<compile_context>
chip_gen: v5e
topology: v5e:2x2
jax: 0.10.0
libtpu: 0.0.40
codegen_flags: <defaults>
</compile_context>

<pallas_src>
import functools

import jax
import jax.numpy as jnp
from jax.experimental import pallas as pl
from jax.experimental.pallas import tpu as pltpu

BM = 512  # row tile for the fused matmul kernels


def _round_up(n, m):
    return ((n + m - 1) // m) * m


# ----------------------------------------------------------------------------
# Pallas kernels
# ----------------------------------------------------------------------------
def _apply_act(y, act):
    if act == "silu":
        return y * pl.reciprocal(1.0 + jnp.exp(-y), approx=True)
    if act == "hswish":
        return y * jnp.clip(y + 3.0, 0.0, 6.0) * (1.0 / 6.0)
    if act == "sigmoid":
        return pl.reciprocal(1.0 + jnp.exp(-y), approx=True)
    return y  # "none"


def _mm_bn_act_kernel(x_ref, w_ref, scale_ref, shift_ref, o_ref, *, act):
    y = jnp.dot(x_ref[...], w_ref[...], preferred_element_type=jnp.float32)
    y = y * scale_ref[...] + shift_ref[...]
    o_ref[...] = _apply_act(y, act)


def _mm_bn_act_res_kernel(x_ref, w_ref, scale_ref, shift_ref, res_ref, o_ref, *, act):
    y = jnp.dot(x_ref[...], w_ref[...], preferred_element_type=jnp.float32)
    y = y * scale_ref[...] + shift_ref[...]
    o_ref[...] = _apply_act(y, act) + res_ref[...]


def _coord_pool_kernel(x_ref, xh_ref, xw_ref):
    x = x_ref[...]                                    # (1, H, W, C)
    xh_ref[...] = jnp.mean(x, axis=2, keepdims=True)  # (1, H, 1, C)  pool over W
    xw_ref[...] = jnp.mean(x, axis=1, keepdims=True)  # (1, 1, W, C)  pool over H


def _ca_conv2_kernel(x_ref, ah_ref, aw_ref, w_ref, scale_ref, shift_ref, o_ref, *, act):
    # Fused CoordAtt output: (identity * a_w * a_h) @ W_conv2 -> BN -> act, per image.
    xw = x_ref[...] * aw_ref[...] * ah_ref[...]       # (1, H, W, Cm) f32
    _, H, W, Cm = xw.shape
    xm = xw.reshape(H * W, Cm).astype(jnp.bfloat16)   # H, W multiples of 8 -> free relayout
    y = jnp.dot(xm, w_ref[...], preferred_element_type=jnp.float32)
    y = y * scale_ref[...] + shift_ref[...]
    o_ref[...] = _apply_act(y, act).reshape(1, H, W, -1)


# ----------------------------------------------------------------------------
# Kernel wrappers
# ----------------------------------------------------------------------------
def matmul_bn_act(x2d, w, scale, shift, act="none", residual=None):
    """(M,K)@(K,N) fused with per-output-channel scale/shift + activation (+res).

    MXU operands are bf16, accumulation / epilogue are f32.  No pad/slice copies:
    Pallas clips the ragged last row block.
    """
    M, K = x2d.shape
    N = w.shape[1]
    bm = min(BM, _round_up(M, 16))
    grid = (pl.cdiv(M, bm),)

    xb = x2d.astype(jnp.bfloat16)
    wb = w.astype(jnp.bfloat16)
    scale2 = scale.reshape(1, N).astype(jnp.float32)
    shift2 = shift.reshape(1, N).astype(jnp.float32)

    in_specs = [
        pl.BlockSpec((bm, K), lambda i: (i, 0)),
        pl.BlockSpec((K, N), lambda i: (0, 0)),
        pl.BlockSpec((1, N), lambda i: (0, 0)),
        pl.BlockSpec((1, N), lambda i: (0, 0)),
    ]
    args = [xb, wb, scale2, shift2]
    if residual is not None:
        in_specs.append(pl.BlockSpec((bm, N), lambda i: (i, 0)))
        args.append(residual.astype(jnp.float32))
        kernel = functools.partial(_mm_bn_act_res_kernel, act=act)
    else:
        kernel = functools.partial(_mm_bn_act_kernel, act=act)

    return pl.pallas_call(
        kernel,
        out_shape=jax.ShapeDtypeStruct((M, N), jnp.float32),
        grid=grid,
        in_specs=in_specs,
        out_specs=pl.BlockSpec((bm, N), lambda i: (i, 0)),
        compiler_params=pltpu.CompilerParams(dimension_semantics=("parallel",)),
    )(*args)


def coord_pool(x_nhwc):
    """CoordAtt H/W average pooling, tiled over the batch dimension."""
    B, H, W, C = x_nhwc.shape
    xh, xw = pl.pallas_call(
        _coord_pool_kernel,
        out_shape=(
            jax.ShapeDtypeStruct((B, H, 1, C), jnp.float32),
            jax.ShapeDtypeStruct((B, 1, W, C), jnp.float32),
        ),
        grid=(B,),
        in_specs=[pl.BlockSpec((1, H, W, C), lambda b: (b, 0, 0, 0))],
        out_specs=(
            pl.BlockSpec((1, H, 1, C), lambda b: (b, 0, 0, 0)),
            pl.BlockSpec((1, 1, W, C), lambda b: (b, 0, 0, 0)),
        ),
        compiler_params=pltpu.CompilerParams(dimension_semantics=("parallel",)),
    )(x_nhwc)
    return xh, xw


def ca_conv2(x_nhwc, ah, aw, w, scale, shift, act="silu"):
    """out = act(BN((x * a_w * a_h) @ W)), one grid step per image (grid over B)."""
    B, H, W, Cm = x_nhwc.shape
    N = w.shape[1]
    return pl.pallas_call(
        functools.partial(_ca_conv2_kernel, act=act),
        out_shape=jax.ShapeDtypeStruct((B, H, W, N), jnp.float32),
        grid=(B,),
        in_specs=[
            pl.BlockSpec((1, H, W, Cm), lambda b: (b, 0, 0, 0)),
            pl.BlockSpec((1, H, 1, Cm), lambda b: (b, 0, 0, 0)),
            pl.BlockSpec((1, 1, W, Cm), lambda b: (b, 0, 0, 0)),
            pl.BlockSpec((Cm, N), lambda b: (0, 0)),
            pl.BlockSpec((1, N), lambda b: (0, 0)),
            pl.BlockSpec((1, N), lambda b: (0, 0)),
        ],
        out_specs=pl.BlockSpec((1, H, W, N), lambda b: (b, 0, 0, 0)),
        compiler_params=pltpu.CompilerParams(dimension_semantics=("parallel",)),
    )(
        x_nhwc,
        ah,
        aw,
        w.astype(jnp.bfloat16),
        scale.reshape(1, N).astype(jnp.float32),
        shift.reshape(1, N).astype(jnp.float32),
    )


# ----------------------------------------------------------------------------
# JAX glue
# ----------------------------------------------------------------------------
def fold_bn(bn, conv_bias=None, eps=1e-5):
    scale = bn["gamma"] / jnp.sqrt(bn["var"] + eps)
    b = jnp.zeros_like(bn["mean"]) if conv_bias is None else conv_bias
    shift = bn["beta"] + (b - bn["mean"]) * scale
    return scale, shift


def _im2col_3x3(x_nhwc):
    # pad=1, stride=1, k-major layout: last dim is (kernel tap k=3*r+s, channel).
    # Channel-contiguous concatenation -> no lane-crossing transpose.
    B, H, W, C = x_nhwc.shape
    xp = jnp.pad(x_nhwc, ((0, 0), (1, 1), (1, 1), (0, 0)))
    cols = [xp[:, r:r + H, s:s + W, :] for r in range(3) for s in range(3)]
    return jnp.concatenate(cols, axis=-1)              # (B, H, W, 9*C)


def deform_conv2d(x_nhwc, p_w, p_b, conv_w, bn_scale, bn_shift, act="silu", residual=None):
    """DeformConv2d(ks=3, pad=1, stride=1, modulation=False) + folded BN + act (+res)."""
    B, H, W, C = x_nhwc.shape
    O = conv_w.shape[0]
    N = 9

    # offset conv (3x3, pad 1) via k-major im2col + Pallas fused matmul (bias only)
    patches = _im2col_3x3(x_nhwc).reshape(B * H * W, N * C)
    w_off = jnp.transpose(p_w, (0, 2, 3, 1)).reshape(2 * N, N * C).T
    offset = matmul_bn_act(patches, w_off, jnp.ones((2 * N,), jnp.float32), p_b, act="none")
    offset = offset.reshape(B, H, W, 2 * N)
    off_x, off_y = offset[..., :N], offset[..., N:]

    # sampling positions in zero-padded image coordinates (torch semantics)
    Hp, Wp = H + 2, W + 2
    p0x = (jnp.arange(H, dtype=jnp.float32) + 1.0).reshape(1, H, 1, 1)
    p0y = (jnp.arange(W, dtype=jnp.float32) + 1.0).reshape(1, 1, W, 1)
    pnx = jnp.array([-1, -1, -1, 0, 0, 0, 1, 1, 1], jnp.float32).reshape(1, 1, 1, N)
    pny = jnp.array([-1, 0, 1, -1, 0, 1, -1, 0, 1], jnp.float32).reshape(1, 1, 1, N)
    px = p0x + pnx + off_x
    py = p0y + pny + off_y

    fx = jnp.floor(px)
    fy = jnp.floor(py)
    q_lt_x = jnp.clip(fx, 0, Hp - 1)
    q_lt_y = jnp.clip(fy, 0, Wp - 1)
    q_rb_x = jnp.clip(fx + 1, 0, Hp - 1)
    q_rb_y = jnp.clip(fy + 1, 0, Wp - 1)
    pxc = jnp.clip(px, 0, Hp - 1)
    pyc = jnp.clip(py, 0, Wp - 1)

    g_lt = (1 + (q_lt_x - pxc)) * (1 + (q_lt_y - pyc))
    g_rb = (1 - (q_rb_x - pxc)) * (1 - (q_rb_y - pyc))
    g_lb = (1 + (q_lt_x - pxc)) * (1 - (q_rb_y - pyc))
    g_rt = (1 - (q_rb_x - pxc)) * (1 + (q_lt_y - pyc))

    # TODO(synk): data-dependent bilinear gather stays in plain JAX (single fused XLA
    # gather + blend); a Pallas per-row DMA gather is not worthwhile at these sizes.
    xp = jnp.pad(x_nhwc, ((0, 0), (1, 1), (1, 1), (0, 0)))
    xflat = xp.reshape(B, Hp * Wp, C)
    qx = jnp.stack([q_lt_x, q_rb_x, q_lt_x, q_rb_x], axis=-1)   # corners: lt, rb, lb, rt
    qy = jnp.stack([q_lt_y, q_rb_y, q_rb_y, q_lt_y], axis=-1)   # (B, H, W, 9, 4)
    g = jnp.stack([g_lt, g_rb, g_lb, g_rt], axis=-1)            # (B, H, W, 9, 4)
    idx = (qx * Wp + qy).astype(jnp.int32).reshape(B, H * W * N * 4)
    gathered = jax.vmap(lambda xf, ix: jnp.take(xf, ix, axis=0))(xflat, idx)
    gathered = gathered.reshape(B, H, W, N, 4, C)
    x_off = jnp.sum(g[..., None] * gathered, axis=4)            # (B, H, W, 9, C)

    # deformable "3x3, stride 3" conv == matmul over the k-major (9*C) patch axis.
    # No transpose of the big activation: transpose the tiny weight instead.
    x2 = x_off.reshape(B * H * W, N * C)
    wm = jnp.transpose(conv_w, (0, 2, 3, 1)).reshape(O, N * C).T
    res2 = None if residual is None else residual.reshape(B * H * W, O)
    out = matmul_bn_act(x2, wm, bn_scale, bn_shift, act=act, residual=res2)
    return out.reshape(B, H, W, O)


def coord_att_conv2(x_nhwc, P):
    """CoordAtt followed by conv2(1x1)+bn3+silu; the broadcast multiply is fused
    into the conv2 matmul epilogue."""
    B, H, W, Cm = x_nhwc.shape
    mip = P["ca_conv1_w"].shape[0]

    xh, xw = coord_pool(x_nhwc)                       # (B,H,1,Cm), (B,1,W,Cm)
    y = jnp.concatenate([xh.reshape(B, H, Cm), xw.reshape(B, W, Cm)], axis=1)
    y = y.reshape(B * (H + W), Cm)

    s, t = fold_bn(P["ca_bn1"], P["ca_conv1_b"])
    y = matmul_bn_act(y, P["ca_conv1_w"].reshape(mip, Cm).T, s, t, act="hswish")

    # conv_h / conv_w merged into one (lane-denser, N = 2*Cm) matmul over all H+W rows
    w_hw = jnp.concatenate([P["ca_convh_w"].reshape(Cm, mip),
                            P["ca_convw_w"].reshape(Cm, mip)], axis=0).T   # (mip, 2*Cm)
    b_hw = jnp.concatenate([P["ca_convh_b"], P["ca_convw_b"]])
    ones = jnp.ones((2 * Cm,), jnp.float32)
    a = matmul_bn_act(y, w_hw, ones, b_hw, act="sigmoid").reshape(B, H + W, 2 * Cm)
    ah = a[:, :H, :Cm].reshape(B, H, 1, Cm)           # conv_h on the H rows
    aw = a[:, H:, Cm:].reshape(B, 1, W, Cm)           # conv_w on the W rows

    # identity * a_w * a_h fused into conv2 (1x1) + bn3 + silu
    s3, t3 = fold_bn(P["bn3"], P["conv2_b"])
    inc = P["conv2_w"].shape[0]
    return ca_conv2(x_nhwc, ah, aw, P["conv2_w"].reshape(inc, Cm).T, s3, t3, act="silu")


def cab_forward(x_nchw, P):
    x = jnp.transpose(x_nchw, (0, 2, 3, 1)).astype(jnp.float32)  # NHWC
    B, H, W, C = x.shape
    mid = P["conv1_w"].shape[0]
    rx = x

    # dc1 -> bn1 -> silu
    s1, t1 = fold_bn(P["bn1"])
    x = deform_conv2d(x, P["dc1_p_w"], P["dc1_p_b"], P["dc1_w"], s1, t1, act="silu")

    # conv1 (1x1) -> bn2 -> silu
    s2, t2 = fold_bn(P["bn2"], P["conv1_b"])
    x = matmul_bn_act(x.reshape(B * H * W, C), P["conv1_w"].reshape(mid, C).T,
                      s2, t2, act="silu").reshape(B, H, W, mid)

    # CoordAtt + conv2 (1x1) -> bn3 -> silu (broadcast multiply fused into conv2)
    x = coord_att_conv2(x, P)

    # dc2 -> bn4 -> silu -> + residual (fused into the matmul kernel)
    s4, t4 = fold_bn(P["bn4"])
    x = deform_conv2d(x, P["dc2_p_w"], P["dc2_p_b"], P["dc2_w"], s4, t4,
                      act="silu", residual=rx)

    return jnp.transpose(x, (0, 3, 1, 2))  # back to NCHW


# ----------------------------------------------------------------------------
# Deterministic parameter init (shapes per CAB.__init__; inference-mode BN stats)
# ----------------------------------------------------------------------------
def init_params(key, inc=16, outc=16, reduction=32):
    mid = inc // 2
    mip = max(8, mid // reduction)
    keys = jax.random.split(key, 64)
    it = iter(keys)

    def nrm(shape, s=0.1):
        return s * jax.random.normal(next(it), shape, jnp.float32)

    def bn(c):
        return dict(gamma=1.0 + nrm((c,)), beta=nrm((c,)), mean=nrm((c,)),
                    var=0.5 + jax.random.uniform(next(it), (c,), jnp.float32))

    return dict(
        # DeformConv2d #1 (inc -> inc): p_conv weight zero-init like the module
        dc1_p_w=jnp.zeros((18, inc, 3, 3), jnp.float32),
        dc1_p_b=nrm((18,)),
        dc1_w=nrm((inc, inc, 3, 3)),
        bn1=bn(inc),
        conv1_w=nrm((mid, inc, 1, 1)), conv1_b=nrm((mid,)),
        bn2=bn(mid),
        # CoordAtt(mid -> mid), mip = max(8, mid // 32)
        ca_conv1_w=nrm((mip, mid, 1, 1)), ca_conv1_b=nrm((mip,)),
        ca_bn1=bn(mip),
        ca_convh_w=nrm((mid, mip, 1, 1)), ca_convh_b=nrm((mid,)),
        ca_convw_w=nrm((mid, mip, 1, 1)), ca_convw_b=nrm((mid,)),
        conv2_w=nrm((inc, mid, 1, 1)), conv2_b=nrm((inc,)),
        bn3=bn(inc),
        # DeformConv2d #2 (inc -> outc)
        dc2_p_w=jnp.zeros((18, inc, 3, 3), jnp.float32),
        dc2_p_b=nrm((18,)),
        dc2_w=nrm((outc, inc, 3, 3)),
        bn4=bn(outc),
    )


if __name__ == "__main__":
    key = jax.random.PRNGKey(0)
    kx, kp = jax.random.split(key)

    inc = outc = 16
    B, H, W = 2, 16, 16
    x = jax.random.normal(kx, (B, inc, H, W), jnp.float32)
    P = init_params(kp, inc, outc)

    out = jax.jit(lambda inp: cab_forward(inp, P))(x)
    out = jax.block_until_ready(out)
    assert out.shape == (B, outc, H, W), out.shape
    assert bool(jnp.all(jnp.isfinite(out)))
    print("KERNEL_OK")
</pallas_src>

<mosaic_0001>
module attributes {stable_mosaic.version = 11 : i64} {
  func.func @_mm_bn_act_kernel(%arg0: i32, %arg1: memref<512x144xbf16, #tpu.memory_space<vmem>>, %arg2: memref<144x18xbf16, #tpu.memory_space<vmem>>, %arg3: memref<1x18xf32, #tpu.memory_space<vmem>>, %arg4: memref<1x18xf32, #tpu.memory_space<vmem>>, %arg5: memref<512x18xf32, #tpu.memory_space<vmem>>) attributes {dimension_semantics = [#tpu.dimension_semantics<parallel>], iteration_bounds = array<i64: 1>, scalar_prefetch = 0 : i64, scratch_operands = 0 : i64, tpu.core_type = #tpu.core_type<tc>, window_params = [{transform_indices = @transform_0, window_bounds = array<i64: 512, 144>}, {pipeline_mode = #tpu.pipeline_mode<synchronous>, transform_indices = @transform_1, window_bounds = array<i64: 144, 18>}, {pipeline_mode = #tpu.pipeline_mode<synchronous>, transform_indices = @transform_2, window_bounds = array<i64: 1, 18>}, {pipeline_mode = #tpu.pipeline_mode<synchronous>, transform_indices = @transform_3, window_bounds = array<i64: 1, 18>}, {transform_indices = @transform_4, window_bounds = array<i64: 512, 18>}]} {
    %c0 = arith.constant 0 : index
    %c0_0 = arith.constant 0 : index
    %0 = vector.load %arg1[%c0, %c0_0] : memref<512x144xbf16, #tpu.memory_space<vmem>>, vector<512x144xbf16>
    %c0_1 = arith.constant 0 : index
    %c0_2 = arith.constant 0 : index
    %1 = vector.load %arg2[%c0_1, %c0_2] : memref<144x18xbf16, #tpu.memory_space<vmem>>, vector<144x18xbf16>
    %cst = arith.constant dense<0.000000e+00> : vector<512x18xf32>
    %2 = tpu.matmul %0, %1, %cst {dimension_numbers = #tpu.dot_dimension_numbers<[1], [0], [0], [1], [0, 0, 1, 1], [], []>} : vector<512x144xbf16>, vector<144x18xbf16>, vector<512x18xf32> -> vector<512x18xf32>
    %c0_3 = arith.constant 0 : index
    %c0_4 = arith.constant 0 : index
    %3 = vector.load %arg3[%c0_3, %c0_4] : memref<1x18xf32, #tpu.memory_space<vmem>>, vector<1x18xf32>
    %4 = vector.broadcast %3 : vector<1x18xf32> to vector<512x18xf32>
    %5 = arith.mulf %2, %4 : vector<512x18xf32>
    %c0_5 = arith.constant 0 : index
    %c0_6 = arith.constant 0 : index
    %6 = vector.load %arg4[%c0_5, %c0_6] : memref<1x18xf32, #tpu.memory_space<vmem>>, vector<1x18xf32>
    %7 = vector.broadcast %6 : vector<1x18xf32> to vector<512x18xf32>
    %8 = arith.addf %5, %7 : vector<512x18xf32>
    %c0_7 = arith.constant 0 : index
    %c0_8 = arith.constant 0 : index
    %9 = vector.load %arg5[%c0_7, %c0_8] : memref<512x18xf32, #tpu.memory_space<vmem>>, vector<512x18xf32>
    tpu.vector_store %arg5[%c0_7, %c0_8], %8 {strides = array<i32>} : memref<512x18xf32, #tpu.memory_space<vmem>>, vector<512x18xf32>,
    return
  }
  func.func @transform_0(%arg0: i32) -> (i32, i32) {
    %c0_i32 = arith.constant 0 : i32
    %c0_i32_0 = arith.constant 0 : i32
    return %arg0, %c0_i32 : i32, i32
  }
  func.func @transform_1(%arg0: i32) -> (i32, i32) {
    %c0_i32 = arith.constant 0 : i32
    %c0_i32_0 = arith.constant 0 : i32
    %c0_i32_1 = arith.constant 0 : i32
    return %c0_i32, %c0_i32_0 : i32, i32
  }
  func.func @transform_2(%arg0: i32) -> (i32, i32) {
    %c0_i32 = arith.constant 0 : i32
    %c0_i32_0 = arith.constant 0 : i32
    %c0_i32_1 = arith.constant 0 : i32
    return %c0_i32, %c0_i32_0 : i32, i32
  }
  func.func @transform_3(%arg0: i32) -> (i32, i32) {
    %c0_i32 = arith.constant 0 : i32
    %c0_i32_0 = arith.constant 0 : i32
    %c0_i32_1 = arith.constant 0 : i32
    return %c0_i32, %c0_i32_0 : i32, i32
  }
  func.func @transform_4(%arg0: i32) -> (i32, i32) {
    %c0_i32 = arith.constant 0 : i32
    %c0_i32_0 = arith.constant 0 : i32
    return %arg0, %c0_i32 : i32, i32
  }
}

module attributes {stable_mosaic.version = 11 : i64} {
  func.func @_mm_bn_act_kernel(%arg0: i32, %arg1: memref<512x144xbf16, #tpu.memory_space<vmem>>, %arg2: memref<144x16xbf16, #tpu.memory_space<vmem>>, %arg3: memref<1x16xf32, #tpu.memory_space<vmem>>, %arg4: memref<1x16xf32, #tpu.memory_space<vmem>>, %arg5: memref<512x16xf32, #tpu.memory_space<vmem>>) attributes {dimension_semantics = [#tpu.dimension_semantics<parallel>], iteration_bounds = array<i64: 1>, scalar_prefetch = 0 : i64, scratch_operands = 0 : i64, tpu.core_type = #tpu.core_type<tc>, window_params = [{transform_indices = @transform_0, window_bounds = array<i64: 512, 144>}, {pipeline_mode = #tpu.pipeline_mode<synchronous>, transform_indices = @transform_1, window_bounds = array<i64: 144, 16>}, {pipeline_mode = #tpu.pipeline_mode<synchronous>, transform_indices = @transform_2, window_bounds = array<i64: 1, 16>}, {pipeline_mode = #tpu.pipeline_mode<synchronous>, transform_indices = @transform_3, window_bounds = array<i64: 1, 16>}, {transform_indices = @transform_4, window_bounds = array<i64: 512, 16>}]} {
    %c0 = arith.constant 0 : index
    %c0_0 = arith.constant 0 : index
    %0 = vector.load %arg1[%c0, %c0_0] : memref<512x144xbf16, #tpu.memory_space<vmem>>, vector<512x144xbf16>
    %c0_1 = arith.constant 0 : index
    %c0_2 = arith.constant 0 : index
    %1 = vector.load %arg2[%c0_1, %c0_2] : memref<144x16xbf16, #tpu.memory_space<vmem>>, vector<144x16xbf16>
    %cst = arith.constant dense<0.000000e+00> : vector<512x16xf32>
    %2 = tpu.matmul %0, %1, %cst {dimension_numbers = #tpu.dot_dimension_numbers<[1], [0], [0], [1], [0, 0, 1, 1], [], []>} : vector<512x144xbf16>, vector<144x16xbf16>, vector<512x16xf32> -> vector<512x16xf32>
    %c0_3 = arith.constant 0 : index
    %c0_4 = arith.constant 0 : index
    %3 = vector.load %arg3[%c0_3, %c0_4] : memref<1x16xf32, #tpu.memory_space<vmem>>, vector<1x16xf32>
    %4 = vector.broadcast %3 : vector<1x16xf32> to vector<512x16xf32>
    %5 = arith.mulf %2, %4 : vector<512x16xf32>
    %c0_5 = arith.constant 0 : index
    %c0_6 = arith.constant 0 : index
    %6 = vector.load %arg4[%c0_5, %c0_6] : memref<1x16xf32, #tpu.memory_space<vmem>>, vector<1x16xf32>
    %7 = vector.broadcast %6 : vector<1x16xf32> to vector<512x16xf32>
    %8 = arith.addf %5, %7 : vector<512x16xf32>
    %cst_7 = arith.constant 0.000000e+00 : f32
    %9 = vector.broadcast %cst_7 : f32 to vector<512x16xf32>
    %10 = arith.subf %9, %8 : vector<512x16xf32>
    %11 = math.exp %10 : vector<512x16xf32>
    %cst_8 = arith.constant 1.000000e+00 : f32
    %12 = vector.broadcast %cst_8 : f32 to vector<512x16xf32>
    %13 = arith.addf %12, %11 : vector<512x16xf32>
    %14 = tpu.reciprocal %13 {approx = true} : vector<512x16xf32> -> vector<512x16xf32>
    %15 = arith.mulf %8, %14 : vector<512x16xf32>
    %c0_9 = arith.constant 0 : index
    %c0_10 = arith.constant 0 : index
    %16 = vector.load %arg5[%c0_9, %c0_10] : memref<512x16xf32, #tpu.memory_space<vmem>>, vector<512x16xf32>
    tpu.vector_store %arg5[%c0_9, %c0_10], %15 {strides = array<i32>} : memref<512x16xf32, #tpu.memory_space<vmem>>, vector<512x16xf32>,
    return
  }
  func.func @transform_0(%arg0: i32) -> (i32, i32) {
    %c0_i32 = arith.constant 0 : i32
    %c0_i32_0 = arith.constant 0 : i32
    return %arg0, %c0_i32 : i32, i32
  }
  func.func @transform_1(%arg0: i32) -> (i32, i32) {
    %c0_i32 = arith.constant 0 : i32
    %c0_i32_0 = arith.constant 0 : i32
    %c0_i32_1 = arith.constant 0 : i32
    return %c0_i32, %c0_i32_0 : i32, i32
  }
  func.func @transform_2(%arg0: i32) -> (i32, i32) {
    %c0_i32 = arith.constant 0 : i32
    %c0_i32_0 = arith.constant 0 : i32
    %c0_i32_1 = arith.constant 0 : i32
    return %c0_i32, %c0_i32_0 : i32, i32
  }
  func.func @transform_3(%arg0: i32) -> (i32, i32) {
    %c0_i32 = arith.constant 0 : i32
    %c0_i32_0 = arith.constant 0 : i32
    %c0_i32_1 = arith.constant 0 : i32
    return %c0_i32, %c0_i32_0 : i32, i32
  }
  func.func @transform_4(%arg0: i32) -> (i32, i32) {
    %c0_i32 = arith.constant 0 : i32
    %c0_i32_0 = arith.constant 0 : i32
    return %arg0, %c0_i32 : i32, i32
  }
}

module attributes {stable_mosaic.version = 11 : i64} {
  func.func @_mm_bn_act_kernel(%arg0: i32, %arg1: memref<512x16xbf16, #tpu.memory_space<vmem>>, %arg2: memref<16x8xbf16, #tpu.memory_space<vmem>>, %arg3: memref<1x8xf32, #tpu.memory_space<vmem>>, %arg4: memref<1x8xf32, #tpu.memory_space<vmem>>, %arg5: memref<512x8xf32, #tpu.memory_space<vmem>>) attributes {dimension_semantics = [#tpu.dimension_semantics<parallel>], iteration_bounds = array<i64: 1>, scalar_prefetch = 0 : i64, scratch_operands = 0 : i64, tpu.core_type = #tpu.core_type<tc>, window_params = [{transform_indices = @transform_0, window_bounds = array<i64: 512, 16>}, {pipeline_mode = #tpu.pipeline_mode<synchronous>, transform_indices = @transform_1, window_bounds = array<i64: 16, 8>}, {pipeline_mode = #tpu.pipeline_mode<synchronous>, transform_indices = @transform_2, window_bounds = array<i64: 1, 8>}, {pipeline_mode = #tpu.pipeline_mode<synchronous>, transform_indices = @transform_3, window_bounds = array<i64: 1, 8>}, {transform_indices = @transform_4, window_bounds = array<i64: 512, 8>}]} {
    %c0 = arith.constant 0 : index
    %c0_0 = arith.constant 0 : index
    %0 = vector.load %arg1[%c0, %c0_0] : memref<512x16xbf16, #tpu.memory_space<vmem>>, vector<512x16xbf16>
    %c0_1 = arith.constant 0 : index
    %c0_2 = arith.constant 0 : index
    %1 = vector.load %arg2[%c0_1, %c0_2] : memref<16x8xbf16, #tpu.memory_space<vmem>>, vector<16x8xbf16>
    %cst = arith.constant dense<0.000000e+00> : vector<512x8xf32>
    %2 = tpu.matmul %0, %1, %cst {dimension_numbers = #tpu.dot_dimension_numbers<[1], [0], [0], [1], [0, 0, 1, 1], [], []>} : vector<512x16xbf16>, vector<16x8xbf16>, vector<512x8xf32> -> vector<512x8xf32>
    %c0_3 = arith.constant 0 : index
    %c0_4 = arith.constant 0 : index
    %3 = vector.load %arg3[%c0_3, %c0_4] : memref<1x8xf32, #tpu.memory_space<vmem>>, vector<1x8xf32>
    %4 = vector.broadcast %3 : vector<1x8xf32> to vector<512x8xf32>
    %5 = arith.mulf %2, %4 : vector<512x8xf32>
    %c0_5 = arith.constant 0 : index
    %c0_6 = arith.constant 0 : index
    %6 = vector.load %arg4[%c0_5, %c0_6] : memref<1x8xf32, #tpu.memory_space<vmem>>, vector<1x8xf32>
    %7 = vector.broadcast %6 : vector<1x8xf32> to vector<512x8xf32>
    %8 = arith.addf %5, %7 : vector<512x8xf32>
    %cst_7 = arith.constant 0.000000e+00 : f32
    %9 = vector.broadcast %cst_7 : f32 to vector<512x8xf32>
    %10 = arith.subf %9, %8 : vector<512x8xf32>
    %11 = math.exp %10 : vector<512x8xf32>
    %cst_8 = arith.constant 1.000000e+00 : f32
    %12 = vector.broadcast %cst_8 : f32 to vector<512x8xf32>
    %13 = arith.addf %12, %11 : vector<512x8xf32>
    %14 = tpu.reciprocal %13 {approx = true} : vector<512x8xf32> -> vector<512x8xf32>
    %15 = arith.mulf %8, %14 : vector<512x8xf32>
    %c0_9 = arith.constant 0 : index
    %c0_10 = arith.constant 0 : index
    %16 = vector.load %arg5[%c0_9, %c0_10] : memref<512x8xf32, #tpu.memory_space<vmem>>, vector<512x8xf32>
    tpu.vector_store %arg5[%c0_9, %c0_10], %15 {strides = array<i32>} : memref<512x8xf32, #tpu.memory_space<vmem>>, vector<512x8xf32>,
    return
  }
  func.func @transform_0(%arg0: i32) -> (i32, i32) {
    %c0_i32 = arith.constant 0 : i32
    %c0_i32_0 = arith.constant 0 : i32
    return %arg0, %c0_i32 : i32, i32
  }
  func.func @transform_1(%arg0: i32) -> (i32, i32) {
    %c0_i32 = arith.constant 0 : i32
    %c0_i32_0 = arith.constant 0 : i32
    %c0_i32_1 = arith.constant 0 : i32
    return %c0_i32, %c0_i32_0 : i32, i32
  }
  func.func @transform_2(%arg0: i32) -> (i32, i32) {
    %c0_i32 = arith.constant 0 : i32
    %c0_i32_0 = arith.constant 0 : i32
    %c0_i32_1 = arith.constant 0 : i32
    return %c0_i32, %c0_i32_0 : i32, i32
  }
  func.func @transform_3(%arg0: i32) -> (i32, i32) {
    %c0_i32 = arith.constant 0 : i32
    %c0_i32_0 = arith.constant 0 : i32
    %c0_i32_1 = arith.constant 0 : i32
    return %c0_i32, %c0_i32_0 : i32, i32
  }
  func.func @transform_4(%arg0: i32) -> (i32, i32) {
    %c0_i32 = arith.constant 0 : i32
    %c0_i32_0 = arith.constant 0 : i32
    return %arg0, %c0_i32 : i32, i32
  }
}

module attributes {stable_mosaic.version = 11 : i64} {
  func.func @_coord_pool_kernel(%arg0: i32, %arg1: memref<1x16x16x8xf32, #tpu.memory_space<vmem>>, %arg2: memref<1x16x1x8xf32, #tpu.memory_space<vmem>>, %arg3: memref<1x1x16x8xf32, #tpu.memory_space<vmem>>) attributes {dimension_semantics = [#tpu.dimension_semantics<parallel>], iteration_bounds = array<i64: 2>, scalar_prefetch = 0 : i64, scratch_operands = 0 : i64, tpu.core_type = #tpu.core_type<tc>, window_params = [{transform_indices = @transform_0, window_bounds = array<i64: 1, 16, 16, 8>}, {transform_indices = @transform_1, window_bounds = array<i64: 1, 16, 1, 8>}, {transform_indices = @transform_2, window_bounds = array<i64: 1, 1, 16, 8>}]} {
    %c0 = arith.constant 0 : index
    %c0_0 = arith.constant 0 : index
    %c0_1 = arith.constant 0 : index
    %c0_2 = arith.constant 0 : index
    %0 = vector.load %arg1[%c0, %c0_0, %c0_1, %c0_2] : memref<1x16x16x8xf32, #tpu.memory_space<vmem>>, vector<1x16x16x8xf32>
    %cst = arith.constant dense<0.000000e+00> : vector<1x16x8xf32>
    %1 = vector.multi_reduction <add>, %0, %cst [2] : vector<1x16x16x8xf32> to vector<1x16x8xf32>
    %2 = vector.shape_cast %1 : vector<1x16x8xf32> to vector<1x16x1x8xf32>
    %cst_3 = arith.constant 1.600000e+01 : f32
    %3 = vector.broadcast %cst_3 : f32 to vector<1x16x1x8xf32>
    %4 = arith.divf %2, %3 : vector<1x16x1x8xf32>
    %c0_4 = arith.constant 0 : index
    %c0_5 = arith.constant 0 : index
    %c0_6 = arith.constant 0 : index
    %c0_7 = arith.constant 0 : index
    %5 = vector.load %arg2[%c0_4, %c0_5, %c0_6, %c0_7] : memref<1x16x1x8xf32, #tpu.memory_space<vmem>>, vector<1x16x1x8xf32>
    tpu.vector_store %arg2[%c0_4, %c0_5, %c0_6, %c0_7], %4 {strides = array<i32>} : memref<1x16x1x8xf32, #tpu.memory_space<vmem>>, vector<1x16x1x8xf32>,
    %cst_8 = arith.constant dense<0.000000e+00> : vector<1x16x8xf32>
    %6 = vector.multi_reduction <add>, %0, %cst_8 [1] : vector<1x16x16x8xf32> to vector<1x16x8xf32>
    %7 = vector.shape_cast %6 : vector<1x16x8xf32> to vector<1x1x16x8xf32>
    %cst_9 = arith.constant 1.600000e+01 : f32
    %8 = vector.broadcast %cst_9 : f32 to vector<1x1x16x8xf32>
    %9 = arith.divf %7, %8 : vector<1x1x16x8xf32>
    %c0_10 = arith.constant 0 : index
    %c0_11 = arith.constant 0 : index
    %c0_12 = arith.constant 0 : index
    %c0_13 = arith.constant 0 : index
    %10 = vector.load %arg3[%c0_10, %c0_11, %c0_12, %c0_13] : memref<1x1x16x8xf32, #tpu.memory_space<vmem>>, vector<1x1x16x8xf32>
    tpu.vector_store %arg3[%c0_10, %c0_11, %c0_12, %c0_13], %9 {strides = array<i32>} : memref<1x1x16x8xf32, #tpu.memory_space<vmem>>, vector<1x1x16x8xf32>,
    return
  }
  func.func @transform_0(%arg0: i32) -> (i32, i32, i32, i32) {
    %c0_i32 = arith.constant 0 : i32
    %c0_i32_0 = arith.constant 0 : i32
    %c0_i32_1 = arith.constant 0 : i32
    %c0_i32_2 = arith.constant 0 : i32
    return %arg0, %c0_i32, %c0_i32_0, %c0_i32_1 : i32, i32, i32, i32
  }
  func.func @transform_1(%arg0: i32) -> (i32, i32, i32, i32) {
    %c0_i32 = arith.constant 0 : i32
    %c0_i32_0 = arith.constant 0 : i32
    %c0_i32_1 = arith.constant 0 : i32
    %c0_i32_2 = arith.constant 0 : i32
    return %arg0, %c0_i32, %c0_i32_0, %c0_i32_1 : i32, i32, i32, i32
  }
  func.func @transform_2(%arg0: i32) -> (i32, i32, i32, i32) {
    %c0_i32 = arith.constant 0 : i32
    %c0_i32_0 = arith.constant 0 : i32
    %c0_i32_1 = arith.constant 0 : i32
    %c0_i32_2 = arith.constant 0 : i32
    return %arg0, %c0_i32, %c0_i32_0, %c0_i32_1 : i32, i32, i32, i32
  }
}

module attributes {stable_mosaic.version = 11 : i64} {
  func.func @_mm_bn_act_kernel(%arg0: i32, %arg1: memref<64x8xbf16, #tpu.memory_space<vmem>>, %arg2: memref<8x8xbf16, #tpu.memory_space<vmem>>, %arg3: memref<1x8xf32, #tpu.memory_space<vmem>>, %arg4: memref<1x8xf32, #tpu.memory_space<vmem>>, %arg5: memref<64x8xf32, #tpu.memory_space<vmem>>) attributes {dimension_semantics = [#tpu.dimension_semantics<parallel>], iteration_bounds = array<i64: 1>, scalar_prefetch = 0 : i64, scratch_operands = 0 : i64, tpu.core_type = #tpu.core_type<tc>, window_params = [{transform_indices = @transform_0, window_bounds = array<i64: 64, 8>}, {pipeline_mode = #tpu.pipeline_mode<synchronous>, transform_indices = @transform_1, window_bounds = array<i64: 8, 8>}, {pipeline_mode = #tpu.pipeline_mode<synchronous>, transform_indices = @transform_2, window_bounds = array<i64: 1, 8>}, {pipeline_mode = #tpu.pipeline_mode<synchronous>, transform_indices = @transform_3, window_bounds = array<i64: 1, 8>}, {transform_indices = @transform_4, window_bounds = array<i64: 64, 8>}]} {
    %c0 = arith.constant 0 : index
    %c0_0 = arith.constant 0 : index
    %0 = vector.load %arg1[%c0, %c0_0] : memref<64x8xbf16, #tpu.memory_space<vmem>>, vector<64x8xbf16>
    %c0_1 = arith.constant 0 : index
    %c0_2 = arith.constant 0 : index
    %1 = vector.load %arg2[%c0_1, %c0_2] : memref<8x8xbf16, #tpu.memory_space<vmem>>, vector<8x8xbf16>
    %cst = arith.constant dense<0.000000e+00> : vector<64x8xf32>
    %2 = tpu.matmul %0, %1, %cst {dimension_numbers = #tpu.dot_dimension_numbers<[1], [0], [0], [1], [0, 0, 1, 1], [], []>} : vector<64x8xbf16>, vector<8x8xbf16>, vector<64x8xf32> -> vector<64x8xf32>
    %c0_3 = arith.constant 0 : index
    %c0_4 = arith.constant 0 : index
    %3 = vector.load %arg3[%c0_3, %c0_4] : memref<1x8xf32, #tpu.memory_space<vmem>>, vector<1x8xf32>
    %4 = vector.broadcast %3 : vector<1x8xf32> to vector<64x8xf32>
    %5 = arith.mulf %2, %4 : vector<64x8xf32>
    %c0_5 = arith.constant 0 : index
    %c0_6 = arith.constant 0 : index
    %6 = vector.load %arg4[%c0_5, %c0_6] : memref<1x8xf32, #tpu.memory_space<vmem>>, vector<1x8xf32>
    %7 = vector.broadcast %6 : vector<1x8xf32> to vector<64x8xf32>
    %8 = arith.addf %5, %7 : vector<64x8xf32>
    %cst_7 = arith.constant 3.000000e+00 : f32
    %9 = vector.broadcast %cst_7 : f32 to vector<64x8xf32>
    %10 = arith.addf %8, %9 : vector<64x8xf32>
    %cst_8 = arith.constant 0.000000e+00 : f32
    %cst_9 = arith.constant 6.000000e+00 : f32
    %11 = vector.broadcast %cst_8 : f32 to vector<64x8xf32>
    %12 = arith.maximumf %11, %10 : vector<64x8xf32>
    %13 = vector.broadcast %cst_9 : f32 to vector<64x8xf32>
    %14 = arith.minimumf %13, %12 : vector<64x8xf32>
    %15 = arith.mulf %8, %14 : vector<64x8xf32>
    %cst_10 = arith.constant 0.166666672 : f32
    %16 = vector.broadcast %cst_10 : f32 to vector<64x8xf32>
    %17 = arith.mulf %15, %16 : vector<64x8xf32>
    %c0_11 = arith.constant 0 : index
    %c0_12 = arith.constant 0 : index
    %18 = vector.load %arg5[%c0_11, %c0_12] : memref<64x8xf32, #tpu.memory_space<vmem>>, vector<64x8xf32>
    tpu.vector_store %arg5[%c0_11, %c0_12], %17 {strides = array<i32>} : memref<64x8xf32, #tpu.memory_space<vmem>>, vector<64x8xf32>,
    return
  }
  func.func @transform_0(%arg0: i32) -> (i32, i32) {
    %c0_i32 = arith.constant 0 : i32
    %c0_i32_0 = arith.constant 0 : i32
    return %arg0, %c0_i32 : i32, i32
  }
  func.func @transform_1(%arg0: i32) -> (i32, i32) {
    %c0_i32 = arith.constant 0 : i32
    %c0_i32_0 = arith.constant 0 : i32
    %c0_i32_1 = arith.constant 0 : i32
    return %c0_i32, %c0_i32_0 : i32, i32
  }
  func.func @transform_2(%arg0: i32) -> (i32, i32) {
    %c0_i32 = arith.constant 0 : i32
    %c0_i32_0 = arith.constant 0 : i32
    %c0_i32_1 = arith.constant 0 : i32
    return %c0_i32, %c0_i32_0 : i32, i32
  }
  func.func @transform_3(%arg0: i32) -> (i32, i32) {
    %c0_i32 = arith.constant 0 : i32
    %c0_i32_0 = arith.constant 0 : i32
    %c0_i32_1 = arith.constant 0 : i32
    return %c0_i32, %c0_i32_0 : i32, i32
  }
  func.func @transform_4(%arg0: i32) -> (i32, i32) {
    %c0_i32 = arith.constant 0 : i32
    %c0_i32_0 = arith.constant 0 : i32
    return %arg0, %c0_i32 : i32, i32
  }
}

module attributes {stable_mosaic.version = 11 : i64} {
  func.func @_mm_bn_act_kernel(%arg0: i32, %arg1: memref<64x8xbf16, #tpu.memory_space<vmem>>, %arg2: memref<8x16xbf16, #tpu.memory_space<vmem>>, %arg3: memref<1x16xf32, #tpu.memory_space<vmem>>, %arg4: memref<1x16xf32, #tpu.memory_space<vmem>>, %arg5: memref<64x16xf32, #tpu.memory_space<vmem>>) attributes {dimension_semantics = [#tpu.dimension_semantics<parallel>], iteration_bounds = array<i64: 1>, scalar_prefetch = 0 : i64, scratch_operands = 0 : i64, tpu.core_type = #tpu.core_type<tc>, window_params = [{transform_indices = @transform_0, window_bounds = array<i64: 64, 8>}, {pipeline_mode = #tpu.pipeline_mode<synchronous>, transform_indices = @transform_1, window_bounds = array<i64: 8, 16>}, {pipeline_mode = #tpu.pipeline_mode<synchronous>, transform_indices = @transform_2, window_bounds = array<i64: 1, 16>}, {pipeline_mode = #tpu.pipeline_mode<synchronous>, transform_indices = @transform_3, window_bounds = array<i64: 1, 16>}, {transform_indices = @transform_4, window_bounds = array<i64: 64, 16>}]} {
    %c0 = arith.constant 0 : index
    %c0_0 = arith.constant 0 : index
    %0 = vector.load %arg1[%c0, %c0_0] : memref<64x8xbf16, #tpu.memory_space<vmem>>, vector<64x8xbf16>
    %c0_1 = arith.constant 0 : index
    %c0_2 = arith.constant 0 : index
    %1 = vector.load %arg2[%c0_1, %c0_2] : memref<8x16xbf16, #tpu.memory_space<vmem>>, vector<8x16xbf16>
    %cst = arith.constant dense<0.000000e+00> : vector<64x16xf32>
    %2 = tpu.matmul %0, %1, %cst {dimension_numbers = #tpu.dot_dimension_numbers<[1], [0], [0], [1], [0, 0, 1, 1], [], []>} : vector<64x8xbf16>, vector<8x16xbf16>, vector<64x16xf32> -> vector<64x16xf32>
    %c0_3 = arith.constant 0 : index
    %c0_4 = arith.constant 0 : index
    %3 = vector.load %arg3[%c0_3, %c0_4] : memref<1x16xf32, #tpu.memory_space<vmem>>, vector<1x16xf32>
    %4 = vector.broadcast %3 : vector<1x16xf32> to vector<64x16xf32>
    %5 = arith.mulf %2, %4 : vector<64x16xf32>
    %c0_5 = arith.constant 0 : index
    %c0_6 = arith.constant 0 : index
    %6 = vector.load %arg4[%c0_5, %c0_6] : memref<1x16xf32, #tpu.memory_space<vmem>>, vector<1x16xf32>
    %7 = vector.broadcast %6 : vector<1x16xf32> to vector<64x16xf32>
    %8 = arith.addf %5, %7 : vector<64x16xf32>
    %cst_7 = arith.constant 0.000000e+00 : f32
    %9 = vector.broadcast %cst_7 : f32 to vector<64x16xf32>
    %10 = arith.subf %9, %8 : vector<64x16xf32>
    %11 = math.exp %10 : vector<64x16xf32>
    %cst_8 = arith.constant 1.000000e+00 : f32
    %12 = vector.broadcast %cst_8 : f32 to vector<64x16xf32>
    %13 = arith.addf %12, %11 : vector<64x16xf32>
    %14 = tpu.reciprocal %13 {approx = true} : vector<64x16xf32> -> vector<64x16xf32>
    %c0_9 = arith.constant 0 : index
    %c0_10 = arith.constant 0 : index
    %15 = vector.load %arg5[%c0_9, %c0_10] : memref<64x16xf32, #tpu.memory_space<vmem>>, vector<64x16xf32>
    tpu.vector_store %arg5[%c0_9, %c0_10], %14 {strides = array<i32>} : memref<64x16xf32, #tpu.memory_space<vmem>>, vector<64x16xf32>,
    return
  }
  func.func @transform_0(%arg0: i32) -> (i32, i32) {
    %c0_i32 = arith.constant 0 : i32
    %c0_i32_0 = arith.constant 0 : i32
    return %arg0, %c0_i32 : i32, i32
  }
  func.func @transform_1(%arg0: i32) -> (i32, i32) {
    %c0_i32 = arith.constant 0 : i32
    %c0_i32_0 = arith.constant 0 : i32
    %c0_i32_1 = arith.constant 0 : i32
    return %c0_i32, %c0_i32_0 : i32, i32
  }
  func.func @transform_2(%arg0: i32) -> (i32, i32) {
    %c0_i32 = arith.constant 0 : i32
    %c0_i32_0 = arith.constant 0 : i32
    %c0_i32_1 = arith.constant 0 : i32
    return %c0_i32, %c0_i32_0 : i32, i32
  }
  func.func @transform_3(%arg0: i32) -> (i32, i32) {
    %c0_i32 = arith.constant 0 : i32
    %c0_i32_0 = arith.constant 0 : i32
    %c0_i32_1 = arith.constant 0 : i32
    return %c0_i32, %c0_i32_0 : i32, i32
  }
  func.func @transform_4(%arg0: i32) -> (i32, i32) {
    %c0_i32 = arith.constant 0 : i32
    %c0_i32_0 = arith.constant 0 : i32
    return %arg0, %c0_i32 : i32, i32
  }
}

module attributes {stable_mosaic.version = 11 : i64} {
  func.func @_ca_conv2_kernel(%arg0: i32, %arg1: memref<1x16x16x8xf32, #tpu.memory_space<vmem>>, %arg2: memref<1x16x1x8xf32, #tpu.memory_space<vmem>>, %arg3: memref<1x1x16x8xf32, #tpu.memory_space<vmem>>, %arg4: memref<8x16xbf16, #tpu.memory_space<vmem>>, %arg5: memref<1x16xf32, #tpu.memory_space<vmem>>, %arg6: memref<1x16xf32, #tpu.memory_space<vmem>>, %arg7: memref<1x16x16x16xf32, #tpu.memory_space<vmem>>) attributes {dimension_semantics = [#tpu.dimension_semantics<parallel>], iteration_bounds = array<i64: 2>, scalar_prefetch = 0 : i64, scratch_operands = 0 : i64, tpu.core_type = #tpu.core_type<tc>, window_params = [{transform_indices = @transform_0, window_bounds = array<i64: 1, 16, 16, 8>}, {transform_indices = @transform_1, window_bounds = array<i64: 1, 16, 1, 8>}, {transform_indices = @transform_2, window_bounds = array<i64: 1, 1, 16, 8>}, {pipeline_mode = #tpu.pipeline_mode<synchronous>, transform_indices = @transform_3, window_bounds = array<i64: 8, 16>}, {pipeline_mode = #tpu.pipeline_mode<synchronous>, transform_indices = @transform_4, window_bounds = array<i64: 1, 16>}, {pipeline_mode = #tpu.pipeline_mode<synchronous>, transform_indices = @transform_5, window_bounds = array<i64: 1, 16>}, {transform_indices = @transform_6, window_bounds = array<i64: 1, 16, 16, 16>}]} {
    %c0 = arith.constant 0 : index
    %c0_0 = arith.constant 0 : index
    %c0_1 = arith.constant 0 : index
    %c0_2 = arith.constant 0 : index
    %0 = vector.load %arg1[%c0, %c0_0, %c0_1, %c0_2] : memref<1x16x16x8xf32, #tpu.memory_space<vmem>>, vector<1x16x16x8xf32>
    %c0_3 = arith.constant 0 : index
    %c0_4 = arith.constant 0 : index
    %c0_5 = arith.constant 0 : index
    %c0_6 = arith.constant 0 : index
    %1 = vector.load %arg3[%c0_3, %c0_4, %c0_5, %c0_6] : memref<1x1x16x8xf32, #tpu.memory_space<vmem>>, vector<1x1x16x8xf32>
    %2 = vector.broadcast %1 : vector<1x1x16x8xf32> to vector<1x16x16x8xf32>
    %3 = arith.mulf %0, %2 : vector<1x16x16x8xf32>
    %c0_7 = arith.constant 0 : index
    %c0_8 = arith.constant 0 : index
    %c0_9 = arith.constant 0 : index
    %c0_10 = arith.constant 0 : index
    %4 = vector.load %arg2[%c0_7, %c0_8, %c0_9, %c0_10] : memref<1x16x1x8xf32, #tpu.memory_space<vmem>>, vector<1x16x1x8xf32>
    %5 = vector.broadcast %4 : vector<1x16x1x8xf32> to vector<1x16x16x8xf32>
    %6 = arith.mulf %3, %5 : vector<1x16x16x8xf32>
    %7 = vector.shape_cast %6 : vector<1x16x16x8xf32> to vector<256x8xf32>
    %8 = arith.truncf %7 : vector<256x8xf32> to vector<256x8xbf16>
    %c0_11 = arith.constant 0 : index
    %c0_12 = arith.constant 0 : index
    %9 = vector.load %arg4[%c0_11, %c0_12] : memref<8x16xbf16, #tpu.memory_space<vmem>>, vector<8x16xbf16>
    %cst = arith.constant dense<0.000000e+00> : vector<256x16xf32>
    %10 = tpu.matmul %8, %9, %cst {dimension_numbers = #tpu.dot_dimension_numbers<[1], [0], [0], [1], [0, 0, 1, 1], [], []>} : vector<256x8xbf16>, vector<8x16xbf16>, vector<256x16xf32> -> vector<256x16xf32>
    %c0_13 = arith.constant 0 : index
    %c0_14 = arith.constant 0 : index
    %11 = vector.load %arg5[%c0_13, %c0_14] : memref<1x16xf32, #tpu.memory_space<vmem>>, vector<1x16xf32>
    %12 = vector.broadcast %11 : vector<1x16xf32> to vector<256x16xf32>
    %13 = arith.mulf %10, %12 : vector<256x16xf32>
    %c0_15 = arith.constant 0 : index
    %c0_16 = arith.constant 0 : index
    %14 = vector.load %arg6[%c0_15, %c0_16] : memref<1x16xf32, #tpu.memory_space<vmem>>, vector<1x16xf32>
    %15 = vector.broadcast %14 : vector<1x16xf32> to vector<256x16xf32>
    %16 = arith.addf %13, %15 : vector<256x16xf32>
    %cst_17 = arith.constant 0.000000e+00 : f32
    %17 = vector.broadcast %cst_17 : f32 to vector<256x16xf32>
    %18 = arith.subf %17, %16 : vector<256x16xf32>
    %19 = math.exp %18 : vector<256x16xf32>
    %cst_18 = arith.constant 1.000000e+00 : f32
    %20 = vector.broadcast %cst_18 : f32 to vector<256x16xf32>
    %21 = arith.addf %20, %19 : vector<256x16xf32>
    %22 = tpu.reciprocal %21 {approx = true} : vector<256x16xf32> -> vector<256x16xf32>
    %23 = arith.mulf %16, %22 : vector<256x16xf32>
    %24 = vector.shape_cast %23 : vector<256x16xf32> to vector<1x16x16x16xf32>
    %c0_19 = arith.constant 0 : index
    %c0_20 = arith.constant 0 : index
    %c0_21 = arith.constant 0 : index
    %c0_22 = arith.constant 0 : index
    %25 = vector.load %arg7[%c0_19, %c0_20, %c0_21, %c0_22] : memref<1x16x16x16xf32, #tpu.memory_space<vmem>>, vector<1x16x16x16xf32>
    tpu.vector_store %arg7[%c0_19, %c0_20, %c0_21, %c0_22], %24 {strides = array<i32>} : memref<1x16x16x16xf32, #tpu.memory_space<vmem>>, vector<1x16x16x16xf32>,
    return
  }
  func.func @transform_0(%arg0: i32) -> (i32, i32, i32, i32) {
    %c0_i32 = arith.constant 0 : i32
    %c0_i32_0 = arith.constant 0 : i32
    %c0_i32_1 = arith.constant 0 : i32
    %c0_i32_2 = arith.constant 0 : i32
    return %arg0, %c0_i32, %c0_i32_0, %c0_i32_1 : i32, i32, i32, i32
  }
  func.func @transform_1(%arg0: i32) -> (i32, i32, i32, i32) {
    %c0_i32 = arith.constant 0 : i32
    %c0_i32_0 = arith.constant 0 : i32
    %c0_i32_1 = arith.constant 0 : i32
    %c0_i32_2 = arith.constant 0 : i32
    return %arg0, %c0_i32, %c0_i32_0, %c0_i32_1 : i32, i32, i32, i32
  }
  func.func @transform_2(%arg0: i32) -> (i32, i32, i32, i32) {
    %c0_i32 = arith.constant 0 : i32
    %c0_i32_0 = arith.constant 0 : i32
    %c0_i32_1 = arith.constant 0 : i32
    %c0_i32_2 = arith.constant 0 : i32
    return %arg0, %c0_i32, %c0_i32_0, %c0_i32_1 : i32, i32, i32, i32
  }
  func.func @transform_3(%arg0: i32) -> (i32, i32) {
    %c0_i32 = arith.constant 0 : i32
    %c0_i32_0 = arith.constant 0 : i32
    %c0_i32_1 = arith.constant 0 : i32
    return %c0_i32, %c0_i32_0 : i32, i32
  }
  func.func @transform_4(%arg0: i32) -> (i32, i32) {
    %c0_i32 = arith.constant 0 : i32
    %c0_i32_0 = arith.constant 0 : i32
    %c0_i32_1 = arith.constant 0 : i32
    return %c0_i32, %c0_i32_0 : i32, i32
  }
  func.func @transform_5(%arg0: i32) -> (i32, i32) {
    %c0_i32 = arith.constant 0 : i32
    %c0_i32_0 = arith.constant 0 : i32
    %c0_i32_1 = arith.constant 0 : i32
    return %c0_i32, %c0_i32_0 : i32, i32
  }
  func.func @transform_6(%arg0: i32) -> (i32, i32, i32, i32) {
    %c0_i32 = arith.constant 0 : i32
    %c0_i32_0 = arith.constant 0 : i32
    %c0_i32_1 = arith.constant 0 : i32
    %c0_i32_2 = arith.constant 0 : i32
    return %arg0, %c0_i32, %c0_i32_0, %c0_i32_1 : i32, i32, i32, i32
  }
}

module attributes {stable_mosaic.version = 11 : i64} {
  func.func @_mm_bn_act_kernel(%arg0: i32, %arg1: memref<512x144xbf16, #tpu.memory_space<vmem>>, %arg2: memref<144x18xbf16, #tpu.memory_space<vmem>>, %arg3: memref<1x18xf32, #tpu.memory_space<vmem>>, %arg4: memref<1x18xf32, #tpu.memory_space<vmem>>, %arg5: memref<512x18xf32, #tpu.memory_space<vmem>>) attributes {dimension_semantics = [#tpu.dimension_semantics<parallel>], iteration_bounds = array<i64: 1>, scalar_prefetch = 0 : i64, scratch_operands = 0 : i64, tpu.core_type = #tpu.core_type<tc>, window_params = [{transform_indices = @transform_0, window_bounds = array<i64: 512, 144>}, {pipeline_mode = #tpu.pipeline_mode<synchronous>, transform_indices = @transform_1, window_bounds = array<i64: 144, 18>}, {pipeline_mode = #tpu.pipeline_mode<synchronous>, transform_indices = @transform_2, window_bounds = array<i64: 1, 18>}, {pipeline_mode = #tpu.pipeline_mode<synchronous>, transform_indices = @transform_3, window_bounds = array<i64: 1, 18>}, {transform_indices = @transform_4, window_bounds = array<i64: 512, 18>}]} {
    %c0 = arith.constant 0 : index
    %c0_0 = arith.constant 0 : index
    %0 = vector.load %arg1[%c0, %c0_0] : memref<512x144xbf16, #tpu.memory_space<vmem>>, vector<512x144xbf16>
    %c0_1 = arith.constant 0 : index
    %c0_2 = arith.constant 0 : index
    %1 = vector.load %arg2[%c0_1, %c0_2] : memref<144x18xbf16, #tpu.memory_space<vmem>>, vector<144x18xbf16>
    %cst = arith.constant dense<0.000000e+00> : vector<512x18xf32>
    %2 = tpu.matmul %0, %1, %cst {dimension_numbers = #tpu.dot_dimension_numbers<[1], [0], [0], [1], [0, 0, 1, 1], [], []>} : vector<512x144xbf16>, vector<144x18xbf16>, vector<512x18xf32> -> vector<512x18xf32>
    %c0_3 = arith.constant 0 : index
    %c0_4 = arith.constant 0 : index
    %3 = vector.load %arg3[%c0_3, %c0_4] : memref<1x18xf32, #tpu.memory_space<vmem>>, vector<1x18xf32>
    %4 = vector.broadcast %3 : vector<1x18xf32> to vector<512x18xf32>
    %5 = arith.mulf %2, %4 : vector<512x18xf32>
    %c0_5 = arith.constant 0 : index
    %c0_6 = arith.constant 0 : index
    %6 = vector.load %arg4[%c0_5, %c0_6] : memref<1x18xf32, #tpu.memory_space<vmem>>, vector<1x18xf32>
    %7 = vector.broadcast %6 : vector<1x18xf32> to vector<512x18xf32>
    %8 = arith.addf %5, %7 : vector<512x18xf32>
    %c0_7 = arith.constant 0 : index
    %c0_8 = arith.constant 0 : index
    %9 = vector.load %arg5[%c0_7, %c0_8] : memref<512x18xf32, #tpu.memory_space<vmem>>, vector<512x18xf32>
    tpu.vector_store %arg5[%c0_7, %c0_8], %8 {strides = array<i32>} : memref<512x18xf32, #tpu.memory_space<vmem>>, vector<512x18xf32>,
    return
  }
  func.func @transform_0(%arg0: i32) -> (i32, i32) {
    %c0_i32 = arith.constant 0 : i32
    %c0_i32_0 = arith.constant 0 : i32
    return %arg0, %c0_i32 : i32, i32
  }
  func.func @transform_1(%arg0: i32) -> (i32, i32) {
    %c0_i32 = arith.constant 0 : i32
    %c0_i32_0 = arith.constant 0 : i32
    %c0_i32_1 = arith.constant 0 : i32
    return %c0_i32, %c0_i32_0 : i32, i32
  }
  func.func @transform_2(%arg0: i32) -> (i32, i32) {
    %c0_i32 = arith.constant 0 : i32
    %c0_i32_0 = arith.constant 0 : i32
    %c0_i32_1 = arith.constant 0 : i32
    return %c0_i32, %c0_i32_0 : i32, i32
  }
  func.func @transform_3(%arg0: i32) -> (i32, i32) {
    %c0_i32 = arith.constant 0 : i32
    %c0_i32_0 = arith.constant 0 : i32
    %c0_i32_1 = arith.constant 0 : i32
    return %c0_i32, %c0_i32_0 : i32, i32
  }
  func.func @transform_4(%arg0: i32) -> (i32, i32) {
    %c0_i32 = arith.constant 0 : i32
    %c0_i32_0 = arith.constant 0 : i32
    return %arg0, %c0_i32 : i32, i32
  }
}

module attributes {stable_mosaic.version = 11 : i64} {
  func.func @_mm_bn_act_res_kernel(%arg0: i32, %arg1: memref<512x144xbf16, #tpu.memory_space<vmem>>, %arg2: memref<144x16xbf16, #tpu.memory_space<vmem>>, %arg3: memref<1x16xf32, #tpu.memory_space<vmem>>, %arg4: memref<1x16xf32, #tpu.memory_space<vmem>>, %arg5: memref<512x16xf32, #tpu.memory_space<vmem>>, %arg6: memref<512x16xf32, #tpu.memory_space<vmem>>) attributes {dimension_semantics = [#tpu.dimension_semantics<parallel>], iteration_bounds = array<i64: 1>, scalar_prefetch = 0 : i64, scratch_operands = 0 : i64, tpu.core_type = #tpu.core_type<tc>, window_params = [{transform_indices = @transform_0, window_bounds = array<i64: 512, 144>}, {pipeline_mode = #tpu.pipeline_mode<synchronous>, transform_indices = @transform_1, window_bounds = array<i64: 144, 16>}, {pipeline_mode = #tpu.pipeline_mode<synchronous>, transform_indices = @transform_2, window_bounds = array<i64: 1, 16>}, {pipeline_mode = #tpu.pipeline_mode<synchronous>, transform_indices = @transform_3, window_bounds = array<i64: 1, 16>}, {transform_indices = @transform_4, window_bounds = array<i64: 512, 16>}, {transform_indices = @transform_5, window_bounds = array<i64: 512, 16>}]} {
    %c0 = arith.constant 0 : index
    %c0_0 = arith.constant 0 : index
    %0 = vector.load %arg1[%c0, %c0_0] : memref<512x144xbf16, #tpu.memory_space<vmem>>, vector<512x144xbf16>
    %c0_1 = arith.constant 0 : index
    %c0_2 = arith.constant 0 : index
    %1 = vector.load %arg2[%c0_1, %c0_2] : memref<144x16xbf16, #tpu.memory_space<vmem>>, vector<144x16xbf16>
    %cst = arith.constant dense<0.000000e+00> : vector<512x16xf32>
    %2 = tpu.matmul %0, %1, %cst {dimension_numbers = #tpu.dot_dimension_numbers<[1], [0], [0], [1], [0, 0, 1, 1], [], []>} : vector<512x144xbf16>, vector<144x16xbf16>, vector<512x16xf32> -> vector<512x16xf32>
    %c0_3 = arith.constant 0 : index
    %c0_4 = arith.constant 0 : index
    %3 = vector.load %arg3[%c0_3, %c0_4] : memref<1x16xf32, #tpu.memory_space<vmem>>, vector<1x16xf32>
    %4 = vector.broadcast %3 : vector<1x16xf32> to vector<512x16xf32>
    %5 = arith.mulf %2, %4 : vector<512x16xf32>
    %c0_5 = arith.constant 0 : index
    %c0_6 = arith.constant 0 : index
    %6 = vector.load %arg4[%c0_5, %c0_6] : memref<1x16xf32, #tpu.memory_space<vmem>>, vector<1x16xf32>
    %7 = vector.broadcast %6 : vector<1x16xf32> to vector<512x16xf32>
    %8 = arith.addf %5, %7 : vector<512x16xf32>
    %cst_7 = arith.constant 0.000000e+00 : f32
    %9 = vector.broadcast %cst_7 : f32 to vector<512x16xf32>
    %10 = arith.subf %9, %8 : vector<512x16xf32>
    %11 = math.exp %10 : vector<512x16xf32>
    %cst_8 = arith.constant 1.000000e+00 : f32
    %12 = vector.broadcast %cst_8 : f32 to vector<512x16xf32>
    %13 = arith.addf %12, %11 : vector<512x16xf32>
    %14 = tpu.reciprocal %13 {approx = true} : vector<512x16xf32> -> vector<512x16xf32>
    %15 = arith.mulf %8, %14 : vector<512x16xf32>
    %c0_9 = arith.constant 0 : index
    %c0_10 = arith.constant 0 : index
    %16 = vector.load %arg5[%c0_9, %c0_10] : memref<512x16xf32, #tpu.memory_space<vmem>>, vector<512x16xf32>
    %17 = arith.addf %15, %16 : vector<512x16xf32>
    %c0_11 = arith.constant 0 : index
    %c0_12 = arith.constant 0 : index
    %18 = vector.load %arg6[%c0_11, %c0_12] : memref<512x16xf32, #tpu.memory_space<vmem>>, vector<512x16xf32>
    tpu.vector_store %arg6[%c0_11, %c0_12], %17 {strides = array<i32>} : memref<512x16xf32, #tpu.memory_space<vmem>>, vector<512x16xf32>,
    return
  }
  func.func @transform_0(%arg0: i32) -> (i32, i32) {
    %c0_i32 = arith.constant 0 : i32
    %c0_i32_0 = arith.constant 0 : i32
    return %arg0, %c0_i32 : i32, i32
  }
  func.func @transform_1(%arg0: i32) -> (i32, i32) {
    %c0_i32 = arith.constant 0 : i32
    %c0_i32_0 = arith.constant 0 : i32
    %c0_i32_1 = arith.constant 0 : i32
    return %c0_i32, %c0_i32_0 : i32, i32
  }
  func.func @transform_2(%arg0: i32) -> (i32, i32) {
    %c0_i32 = arith.constant 0 : i32
    %c0_i32_0 = arith.constant 0 : i32
    %c0_i32_1 = arith.constant 0 : i32
    return %c0_i32, %c0_i32_0 : i32, i32
  }
  func.func @transform_3(%arg0: i32) -> (i32, i32) {
    %c0_i32 = arith.constant 0 : i32
    %c0_i32_0 = arith.constant 0 : i32
    %c0_i32_1 = arith.constant 0 : i32
    return %c0_i32, %c0_i32_0 : i32, i32
  }
  func.func @transform_4(%arg0: i32) -> (i32, i32) {
    %c0_i32 = arith.constant 0 : i32
    %c0_i32_0 = arith.constant 0 : i32
    return %arg0, %c0_i32 : i32, i32
  }
  func.func @transform_5(%arg0: i32) -> (i32, i32) {
    %c0_i32 = arith.constant 0 : i32
    %c0_i32_0 = arith.constant 0 : i32
    return %arg0, %c0_i32 : i32, i32
  }
}

</mosaic_0001>

<llo_original>
// kernel: _lambda_.9
$region0: #{_lambda_.9}
  #allocation0 [shape = 'u32[]', space=smem, size = 0x4, offset = 0x4, fixed_abs, tag = 'smem constant byte address 0x4 - core index']
  #allocation1 [shape = 'u32[72,128]{1,0:T(1,128)}', space=vmem, size = 0x9000, scoped, tag = 'internal scratch']
  %s0 = inlined_call_operand.vmem [shape: bf16[512,144], index: 0, kind: input, shape index: {}]
  %s1 = inlined_call_operand.vmem [shape: bf16[144,18], index: 1, kind: input, shape index: {}]
  %s2 = inlined_call_operand.vmem [shape: f32[1,18], index: 2, kind: input, shape index: {}]
  %s3 = inlined_call_operand.hbm [shape: f32[1,18], index: 3, kind: input, shape index: {}]
  %s4 = inlined_call_operand.vmem [shape: f32[512,18], index: 4, kind: output, shape index: {}]
  %s5 = sld [smem:[#allocation0]]
  $region30: #{_lambda_.9} parent=0
    _
  %s7 = ssub.s32 1, %s5
  %s8 = scalar_select 0, %s7, %s5
  $region1: #{_lambda_.9} parent=0
    #allocation2 [shape = 'u8[512]{0}', space=vmem, size = 0x400, scoped, tag = 'input window, operand 3, single buffered']
    #allocation3 [shape = 's32[1]{0}', space=sflag, size = 0x4, scoped, tag = 'scoped memory for _lambda_.9']
    %9 = vsyncpa [#allocation3], 0
    // Predicated region
    $region2: #{_lambda_.9} parent=1 // pred_check
      _
    $region3: #{_lambda_.9} parent=1 // pred_check_branch
      %11 = sbr.rel (0) target = $region5
    $region4: #{_lambda_.9} parent=1 // pred_region
      _
    $region5: #{_lambda_.9} parent=1 // pred_fallthru
      _
    // Predicated region
    $region6: #{_lambda_.9} parent=1 // pred_check
      _
    $region7: #{_lambda_.9} parent=1 // pred_check_branch
      %13 = sbr.rel (0) target = $region9
    $region8: #{_lambda_.9} parent=1 // pred_region
      _
    $region9: #{_lambda_.9} parent=1 // pred_fallthru
      _
    // Predicated region
    $region10: #{_lambda_.9} parent=1 // pred_check
      _
    $region11: #{_lambda_.9} parent=1 // pred_check_branch
      %15 = sbr.rel (0) target = $region13
    $region12: #{_lambda_.9} parent=1 // pred_region
      _
    $region13: #{_lambda_.9} parent=1 // pred_fallthru
      _
    // Predicated region
    $region14: #{_lambda_.9} parent=1 // pred_check
      _
    $region15: #{_lambda_.9} parent=1 // pred_check_branch
      %17 = sbr.rel (0) target = $region17
    $region16: #{_lambda_.9} parent=1 // pred_region
      %19 = vsyncadd [#allocation3], 0
      %s21 = sshll.u32 %s3, 4
      %s22 = int_to_ptr.hbm [resolvable:$true] %s21
      %s23 = sshll.u32 [#allocation2], 4
      %s24 = int_to_ptr.vmem [resolvable:$true] %s23
      %26 = dma.hbm_to_vmem [thread:$0]  %s22, 16, %s24, [#allocation3]
    $region17: #{_lambda_.9} parent=1 // pred_fallthru
      _
    // Predicated region
    $region18: #{_lambda_.9} parent=1 // pred_check
      _
    $region19: #{_lambda_.9} parent=1 // pred_check_branch
      %28 = sbr.rel (0) target = $region21
    $region20: #{_lambda_.9} parent=1 // pred_region
      %30 = dma.done [#allocation3], 16
    $region21: #{_lambda_.9} parent=1 // pred_fallthru
      _
    %v32 = vld [vmem:[%s0] sm:$0xff]
    %v33 = vld [vmem:[%s0 + $0x8] sm:$0xff]
    %v34 = vld [vmem:[%s0 + $0x10] sm:$0xff]
    %v35 = vld [vmem:[%s0 + $0x18] sm:$0xff]
    %v36 = vld [vmem:[%s0 + $0x20] sm:$0xff]
    %v37 = vld [vmem:[%s0 + $0x28] sm:$0xff]
    %v38 = vld [vmem:[%s0 + $0x30] sm:$0xff]
    %v39 = vld [vmem:[%s0 + $0x38] sm:$0xff]
    %v40 = vld [vmem:[%s0 + $0x40] sm:$0xff]
    %v41 = vld [vmem:[%s0 + $0x48] sm:$0xff]
    %v42 = vld [vmem:[%s0 + $0x50] sm:$0xff]
    %v43 = vld [vmem:[%s0 + $0x58] sm:$0xff]
    %v44 = vld [vmem:[%s0 + $0x60] sm:$0xff]
    %v45 = vld [vmem:[%s0 + $0x68] sm:$0xff]
    %v46 = vld [vmem:[%s0 + $0x70] sm:$0xff]
    %v47 = vld [vmem:[%s0 + $0x78] sm:$0xff]
    %v48 = vld [vmem:[%s0 + $0x80] sm:$0xff]
    %v49 = vld [vmem:[%s0 + $0x88] sm:$0xff]
    %v50 = vld [vmem:[%s0 + $0x90] sm:$0xff]
    %v51 = vld [vmem:[%s0 + $0x98] sm:$0xff]
    %v52 = vld [vmem:[%s0 + $0xa0] sm:$0xff]
    %v53 = vld [vmem:[%s0 + $0xa8] sm:$0xff]
    %v54 = vld [vmem:[%s0 + $0xb0] sm:$0xff]
    %v55 = vld [vmem:[%s0 + $0xb8] sm:$0xff]
    %v56 = vld [vmem:[%s0 + $0xc0] sm:$0xff]
    %v57 = vld [vmem:[%s0 + $0xc8] sm:$0xff]
    %v58 = vld [vmem:[%s0 + $0xd0] sm:$0xff]
    %v59 = vld [vmem:[%s0 + $0xd8] sm:$0xff]
    %v60 = vld [vmem:[%s0 + $0xe0] sm:$0xff]
    %v61 = vld [vmem:[%s0 + $0xe8] sm:$0xff]
    %v62 = vld [vmem:[%s0 + $0xf0] sm:$0xff]
    %v63 = vld [vmem:[%s0 + $0xf8] sm:$0xff]
    %v64 = vld [vmem:[%s0 + $0x100] sm:$0xff]
    %v65 = vld [vmem:[%s0 + $0x108] sm:$0xff]
    %v66 = vld [vmem:[%s0 + $0x110] sm:$0xff]
    %v67 = vld [vmem:[%s0 + $0x118] sm:$0xff]
    %v68 = vld [vmem:[%s0 + $0x120] sm:$0xff]
    %v69 = vld [vmem:[%s0 + $0x128] sm:$0xff]
    %v70 = vld [vmem:[%s0 + $0x130] sm:$0xff]
    %v71 = vld [vmem:[%s0 + $0x138] sm:$0xff]
    %v72 = vld [vmem:[%s0 + $0x140] sm:$0xff]
    %v73 = vld [vmem:[%s0 + $0x148] sm:$0xff]
    %v74 = vld [vmem:[%s0 + $0x150] sm:$0xff]
    %v75 = vld [vmem:[%s0 + $0x158] sm:$0xff]
    %v76 = vld [vmem:[%s0 + $0x160] sm:$0xff]
    %v77 = vld [vmem:[%s0 + $0x168] sm:$0xff]
    %v78 = vld [vmem:[%s0 + $0x170] sm:$0xff]
    %v79 = vld [vmem:[%s0 + $0x178] sm:$0xff]
    %v80 = vld [vmem:[%s0 + $0x180] sm:$0xff]
    %v81 = vld [vmem:[%s0 + $0x188] sm:$0xff]
    %v82 = vld [vmem:[%s0 + $0x190] sm:$0xff]
    %v83 = vld [vmem:[%s0 + $0x198] sm:$0xff]
    %v84 = vld [vmem:[%s0 + $0x1a0] sm:$0xff]
    %v85 = vld [vmem:[%s0 + $0x1a8] sm:$0xff]
    %v86 = vld [vmem:[%s0 + $0x1b0] sm:$0xff]
    %v87 = vld [vmem:[%s0 + $0x1b8] sm:$0xff]
    %v88 = vld [vmem:[%s0 + $0x1c0] sm:$0xff]
    %v89 = vld [vmem:[%s0 + $0x1c8] sm:$0xff]
    %v90 = vld [vmem:[%s0 + $0x1d0] sm:$0xff]
    %v91 = vld [vmem:[%s0 + $0x1d8] sm:$0xff]
    %v92 = vld [vmem:[%s0 + $0x1e0] sm:$0xff]
    %v93 = vld [vmem:[%s0 + $0x1e8] sm:$0xff]
    %v94 = vld [vmem:[%s0 + $0x1f0] sm:$0xff]
    %v95 = vld [vmem:[%s0 + $0x1f8] sm:$0xff]
    %v96 = vld [vmem:[%s1] sm:$0xf]
    %v97 = vld [vmem:[%s1 + $0x4] sm:$0xf]
    %v98 = vld [vmem:[%s1 + $0x8] sm:$0xf]
    %v99 = vld [vmem:[%s1 + $0xc] sm:$0xf]
    %v100 = vld [vmem:[%s1 + $0x10] sm:$0xf]
    %v101 = vld [vmem:[%s1 + $0x14] sm:$0xf]
    %v102 = vld [vmem:[%s1 + $0x18] sm:$0xf]
    %v103 = vld [vmem:[%s1 + $0x1c] sm:$0xf]
    %v104 = vld [vmem:[%s1 + $0x20] sm:$0xf]
    %v105 = vld [vmem:[%s1 + $0x24] sm:$0xf]
    %v106 = vld [vmem:[%s1 + $0x28] sm:$0xf]
    %v107 = vld [vmem:[%s1 + $0x2c] sm:$0xf]
    %v108 = vld [vmem:[%s1 + $0x30] sm:$0xf]
    %v109 = vld [vmem:[%s1 + $0x34] sm:$0xf]
    %v110 = vld [vmem:[%s1 + $0x38] sm:$0xf]
    %v111 = vld [vmem:[%s1 + $0x3c] sm:$0xf]
    %v112 = vld [vmem:[%s1 + $0x40] sm:$0xf]
    %v113 = vld [vmem:[%s1 + $0x44] sm:$0xf]
    %v178 = vunpack.c.l.b16 %v32
    %v179 = vunpack.c.h.b16 %v32
    %v180 = vunpack.c.l.b16 %v33
    %v181 = vunpack.c.h.b16 %v33
    %v182 = vunpack.c.l.b16 %v34
    %v183 = vunpack.c.h.b16 %v34
    %v184 = vunpack.c.l.b16 %v35
    %v185 = vunpack.c.h.b16 %v35
    %v186 = vunpack.c.l.b16 %v36
    %v187 = vunpack.c.h.b16 %v36
    %v188 = vunpack.c.l.b16 %v37
    %v189 = vunpack.c.h.b16 %v37
    %v190 = vunpack.c.l.b16 %v38
    %v191 = vunpack.c.h.b16 %v38
    %v192 = vunpack.c.l.b16 %v39
    %v193 = vunpack.c.h.b16 %v39
    %v194 = vunpack.c.l.b16 %v40
    %v195 = vunpack.c.h.b16 %v40
    %v196 = vunpack.c.l.b16 %v41
    %v197 = vunpack.c.h.b16 %v41
    %v198 = vunpack.c.l.b16 %v42
    %v199 = vunpack.c.h.b16 %v42
    %v200 = vunpack.c.l.b16 %v43
    %v201 = vunpack.c.h.b16 %v43
    %v202 = vunpack.c.l.b16 %v44
    %v203 = vunpack.c.h.b16 %v44
    %v204 = vunpack.c.l.b16 %v45
    %v205 = vunpack.c.h.b16 %v45
    %v206 = vunpack.c.l.b16 %v46
    %v207 = vunpack.c.h.b16 %v46
    %v208 = vunpack.c.l.b16 %v47
    %v209 = vunpack.c.h.b16 %v47
    %v210 = vunpack.c.l.b16 %v48
    %v211 = vunpack.c.h.b16 %v48
    %v212 = vunpack.c.l.b16 %v49
    %v213 = vunpack.c.h.b16 %v49
    %v214 = vunpack.c.l.b16 %v50
    %v215 = vunpack.c.h.b16 %v50
    %v216 = vunpack.c.l.b16 %v51
    %v217 = vunpack.c.h.b16 %v51
    %v218 = vunpack.c.l.b16 %v52
    %v219 = vunpack.c.h.b16 %v52
    %v220 = vunpack.c.l.b16 %v53
    %v221 = vunpack.c.h.b16 %v53
    %v222 = vunpack.c.l.b16 %v54
    %v223 = vunpack.c.h.b16 %v54
    %v224 = vunpack.c.l.b16 %v55
    %v225 = vunpack.c.h.b16 %v55
    %v226 = vunpack.c.l.b16 %v56
    %v227 = vunpack.c.h.b16 %v56
    %v228 = vunpack.c.l.b16 %v57
    %v229 = vunpack.c.h.b16 %v57
    %v230 = vunpack.c.l.b16 %v58
    %v231 = vunpack.c.h.b16 %v58
    %v232 = vunpack.c.l.b16 %v59
    %v233 = vunpack.c.h.b16 %v59
    %v234 = vunpack.c.l.b16 %v60
    %v235 = vunpack.c.h.b16 %v60
    %v236 = vunpack.c.l.b16 %v61
    %v237 = vunpack.c.h.b16 %v61
    %v238 = vunpack.c.l.b16 %v62
    %v239 = vunpack.c.h.b16 %v62
    %v240 = vunpack.c.l.b16 %v63
    %v241 = vunpack.c.h.b16 %v63
    %v242 = vunpack.c.l.b16 %v64
    %v243 = vunpack.c.h.b16 %v64
    %v244 = vunpack.c.l.b16 %v65
    %v245 = vunpack.c.h.b16 %v65
    %v246 = vunpack.c.l.b16 %v66
    %v247 = vunpack.c.h.b16 %v66
    %v248 = vunpack.c.l.b16 %v67
    %v249 = vunpack.c.h.b16 %v67
    %v250 = vunpack.c.l.b16 %v68
    %v251 = vunpack.c.h.b16 %v68
    %v252 = vunpack.c.l.b16 %v69
    %v253 = vunpack.c.h.b16 %v69
    %v254 = vunpack.c.l.b16 %v70
    %v255 = vunpack.c.h.b16 %v70
    %v256 = vunpack.c.l.b16 %v71
    %v257 = vunpack.c.h.b16 %v71
    %v258 = vunpack.c.l.b16 %v72
    %v259 = vunpack.c.h.b16 %v72
    %v260 = vunpack.c.l.b16 %v73
    %v261 = vunpack.c.h.b16 %v73
    %v262 = vunpack.c.l.b16 %v74
    %v263 = vunpack.c.h.b16 %v74
    %v264 = vunpack.c.l.b16 %v75
    %v265 = vunpack.c.h.b16 %v75
    %v266 = vunpack.c.l.b16 %v76
    %v267 = vunpack.c.h.b16 %v76
    %v268 = vunpack.c.l.b16 %v77
    %v269 = vunpack.c.h.b16 %v77
    %v270 = vunpack.c.l.b16 %v78
    %v271 = vunpack.c.h.b16 %v78
    %v272 = vunpack.c.l.b16 %v79
    %v273 = vunpack.c.h.b16 %v79
    %v274 = vunpack.c.l.b16 %v80
    %v275 = vunpack.c.h.b16 %v80
    %v276 = vunpack.c.l.b16 %v81
    %v277 = vunpack.c.h.b16 %v81
    %v278 = vunpack.c.l.b16 %v82
    %v279 = vunpack.c.h.b16 %v82
    %v280 = vunpack.c.l.b16 %v83
    %v281 = vunpack.c.h.b16 %v83
    %v282 = vunpack.c.l.b16 %v84
    %v283 = vunpack.c.h.b16 %v84
    %v284 = vunpack.c.l.b16 %v85
    %v285 = vunpack.c.h.b16 %v85
    %v286 = vunpack.c.l.b16 %v86
    %v287 = vunpack.c.h.b16 %v86
    %v288 = vunpack.c.l.b16 %v87
    %v289 = vunpack.c.h.b16 %v87
    %v290 = vunpack.c.l.b16 %v88
    %v291 = vunpack.c.h.b16 %v88
    %v292 = vunpack.c.l.b16 %v89
    %v293 = vunpack.c.h.b16 %v89
    %v294 = vunpack.c.l.b16 %v90
    %v295 = vunpack.c.h.b16 %v90
    %v296 = vunpack.c.l.b16 %v91
    %v297 = vunpack.c.h.b16 %v91
    %v298 = vunpack.c.l.b16 %v92
    %v299 = vunpack.c.h.b16 %v92
    %v300 = vunpack.c.l.b16 %v93
    %v301 = vunpack.c.h.b16 %v93
    %v302 = vunpack.c.l.b16 %v94
    %v303 = vunpack.c.h.b16 %v94
    %v304 = vunpack.c.l.b16 %v95
    %v305 = vunpack.c.h.b16 %v95
    %v306 = vpack.c.b16 %v180, %v178
    %v307 = vpack.c.b16 %v181, %v179
    %v308 = vpack.c.b16 %v184, %v182
    %v309 = vpack.c.b16 %v185, %v183
    %v310 = vpack.c.b16 %v188, %v186
    %v311 = vpack.c.b16 %v189, %v187
    %v312 = vpack.c.b16 %v192, %v190
    %v313 = vpack.c.b16 %v193, %v191
    %v314 = vpack.c.b16 %v196, %v194
    %v315 = vpack.c.b16 %v197, %v195
    %v316 = vpack.c.b16 %v200, %v198
    %v317 = vpack.c.b16 %v201, %v199
    %v318 = vpack.c.b16 %v204, %v202
    %v319 = vpack.c.b16 %v205, %v203
    %v320 = vpack.c.b16 %v208, %v206
    %v321 = vpack.c.b16 %v209, %v207
    %v322 = vpack.c.b16 %v212, %v210
    %v323 = vpack.c.b16 %v213, %v211
    %v324 = vpack.c.b16 %v216, %v214
    %v325 = vpack.c.b16 %v217, %v215
    %v326 = vpack.c.b16 %v220, %v218
    %v327 = vpack.c.b16 %v221, %v219
    %v328 = vpack.c.b16 %v224, %v222
    %v329 = vpack.c.b16 %v225, %v223
    %v330 = vpack.c.b16 %v228, %v226
    %v331 = vpack.c.b16 %v229, %v227
    %v332 = vpack.c.b16 %v232, %v230
    %v333 = vpack.c.b16 %v233, %v231
    %v334 = vpack.c.b16 %v236, %v234
    %v335 = vpack.c.b16 %v237, %v235
    %v336 = vpack.c.b16 %v240, %v238
    %v337 = vpack.c.b16 %v241, %v239
    %v338 = vpack.c.b16 %v244, %v242
    %v339 = vpack.c.b16 %v245, %v243
    %v340 = vpack.c.b16 %v248, %v246
    %v341 = vpack.c.b16 %v249, %v247
    %v342 = vpack.c.b16 %v252, %v250
    %v343 = vpack.c.b16 %v253, %v251
    %v344 = vpack.c.b16 %v256, %v254
    %v345 = vpack.c.b16 %v257, %v255
    %v346 = vpack.c.b16 %v260, %v258
    %v347 = vpack.c.b16 %v261, %v259
    %v348 = vpack.c.b16 %v264, %v262
    %v349 = vpack.c.b16 %v265, %v263
    %v350 = vpack.c.b16 %v268, %v266
    %v351 = vpack.c.b16 %v269, %v267
    %v352 = vpack.c.b16 %v272, %v270
    %v353 = vpack.c.b16 %v273, %v271
    %v354 = vpack.c.b16 %v276, %v274
    %v355 = vpack.c.b16 %v277, %v275
    %v356 = vpack.c.b16 %v280, %v278
    %v357 = vpack.c.b16 %v281, %v279
    %v358 = vpack.c.b16 %v284, %v282
    %v359 = vpack.c.b16 %v285, %v283
    %v360 = vpack.c.b16 %v288, %v286
    %v361 = vpack.c.b16 %v289, %v287
    %v362 = vpack.c.b16 %v292, %v290
    %v363 = vpack.c.b16 %v293, %v291
    %v364 = vpack.c.b16 %v296, %v294
    %v365 = vpack.c.b16 %v297, %v295
    %v366 = vpack.c.b16 %v300, %v298
    %v367 = vpack.c.b16 %v301, %v299
    %v368 = vpack.c.b16 %v304, %v302
    %v369 = vpack.c.b16 %v305, %v303
    %v420 = vunpack.c.l.b16 %v96
    %v421 = vunpack.c.l.b16 %v97
    %v422 = vunpack.c.l.b16 %v98
    %v423 = vunpack.c.l.b16 %v99
    %v424 = vunpack.c.l.b16 %v100
    %v425 = vunpack.c.l.b16 %v101
    %v426 = vunpack.c.l.b16 %v102
    %v427 = vunpack.c.l.b16 %v103
    %v428 = vunpack.c.l.b16 %v104
    %v429 = vunpack.c.l.b16 %v105
    %v430 = vunpack.c.l.b16 %v106
    %v431 = vunpack.c.l.b16 %v107
    %v432 = vunpack.c.l.b16 %v108
    %v433 = vunpack.c.l.b16 %v109
    %v434 = vunpack.c.l.b16 %v110
    %v435 = vunpack.c.l.b16 %v111
    %v436 = vunpack.c.l.b16 %v112
    %v437 = vunpack.c.l.b16 %v113
    %v438 = vpack.c.b16 %v421, %v420
    %v439 = vpack.c.b16 %v423, %v422
    %v440 = vpack.c.b16 %v425, %v424
    %v441 = vpack.c.b16 %v427, %v426
    %v442 = vpack.c.b16 %v429, %v428
    %v443 = vpack.c.b16 %v431, %v430
    %v444 = vpack.c.b16 %v433, %v432
    %v445 = vpack.c.b16 %v435, %v434
    %v446 = vpack.c.b16 %v437, %v436
    %vm456 = vcmask 130048
    %v458 = vsel %vm456, %v307, 0
    %v461 = vsel %vm456, %v309, 0
    %v464 = vsel %vm456, %v311, 0
    %v467 = vsel %vm456, %v313, 0
    %v470 = vsel %vm456, %v315, 0
    %v473 = vsel %vm456, %v317, 0
    %v476 = vsel %vm456, %v319, 0
    %v479 = vsel %vm456, %v321, 0
    %v482 = vsel %vm456, %v323, 0
    %v485 = vsel %vm456, %v325, 0
    %v488 = vsel %vm456, %v327, 0
    %v491 = vsel %vm456, %v329, 0
    %v494 = vsel %vm456, %v331, 0
    %v497 = vsel %vm456, %v333, 0
    %v500 = vsel %vm456, %v335, 0
    %v503 = vsel %vm456, %v337, 0
    %v506 = vsel %vm456, %v339, 0
    %v509 = vsel %vm456, %v341, 0
    %v512 = vsel %vm456, %v343, 0
    %v515 = vsel %vm456, %v345, 0
    %v518 = vsel %vm456, %v347, 0
    %v521 = vsel %vm456, %v349, 0
    %v524 = vsel %vm456, %v351, 0
    %v527 = vsel %vm456, %v353, 0
    %v530 = vsel %vm456, %v355, 0
    %v533 = vsel %vm456, %v357, 0
    %v536 = vsel %vm456, %v359, 0
    %v539 = vsel %vm456, %v361, 0
    %v542 = vsel %vm456, %v363, 0
    %v545 = vsel %vm456, %v365, 0
    %v548 = vsel %vm456, %v367, 0
    %v551 = vsel %vm456, %v369, 0
    %553 = vmatpush.bf16.msra.mxu0 %v445
    %554 = vmatpush.bf16.msra.mxu0 %v444
    %555 = vmatpush.bf16.msra.mxu0 %v443
    %556 = vmatpush.bf16.msra.mxu0 %v442
    %557 = vmatpush.bf16.msra.mxu0 %v441
    %558 = vmatpush.bf16.msra.mxu0 %v440
    %559 = vmatpush.bf16.msra.mxu0 %v439
    %560 = vmatpush.bf16.msra.mxu0 %v438
    %561 = vmatmul.bf16.gmra.mxu0 %v306
    %v562 = vpop.f32.mrf.mxu0
    %v563 = vadd.f32 0.0, %v562
    %v564 = vpop.f32.mrf.mxu0
    %v565 = vadd.f32 0.0, %v564
    %566 = vmatmul.bf16.gmra.mxu0 %v308
    %v567 = vpop.f32.mrf.mxu0
    %v568 = vadd.f32 0.0, %v567
    %v569 = vpop.f32.mrf.mxu0
    %v570 = vadd.f32 0.0, %v569
    %571 = vmatmul.bf16.gmra.mxu0 %v310
    %v572 = vpop.f32.mrf.mxu0
    %v573 = vadd.f32 0.0, %v572
    %v574 = vpop.f32.mrf.mxu0
    %v575 = vadd.f32 0.0, %v574
    %576 = vmatmul.bf16.gmra.mxu0 %v312
    %v577 = vpop.f32.mrf.mxu0
    %v578 = vadd.f32 0.0, %v577
    %v579 = vpop.f32.mrf.mxu0
    %v580 = vadd.f32 0.0, %v579
    %581 = vmatmul.bf16.gmra.mxu0 %v314
    %v582 = vpop.f32.mrf.mxu0
    %v583 = vadd.f32 0.0, %v582
    %v584 = vpop.f32.mrf.mxu0
    %v585 = vadd.f32 0.0, %v584
    %586 = vmatmul.bf16.gmra.mxu0 %v316
    %v587 = vpop.f32.mrf.mxu0
    %v588 = vadd.f32 0.0, %v587
    %v589 = vpop.f32.mrf.mxu0
    %v590 = vadd.f32 0.0, %v589
    %591 = vmatmul.bf16.gmra.mxu0 %v318
    %v592 = vpop.f32.mrf.mxu0
    %v593 = vadd.f32 0.0, %v592
    %v594 = vpop.f32.mrf.mxu0
    %v595 = vadd.f32 0.0, %v594
    %596 = vmatmul.bf16.gmra.mxu0 %v320
    %v597 = vpop.f32.mrf.mxu0
    %v598 = vadd.f32 0.0, %v597
    %v599 = vpop.f32.mrf.mxu0
    %v600 = vadd.f32 0.0, %v599
    %601 = vmatmul.bf16.gmra.mxu0 %v322
    %v602 = vpop.f32.mrf.mxu0
    %v603 = vadd.f32 0.0, %v602
    %v604 = vpop.f32.mrf.mxu0
    %v605 = vadd.f32 0.0, %v604
    %606 = vmatmul.bf16.gmra.mxu0 %v324
    %v607 = vpop.f32.mrf.mxu0
    %v608 = vadd.f32 0.0, %v607
    %v609 = vpop.f32.mrf.mxu0
    %v610 = vadd.f32 0.0, %v609
    %611 = vmatmul.bf16.gmra.mxu0 %v326
    %v612 = vpop.f32.mrf.mxu0
    %v613 = vadd.f32 0.0, %v612
    %v614 = vpop.f32.mrf.mxu0
    %v615 = vadd.f32 0.0, %v614
    %616 = vmatmul.bf16.gmra.mxu0 %v328
    %v617 = vpop.f32.mrf.mxu0
    %v618 = vadd.f32 0.0, %v617
    %v619 = vpop.f32.mrf.mxu0
    %v620 = vadd.f32 0.0, %v619
    %621 = vmatmul.bf16.gmra.mxu0 %v330
    %v622 = vpop.f32.mrf.mxu0
    %v623 = vadd.f32 0.0, %v622
    %v624 = vpop.f32.mrf.mxu0
    %v625 = vadd.f32 0.0, %v624
    %626 = vmatmul.bf16.gmra.mxu0 %v332
    %v627 = vpop.f32.mrf.mxu0
    %v628 = vadd.f32 0.0, %v627
    %v629 = vpop.f32.mrf.mxu0
    %v630 = vadd.f32 0.0, %v629
    %631 = vmatmul.bf16.gmra.mxu0 %v334
    %v632 = vpop.f32.mrf.mxu0
    %v633 = vadd.f32 0.0, %v632
    %v634 = vpop.f32.mrf.mxu0
    %v635 = vadd.f32 0.0, %v634
    %636 = vmatmul.bf16.gmra.mxu0 %v336
    %v637 = vpop.f32.mrf.mxu0
    %v638 = vadd.f32 0.0, %v637
    %v639 = vpop.f32.mrf.mxu0
    %v640 = vadd.f32 0.0, %v639
    %641 = vmatmul.bf16.gmra.mxu0 %v338
    %v642 = vpop.f32.mrf.mxu0
    %v643 = vadd.f32 0.0, %v642
    %v644 = vpop.f32.mrf.mxu0
    %v645 = vadd.f32 0.0, %v644
    %646 = vmatmul.bf16.gmra.mxu0 %v340
    %v647 = vpop.f32.mrf.mxu0
    %v648 = vadd.f32 0.0, %v647
    %v649 = vpop.f32.mrf.mxu0
    %v650 = vadd.f32 0.0, %v649
    %651 = vmatmul.bf16.gmra.mxu0 %v342
    %v652 = vpop.f32.mrf.mxu0
    %v653 = vadd.f32 0.0, %v652
    %v654 = vpop.f32.mrf.mxu0
    %v655 = vadd.f32 0.0, %v654
    %656 = vmatmul.bf16.gmra.mxu0 %v344
    %v657 = vpop.f32.mrf.mxu0
    %v658 = vadd.f32 0.0, %v657
    %v659 = vpop.f32.mrf.mxu0
    %v660 = vadd.f32 0.0, %v659
    %661 = vmatmul.bf16.gmra.mxu0 %v346
    %v662 = vpop.f32.mrf.mxu0
    %v663 = vadd.f32 0.0, %v662
    %v664 = vpop.f32.mrf.mxu0
    %v665 = vadd.f32 0.0, %v664
    %666 = vmatmul.bf16.gmra.mxu0 %v348
    %v667 = vpop.f32.mrf.mxu0
    %v668 = vadd.f32 0.0, %v667
    %v669 = vpop.f32.mrf.mxu0
    %v670 = vadd.f32 0.0, %v669
    %671 = vmatmul.bf16.gmra.mxu0 %v350
    %v672 = vpop.f32.mrf.mxu0
    %v673 = vadd.f32 0.0, %v672
    %v674 = vpop.f32.mrf.mxu0
    %v675 = vadd.f32 0.0, %v674
    %676 = vmatmul.bf16.gmra.mxu0 %v352
    %v677 = vpop.f32.mrf.mxu0
    %v678 = vadd.f32 0.0, %v677
    %v679 = vpop.f32.mrf.mxu0
    %v680 = vadd.f32 0.0, %v679
    %681 = vmatmul.bf16.gmra.mxu0 %v354
    %v682 = vpop.f32.mrf.mxu0
    %v683 = vadd.f32 0.0, %v682
    %v684 = vpop.f32.mrf.mxu0
    %v685 = vadd.f32 0.0, %v684
    %686 = vmatmul.bf16.gmra.mxu0 %v356
    %v687 = vpop.f32.mrf.mxu0
    %v688 = vadd.f32 0.0, %v687
    %v689 = vpop.f32.mrf.mxu0
    %v690 = vadd.f32 0.0, %v689
    %691 = vmatmul.bf16.gmra.mxu0 %v358
    %v692 = vpop.f32.mrf.mxu0
    %v693 = vadd.f32 0.0, %v692
    %v694 = vpop.f32.mrf.mxu0
    %v695 = vadd.f32 0.0, %v694
    %696 = vmatmul.bf16.gmra.mxu0 %v360
    %v697 = vpop.f32.mrf.mxu0
    %v698 = vadd.f32 0.0, %v697
    %v699 = vpop.f32.mrf.mxu0
    %v700 = vadd.f32 0.0, %v699
    %701 = vmatmul.bf16.gmra.mxu0 %v362
    %v702 = vpop.f32.mrf.mxu0
    %v703 = vadd.f32 0.0, %v702
    %v704 = vpop.f32.mrf.mxu0
    %v705 = vadd.f32 0.0, %v704
    %706 = vmatmul.bf16.gmra.mxu0 %v364
    %v707 = vpop.f32.mrf.mxu0
    %v708 = vadd.f32 0.0, %v707
    %v709 = vpop.f32.mrf.mxu0
    %v710 = vadd.f32 0.0, %v709
    %711 = vmatmul.bf16.gmra.mxu0 %v366
    %v712 = vpop.f32.mrf.mxu0
    %v713 = vadd.f32 0.0, %v712
    %v714 = vpop.f32.mrf.mxu0
    %v715 = vadd.f32 0.0, %v714
    %716 = vmatmul.bf16.gmra.mxu0 %v368
    %v717 = vpop.f32.mrf.mxu0
    %v718 = vadd.f32 0.0, %v717
    %v719 = vpop.f32.mrf.mxu0
    %v720 = vadd.f32 0.0, %v719
    %721 = vdwg.mxu0
    %722 = vmatpush.bf16.msra.mxu0 0
    %723 = vmatpush.bf16.msra.mxu0 0
    %724 = vmatpush.bf16.msra.mxu0 0
    %725 = vmatpush.bf16.msra.mxu0 0
    %726 = vmatpush.bf16.msra.mxu0 0
    %727 = vmatpush.bf16.msra.mxu0 0
    %728 = vmatpush.bf16.msra.mxu0 0
    %729 = vmatpush.bf16.msra.mxu0 %v446
    %730 = vmatmul.bf16.gmra.mxu0 %v458
    %v731 = vpop.f32.mrf.mxu0
    %v732 = vadd.f32 %v563, %v731
    %v733 = vpop.f32.mrf.mxu0
    %v734 = vadd.f32 %v565, %v733
    %735 = vmatmul.bf16.gmra.mxu0 %v461
    %v736 = vpop.f32.mrf.mxu0
    %v737 = vadd.f32 %v568, %v736
    %v738 = vpop.f32.mrf.mxu0
    %v739 = vadd.f32 %v570, %v738
    %740 = vmatmul.bf16.gmra.mxu0 %v464
    %v741 = vpop.f32.mrf.mxu0
    %v742 = vadd.f32 %v573, %v741
    %v743 = vpop.f32.mrf.mxu0
    %v744 = vadd.f32 %v575, %v743
    %745 = vmatmul.bf16.gmra.mxu0 %v467
    %v746 = vpop.f32.mrf.mxu0
    %v747 = vadd.f32 %v578, %v746
    %v748 = vpop.f32.mrf.mxu0
    %v749 = vadd.f32 %v580, %v748
    %750 = vmatmul.bf16.gmra.mxu0 %v470
    %v751 = vpop.f32.mrf.mxu0
    %v752 = vadd.f32 %v583, %v751
    %v753 = vpop.f32.mrf.mxu0
    %v754 = vadd.f32 %v585, %v753
    %755 = vmatmul.bf16.gmra.mxu0 %v473
    %v756 = vpop.f32.mrf.mxu0
    %v757 = vadd.f32 %v588, %v756
    %v758 = vpop.f32.mrf.mxu0
    %v759 = vadd.f32 %v590, %v758
    %760 = vmatmul.bf16.gmra.mxu0 %v476
    %v761 = vpop.f32.mrf.mxu0
    %v762 = vadd.f32 %v593, %v761
    %v763 = vpop.f32.mrf.mxu0
    %v764 = vadd.f32 %v595, %v763
    %765 = vmatmul.bf16.gmra.mxu0 %v479
    %v766 = vpop.f32.mrf.mxu0
    %v767 = vadd.f32 %v598, %v766
    %v768 = vpop.f32.mrf.mxu0
    %v769 = vadd.f32 %v600, %v768
    %770 = vmatmul.bf16.gmra.mxu0 %v482
    %v771 = vpop.f32.mrf.mxu0
    %v772 = vadd.f32 %v603, %v771
    %v773 = vpop.f32.mrf.mxu0
    %v774 = vadd.f32 %v605, %v773
    %775 = vmatmul.bf16.gmra.mxu0 %v485
    %v776 = vpop.f32.mrf.mxu0
    %v777 = vadd.f32 %v608, %v776
    %v778 = vpop.f32.mrf.mxu0
    %v779 = vadd.f32 %v610, %v778
    %780 = vmatmul.bf16.gmra.mxu0 %v488
    %v781 = vpop.f32.mrf.mxu0
    %v782 = vadd.f32 %v613, %v781
    %v783 = vpop.f32.mrf.mxu0
    %v784 = vadd.f32 %v615, %v783
    %785 = vmatmul.bf16.gmra.mxu0 %v491
    %v786 = vpop.f32.mrf.mxu0
    %v787 = vadd.f32 %v618, %v786
    %v788 = vpop.f32.mrf.mxu0
    %v789 = vadd.f32 %v620, %v788
    %790 = vmatmul.bf16.gmra.mxu0 %v494
    %v791 = vpop.f32.mrf.mxu0
    %v792 = vadd.f32 %v623, %v791
    %v793 = vpop.f32.mrf.mxu0
    %v794 = vadd.f32 %v625, %v793
    %795 = vmatmul.bf16.gmra.mxu0 %v497
    %v796 = vpop.f32.mrf.mxu0
    %v797 = vadd.f32 %v628, %v796
    %v798 = vpop.f32.mrf.mxu0
    %v799 = vadd.f32 %v630, %v798
    %800 = vmatmul.bf16.gmra.mxu0 %v500
    %v801 = vpop.f32.mrf.mxu0
    %v802 = vadd.f32 %v633, %v801
    %v803 = vpop.f32.mrf.mxu0
    %v804 = vadd.f32 %v635, %v803
    %805 = vmatmul.bf16.gmra.mxu0 %v503
    %v806 = vpop.f32.mrf.mxu0
    %v807 = vadd.f32 %v638, %v806
    %v808 = vpop.f32.mrf.mxu0
    %v809 = vadd.f32 %v640, %v808
    %810 = vmatmul.bf16.gmra.mxu0 %v506
    %v811 = vpop.f32.mrf.mxu0
    %v812 = vadd.f32 %v643, %v811
    %v813 = vpop.f32.mrf.mxu0
    %v814 = vadd.f32 %v645, %v813
    %815 = vmatmul.bf16.gmra.mxu0 %v509
    %v816 = vpop.f32.mrf.mxu0
    %v817 = vadd.f32 %v648, %v816
    %v818 = vpop.f32.mrf.mxu0
    %v819 = vadd.f32 %v650, %v818
    %820 = vmatmul.bf16.gmra.mxu0 %v512
    %v821 = vpop.f32.mrf.mxu0
    %v822 = vadd.f32 %v653, %v821
    %v823 = vpop.f32.mrf.mxu0
    %v824 = vadd.f32 %v655, %v823
    %825 = vmatmul.bf16.gmra.mxu0 %v515
    %v826 = vpop.f32.mrf.mxu0
    %v827 = vadd.f32 %v658, %v826
    %v828 = vpop.f32.mrf.mxu0
    %v829 = vadd.f32 %v660, %v828
    %830 = vmatmul.bf16.gmra.mxu0 %v518
    %v831 = vpop.f32.mrf.mxu0
    %v832 = vadd.f32 %v663, %v831
    %v833 = vpop.f32.mrf.mxu0
    %v834 = vadd.f32 %v665, %v833
    %835 = vmatmul.bf16.gmra.mxu0 %v521
    %v836 = vpop.f32.mrf.mxu0
    %v837 = vadd.f32 %v668, %v836
    %v838 = vpop.f32.mrf.mxu0
    %v839 = vadd.f32 %v670, %v838
    %840 = vmatmul.bf16.gmra.mxu0 %v524
    %v841 = vpop.f32.mrf.mxu0
    %v842 = vadd.f32 %v673, %v841
    %v843 = vpop.f32.mrf.mxu0
    %v844 = vadd.f32 %v675, %v843
    %845 = vmatmul.bf16.gmra.mxu0 %v527
    %v846 = vpop.f32.mrf.mxu0
    %v847 = vadd.f32 %v678, %v846
    %v848 = vpop.f32.mrf.mxu0
    %v849 = vadd.f32 %v680, %v848
    %850 = vmatmul.bf16.gmra.mxu0 %v530
    %v851 = vpop.f32.mrf.mxu0
    %v852 = vadd.f32 %v683, %v851
    %v853 = vpop.f32.mrf.mxu0
    %v854 = vadd.f32 %v685, %v853
    %855 = vmatmul.bf16.gmra.mxu0 %v533
    %v856 = vpop.f32.mrf.mxu0
    %v857 = vadd.f32 %v688, %v856
    %v858 = vpop.f32.mrf.mxu0
    %v859 = vadd.f32 %v690, %v858
    %860 = vmatmul.bf16.gmra.mxu0 %v536
    %v861 = vpop.f32.mrf.mxu0
    %v862 = vadd.f32 %v693, %v861
    %v863 = vpop.f32.mrf.mxu0
    %v864 = vadd.f32 %v695, %v863
    %865 = vmatmul.bf16.gmra.mxu0 %v539
    %v866 = vpop.f32.mrf.mxu0
    %v867 = vadd.f32 %v698, %v866
    %v868 = vpop.f32.mrf.mxu0
    %v869 = vadd.f32 %v700, %v868
    %870 = vmatmul.bf16.gmra.mxu0 %v542
    %v871 = vpop.f32.mrf.mxu0
    %v872 = vadd.f32 %v703, %v871
    %v873 = vpop.f32.mrf.mxu0
    %v874 = vadd.f32 %v705, %v873
    %875 = vmatmul.bf16.gmra.mxu0 %v545
    %v876 = vpop.f32.mrf.mxu0
    %v877 = vadd.f32 %v708, %v876
    %v878 = vpop.f32.mrf.mxu0
    %v879 = vadd.f32 %v710, %v878
    %880 = vmatmul.bf16.gmra.mxu0 %v548
    %v881 = vpop.f32.mrf.mxu0
    %v882 = vadd.f32 %v713, %v881
    %v883 = vpop.f32.mrf.mxu0
    %v884 = vadd.f32 %v715, %v883
    %885 = vmatmul.bf16.gmra.mxu0 %v551
    %v886 = vpop.f32.mrf.mxu0
    %v887 = vadd.f32 %v718, %v886
    %v888 = vpop.f32.mrf.mxu0
    %v889 = vadd.f32 %v720, %v888
    %890 = vdwg.mxu0
    %v891 = vld [vmem:[%s2] sm:$0x1]
    %v893 = vperm.slane %v891, 0
    %v895 = vmul.f32 %v732, %v893
    %v896 = vmul.f32 %v734, %v893
    %v897 = vmul.f32 %v737, %v893
    %v898 = vmul.f32 %v739, %v893
    %v899 = vmul.f32 %v742, %v893
    %v900 = vmul.f32 %v744, %v893
    %v901 = vmul.f32 %v747, %v893
    %v902 = vmul.f32 %v749, %v893
    %v903 = vmul.f32 %v752, %v893
    %v904 = vmul.f32 %v754, %v893
    %v905 = vmul.f32 %v757, %v893
    %v906 = vmul.f32 %v759, %v893
    %v907 = vmul.f32 %v762, %v893
    %v908 = vmul.f32 %v764, %v893
    %v909 = vmul.f32 %v767, %v893
    %v910 = vmul.f32 %v769, %v893
    %v911 = vmul.f32 %v772, %v893
    %v912 = vmul.f32 %v774, %v893
    %v913 = vmul.f32 %v777, %v893
    %v914 = vmul.f32 %v779, %v893
    %v915 = vmul.f32 %v782, %v893
    %v916 = vmul.f32 %v784, %v893
    %v917 = vmul.f32 %v787, %v893
    %v918 = vmul.f32 %v789, %v893
    %v919 = vmul.f32 %v792, %v893
    %v920 = vmul.f32 %v794, %v893
    %v921 = vmul.f32 %v797, %v893
    %v922 = vmul.f32 %v799, %v893
    %v923 = vmul.f32 %v802, %v893
    %v924 = vmul.f32 %v804, %v893
    %v925 = vmul.f32 %v807, %v893
    %v926 = vmul.f32 %v809, %v893
    %v927 = vmul.f32 %v812, %v893
    %v928 = vmul.f32 %v814, %v893
    %v929 = vmul.f32 %v817, %v893
    %v930 = vmul.f32 %v819, %v893
    %v931 = vmul.f32 %v822, %v893
    %v932 = vmul.f32 %v824, %v893
    %v933 = vmul.f32 %v827, %v893
    %v934 = vmul.f32 %v829, %v893
    %v935 = vmul.f32 %v832, %v893
    %v936 = vmul.f32 %v834, %v893
    %v937 = vmul.f32 %v837, %v893
    %v938 = vmul.f32 %v839, %v893
    %v939 = vmul.f32 %v842, %v893
    %v940 = vmul.f32 %v844, %v893
    %v941 = vmul.f32 %v847, %v893
    %v942 = vmul.f32 %v849, %v893
    %v943 = vmul.f32 %v852, %v893
    %v944 = vmul.f32 %v854, %v893
    %v945 = vmul.f32 %v857, %v893
    %v946 = vmul.f32 %v859, %v893
    %v947 = vmul.f32 %v862, %v893
    %v948 = vmul.f32 %v864, %v893
    %v949 = vmul.f32 %v867, %v893
    %v950 = vmul.f32 %v869, %v893
    %v951 = vmul.f32 %v872, %v893
    %v952 = vmul.f32 %v874, %v893
    %v953 = vmul.f32 %v877, %v893
    %v954 = vmul.f32 %v879, %v893
    %v955 = vmul.f32 %v882, %v893
    %v956 = vmul.f32 %v884, %v893
    %v957 = vmul.f32 %v887, %v893
    %v958 = vmul.f32 %v889, %v893
    %v959 = vld [vmem:[#allocation2] sm:$0x1]
    %v961 = vperm.slane %v959, 0
    %v963 = vadd.f32 %v895, %v961
    %v964 = vadd.f32 %v896, %v961
    %v965 = vadd.f32 %v897, %v961
    %v966 = vadd.f32 %v898, %v961
    %v967 = vadd.f32 %v899, %v961
    %v968 = vadd.f32 %v900, %v961
    %v969 = vadd.f32 %v901, %v961
    %v970 = vadd.f32 %v902, %v961
    %v971 = vadd.f32 %v903, %v961
    %v972 = vadd.f32 %v904, %v961
    %v973 = vadd.f32 %v905, %v961
    %v974 = vadd.f32 %v906, %v961
    %v975 = vadd.f32 %v907, %v961
    %v976 = vadd.f32 %v908, %v961
    %v977 = vadd.f32 %v909, %v961
    %v978 = vadd.f32 %v910, %v961
    %v979 = vadd.f32 %v911, %v961
    %v980 = vadd.f32 %v912, %v961
    %v981 = vadd.f32 %v913, %v961
    %v982 = vadd.f32 %v914, %v961
    %v983 = vadd.f32 %v915, %v961
    %v984 = vadd.f32 %v916, %v961
    %v985 = vadd.f32 %v917, %v961
    %v986 = vadd.f32 %v918, %v961
    %v987 = vadd.f32 %v919, %v961
    %v988 = vadd.f32 %v920, %v961
    %v989 = vadd.f32 %v921, %v961
    %v990 = vadd.f32 %v922, %v961
    %v991 = vadd.f32 %v923, %v961
    %v992 = vadd.f32 %v924, %v961
    %v993 = vadd.f32 %v925, %v961
    %v994 = vadd.f32 %v926, %v961
    %v995 = vadd.f32 %v927, %v961
    %v996 = vadd.f32 %v928, %v961
    %v997 = vadd.f32 %v929, %v961
    %v998 = vadd.f32 %v930, %v961
    %v999 = vadd.f32 %v931, %v961
    %v1000 = vadd.f32 %v932, %v961
    %v1001 = vadd.f32 %v933, %v961
    %v1002 = vadd.f32 %v934, %v961
    %v1003 = vadd.f32 %v935, %v961
    %v1004 = vadd.f32 %v936, %v961
    %v1005 = vadd.f32 %v937, %v961
    %v1006 = vadd.f32 %v938, %v961
    %v1007 = vadd.f32 %v939, %v961
    %v1008 = vadd.f32 %v940, %v961
    %v1009 = vadd.f32 %v941, %v961
    %v1010 = vadd.f32 %v942, %v961
    %v1011 = vadd.f32 %v943, %v961
    %v1012 = vadd.f32 %v944, %v961
    %v1013 = vadd.f32 %v945, %v961
    %v1014 = vadd.f32 %v946, %v961
    %v1015 = vadd.f32 %v947, %v961
    %v1016 = vadd.f32 %v948, %v961
    %v1017 = vadd.f32 %v949, %v961
    %v1018 = vadd.f32 %v950, %v961
    %v1019 = vadd.f32 %v951, %v961
    %v1020 = vadd.f32 %v952, %v961
    %v1021 = vadd.f32 %v953, %v961
    %v1022 = vadd.f32 %v954, %v961
    %v1023 = vadd.f32 %v955, %v961
    %v1024 = vadd.f32 %v956, %v961
    %v1025 = vadd.f32 %v957, %v961
    %v1026 = vadd.f32 %v958, %v961
    %vm1027 = vcmask 146432
    %1028 = vst.msk [vmem:[%s4] sm:$0xff] %vm1027, %v963
    %1029 = vst.msk [vmem:[%s4 + $0x8] sm:$0xff] %vm1027, %v964
    %1030 = vst.msk [vmem:[%s4 + $0x10] sm:$0xff] %vm1027, %v965
    %1031 = vst.msk [vmem:[%s4 + $0x18] sm:$0xff] %vm1027, %v966
    %1032 = vst.msk [vmem:[%s4 + $0x20] sm:$0xff] %vm1027, %v967
    %1033 = vst.msk [vmem:[%s4 + $0x28] sm:$0xff] %vm1027, %v968
    %1034 = vst.msk [vmem:[%s4 + $0x30] sm:$0xff] %vm1027, %v969
    %1035 = vst.msk [vmem:[%s4 + $0x38] sm:$0xff] %vm1027, %v970
    %1036 = vst.msk [vmem:[%s4 + $0x40] sm:$0xff] %vm1027, %v971
    %1037 = vst.msk [vmem:[%s4 + $0x48] sm:$0xff] %vm1027, %v972
    %1038 = vst.msk [vmem:[%s4 + $0x50] sm:$0xff] %vm1027, %v973
    %1039 = vst.msk [vmem:[%s4 + $0x58] sm:$0xff] %vm1027, %v974
    %1040 = vst.msk [vmem:[%s4 + $0x60] sm:$0xff] %vm1027, %v975
    %1041 = vst.msk [vmem:[%s4 + $0x68] sm:$0xff] %vm1027, %v976
    %1042 = vst.msk [vmem:[%s4 + $0x70] sm:$0xff] %vm1027, %v977
    %1043 = vst.msk [vmem:[%s4 + $0x78] sm:$0xff] %vm1027, %v978
    %1044 = vst.msk [vmem:[%s4 + $0x80] sm:$0xff] %vm1027, %v979
    %1045 = vst.msk [vmem:[%s4 + $0x88] sm:$0xff] %vm1027, %v980
    %1046 = vst.msk [vmem:[%s4 + $0x90] sm:$0xff] %vm1027, %v981
    %1047 = vst.msk [vmem:[%s4 + $0x98] sm:$0xff] %vm1027, %v982
    %1048 = vst.msk [vmem:[%s4 + $0xa0] sm:$0xff] %vm1027, %v983
    %1049 = vst.msk [vmem:[%s4 + $0xa8] sm:$0xff] %vm1027, %v984
    %1050 = vst.msk [vmem:[%s4 + $0xb0] sm:$0xff] %vm1027, %v985
    %1051 = vst.msk [vmem:[%s4 + $0xb8] sm:$0xff] %vm1027, %v986
    %1052 = vst.msk [vmem:[%s4 + $0xc0] sm:$0xff] %vm1027, %v987
    %1053 = vst.msk [vmem:[%s4 + $0xc8] sm:$0xff] %vm1027, %v988
    %1054 = vst.msk [vmem:[%s4 + $0xd0] sm:$0xff] %vm1027, %v989
    %1055 = vst.msk [vmem:[%s4 + $0xd8] sm:$0xff] %vm1027, %v990
    %1056 = vst.msk [vmem:[%s4 + $0xe0] sm:$0xff] %vm1027, %v991
    %1057 = vst.msk [vmem:[%s4 + $0xe8] sm:$0xff] %vm1027, %v992
    %1058 = vst.msk [vmem:[%s4 + $0xf0] sm:$0xff] %vm1027, %v993
    %1059 = vst.msk [vmem:[%s4 + $0xf8] sm:$0xff] %vm1027, %v994
    %1060 = vst.msk [vmem:[%s4 + $0x100] sm:$0xff] %vm1027, %v995
    %1061 = vst.msk [vmem:[%s4 + $0x108] sm:$0xff] %vm1027, %v996
    %1062 = vst.msk [vmem:[%s4 + $0x110] sm:$0xff] %vm1027, %v997
    %1063 = vst.msk [vmem:[%s4 + $0x118] sm:$0xff] %vm1027, %v998
    %1064 = vst.msk [vmem:[%s4 + $0x120] sm:$0xff] %vm1027, %v999
    %1065 = vst.msk [vmem:[%s4 + $0x128] sm:$0xff] %vm1027, %v1000
    %1066 = vst.msk [vmem:[%s4 + $0x130] sm:$0xff] %vm1027, %v1001
    %1067 = vst.msk [vmem:[%s4 + $0x138] sm:$0xff] %vm1027, %v1002
    %1068 = vst.msk [vmem:[%s4 + $0x140] sm:$0xff] %vm1027, %v1003
    %1069 = vst.msk [vmem:[%s4 + $0x148] sm:$0xff] %vm1027, %v1004
    %1070 = vst.msk [vmem:[%s4 + $0x150] sm:$0xff] %vm1027, %v1005
    %1071 = vst.msk [vmem:[%s4 + $0x158] sm:$0xff] %vm1027, %v1006
    %1072 = vst.msk [vmem:[%s4 + $0x160] sm:$0xff] %vm1027, %v1007
    %1073 = vst.msk [vmem:[%s4 + $0x168] sm:$0xff] %vm1027, %v1008
    %1074 = vst.msk [vmem:[%s4 + $0x170] sm:$0xff] %vm1027, %v1009
    %1075 = vst.msk [vmem:[%s4 + $0x178] sm:$0xff] %vm1027, %v1010
    %1076 = vst.msk [vmem:[%s4 + $0x180] sm:$0xff] %vm1027, %v1011
    %1077 = vst.msk [vmem:[%s4 + $0x188] sm:$0xff] %vm1027, %v1012
    %1078 = vst.msk [vmem:[%s4 + $0x190] sm:$0xff] %vm1027, %v1013
    %1079 = vst.msk [vmem:[%s4 + $0x198] sm:$0xff] %vm1027, %v1014
    %1080 = vst.msk [vmem:[%s4 + $0x1a0] sm:$0xff] %vm1027, %v1015
    %1081 = vst.msk [vmem:[%s4 + $0x1a8] sm:$0xff] %vm1027, %v1016
    %1082 = vst.msk [vmem:[%s4 + $0x1b0] sm:$0xff] %vm1027, %v1017
    %1083 = vst.msk [vmem:[%s4 + $0x1b8] sm:$0xff] %vm1027, %v1018
    %1084 = vst.msk [vmem:[%s4 + $0x1c0] sm:$0xff] %vm1027, %v1019
    %1085 = vst.msk [vmem:[%s4 + $0x1c8] sm:$0xff] %vm1027, %v1020
    %1086 = vst.msk [vmem:[%s4 + $0x1d0] sm:$0xff] %vm1027, %v1021
    %1087 = vst.msk [vmem:[%s4 + $0x1d8] sm:$0xff] %vm1027, %v1022
    %1088 = vst.msk [vmem:[%s4 + $0x1e0] sm:$0xff] %vm1027, %v1023
    %1089 = vst.msk [vmem:[%s4 + $0x1e8] sm:$0xff] %vm1027, %v1024
    %1090 = vst.msk [vmem:[%s4 + $0x1f0] sm:$0xff] %vm1027, %v1025
    %1091 = vst.msk [vmem:[%s4 + $0x1f8] sm:$0xff] %vm1027, %v1026
    // Predicated region
    $region22: #{_lambda_.9} parent=1 // pred_check
      _
    $region23: #{_lambda_.9} parent=1 // pred_check_branch
      %1093 = sbr.rel (0) target = $region25
    $region24: #{_lambda_.9} parent=1 // pred_region
      _
    $region25: #{_lambda_.9} parent=1 // pred_fallthru
      _
    // Predicated region
    $region26: #{_lambda_.9} parent=1 // pred_check
      _
    $region27: #{_lambda_.9} parent=1 // pred_check_branch
      %1095 = sbr.rel (0) target = $region29
    $region28: #{_lambda_.9} parent=1 // pred_region
      _
    $region29: #{_lambda_.9} parent=1 // pred_fallthru
      _
    %1096 = vsyncpa [#allocation3], 1

// kernel: _lambda_.10
$region0: #{_lambda_.10}
  #allocation0 [shape = 'u32[]', space=smem, size = 0x4, offset = 0x4, fixed_abs, tag = 'smem constant byte address 0x4 - core index']
  #allocation1 [shape = 'u32[72,128]{1,0:T(1,128)}', space=vmem, size = 0x9000, scoped, tag = 'internal scratch']
  %s0 = inlined_call_operand.vmem [shape: bf16[512,144], index: 0, kind: input, shape index: {}]
  %s1 = inlined_call_operand.vmem [shape: bf16[144,16], index: 1, kind: input, shape index: {}]
  %s2 = inlined_call_operand.vmem [shape: f32[1,16], index: 2, kind: input, shape index: {}]
  %s3 = inlined_call_operand.vmem [shape: f32[1,16], index: 3, kind: input, shape index: {}]
  %s4 = inlined_call_operand.vmem [shape: f32[512,16], index: 4, kind: output, shape index: {}]
  %s5 = sld [smem:[#allocation0]]
  $region26: #{_lambda_.10} parent=0
    _
  %s7 = ssub.s32 1, %s5
  %s8 = scalar_select 0, %s7, %s5
  // Predicated region
  $region2: #{_lambda_.10} parent=0 // pred_check
    _
  $region3: #{_lambda_.10} parent=0 // pred_check_branch
    %10 = sbr.rel (0) target = $region5
  $region4: #{_lambda_.10} parent=0 // pred_region
    _
  $region5: #{_lambda_.10} parent=0 // pred_fallthru
    _
  // Predicated region
  $region6: #{_lambda_.10} parent=0 // pred_check
    _
  $region7: #{_lambda_.10} parent=0 // pred_check_branch
    %12 = sbr.rel (0) target = $region9
  $region8: #{_lambda_.10} parent=0 // pred_region
    _
  $region9: #{_lambda_.10} parent=0 // pred_fallthru
    _
  // Predicated region
  $region10: #{_lambda_.10} parent=0 // pred_check
    _
  $region11: #{_lambda_.10} parent=0 // pred_check_branch
    %14 = sbr.rel (0) target = $region13
  $region12: #{_lambda_.10} parent=0 // pred_region
    _
  $region13: #{_lambda_.10} parent=0 // pred_fallthru
    _
  // Predicated region
  $region14: #{_lambda_.10} parent=0 // pred_check
    _
  $region15: #{_lambda_.10} parent=0 // pred_check_branch
    %16 = sbr.rel (0) target = $region17
  $region16: #{_lambda_.10} parent=0 // pred_region
    _
  $region17: #{_lambda_.10} parent=0 // pred_fallthru
    _
  %v18 = vld [vmem:[%s0] sm:$0xff]
  %v19 = vld [vmem:[%s0 + $0x8] sm:$0xff]
  %v20 = vld [vmem:[%s0 + $0x10] sm:$0xff]
  %v21 = vld [vmem:[%s0 + $0x18] sm:$0xff]
  %v22 = vld [vmem:[%s0 + $0x20] sm:$0xff]
  %v23 = vld [vmem:[%s0 + $0x28] sm:$0xff]
  %v24 = vld [vmem:[%s0 + $0x30] sm:$0xff]
  %v25 = vld [vmem:[%s0 + $0x38] sm:$0xff]
  %v26 = vld [vmem:[%s0 + $0x40] sm:$0xff]
  %v27 = vld [vmem:[%s0 + $0x48] sm:$0xff]
  %v28 = vld [vmem:[%s0 + $0x50] sm:$0xff]
  %v29 = vld [vmem:[%s0 + $0x58] sm:$0xff]
  %v30 = vld [vmem:[%s0 + $0x60] sm:$0xff]
  %v31 = vld [vmem:[%s0 + $0x68] sm:$0xff]
  %v32 = vld [vmem:[%s0 + $0x70] sm:$0xff]
  %v33 = vld [vmem:[%s0 + $0x78] sm:$0xff]
  %v34 = vld [vmem:[%s0 + $0x80] sm:$0xff]
  %v35 = vld [vmem:[%s0 + $0x88] sm:$0xff]
  %v36 = vld [vmem:[%s0 + $0x90] sm:$0xff]
  %v37 = vld [vmem:[%s0 + $0x98] sm:$0xff]
  %v38 = vld [vmem:[%s0 + $0xa0] sm:$0xff]
  %v39 = vld [vmem:[%s0 + $0xa8] sm:$0xff]
  %v40 = vld [vmem:[%s0 + $0xb0] sm:$0xff]
  %v41 = vld [vmem:[%s0 + $0xb8] sm:$0xff]
  %v42 = vld [vmem:[%s0 + $0xc0] sm:$0xff]
  %v43 = vld [vmem:[%s0 + $0xc8] sm:$0xff]
  %v44 = vld [vmem:[%s0 + $0xd0] sm:$0xff]
  %v45 = vld [vmem:[%s0 + $0xd8] sm:$0xff]
  %v46 = vld [vmem:[%s0 + $0xe0] sm:$0xff]
  %v47 = vld [vmem:[%s0 + $0xe8] sm:$0xff]
  %v48 = vld [vmem:[%s0 + $0xf0] sm:$0xff]
  %v49 = vld [vmem:[%s0 + $0xf8] sm:$0xff]
  %v50 = vld [vmem:[%s0 + $0x100] sm:$0xff]
  %v51 = vld [vmem:[%s0 + $0x108] sm:$0xff]
  %v52 = vld [vmem:[%s0 + $0x110] sm:$0xff]
  %v53 = vld [vmem:[%s0 + $0x118] sm:$0xff]
  %v54 = vld [vmem:[%s0 + $0x120] sm:$0xff]
  %v55 = vld [vmem:[%s0 + $0x128] sm:$0xff]
  %v56 = vld [vmem:[%s0 + $0x130] sm:$0xff]
  %v57 = vld [vmem:[%s0 + $0x138] sm:$0xff]
  %v58 = vld [vmem:[%s0 + $0x140] sm:$0xff]
  %v59 = vld [vmem:[%s0 + $0x148] sm:$0xff]
  %v60 = vld [vmem:[%s0 + $0x150] sm:$0xff]
  %v61 = vld [vmem:[%s0 + $0x158] sm:$0xff]
  %v62 = vld [vmem:[%s0 + $0x160] sm:$0xff]
  %v63 = vld [vmem:[%s0 + $0x168] sm:$0xff]
  %v64 = vld [vmem:[%s0 + $0x170] sm:$0xff]
  %v65 = vld [vmem:[%s0 + $0x178] sm:$0xff]
  %v66 = vld [vmem:[%s0 + $0x180] sm:$0xff]
  %v67 = vld [vmem:[%s0 + $0x188] sm:$0xff]
  %v68 = vld [vmem:[%s0 + $0x190] sm:$0xff]
  %v69 = vld [vmem:[%s0 + $0x198] sm:$0xff]
  %v70 = vld [vmem:[%s0 + $0x1a0] sm:$0xff]
  %v71 = vld [vmem:[%s0 + $0x1a8] sm:$0xff]
  %v72 = vld [vmem:[%s0 + $0x1b0] sm:$0xff]
  %v73 = vld [vmem:[%s0 + $0x1b8] sm:$0xff]
  %v74 = vld [vmem:[%s0 + $0x1c0] sm:$0xff]
  %v75 = vld [vmem:[%s0 + $0x1c8] sm:$0xff]
  %v76 = vld [vmem:[%s0 + $0x1d0] sm:$0xff]
  %v77 = vld [vmem:[%s0 + $0x1d8] sm:$0xff]
  %v78 = vld [vmem:[%s0 + $0x1e0] sm:$0xff]
  %v79 = vld [vmem:[%s0 + $0x1e8] sm:$0xff]
  %v80 = vld [vmem:[%s0 + $0x1f0] sm:$0xff]
  %v81 = vld [vmem:[%s0 + $0x1f8] sm:$0xff]
  %v82 = vld [vmem:[%s1] sm:$0xf]
  %v83 = vld [vmem:[%s1 + $0x4] sm:$0xf]
  %v84 = vld [vmem:[%s1 + $0x8] sm:$0xf]
  %v85 = vld [vmem:[%s1 + $0xc] sm:$0xf]
  %v86 = vld [vmem:[%s1 + $0x10] sm:$0xf]
  %v87 = vld [vmem:[%s1 + $0x14] sm:$0xf]
  %v88 = vld [vmem:[%s1 + $0x18] sm:$0xf]
  %v89 = vld [vmem:[%s1 + $0x1c] sm:$0xf]
  %v90 = vld [vmem:[%s1 + $0x20] sm:$0xf]
  %v91 = vld [vmem:[%s1 + $0x24] sm:$0xf]
  %v92 = vld [vmem:[%s1 + $0x28] sm:$0xf]
  %v93 = vld [vmem:[%s1 + $0x2c] sm:$0xf]
  %v94 = vld [vmem:[%s1 + $0x30] sm:$0xf]
  %v95 = vld [vmem:[%s1 + $0x34] sm:$0xf]
  %v96 = vld [vmem:[%s1 + $0x38] sm:$0xf]
  %v97 = vld [vmem:[%s1 + $0x3c] sm:$0xf]
  %v98 = vld [vmem:[%s1 + $0x40] sm:$0xf]
  %v99 = vld [vmem:[%s1 + $0x44] sm:$0xf]
  %v164 = vunpack.c.l.b16 %v18
  %v165 = vunpack.c.h.b16 %v18
  %v166 = vunpack.c.l.b16 %v19
  %v167 = vunpack.c.h.b16 %v19
  %v168 = vunpack.c.l.b16 %v20
  %v169 = vunpack.c.h.b16 %v20
  %v170 = vunpack.c.l.b16 %v21
  %v171 = vunpack.c.h.b16 %v21
  %v172 = vunpack.c.l.b16 %v22
  %v173 = vunpack.c.h.b16 %v22
  %v174 = vunpack.c.l.b16 %v23
  %v175 = vunpack.c.h.b16 %v23
  %v176 = vunpack.c.l.b16 %v24
  %v177 = vunpack.c.h.b16 %v24
  %v178 = vunpack.c.l.b16 %v25
  %v179 = vunpack.c.h.b16 %v25
  %v180 = vunpack.c.l.b16 %v26
  %v181 = vunpack.c.h.b16 %v26
  %v182 = vunpack.c.l.b16 %v27
  %v183 = vunpack.c.h.b16 %v27
  %v184 = vunpack.c.l.b16 %v28
  %v185 = vunpack.c.h.b16 %v28
  %v186 = vunpack.c.l.b16 %v29
  %v187 = vunpack.c.h.b16 %v29
  %v188 = vunpack.c.l.b16 %v30
  %v189 = vunpack.c.h.b16 %v30
  %v190 = vunpack.c.l.b16 %v31
  %v191 = vunpack.c.h.b16 %v31
  %v192 = vunpack.c.l.b16 %v32
  %v193 = vunpack.c.h.b16 %v32
  %v194 = vunpack.c.l.b16 %v33
  %v195 = vunpack.c.h.b16 %v33
  %v196 = vunpack.c.l.b16 %v34
  %v197 = vunpack.c.h.b16 %v34
  %v198 = vunpack.c.l.b16 %v35
  %v199 = vunpack.c.h.b16 %v35
  %v200 = vunpack.c.l.b16 %v36
  %v201 = vunpack.c.h.b16 %v36
  %v202 = vunpack.c.l.b16 %v37
  %v203 = vunpack.c.h.b16 %v37
  %v204 = vunpack.c.l.b16 %v38
  %v205 = vunpack.c.h.b16 %v38
  %v206 = vunpack.c.l.b16 %v39
  %v207 = vunpack.c.h.b16 %v39
  %v208 = vunpack.c.l.b16 %v40
  %v209 = vunpack.c.h.b16 %v40
  %v210 = vunpack.c.l.b16 %v41
  %v211 = vunpack.c.h.b16 %v41
  %v212 = vunpack.c.l.b16 %v42
  %v213 = vunpack.c.h.b16 %v42
  %v214 = vunpack.c.l.b16 %v43
  %v215 = vunpack.c.h.b16 %v43
  %v216 = vunpack.c.l.b16 %v44
  %v217 = vunpack.c.h.b16 %v44
  %v218 = vunpack.c.l.b16 %v45
  %v219 = vunpack.c.h.b16 %v45
  %v220 = vunpack.c.l.b16 %v46
  %v221 = vunpack.c.h.b16 %v46
  %v222 = vunpack.c.l.b16 %v47
  %v223 = vunpack.c.h.b16 %v47
  %v224 = vunpack.c.l.b16 %v48
  %v225 = vunpack.c.h.b16 %v48
  %v226 = vunpack.c.l.b16 %v49
  %v227 = vunpack.c.h.b16 %v49
  %v228 = vunpack.c.l.b16 %v50
  %v229 = vunpack.c.h.b16 %v50
  %v230 = vunpack.c.l.b16 %v51
  %v231 = vunpack.c.h.b16 %v51
  %v232 = vunpack.c.l.b16 %v52
  %v233 = vunpack.c.h.b16 %v52
  %v234 = vunpack.c.l.b16 %v53
  %v235 = vunpack.c.h.b16 %v53
  %v236 = vunpack.c.l.b16 %v54
  %v237 = vunpack.c.h.b16 %v54
  %v238 = vunpack.c.l.b16 %v55
  %v239 = vunpack.c.h.b16 %v55
  %v240 = vunpack.c.l.b16 %v56
  %v241 = vunpack.c.h.b16 %v56
  %v242 = vunpack.c.l.b16 %v57
  %v243 = vunpack.c.h.b16 %v57
  %v244 = vunpack.c.l.b16 %v58
  %v245 = vunpack.c.h.b16 %v58
  %v246 = vunpack.c.l.b16 %v59
  %v247 = vunpack.c.h.b16 %v59
  %v248 = vunpack.c.l.b16 %v60
  %v249 = vunpack.c.h.b16 %v60
  %v250 = vunpack.c.l.b16 %v61
  %v251 = vunpack.c.h.b16 %v61
  %v252 = vunpack.c.l.b16 %v62
  %v253 = vunpack.c.h.b16 %v62
  %v254 = vunpack.c.l.b16 %v63
  %v255 = vunpack.c.h.b16 %v63
  %v256 = vunpack.c.l.b16 %v64
  %v257 = vunpack.c.h.b16 %v64
  %v258 = vunpack.c.l.b16 %v65
  %v259 = vunpack.c.h.b16 %v65
  %v260 = vunpack.c.l.b16 %v66
  %v261 = vunpack.c.h.b16 %v66
  %v262 = vunpack.c.l.b16 %v67
  %v263 = vunpack.c.h.b16 %v67
  %v264 = vunpack.c.l.b16 %v68
  %v265 = vunpack.c.h.b16 %v68
  %v266 = vunpack.c.l.b16 %v69
  %v267 = vunpack.c.h.b16 %v69
  %v268 = vunpack.c.l.b16 %v70
  %v269 = vunpack.c.h.b16 %v70
  %v270 = vunpack.c.l.b16 %v71
  %v271 = vunpack.c.h.b16 %v71
  %v272 = vunpack.c.l.b16 %v72
  %v273 = vunpack.c.h.b16 %v72
  %v274 = vunpack.c.l.b16 %v73
  %v275 = vunpack.c.h.b16 %v73
  %v276 = vunpack.c.l.b16 %v74
  %v277 = vunpack.c.h.b16 %v74
  %v278 = vunpack.c.l.b16 %v75
  %v279 = vunpack.c.h.b16 %v75
  %v280 = vunpack.c.l.b16 %v76
  %v281 = vunpack.c.h.b16 %v76
  %v282 = vunpack.c.l.b16 %v77
  %v283 = vunpack.c.h.b16 %v77
  %v284 = vunpack.c.l.b16 %v78
  %v285 = vunpack.c.h.b16 %v78
  %v286 = vunpack.c.l.b16 %v79
  %v287 = vunpack.c.h.b16 %v79
  %v288 = vunpack.c.l.b16 %v80
  %v289 = vunpack.c.h.b16 %v80
  %v290 = vunpack.c.l.b16 %v81
  %v291 = vunpack.c.h.b16 %v81
  %v292 = vpack.c.b16 %v166, %v164
  %v293 = vpack.c.b16 %v167, %v165
  %v294 = vpack.c.b16 %v170, %v168
  %v295 = vpack.c.b16 %v171, %v169
  %v296 = vpack.c.b16 %v174, %v172
  %v297 = vpack.c.b16 %v175, %v173
  %v298 = vpack.c.b16 %v178, %v176
  %v299 = vpack.c.b16 %v179, %v177
  %v300 = vpack.c.b16 %v182, %v180
  %v301 = vpack.c.b16 %v183, %v181
  %v302 = vpack.c.b16 %v186, %v184
  %v303 = vpack.c.b16 %v187, %v185
  %v304 = vpack.c.b16 %v190, %v188
  %v305 = vpack.c.b16 %v191, %v189
  %v306 = vpack.c.b16 %v194, %v192
  %v307 = vpack.c.b16 %v195, %v193
  %v308 = vpack.c.b16 %v198, %v196
  %v309 = vpack.c.b16 %v199, %v197
  %v310 = vpack.c.b16 %v202, %v200
  %v311 = vpack.c.b16 %v203, %v201
  %v312 = vpack.c.b16 %v206, %v204
  %v313 = vpack.c.b16 %v207, %v205
  %v314 = vpack.c.b16 %v210, %v208
  %v315 = vpack.c.b16 %v211, %v209
  %v316 = vpack.c.b16 %v214, %v212
  %v317 = vpack.c.b16 %v215, %v213
  %v318 = vpack.c.b16 %v218, %v216
  %v319 = vpack.c.b16 %v219, %v217
  %v320 = vpack.c.b16 %v222, %v220
  %v321 = vpack.c.b16 %v223, %v221
  %v322 = vpack.c.b16 %v226, %v224
  %v323 = vpack.c.b16 %v227, %v225
  %v324 = vpack.c.b16 %v230, %v228
  %v325 = vpack.c.b16 %v231, %v229
  %v326 = vpack.c.b16 %v234, %v232
  %v327 = vpack.c.b16 %v235, %v233
  %v328 = vpack.c.b16 %v238, %v236
  %v329 = vpack.c.b16 %v239, %v237
  %v330 = vpack.c.b16 %v242, %v240
  %v331 = vpack.c.b16 %v243, %v241
  %v332 = vpack.c.b16 %v246, %v244
  %v333 = vpack.c.b16 %v247, %v245
  %v334 = vpack.c.b16 %v250, %v248
  %v335 = vpack.c.b16 %v251, %v249
  %v336 = vpack.c.b16 %v254, %v252
  %v337 = vpack.c.b16 %v255, %v253
  %v338 = vpack.c.b16 %v258, %v256
  %v339 = vpack.c.b16 %v259, %v257
  %v340 = vpack.c.b16 %v262, %v260
  %v341 = vpack.c.b16 %v263, %v261
  %v342 = vpack.c.b16 %v266, %v264
  %v343 = vpack.c.b16 %v267, %v265
  %v344 = vpack.c.b16 %v270, %v268
  %v345 = vpack.c.b16 %v271, %v269
  %v346 = vpack.c.b16 %v274, %v272
  %v347 = vpack.c.b16 %v275, %v273
  %v348 = vpack.c.b16 %v278, %v276
  %v349 = vpack.c.b16 %v279, %v277
  %v350 = vpack.c.b16 %v282, %v280
  %v351 = vpack.c.b16 %v283, %v281
  %v352 = vpack.c.b16 %v286, %v284
  %v353 = vpack.c.b16 %v287, %v285
  %v354 = vpack.c.b16 %v290, %v288
  %v355 = vpack.c.b16 %v291, %v289
  %v406 = vunpack.c.l.b16 %v82
  %v407 = vunpack.c.l.b16 %v83
  %v408 = vunpack.c.l.b16 %v84
  %v409 = vunpack.c.l.b16 %v85
  %v410 = vunpack.c.l.b16 %v86
  %v411 = vunpack.c.l.b16 %v87
  %v412 = vunpack.c.l.b16 %v88
  %v413 = vunpack.c.l.b16 %v89
  %v414 = vunpack.c.l.b16 %v90
  %v415 = vunpack.c.l.b16 %v91
  %v416 = vunpack.c.l.b16 %v92
  %v417 = vunpack.c.l.b16 %v93
  %v418 = vunpack.c.l.b16 %v94
  %v419 = vunpack.c.l.b16 %v95
  %v420 = vunpack.c.l.b16 %v96
  %v421 = vunpack.c.l.b16 %v97
  %v422 = vunpack.c.l.b16 %v98
  %v423 = vunpack.c.l.b16 %v99
  %v424 = vpack.c.b16 %v407, %v406
  %v425 = vpack.c.b16 %v409, %v408
  %v426 = vpack.c.b16 %v411, %v410
  %v427 = vpack.c.b16 %v413, %v412
  %v428 = vpack.c.b16 %v415, %v414
  %v429 = vpack.c.b16 %v417, %v416
  %v430 = vpack.c.b16 %v419, %v418
  %v431 = vpack.c.b16 %v421, %v420
  %v432 = vpack.c.b16 %v423, %v422
  %vm442 = vcmask 130048
  %v444 = vsel %vm442, %v293, 0
  %v447 = vsel %vm442, %v295, 0
  %v450 = vsel %vm442, %v297, 0
  %v453 = vsel %vm442, %v299, 0
  %v456 = vsel %vm442, %v301, 0
  %v459 = vsel %vm442, %v303, 0
  %v462 = vsel %vm442, %v305, 0
  %v465 = vsel %vm442, %v307, 0
  %v468 = vsel %vm442, %v309, 0
  %v471 = vsel %vm442, %v311, 0
  %v474 = vsel %vm442, %v313, 0
  %v477 = vsel %vm442, %v315, 0
  %v480 = vsel %vm442, %v317, 0
  %v483 = vsel %vm442, %v319, 0
  %v486 = vsel %vm442, %v321, 0
  %v489 = vsel %vm442, %v323, 0
  %v492 = vsel %vm442, %v325, 0
  %v495 = vsel %vm442, %v327, 0
  %v498 = vsel %vm442, %v329, 0
  %v501 = vsel %vm442, %v331, 0
  %v504 = vsel %vm442, %v333, 0
  %v507 = vsel %vm442, %v335, 0
  %v510 = vsel %vm442, %v337, 0
  %v513 = vsel %vm442, %v339, 0
  %v516 = vsel %vm442, %v341, 0
  %v519 = vsel %vm442, %v343, 0
  %v522 = vsel %vm442, %v345, 0
  %v525 = vsel %vm442, %v347, 0
  %v528 = vsel %vm442, %v349, 0
  %v531 = vsel %vm442, %v351, 0
  %v534 = vsel %vm442, %v353, 0
  %v537 = vsel %vm442, %v355, 0
  %539 = vmatpush.bf16.msra.mxu0 %v431
  %540 = vmatpush.bf16.msra.mxu0 %v430
  %541 = vmatpush.bf16.msra.mxu0 %v429
  %542 = vmatpush.bf16.msra.mxu0 %v428
  %543 = vmatpush.bf16.msra.mxu0 %v427
  %544 = vmatpush.bf16.msra.mxu0 %v426
  %545 = vmatpush.bf16.msra.mxu0 %v425
  %546 = vmatpush.bf16.msra.mxu0 %v424
  %547 = vmatmul.bf16.gmra.mxu0 %v292
  %v548 = vpop.f32.mrf.mxu0
  %v549 = vadd.f32 0.0, %v548
  %v550 = vpop.f32.mrf.mxu0
  %v551 = vadd.f32 0.0, %v550
  %552 = vmatmul.bf16.gmra.mxu0 %v294
  %v553 = vpop.f32.mrf.mxu0
  %v554 = vadd.f32 0.0, %v553
  %v555 = vpop.f32.mrf.mxu0
  %v556 = vadd.f32 0.0, %v555
  %557 = vmatmul.bf16.gmra.mxu0 %v296
  %v558 = vpop.f32.mrf.mxu0
  %v559 = vadd.f32 0.0, %v558
  %v560 = vpop.f32.mrf.mxu0
  %v561 = vadd.f32 0.0, %v560
  %562 = vmatmul.bf16.gmra.mxu0 %v298
  %v563 = vpop.f32.mrf.mxu0
  %v564 = vadd.f32 0.0, %v563
  %v565 = vpop.f32.mrf.mxu0
  %v566 = vadd.f32 0.0, %v565
  %567 = vmatmul.bf16.gmra.mxu0 %v300
  %v568 = vpop.f32.mrf.mxu0
  %v569 = vadd.f32 0.0, %v568
  %v570 = vpop.f32.mrf.mxu0
  %v571 = vadd.f32 0.0, %v570
  %572 = vmatmul.bf16.gmra.mxu0 %v302
  %v573 = vpop.f32.mrf.mxu0
  %v574 = vadd.f32 0.0, %v573
  %v575 = vpop.f32.mrf.mxu0
  %v576 = vadd.f32 0.0, %v575
  %577 = vmatmul.bf16.gmra.mxu0 %v304
  %v578 = vpop.f32.mrf.mxu0
  %v579 = vadd.f32 0.0, %v578
  %v580 = vpop.f32.mrf.mxu0
  %v581 = vadd.f32 0.0, %v580
  %582 = vmatmul.bf16.gmra.mxu0 %v306
  %v583 = vpop.f32.mrf.mxu0
  %v584 = vadd.f32 0.0, %v583
  %v585 = vpop.f32.mrf.mxu0
  %v586 = vadd.f32 0.0, %v585
  %587 = vmatmul.bf16.gmra.mxu0 %v308
  %v588 = vpop.f32.mrf.mxu0
  %v589 = vadd.f32 0.0, %v588
  %v590 = vpop.f32.mrf.mxu0
  %v591 = vadd.f32 0.0, %v590
  %592 = vmatmul.bf16.gmra.mxu0 %v310
  %v593 = vpop.f32.mrf.mxu0
  %v594 = vadd.f32 0.0, %v593
  %v595 = vpop.f32.mrf.mxu0
  %v596 = vadd.f32 0.0, %v595
  %597 = vmatmul.bf16.gmra.mxu0 %v312
  %v598 = vpop.f32.mrf.mxu0
  %v599 = vadd.f32 0.0, %v598
  %v600 = vpop.f32.mrf.mxu0
  %v601 = vadd.f32 0.0, %v600
  %602 = vmatmul.bf16.gmra.mxu0 %v314
  %v603 = vpop.f32.mrf.mxu0
  %v604 = vadd.f32 0.0, %v603
  %v605 = vpop.f32.mrf.mxu0
  %v606 = vadd.f32 0.0, %v605
  %607 = vmatmul.bf16.gmra.mxu0 %v316
  %v608 = vpop.f32.mrf.mxu0
  %v609 = vadd.f32 0.0, %v608
  %v610 = vpop.f32.mrf.mxu0
  %v611 = vadd.f32 0.0, %v610
  %612 = vmatmul.bf16.gmra.mxu0 %v318
  %v613 = vpop.f32.mrf.mxu0
  %v614 = vadd.f32 0.0, %v613
  %v615 = vpop.f32.mrf.mxu0
  %v616 = vadd.f32 0.0, %v615
  %617 = vmatmul.bf16.gmra.mxu0 %v320
  %v618 = vpop.f32.mrf.mxu0
  %v619 = vadd.f32 0.0, %v618
  %v620 = vpop.f32.mrf.mxu0
  %v621 = vadd.f32 0.0, %v620
  %622 = vmatmul.bf16.gmra.mxu0 %v322
  %v623 = vpop.f32.mrf.mxu0
  %v624 = vadd.f32 0.0, %v623
  %v625 = vpop.f32.mrf.mxu0
  %v626 = vadd.f32 0.0, %v625
  %627 = vmatmul.bf16.gmra.mxu0 %v324
  %v628 = vpop.f32.mrf.mxu0
  %v629 = vadd.f32 0.0, %v628
  %v630 = vpop.f32.mrf.mxu0
  %v631 = vadd.f32 0.0, %v630
  %632 = vmatmul.bf16.gmra.mxu0 %v326
  %v633 = vpop.f32.mrf.mxu0
  %v634 = vadd.f32 0.0, %v633
  %v635 = vpop.f32.mrf.mxu0
  %v636 = vadd.f32 0.0, %v635
  %637 = vmatmul.bf16.gmra.mxu0 %v328
  %v638 = vpop.f32.mrf.mxu0
  %v639 = vadd.f32 0.0, %v638
  %v640 = vpop.f32.mrf.mxu0
  %v641 = vadd.f32 0.0, %v640
  %642 = vmatmul.bf16.gmra.mxu0 %v330
  %v643 = vpop.f32.mrf.mxu0
  %v644 = vadd.f32 0.0, %v643
  %v645 = vpop.f32.mrf.mxu0
  %v646 = vadd.f32 0.0, %v645
  %647 = vmatmul.bf16.gmra.mxu0 %v332
  %v648 = vpop.f32.mrf.mxu0
  %v649 = vadd.f32 0.0, %v648
  %v650 = vpop.f32.mrf.mxu0
  %v651 = vadd.f32 0.0, %v650
  %652 = vmatmul.bf16.gmra.mxu0 %v334
  %v653 = vpop.f32.mrf.mxu0
  %v654 = vadd.f32 0.0, %v653
  %v655 = vpop.f32.mrf.mxu0
  %v656 = vadd.f32 0.0, %v655
  %657 = vmatmul.bf16.gmra.mxu0 %v336
  %v658 = vpop.f32.mrf.mxu0
  %v659 = vadd.f32 0.0, %v658
  %v660 = vpop.f32.mrf.mxu0
  %v661 = vadd.f32 0.0, %v660
  %662 = vmatmul.bf16.gmra.mxu0 %v338
  %v663 = vpop.f32.mrf.mxu0
  %v664 = vadd.f32 0.0, %v663
  %v665 = vpop.f32.mrf.mxu0
  %v666 = vadd.f32 0.0, %v665
  %667 = vmatmul.bf16.gmra.mxu0 %v340
  %v668 = vpop.f32.mrf.mxu0
  %v669 = vadd.f32 0.0, %v668
  %v670 = vpop.f32.mrf.mxu0
  %v671 = vadd.f32 0.0, %v670
  %672 = vmatmul.bf16.gmra.mxu0 %v342
  %v673 = vpop.f32.mrf.mxu0
  %v674 = vadd.f32 0.0, %v673
  %v675 = vpop.f32.mrf.mxu0
  %v676 = vadd.f32 0.0, %v675
  %677 = vmatmul.bf16.gmra.mxu0 %v344
  %v678 = vpop.f32.mrf.mxu0
  %v679 = vadd.f32 0.0, %v678
  %v680 = vpop.f32.mrf.mxu0
  %v681 = vadd.f32 0.0, %v680
  %682 = vmatmul.bf16.gmra.mxu0 %v346
  %v683 = vpop.f32.mrf.mxu0
  %v684 = vadd.f32 0.0, %v683
  %v685 = vpop.f32.mrf.mxu0
  %v686 = vadd.f32 0.0, %v685
  %687 = vmatmul.bf16.gmra.mxu0 %v348
  %v688 = vpop.f32.mrf.mxu0
  %v689 = vadd.f32 0.0, %v688
  %v690 = vpop.f32.mrf.mxu0
  %v691 = vadd.f32 0.0, %v690
  %692 = vmatmul.bf16.gmra.mxu0 %v350
  %v693 = vpop.f32.mrf.mxu0
  %v694 = vadd.f32 0.0, %v693
  %v695 = vpop.f32.mrf.mxu0
  %v696 = vadd.f32 0.0, %v695
  %697 = vmatmul.bf16.gmra.mxu0 %v352
  %v698 = vpop.f32.mrf.mxu0
  %v699 = vadd.f32 0.0, %v698
  %v700 = vpop.f32.mrf.mxu0
  %v701 = vadd.f32 0.0, %v700
  %702 = vmatmul.bf16.gmra.mxu0 %v354
  %v703 = vpop.f32.mrf.mxu0
  %v704 = vadd.f32 0.0, %v703
  %v705 = vpop.f32.mrf.mxu0
  %v706 = vadd.f32 0.0, %v705
  %707 = vdwg.mxu0
  %708 = vmatpush.bf16.msra.mxu0 0
  %709 = vmatpush.bf16.msra.mxu0 0
  %710 = vmatpush.bf16.msra.mxu0 0
  %711 = vmatpush.bf16.msra.mxu0 0
  %712 = vmatpush.bf16.msra.mxu0 0
  %713 = vmatpush.bf16.msra.mxu0 0
  %714 = vmatpush.bf16.msra.mxu0 0
  %715 = vmatpush.bf16.msra.mxu0 %v432
  %716 = vmatmul.bf16.gmra.mxu0 %v444
  %v717 = vpop.f32.mrf.mxu0
  %v718 = vadd.f32 %v549, %v717
  %v719 = vpop.f32.mrf.mxu0
  %v720 = vadd.f32 %v551, %v719
  %721 = vmatmul.bf16.gmra.mxu0 %v447
  %v722 = vpop.f32.mrf.mxu0
  %v723 = vadd.f32 %v554, %v722
  %v724 = vpop.f32.mrf.mxu0
  %v725 = vadd.f32 %v556, %v724
  %726 = vmatmul.bf16.gmra.mxu0 %v450
  %v727 = vpop.f32.mrf.mxu0
  %v728 = vadd.f32 %v559, %v727
  %v729 = vpop.f32.mrf.mxu0
  %v730 = vadd.f32 %v561, %v729
  %731 = vmatmul.bf16.gmra.mxu0 %v453
  %v732 = vpop.f32.mrf.mxu0
  %v733 = vadd.f32 %v564, %v732
  %v734 = vpop.f32.mrf.mxu0
  %v735 = vadd.f32 %v566, %v734
  %736 = vmatmul.bf16.gmra.mxu0 %v456
  %v737 = vpop.f32.mrf.mxu0
  %v738 = vadd.f32 %v569, %v737
  %v739 = vpop.f32.mrf.mxu0
  %v740 = vadd.f32 %v571, %v739
  %741 = vmatmul.bf16.gmra.mxu0 %v459
  %v742 = vpop.f32.mrf.mxu0
  %v743 = vadd.f32 %v574, %v742
  %v744 = vpop.f32.mrf.mxu0
  %v745 = vadd.f32 %v576, %v744
  %746 = vmatmul.bf16.gmra.mxu0 %v462
  %v747 = vpop.f32.mrf.mxu0
  %v748 = vadd.f32 %v579, %v747
  %v749 = vpop.f32.mrf.mxu0
  %v750 = vadd.f32 %v581, %v749
  %751 = vmatmul.bf16.gmra.mxu0 %v465
  %v752 = vpop.f32.mrf.mxu0
  %v753 = vadd.f32 %v584, %v752
  %v754 = vpop.f32.mrf.mxu0
  %v755 = vadd.f32 %v586, %v754
  %756 = vmatmul.bf16.gmra.mxu0 %v468
  %v757 = vpop.f32.mrf.mxu0
  %v758 = vadd.f32 %v589, %v757
  %v759 = vpop.f32.mrf.mxu0
  %v760 = vadd.f32 %v591, %v759
  %761 = vmatmul.bf16.gmra.mxu0 %v471
  %v762 = vpop.f32.mrf.mxu0
  %v763 = vadd.f32 %v594, %v762
  %v764 = vpop.f32.mrf.mxu0
  %v765 = vadd.f32 %v596, %v764
  %766 = vmatmul.bf16.gmra.mxu0 %v474
  %v767 = vpop.f32.mrf.mxu0
  %v768 = vadd.f32 %v599, %v767
  %v769 = vpop.f32.mrf.mxu0
  %v770 = vadd.f32 %v601, %v769
  %771 = vmatmul.bf16.gmra.mxu0 %v477
  %v772 = vpop.f32.mrf.mxu0
  %v773 = vadd.f32 %v604, %v772
  %v774 = vpop.f32.mrf.mxu0
  %v775 = vadd.f32 %v606, %v774
  %776 = vmatmul.bf16.gmra.mxu0 %v480
  %v777 = vpop.f32.mrf.mxu0
  %v778 = vadd.f32 %v609, %v777
  %v779 = vpop.f32.mrf.mxu0
  %v780 = vadd.f32 %v611, %v779
  %781 = vmatmul.bf16.gmra.mxu0 %v483
  %v782 = vpop.f32.mrf.mxu0
  %v783 = vadd.f32 %v614, %v782
  %v784 = vpop.f32.mrf.mxu0
  %v785 = vadd.f32 %v616, %v784
  %786 = vmatmul.bf16.gmra.mxu0 %v486
  %v787 = vpop.f32.mrf.mxu0
  %v788 = vadd.f32 %v619, %v787
  %v789 = vpop.f32.mrf.mxu0
  %v790 = vadd.f32 %v621, %v789
  %791 = vmatmul.bf16.gmra.mxu0 %v489
  %v792 = vpop.f32.mrf.mxu0
  %v793 = vadd.f32 %v624, %v792
  %v794 = vpop.f32.mrf.mxu0
  %v795 = vadd.f32 %v626, %v794
  %796 = vmatmul.bf16.gmra.mxu0 %v492
  %v797 = vpop.f32.mrf.mxu0
  %v798 = vadd.f32 %v629, %v797
  %v799 = vpop.f32.mrf.mxu0
  %v800 = vadd.f32 %v631, %v799
  %801 = vmatmul.bf16.gmra.mxu0 %v495
  %v802 = vpop.f32.mrf.mxu0
  %v803 = vadd.f32 %v634, %v802
  %v804 = vpop.f32.mrf.mxu0
  %v805 = vadd.f32 %v636, %v804
  %806 = vmatmul.bf16.gmra.mxu0 %v498
  %v807 = vpop.f32.mrf.mxu0
  %v808 = vadd.f32 %v639, %v807
  %v809 = vpop.f32.mrf.mxu0
  %v810 = vadd.f32 %v641, %v809
  %811 = vmatmul.bf16.gmra.mxu0 %v501
  %v812 = vpop.f32.mrf.mxu0
  %v813 = vadd.f32 %v644, %v812
  %v814 = vpop.f32.mrf.mxu0
  %v815 = vadd.f32 %v646, %v814
  %816 = vmatmul.bf16.gmra.mxu0 %v504
  %v817 = vpop.f32.mrf.mxu0
  %v818 = vadd.f32 %v649, %v817
  %v819 = vpop.f32.mrf.mxu0
  %v820 = vadd.f32 %v651, %v819
  %821 = vmatmul.bf16.gmra.mxu0 %v507
  %v822 = vpop.f32.mrf.mxu0
  %v823 = vadd.f32 %v654, %v822
  %v824 = vpop.f32.mrf.mxu0
  %v825 = vadd.f32 %v656, %v824
  %826 = vmatmul.bf16.gmra.mxu0 %v510
  %v827 = vpop.f32.mrf.mxu0
  %v828 = vadd.f32 %v659, %v827
  %v829 = vpop.f32.mrf.mxu0
  %v830 = vadd.f32 %v661, %v829
  %831 = vmatmul.bf16.gmra.mxu0 %v513
  %v832 = vpop.f32.mrf.mxu0
  %v833 = vadd.f32 %v664, %v832
  %v834 = vpop.f32.mrf.mxu0
  %v835 = vadd.f32 %v666, %v834
  %836 = vmatmul.bf16.gmra.mxu0 %v516
  %v837 = vpop.f32.mrf.mxu0
  %v838 = vadd.f32 %v669, %v837
  %v839 = vpop.f32.mrf.mxu0
  %v840 = vadd.f32 %v671, %v839
  %841 = vmatmul.bf16.gmra.mxu0 %v519
  %v842 = vpop.f32.mrf.mxu0
  %v843 = vadd.f32 %v674, %v842
  %v844 = vpop.f32.mrf.mxu0
  %v845 = vadd.f32 %v676, %v844
  %846 = vmatmul.bf16.gmra.mxu0 %v522
  %v847 = vpop.f32.mrf.mxu0
  %v848 = vadd.f32 %v679, %v847
  %v849 = vpop.f32.mrf.mxu0
  %v850 = vadd.f32 %v681, %v849
  %851 = vmatmul.bf16.gmra.mxu0 %v525
  %v852 = vpop.f32.mrf.mxu0
  %v853 = vadd.f32 %v684, %v852
  %v854 = vpop.f32.mrf.mxu0
  %v855 = vadd.f32 %v686, %v854
  %856 = vmatmul.bf16.gmra.mxu0 %v528
  %v857 = vpop.f32.mrf.mxu0
  %v858 = vadd.f32 %v689, %v857
  %v859 = vpop.f32.mrf.mxu0
  %v860 = vadd.f32 %v691, %v859
  %861 = vmatmul.bf16.gmra.mxu0 %v531
  %v862 = vpop.f32.mrf.mxu0
  %v863 = vadd.f32 %v694, %v862
  %v864 = vpop.f32.mrf.mxu0
  %v865 = vadd.f32 %v696, %v864
  %866 = vmatmul.bf16.gmra.mxu0 %v534
  %v867 = vpop.f32.mrf.mxu0
  %v868 = vadd.f32 %v699, %v867
  %v869 = vpop.f32.mrf.mxu0
  %v870 = vadd.f32 %v701, %v869
  %871 = vmatmul.bf16.gmra.mxu0 %v537
  %v872 = vpop.f32.mrf.mxu0
  %v873 = vadd.f32 %v704, %v872
  %v874 = vpop.f32.mrf.mxu0
  %v875 = vadd.f32 %v706, %v874
  %876 = vdwg.mxu0
  %v877 = vld [vmem:[%s2] sm:$0x1]
  %v879 = vperm.slane %v877, 0
  %v881 = vmul.f32 %v718, %v879
  %v882 = vmul.f32 %v720, %v879
  %v883 = vmul.f32 %v723, %v879
  %v884 = vmul.f32 %v725, %v879
  %v885 = vmul.f32 %v728, %v879
  %v886 = vmul.f32 %v730, %v879
  %v887 = vmul.f32 %v733, %v879
  %v888 = vmul.f32 %v735, %v879
  %v889 = vmul.f32 %v738, %v879
  %v890 = vmul.f32 %v740, %v879
  %v891 = vmul.f32 %v743, %v879
  %v892 = vmul.f32 %v745, %v879
  %v893 = vmul.f32 %v748, %v879
  %v894 = vmul.f32 %v750, %v879
  %v895 = vmul.f32 %v753, %v879
  %v896 = vmul.f32 %v755, %v879
  %v897 = vmul.f32 %v758, %v879
  %v898 = vmul.f32 %v760, %v879
  %v899 = vmul.f32 %v763, %v879
  %v900 = vmul.f32 %v765, %v879
  %v901 = vmul.f32 %v768, %v879
  %v902 = vmul.f32 %v770, %v879
  %v903 = vmul.f32 %v773, %v879
  %v904 = vmul.f32 %v775, %v879
  %v905 = vmul.f32 %v778, %v879
  %v906 = vmul.f32 %v780, %v879
  %v907 = vmul.f32 %v783, %v879
  %v908 = vmul.f32 %v785, %v879
  %v909 = vmul.f32 %v788, %v879
  %v910 = vmul.f32 %v790, %v879
  %v911 = vmul.f32 %v793, %v879
  %v912 = vmul.f32 %v795, %v879
  %v913 = vmul.f32 %v798, %v879
  %v914 = vmul.f32 %v800, %v879
  %v915 = vmul.f32 %v803, %v879
  %v916 = vmul.f32 %v805, %v879
  %v917 = vmul.f32 %v808, %v879
  %v918 = vmul.f32 %v810, %v879
  %v919 = vmul.f32 %v813, %v879
  %v920 = vmul.f32 %v815, %v879
  %v921 = vmul.f32 %v818, %v879
  %v922 = vmul.f32 %v820, %v879
  %v923 = vmul.f32 %v823, %v879
  %v924 = vmul.f32 %v825, %v879
  %v925 = vmul.f32 %v828, %v879
  %v926 = vmul.f32 %v830, %v879
  %v927 = vmul.f32 %v833, %v879
  %v928 = vmul.f32 %v835, %v879
  %v929 = vmul.f32 %v838, %v879
  %v930 = vmul.f32 %v840, %v879
  %v931 = vmul.f32 %v843, %v879
  %v932 = vmul.f32 %v845, %v879
  %v933 = vmul.f32 %v848, %v879
  %v934 = vmul.f32 %v850, %v879
  %v935 = vmul.f32 %v853, %v879
  %v936 = vmul.f32 %v855, %v879
  %v937 = vmul.f32 %v858, %v879
  %v938 = vmul.f32 %v860, %v879
  %v939 = vmul.f32 %v863, %v879
  %v940 = vmul.f32 %v865, %v879
  %v941 = vmul.f32 %v868, %v879
  %v942 = vmul.f32 %v870, %v879
  %v943 = vmul.f32 %v873, %v879
  %v944 = vmul.f32 %v875, %v879
  %v945 = vld [vmem:[%s3] sm:$0x1]
  %v947 = vperm.slane %v945, 0
  %v949 = vadd.f32 %v881, %v947
  %v950 = vadd.f32 %v882, %v947
  %v951 = vadd.f32 %v883, %v947
  %v952 = vadd.f32 %v884, %v947
  %v953 = vadd.f32 %v885, %v947
  %v954 = vadd.f32 %v886, %v947
  %v955 = vadd.f32 %v887, %v947
  %v956 = vadd.f32 %v888, %v947
  %v957 = vadd.f32 %v889, %v947
  %v958 = vadd.f32 %v890, %v947
  %v959 = vadd.f32 %v891, %v947
  %v960 = vadd.f32 %v892, %v947
  %v961 = vadd.f32 %v893, %v947
  %v962 = vadd.f32 %v894, %v947
  %v963 = vadd.f32 %v895, %v947
  %v964 = vadd.f32 %v896, %v947
  %v965 = vadd.f32 %v897, %v947
  %v966 = vadd.f32 %v898, %v947
  %v967 = vadd.f32 %v899, %v947
  %v968 = vadd.f32 %v900, %v947
  %v969 = vadd.f32 %v901, %v947
  %v970 = vadd.f32 %v902, %v947
  %v971 = vadd.f32 %v903, %v947
  %v972 = vadd.f32 %v904, %v947
  %v973 = vadd.f32 %v905, %v947
  %v974 = vadd.f32 %v906, %v947
  %v975 = vadd.f32 %v907, %v947
  %v976 = vadd.f32 %v908, %v947
  %v977 = vadd.f32 %v909, %v947
  %v978 = vadd.f32 %v910, %v947
  %v979 = vadd.f32 %v911, %v947
  %v980 = vadd.f32 %v912, %v947
  %v981 = vadd.f32 %v913, %v947
  %v982 = vadd.f32 %v914, %v947
  %v983 = vadd.f32 %v915, %v947
  %v984 = vadd.f32 %v916, %v947
  %v985 = vadd.f32 %v917, %v947
  %v986 = vadd.f32 %v918, %v947
  %v987 = vadd.f32 %v919, %v947
  %v988 = vadd.f32 %v920, %v947
  %v989 = vadd.f32 %v921, %v947
  %v990 = vadd.f32 %v922, %v947
  %v991 = vadd.f32 %v923, %v947
  %v992 = vadd.f32 %v924, %v947
  %v993 = vadd.f32 %v925, %v947
  %v994 = vadd.f32 %v926, %v947
  %v995 = vadd.f32 %v927, %v947
  %v996 = vadd.f32 %v928, %v947
  %v997 = vadd.f32 %v929, %v947
  %v998 = vadd.f32 %v930, %v947
  %v999 = vadd.f32 %v931, %v947
  %v1000 = vadd.f32 %v932, %v947
  %v1001 = vadd.f32 %v933, %v947
  %v1002 = vadd.f32 %v934, %v947
  %v1003 = vadd.f32 %v935, %v947
  %v1004 = vadd.f32 %v936, %v947
  %v1005 = vadd.f32 %v937, %v947
  %v1006 = vadd.f32 %v938, %v947
  %v1007 = vadd.f32 %v939, %v947
  %v1008 = vadd.f32 %v940, %v947
  %v1009 = vadd.f32 %v941, %v947
  %v1010 = vadd.f32 %v942, %v947
  %v1011 = vadd.f32 %v943, %v947
  %v1012 = vadd.f32 %v944, %v947
  %v1013 = vsub.f32 0.0, %v949
  %v1014 = vsub.f32 0.0, %v950
  %v1015 = vsub.f32 0.0, %v951
  %v1016 = vsub.f32 0.0, %v952
  %v1017 = vsub.f32 0.0, %v953
  %v1018 = vsub.f32 0.0, %v954
  %v1019 = vsub.f32 0.0, %v955
  %v1020 = vsub.f32 0.0, %v956
  %v1021 = vsub.f32 0.0, %v957
  %v1022 = vsub.f32 0.0, %v958
  %v1023 = vsub.f32 0.0, %v959
  %v1024 = vsub.f32 0.0, %v960
  %v1025 = vsub.f32 0.0, %v961
  %v1026 = vsub.f32 0.0, %v962
  %v1027 = vsub.f32 0.0, %v963
  %v1028 = vsub.f32 0.0, %v964
  %v1029 = vsub.f32 0.0, %v965
  %v1030 = vsub.f32 0.0, %v966
  %v1031 = vsub.f32 0.0, %v967
  %v1032 = vsub.f32 0.0, %v968
  %v1033 = vsub.f32 0.0, %v969
  %v1034 = vsub.f32 0.0, %v970
  %v1035 = vsub.f32 0.0, %v971
  %v1036 = vsub.f32 0.0, %v972
  %v1037 = vsub.f32 0.0, %v973
  %v1038 = vsub.f32 0.0, %v974
  %v1039 = vsub.f32 0.0, %v975
  %v1040 = vsub.f32 0.0, %v976
  %v1041 = vsub.f32 0.0, %v977
  %v1042 = vsub.f32 0.0, %v978
  %v1043 = vsub.f32 0.0, %v979
  %v1044 = vsub.f32 0.0, %v980
  %v1045 = vsub.f32 0.0, %v981
  %v1046 = vsub.f32 0.0, %v982
  %v1047 = vsub.f32 0.0, %v983
  %v1048 = vsub.f32 0.0, %v984
  %v1049 = vsub.f32 0.0, %v985
  %v1050 = vsub.f32 0.0, %v986
  %v1051 = vsub.f32 0.0, %v987
  %v1052 = vsub.f32 0.0, %v988
  %v1053 = vsub.f32 0.0, %v989
  %v1054 = vsub.f32 0.0, %v990
  %v1055 = vsub.f32 0.0, %v991
  %v1056 = vsub.f32 0.0, %v992
  %v1057 = vsub.f32 0.0, %v993
  %v1058 = vsub.f32 0.0, %v994
  %v1059 = vsub.f32 0.0, %v995
  %v1060 = vsub.f32 0.0, %v996
  %v1061 = vsub.f32 0.0, %v997
  %v1062 = vsub.f32 0.0, %v998
  %v1063 = vsub.f32 0.0, %v999
  %v1064 = vsub.f32 0.0, %v1000
  %v1065 = vsub.f32 0.0, %v1001
  %v1066 = vsub.f32 0.0, %v1002
  %v1067 = vsub.f32 0.0, %v1003
  %v1068 = vsub.f32 0.0, %v1004
  %v1069 = vsub.f32 0.0, %v1005
  %v1070 = vsub.f32 0.0, %v1006
  %v1071 = vsub.f32 0.0, %v1007
  %v1072 = vsub.f32 0.0, %v1008
  %v1073 = vsub.f32 0.0, %v1009
  %v1074 = vsub.f32 0.0, %v1010
  %v1075 = vsub.f32 0.0, %v1011
  %v1076 = vsub.f32 0.0, %v1012
  %v1077 = vmul.f32 %v1013, 1.442695
  %v1078 = vpow.pop %v1077
  %v1079 = vmul.f32 %v1014, 1.442695
  %v1080 = vpow.pop %v1079
  %v1081 = vmul.f32 %v1015, 1.442695
  %v1082 = vpow.pop %v1081
  %v1083 = vmul.f32 %v1016, 1.442695
  %v1084 = vpow.pop %v1083
  %v1085 = vmul.f32 %v1017, 1.442695
  %v1086 = vpow.pop %v1085
  %v1087 = vmul.f32 %v1018, 1.442695
  %v1088 = vpow.pop %v1087
  %v1089 = vmul.f32 %v1019, 1.442695
  %v1090 = vpow.pop %v1089
  %v1091 = vmul.f32 %v1020, 1.442695
  %v1092 = vpow.pop %v1091
  %v1093 = vmul.f32 %v1021, 1.442695
  %v1094 = vpow.pop %v1093
  %v1095 = vmul.f32 %v1022, 1.442695
  %v1096 = vpow.pop %v1095
  %v1097 = vmul.f32 %v1023, 1.442695
  %v1098 = vpow.pop %v1097
  %v1099 = vmul.f32 %v1024, 1.442695
  %v1100 = vpow.pop %v1099
  %v1101 = vmul.f32 %v1025, 1.442695
  %v1102 = vpow.pop %v1101
  %v1103 = vmul.f32 %v1026, 1.442695
  %v1104 = vpow.pop %v1103
  %v1105 = vmul.f32 %v1027, 1.442695
  %v1106 = vpow.pop %v1105
  %v1107 = vmul.f32 %v1028, 1.442695
  %v1108 = vpow.pop %v1107
  %v1109 = vmul.f32 %v1029, 1.442695
  %v1110 = vpow.pop %v1109
  %v1111 = vmul.f32 %v1030, 1.442695
  %v1112 = vpow.pop %v1111
  %v1113 = vmul.f32 %v1031, 1.442695
  %v1114 = vpow.pop %v1113
  %v1115 = vmul.f32 %v1032, 1.442695
  %v1116 = vpow.pop %v1115
  %v1117 = vmul.f32 %v1033, 1.442695
  %v1118 = vpow.pop %v1117
  %v1119 = vmul.f32 %v1034, 1.442695
  %v1120 = vpow.pop %v1119
  %v1121 = vmul.f32 %v1035, 1.442695
  %v1122 = vpow.pop %v1121
  %v1123 = vmul.f32 %v1036, 1.442695
  %v1124 = vpow.pop %v1123
  %v1125 = vmul.f32 %v1037, 1.442695
  %v1126 = vpow.pop %v1125
  %v1127 = vmul.f32 %v1038, 1.442695
  %v1128 = vpow.pop %v1127
  %v1129 = vmul.f32 %v1039, 1.442695
  %v1130 = vpow.pop %v1129
  %v1131 = vmul.f32 %v1040, 1.442695
  %v1132 = vpow.pop %v1131
  %v1133 = vmul.f32 %v1041, 1.442695
  %v1134 = vpow.pop %v1133
  %v1135 = vmul.f32 %v1042, 1.442695
  %v1136 = vpow.pop %v1135
  %v1137 = vmul.f32 %v1043, 1.442695
  %v1138 = vpow.pop %v1137
  %v1139 = vmul.f32 %v1044, 1.442695
  %v1140 = vpow.pop %v1139
  %v1141 = vmul.f32 %v1045, 1.442695
  %v1142 = vpow.pop %v1141
  %v1143 = vmul.f32 %v1046, 1.442695
  %v1144 = vpow.pop %v1143
  %v1145 = vmul.f32 %v1047, 1.442695
  %v1146 = vpow.pop %v1145
  %v1147 = vmul.f32 %v1048, 1.442695
  %v1148 = vpow.pop %v1147
  %v1149 = vmul.f32 %v1049, 1.442695
  %v1150 = vpow.pop %v1149
  %v1151 = vmul.f32 %v1050, 1.442695
  %v1152 = vpow.pop %v1151
  %v1153 = vmul.f32 %v1051, 1.442695
  %v1154 = vpow.pop %v1153
  %v1155 = vmul.f32 %v1052, 1.442695
  %v1156 = vpow.pop %v1155
  %v1157 = vmul.f32 %v1053, 1.442695
  %v1158 = vpow.pop %v1157
  %v1159 = vmul.f32 %v1054, 1.442695
  %v1160 = vpow.pop %v1159
  %v1161 = vmul.f32 %v1055, 1.442695
  %v1162 = vpow.pop %v1161
  %v1163 = vmul.f32 %v1056, 1.442695
  %v1164 = vpow.pop %v1163
  %v1165 = vmul.f32 %v1057, 1.442695
  %v1166 = vpow.pop %v1165
  %v1167 = vmul.f32 %v1058, 1.442695
  %v1168 = vpow.pop %v1167
  %v1169 = vmul.f32 %v1059, 1.442695
  %v1170 = vpow.pop %v1169
  %v1171 = vmul.f32 %v1060, 1.442695
  %v1172 = vpow.pop %v1171
  %v1173 = vmul.f32 %v1061, 1.442695
  %v1174 = vpow.pop %v1173
  %v1175 = vmul.f32 %v1062, 1.442695
  %v1176 = vpow.pop %v1175
  %v1177 = vmul.f32 %v1063, 1.442695
  %v1178 = vpow.pop %v1177
  %v1179 = vmul.f32 %v1064, 1.442695
  %v1180 = vpow.pop %v1179
  %v1181 = vmul.f32 %v1065, 1.442695
  %v1182 = vpow.pop %v1181
  %v1183 = vmul.f32 %v1066, 1.442695
  %v1184 = vpow.pop %v1183
  %v1185 = vmul.f32 %v1067, 1.442695
  %v1186 = vpow.pop %v1185
  %v1187 = vmul.f32 %v1068, 1.442695
  %v1188 = vpow.pop %v1187
  %v1189 = vmul.f32 %v1069, 1.442695
  %v1190 = vpow.pop %v1189
  %v1191 = vmul.f32 %v1070, 1.442695
  %v1192 = vpow.pop %v1191
  %v1193 = vmul.f32 %v1071, 1.442695
  %v1194 = vpow.pop %v1193
  %v1195 = vmul.f32 %v1072, 1.442695
  %v1196 = vpow.pop %v1195
  %v1197 = vmul.f32 %v1073, 1.442695
  %v1198 = vpow.pop %v1197
  %v1199 = vmul.f32 %v1074, 1.442695
  %v1200 = vpow.pop %v1199
  %v1201 = vmul.f32 %v1075, 1.442695
  %v1202 = vpow.pop %v1201
  %v1203 = vmul.f32 %v1076, 1.442695
  %v1204 = vpow.pop %v1203
  %v1205 = vadd.f32 %v1078, 1.0
  %v1206 = vadd.f32 %v1080, 1.0
  %v1207 = vadd.f32 %v1082, 1.0
  %v1208 = vadd.f32 %v1084, 1.0
  %v1209 = vadd.f32 %v1086, 1.0
  %v1210 = vadd.f32 %v1088, 1.0
  %v1211 = vadd.f32 %v1090, 1.0
  %v1212 = vadd.f32 %v1092, 1.0
  %v1213 = vadd.f32 %v1094, 1.0
  %v1214 = vadd.f32 %v1096, 1.0
  %v1215 = vadd.f32 %v1098, 1.0
  %v1216 = vadd.f32 %v1100, 1.0
  %v1217 = vadd.f32 %v1102, 1.0
  %v1218 = vadd.f32 %v1104, 1.0
  %v1219 = vadd.f32 %v1106, 1.0
  %v1220 = vadd.f32 %v1108, 1.0
  %v1221 = vadd.f32 %v1110, 1.0
  %v1222 = vadd.f32 %v1112, 1.0
  %v1223 = vadd.f32 %v1114, 1.0
  %v1224 = vadd.f32 %v1116, 1.0
  %v1225 = vadd.f32 %v1118, 1.0
  %v1226 = vadd.f32 %v1120, 1.0
  %v1227 = vadd.f32 %v1122, 1.0
  %v1228 = vadd.f32 %v1124, 1.0
  %v1229 = vadd.f32 %v1126, 1.0
  %v1230 = vadd.f32 %v1128, 1.0
  %v1231 = vadd.f32 %v1130, 1.0
  %v1232 = vadd.f32 %v1132, 1.0
  %v1233 = vadd.f32 %v1134, 1.0
  %v1234 = vadd.f32 %v1136, 1.0
  %v1235 = vadd.f32 %v1138, 1.0
  %v1236 = vadd.f32 %v1140, 1.0
  %v1237 = vadd.f32 %v1142, 1.0
  %v1238 = vadd.f32 %v1144, 1.0
  %v1239 = vadd.f32 %v1146, 1.0
  %v1240 = vadd.f32 %v1148, 1.0
  %v1241 = vadd.f32 %v1150, 1.0
  %v1242 = vadd.f32 %v1152, 1.0
  %v1243 = vadd.f32 %v1154, 1.0
  %v1244 = vadd.f32 %v1156, 1.0
  %v1245 = vadd.f32 %v1158, 1.0
  %v1246 = vadd.f32 %v1160, 1.0
  %v1247 = vadd.f32 %v1162, 1.0
  %v1248 = vadd.f32 %v1164, 1.0
  %v1249 = vadd.f32 %v1166, 1.0
  %v1250 = vadd.f32 %v1168, 1.0
  %v1251 = vadd.f32 %v1170, 1.0
  %v1252 = vadd.f32 %v1172, 1.0
  %v1253 = vadd.f32 %v1174, 1.0
  %v1254 = vadd.f32 %v1176, 1.0
  %v1255 = vadd.f32 %v1178, 1.0
  %v1256 = vadd.f32 %v1180, 1.0
  %v1257 = vadd.f32 %v1182, 1.0
  %v1258 = vadd.f32 %v1184, 1.0
  %v1259 = vadd.f32 %v1186, 1.0
  %v1260 = vadd.f32 %v1188, 1.0
  %v1261 = vadd.f32 %v1190, 1.0
  %v1262 = vadd.f32 %v1192, 1.0
  %v1263 = vadd.f32 %v1194, 1.0
  %v1264 = vadd.f32 %v1196, 1.0
  %v1265 = vadd.f32 %v1198, 1.0
  %v1266 = vadd.f32 %v1200, 1.0
  %v1267 = vadd.f32 %v1202, 1.0
  %v1268 = vadd.f32 %v1204, 1.0
  %v1269 = vrcp.pop %v1205
  %v1270 = vrcp.pop %v1206
  %v1271 = vrcp.pop %v1207
  %v1272 = vrcp.pop %v1208
  %v1273 = vrcp.pop %v1209
  %v1274 = vrcp.pop %v1210
  %v1275 = vrcp.pop %v1211
  %v1276 = vrcp.pop %v1212
  %v1277 = vrcp.pop %v1213
  %v1278 = vrcp.pop %v1214
  %v1279 = vrcp.pop %v1215
  %v1280 = vrcp.pop %v1216
  %v1281 = vrcp.pop %v1217
  %v1282 = vrcp.pop %v1218
  %v1283 = vrcp.pop %v1219
  %v1284 = vrcp.pop %v1220
  %v1285 = vrcp.pop %v1221
  %v1286 = vrcp.pop %v1222
  %v1287 = vrcp.pop %v1223
  %v1288 = vrcp.pop %v1224
  %v1289 = vrcp.pop %v1225
  %v1290 = vrcp.pop %v1226
  %v1291 = vrcp.pop %v1227
  %v1292 = vrcp.pop %v1228
  %v1293 = vrcp.pop %v1229
  %v1294 = vrcp.pop %v1230
  %v1295 = vrcp.pop %v1231
  %v1296 = vrcp.pop %v1232
  %v1297 = vrcp.pop %v1233
  %v1298 = vrcp.pop %v1234
  %v1299 = vrcp.pop %v1235
  %v1300 = vrcp.pop %v1236
  %v1301 = vrcp.pop %v1237
  %v1302 = vrcp.pop %v1238
  %v1303 = vrcp.pop %v1239
  %v1304 = vrcp.pop %v1240
  %v1305 = vrcp.pop %v1241
  %v1306 = vrcp.pop %v1242
  %v1307 = vrcp.pop %v1243
  %v1308 = vrcp.pop %v1244
  %v1309 = vrcp.pop %v1245
  %v1310 = vrcp.pop %v1246
  %v1311 = vrcp.pop %v1247
  %v1312 = vrcp.pop %v1248
  %v1313 = vrcp.pop %v1249
  %v1314 = vrcp.pop %v1250
  %v1315 = vrcp.pop %v1251
  %v1316 = vrcp.pop %v1252
  %v1317 = vrcp.pop %v1253
  %v1318 = vrcp.pop %v1254
  %v1319 = vrcp.pop %v1255
  %v1320 = vrcp.pop %v1256
  %v1321 = vrcp.pop %v1257
  %v1322 = vrcp.pop %v1258
  %v1323 = vrcp.pop %v1259
  %v1324 = vrcp.pop %v1260
  %v1325 = vrcp.pop %v1261
  %v1326 = vrcp.pop %v1262
  %v1327 = vrcp.pop %v1263
  %v1328 = vrcp.pop %v1264
  %v1329 = vrcp.pop %v1265
  %v1330 = vrcp.pop %v1266
  %v1331 = vrcp.pop %v1267
  %v1332 = vrcp.pop %v1268
  %v1333 = vmul.f32 %v949, %v1269
  %v1334 = vmul.f32 %v950, %v1270
  %v1335 = vmul.f32 %v951, %v1271
  %v1336 = vmul.f32 %v952, %v1272
  %v1337 = vmul.f32 %v953, %v1273
  %v1338 = vmul.f32 %v954, %v1274
  %v1339 = vmul.f32 %v955, %v1275
  %v1340 = vmul.f32 %v956, %v1276
  %v1341 = vmul.f32 %v957, %v1277
  %v1342 = vmul.f32 %v958, %v1278
  %v1343 = vmul.f32 %v959, %v1279
  %v1344 = vmul.f32 %v960, %v1280
  %v1345 = vmul.f32 %v961, %v1281
  %v1346 = vmul.f32 %v962, %v1282
  %v1347 = vmul.f32 %v963, %v1283
  %v1348 = vmul.f32 %v964, %v1284
  %v1349 = vmul.f32 %v965, %v1285
  %v1350 = vmul.f32 %v966, %v1286
  %v1351 = vmul.f32 %v967, %v1287
  %v1352 = vmul.f32 %v968, %v1288
  %v1353 = vmul.f32 %v969, %v1289
  %v1354 = vmul.f32 %v970, %v1290
  %v1355 = vmul.f32 %v971, %v1291
  %v1356 = vmul.f32 %v972, %v1292
  %v1357 = vmul.f32 %v973, %v1293
  %v1358 = vmul.f32 %v974, %v1294
  %v1359 = vmul.f32 %v975, %v1295
  %v1360 = vmul.f32 %v976, %v1296
  %v1361 = vmul.f32 %v977, %v1297
  %v1362 = vmul.f32 %v978, %v1298
  %v1363 = vmul.f32 %v979, %v1299
  %v1364 = vmul.f32 %v980, %v1300
  %v1365 = vmul.f32 %v981, %v1301
  %v1366 = vmul.f32 %v982, %v1302
  %v1367 = vmul.f32 %v983, %v1303
  %v1368 = vmul.f32 %v984, %v1304
  %v1369 = vmul.f32 %v985, %v1305
  %v1370 = vmul.f32 %v986, %v1306
  %v1371 = vmul.f32 %v987, %v1307
  %v1372 = vmul.f32 %v988, %v1308
  %v1373 = vmul.f32 %v989, %v1309
  %v1374 = vmul.f32 %v990, %v1310
  %v1375 = vmul.f32 %v991, %v1311
  %v1376 = vmul.f32 %v992, %v1312
  %v1377 = vmul.f32 %v993, %v1313
  %v1378 = vmul.f32 %v994, %v1314
  %v1379 = vmul.f32 %v995, %v1315
  %v1380 = vmul.f32 %v996, %v1316
  %v1381 = vmul.f32 %v997, %v1317
  %v1382 = vmul.f32 %v998, %v1318
  %v1383 = vmul.f32 %v999, %v1319
  %v1384 = vmul.f32 %v1000, %v1320
  %v1385 = vmul.f32 %v1001, %v1321
  %v1386 = vmul.f32 %v1002, %v1322
  %v1387 = vmul.f32 %v1003, %v1323
  %v1388 = vmul.f32 %v1004, %v1324
  %v1389 = vmul.f32 %v1005, %v1325
  %v1390 = vmul.f32 %v1006, %v1326
  %v1391 = vmul.f32 %v1007, %v1327
  %v1392 = vmul.f32 %v1008, %v1328
  %v1393 = vmul.f32 %v1009, %v1329
  %v1394 = vmul.f32 %v1010, %v1330
  %v1395 = vmul.f32 %v1011, %v1331
  %v1396 = vmul.f32 %v1012, %v1332
  %1397 = vst.msk [vmem:[%s4] sm:$0xff] %vm442, %v1333
  %1398 = vst.msk [vmem:[%s4 + $0x8] sm:$0xff] %vm442, %v1334
  %1399 = vst.msk [vmem:[%s4 + $0x10] sm:$0xff] %vm442, %v1335
  %1400 = vst.msk [vmem:[%s4 + $0x18] sm:$0xff] %vm442, %v1336
  %1401 = vst.msk [vmem:[%s4 + $0x20] sm:$0xff] %vm442, %v1337
  %1402 = vst.msk [vmem:[%s4 + $0x28] sm:$0xff] %vm442, %v1338
  %1403 = vst.msk [vmem:[%s4 + $0x30] sm:$0xff] %vm442, %v1339
  %1404 = vst.msk [vmem:[%s4 + $0x38] sm:$0xff] %vm442, %v1340
  %1405 = vst.msk [vmem:[%s4 + $0x40] sm:$0xff] %vm442, %v1341
  %1406 = vst.msk [vmem:[%s4 + $0x48] sm:$0xff] %vm442, %v1342
  %1407 = vst.msk [vmem:[%s4 + $0x50] sm:$0xff] %vm442, %v1343
  %1408 = vst.msk [vmem:[%s4 + $0x58] sm:$0xff] %vm442, %v1344
  %1409 = vst.msk [vmem:[%s4 + $0x60] sm:$0xff] %vm442, %v1345
  %1410 = vst.msk [vmem:[%s4 + $0x68] sm:$0xff] %vm442, %v1346
  %1411 = vst.msk [vmem:[%s4 + $0x70] sm:$0xff] %vm442, %v1347
  %1412 = vst.msk [vmem:[%s4 + $0x78] sm:$0xff] %vm442, %v1348
  %1413 = vst.msk [vmem:[%s4 + $0x80] sm:$0xff] %vm442, %v1349
  %1414 = vst.msk [vmem:[%s4 + $0x88] sm:$0xff] %vm442, %v1350
  %1415 = vst.msk [vmem:[%s4 + $0x90] sm:$0xff] %vm442, %v1351
  %1416 = vst.msk [vmem:[%s4 + $0x98] sm:$0xff] %vm442, %v1352
  %1417 = vst.msk [vmem:[%s4 + $0xa0] sm:$0xff] %vm442, %v1353
  %1418 = vst.msk [vmem:[%s4 + $0xa8] sm:$0xff] %vm442, %v1354
  %1419 = vst.msk [vmem:[%s4 + $0xb0] sm:$0xff] %vm442, %v1355
  %1420 = vst.msk [vmem:[%s4 + $0xb8] sm:$0xff] %vm442, %v1356
  %1421 = vst.msk [vmem:[%s4 + $0xc0] sm:$0xff] %vm442, %v1357
  %1422 = vst.msk [vmem:[%s4 + $0xc8] sm:$0xff] %vm442, %v1358
  %1423 = vst.msk [vmem:[%s4 + $0xd0] sm:$0xff] %vm442, %v1359
  %1424 = vst.msk [vmem:[%s4 + $0xd8] sm:$0xff] %vm442, %v1360
  %1425 = vst.msk [vmem:[%s4 + $0xe0] sm:$0xff] %vm442, %v1361
  %1426 = vst.msk [vmem:[%s4 + $0xe8] sm:$0xff] %vm442, %v1362
  %1427 = vst.msk [vmem:[%s4 + $0xf0] sm:$0xff] %vm442, %v1363
  %1428 = vst.msk [vmem:[%s4 + $0xf8] sm:$0xff] %vm442, %v1364
  %1429 = vst.msk [vmem:[%s4 + $0x100] sm:$0xff] %vm442, %v1365
  %1430 = vst.msk [vmem:[%s4 + $0x108] sm:$0xff] %vm442, %v1366
  %1431 = vst.msk [vmem:[%s4 + $0x110] sm:$0xff] %vm442, %v1367
  %1432 = vst.msk [vmem:[%s4 + $0x118] sm:$0xff] %vm442, %v1368
  %1433 = vst.msk [vmem:[%s4 + $0x120] sm:$0xff] %vm442, %v1369
  %1434 = vst.msk [vmem:[%s4 + $0x128] sm:$0xff] %vm442, %v1370
  %1435 = vst.msk [vmem:[%s4 + $0x130] sm:$0xff] %vm442, %v1371
  %1436 = vst.msk [vmem:[%s4 + $0x138] sm:$0xff] %vm442, %v1372
  %1437 = vst.msk [vmem:[%s4 + $0x140] sm:$0xff] %vm442, %v1373
  %1438 = vst.msk [vmem:[%s4 + $0x148] sm:$0xff] %vm442, %v1374
  %1439 = vst.msk [vmem:[%s4 + $0x150] sm:$0xff] %vm442, %v1375
  %1440 = vst.msk [vmem:[%s4 + $0x158] sm:$0xff] %vm442, %v1376
  %1441 = vst.msk [vmem:[%s4 + $0x160] sm:$0xff] %vm442, %v1377
  %1442 = vst.msk [vmem:[%s4 + $0x168] sm:$0xff] %vm442, %v1378
  %1443 = vst.msk [vmem:[%s4 + $0x170] sm:$0xff] %vm442, %v1379
  %1444 = vst.msk [vmem:[%s4 + $0x178] sm:$0xff] %vm442, %v1380
  %1445 = vst.msk [vmem:[%s4 + $0x180] sm:$0xff] %vm442, %v1381
  %1446 = vst.msk [vmem:[%s4 + $0x188] sm:$0xff] %vm442, %v1382
  %1447 = vst.msk [vmem:[%s4 + $0x190] sm:$0xff] %vm442, %v1383
  %1448 = vst.msk [vmem:[%s4 + $0x198] sm:$0xff] %vm442, %v1384
  %1449 = vst.msk [vmem:[%s4 + $0x1a0] sm:$0xff] %vm442, %v1385
  %1450 = vst.msk [vmem:[%s4 + $0x1a8] sm:$0xff] %vm442, %v1386
  %1451 = vst.msk [vmem:[%s4 + $0x1b0] sm:$0xff] %vm442, %v1387
  %1452 = vst.msk [vmem:[%s4 + $0x1b8] sm:$0xff] %vm442, %v1388
  %1453 = vst.msk [vmem:[%s4 + $0x1c0] sm:$0xff] %vm442, %v1389
  %1454 = vst.msk [vmem:[%s4 + $0x1c8] sm:$0xff] %vm442, %v1390
  %1455 = vst.msk [vmem:[%s4 + $0x1d0] sm:$0xff] %vm442, %v1391
  %1456 = vst.msk [vmem:[%s4 + $0x1d8] sm:$0xff] %vm442, %v1392
  %1457 = vst.msk [vmem:[%s4 + $0x1e0] sm:$0xff] %vm442, %v1393
  %1458 = vst.msk [vmem:[%s4 + $0x1e8] sm:$0xff] %vm442, %v1394
  %1459 = vst.msk [vmem:[%s4 + $0x1f0] sm:$0xff] %vm442, %v1395
  %1460 = vst.msk [vmem:[%s4 + $0x1f8] sm:$0xff] %vm442, %v1396
  // Predicated region
  $region18: #{_lambda_.10} parent=0 // pred_check
    _
  $region19: #{_lambda_.10} parent=0 // pred_check_branch
    %1462 = sbr.rel (0) target = $region21
  $region20: #{_lambda_.10} parent=0 // pred_region
    _
  $region21: #{_lambda_.10} parent=0 // pred_fallthru
    _
  // Predicated region
  $region22: #{_lambda_.10} parent=0 // pred_check
    _
  $region23: #{_lambda_.10} parent=0 // pred_check_branch
    %1464 = sbr.rel (0) target = $region25
  $region24: #{_lambda_.10} parent=0 // pred_region
    _
  $region25: #{_lambda_.10} parent=0 // pred_fallthru
    _

// kernel: _lambda_.11
$region0: #{_lambda_.11}
  #allocation0 [shape = 'u32[]', space=smem, size = 0x4, offset = 0x4, fixed_abs, tag = 'smem constant byte address 0x4 - core index']
  #allocation1 [shape = 'u32[72,128]{1,0:T(1,128)}', space=vmem, size = 0x9000, scoped, tag = 'internal scratch']
  %s0 = inlined_call_operand.vmem [shape: bf16[512,16], index: 0, kind: input, shape index: {}]
  %s1 = inlined_call_operand.vmem [shape: bf16[16,8], index: 1, kind: input, shape index: {}]
  %s2 = inlined_call_operand.vmem [shape: f32[1,8], index: 2, kind: input, shape index: {}]
  %s3 = inlined_call_operand.vmem [shape: f32[1,8], index: 3, kind: input, shape index: {}]
  %s4 = inlined_call_operand.vmem [shape: f32[512,8], index: 4, kind: output, shape index: {}]
  %s5 = sld [smem:[#allocation0]]
  $region26: #{_lambda_.11} parent=0
    _
  %s7 = ssub.s32 1, %s5
  %s8 = scalar_select 0, %s7, %s5
  // Predicated region
  $region2: #{_lambda_.11} parent=0 // pred_check
    _
  $region3: #{_lambda_.11} parent=0 // pred_check_branch
    %10 = sbr.rel (0) target = $region5
  $region4: #{_lambda_.11} parent=0 // pred_region
    _
  $region5: #{_lambda_.11} parent=0 // pred_fallthru
    _
  // Predicated region
  $region6: #{_lambda_.11} parent=0 // pred_check
    _
  $region7: #{_lambda_.11} parent=0 // pred_check_branch
    %12 = sbr.rel (0) target = $region9
  $region8: #{_lambda_.11} parent=0 // pred_region
    _
  $region9: #{_lambda_.11} parent=0 // pred_fallthru
    _
  // Predicated region
  $region10: #{_lambda_.11} parent=0 // pred_check
    _
  $region11: #{_lambda_.11} parent=0 // pred_check_branch
    %14 = sbr.rel (0) target = $region13
  $region12: #{_lambda_.11} parent=0 // pred_region
    _
  $region13: #{_lambda_.11} parent=0 // pred_fallthru
    _
  // Predicated region
  $region14: #{_lambda_.11} parent=0 // pred_check
    _
  $region15: #{_lambda_.11} parent=0 // pred_check_branch
    %16 = sbr.rel (0) target = $region17
  $region16: #{_lambda_.11} parent=0 // pred_region
    _
  $region17: #{_lambda_.11} parent=0 // pred_fallthru
    _
  %v18 = vld [vmem:[%s0] sm:$0xf]
  %v19 = vld [vmem:[%s0 + $0x4] sm:$0xf]
  %v20 = vld [vmem:[%s0 + $0x8] sm:$0xf]
  %v21 = vld [vmem:[%s0 + $0xc] sm:$0xf]
  %v22 = vld [vmem:[%s0 + $0x10] sm:$0xf]
  %v23 = vld [vmem:[%s0 + $0x14] sm:$0xf]
  %v24 = vld [vmem:[%s0 + $0x18] sm:$0xf]
  %v25 = vld [vmem:[%s0 + $0x1c] sm:$0xf]
  %v26 = vld [vmem:[%s0 + $0x20] sm:$0xf]
  %v27 = vld [vmem:[%s0 + $0x24] sm:$0xf]
  %v28 = vld [vmem:[%s0 + $0x28] sm:$0xf]
  %v29 = vld [vmem:[%s0 + $0x2c] sm:$0xf]
  %v30 = vld [vmem:[%s0 + $0x30] sm:$0xf]
  %v31 = vld [vmem:[%s0 + $0x34] sm:$0xf]
  %v32 = vld [vmem:[%s0 + $0x38] sm:$0xf]
  %v33 = vld [vmem:[%s0 + $0x3c] sm:$0xf]
  %v34 = vld [vmem:[%s0 + $0x40] sm:$0xf]
  %v35 = vld [vmem:[%s0 + $0x44] sm:$0xf]
  %v36 = vld [vmem:[%s0 + $0x48] sm:$0xf]
  %v37 = vld [vmem:[%s0 + $0x4c] sm:$0xf]
  %v38 = vld [vmem:[%s0 + $0x50] sm:$0xf]
  %v39 = vld [vmem:[%s0 + $0x54] sm:$0xf]
  %v40 = vld [vmem:[%s0 + $0x58] sm:$0xf]
  %v41 = vld [vmem:[%s0 + $0x5c] sm:$0xf]
  %v42 = vld [vmem:[%s0 + $0x60] sm:$0xf]
  %v43 = vld [vmem:[%s0 + $0x64] sm:$0xf]
  %v44 = vld [vmem:[%s0 + $0x68] sm:$0xf]
  %v45 = vld [vmem:[%s0 + $0x6c] sm:$0xf]
  %v46 = vld [vmem:[%s0 + $0x70] sm:$0xf]
  %v47 = vld [vmem:[%s0 + $0x74] sm:$0xf]
  %v48 = vld [vmem:[%s0 + $0x78] sm:$0xf]
  %v49 = vld [vmem:[%s0 + $0x7c] sm:$0xf]
  %v50 = vld [vmem:[%s0 + $0x80] sm:$0xf]
  %v51 = vld [vmem:[%s0 + $0x84] sm:$0xf]
  %v52 = vld [vmem:[%s0 + $0x88] sm:$0xf]
  %v53 = vld [vmem:[%s0 + $0x8c] sm:$0xf]
  %v54 = vld [vmem:[%s0 + $0x90] sm:$0xf]
  %v55 = vld [vmem:[%s0 + $0x94] sm:$0xf]
  %v56 = vld [vmem:[%s0 + $0x98] sm:$0xf]
  %v57 = vld [vmem:[%s0 + $0x9c] sm:$0xf]
  %v58 = vld [vmem:[%s0 + $0xa0] sm:$0xf]
  %v59 = vld [vmem:[%s0 + $0xa4] sm:$0xf]
  %v60 = vld [vmem:[%s0 + $0xa8] sm:$0xf]
  %v61 = vld [vmem:[%s0 + $0xac] sm:$0xf]
  %v62 = vld [vmem:[%s0 + $0xb0] sm:$0xf]
  %v63 = vld [vmem:[%s0 + $0xb4] sm:$0xf]
  %v64 = vld [vmem:[%s0 + $0xb8] sm:$0xf]
  %v65 = vld [vmem:[%s0 + $0xbc] sm:$0xf]
  %v66 = vld [vmem:[%s0 + $0xc0] sm:$0xf]
  %v67 = vld [vmem:[%s0 + $0xc4] sm:$0xf]
  %v68 = vld [vmem:[%s0 + $0xc8] sm:$0xf]
  %v69 = vld [vmem:[%s0 + $0xcc] sm:$0xf]
  %v70 = vld [vmem:[%s0 + $0xd0] sm:$0xf]
  %v71 = vld [vmem:[%s0 + $0xd4] sm:$0xf]
  %v72 = vld [vmem:[%s0 + $0xd8] sm:$0xf]
  %v73 = vld [vmem:[%s0 + $0xdc] sm:$0xf]
  %v74 = vld [vmem:[%s0 + $0xe0] sm:$0xf]
  %v75 = vld [vmem:[%s0 + $0xe4] sm:$0xf]
  %v76 = vld [vmem:[%s0 + $0xe8] sm:$0xf]
  %v77 = vld [vmem:[%s0 + $0xec] sm:$0xf]
  %v78 = vld [vmem:[%s0 + $0xf0] sm:$0xf]
  %v79 = vld [vmem:[%s0 + $0xf4] sm:$0xf]
  %v80 = vld [vmem:[%s0 + $0xf8] sm:$0xf]
  %v81 = vld [vmem:[%s0 + $0xfc] sm:$0xf]
  %v82 = vld [vmem:[%s1] sm:$0xf]
  %v83 = vld [vmem:[%s1 + $0x4] sm:$0xf]
  %v148 = vunpack.c.l.b16 %v18
  %v149 = vunpack.c.l.b16 %v19
  %v150 = vunpack.c.l.b16 %v20
  %v151 = vunpack.c.l.b16 %v21
  %v152 = vunpack.c.l.b16 %v22
  %v153 = vunpack.c.l.b16 %v23
  %v154 = vunpack.c.l.b16 %v24
  %v155 = vunpack.c.l.b16 %v25
  %v156 = vunpack.c.l.b16 %v26
  %v157 = vunpack.c.l.b16 %v27
  %v158 = vunpack.c.l.b16 %v28
  %v159 = vunpack.c.l.b16 %v29
  %v160 = vunpack.c.l.b16 %v30
  %v161 = vunpack.c.l.b16 %v31
  %v162 = vunpack.c.l.b16 %v32
  %v163 = vunpack.c.l.b16 %v33
  %v164 = vunpack.c.l.b16 %v34
  %v165 = vunpack.c.l.b16 %v35
  %v166 = vunpack.c.l.b16 %v36
  %v167 = vunpack.c.l.b16 %v37
  %v168 = vunpack.c.l.b16 %v38
  %v169 = vunpack.c.l.b16 %v39
  %v170 = vunpack.c.l.b16 %v40
  %v171 = vunpack.c.l.b16 %v41
  %v172 = vunpack.c.l.b16 %v42
  %v173 = vunpack.c.l.b16 %v43
  %v174 = vunpack.c.l.b16 %v44
  %v175 = vunpack.c.l.b16 %v45
  %v176 = vunpack.c.l.b16 %v46
  %v177 = vunpack.c.l.b16 %v47
  %v178 = vunpack.c.l.b16 %v48
  %v179 = vunpack.c.l.b16 %v49
  %v180 = vunpack.c.l.b16 %v50
  %v181 = vunpack.c.l.b16 %v51
  %v182 = vunpack.c.l.b16 %v52
  %v183 = vunpack.c.l.b16 %v53
  %v184 = vunpack.c.l.b16 %v54
  %v185 = vunpack.c.l.b16 %v55
  %v186 = vunpack.c.l.b16 %v56
  %v187 = vunpack.c.l.b16 %v57
  %v188 = vunpack.c.l.b16 %v58
  %v189 = vunpack.c.l.b16 %v59
  %v190 = vunpack.c.l.b16 %v60
  %v191 = vunpack.c.l.b16 %v61
  %v192 = vunpack.c.l.b16 %v62
  %v193 = vunpack.c.l.b16 %v63
  %v194 = vunpack.c.l.b16 %v64
  %v195 = vunpack.c.l.b16 %v65
  %v196 = vunpack.c.l.b16 %v66
  %v197 = vunpack.c.l.b16 %v67
  %v198 = vunpack.c.l.b16 %v68
  %v199 = vunpack.c.l.b16 %v69
  %v200 = vunpack.c.l.b16 %v70
  %v201 = vunpack.c.l.b16 %v71
  %v202 = vunpack.c.l.b16 %v72
  %v203 = vunpack.c.l.b16 %v73
  %v204 = vunpack.c.l.b16 %v74
  %v205 = vunpack.c.l.b16 %v75
  %v206 = vunpack.c.l.b16 %v76
  %v207 = vunpack.c.l.b16 %v77
  %v208 = vunpack.c.l.b16 %v78
  %v209 = vunpack.c.l.b16 %v79
  %v210 = vunpack.c.l.b16 %v80
  %v211 = vunpack.c.l.b16 %v81
  %v212 = vpack.c.b16 %v149, %v148
  %v213 = vpack.c.b16 %v151, %v150
  %v214 = vpack.c.b16 %v153, %v152
  %v215 = vpack.c.b16 %v155, %v154
  %v216 = vpack.c.b16 %v157, %v156
  %v217 = vpack.c.b16 %v159, %v158
  %v218 = vpack.c.b16 %v161, %v160
  %v219 = vpack.c.b16 %v163, %v162
  %v220 = vpack.c.b16 %v165, %v164
  %v221 = vpack.c.b16 %v167, %v166
  %v222 = vpack.c.b16 %v169, %v168
  %v223 = vpack.c.b16 %v171, %v170
  %v224 = vpack.c.b16 %v173, %v172
  %v225 = vpack.c.b16 %v175, %v174
  %v226 = vpack.c.b16 %v177, %v176
  %v227 = vpack.c.b16 %v179, %v178
  %v228 = vpack.c.b16 %v181, %v180
  %v229 = vpack.c.b16 %v183, %v182
  %v230 = vpack.c.b16 %v185, %v184
  %v231 = vpack.c.b16 %v187, %v186
  %v232 = vpack.c.b16 %v189, %v188
  %v233 = vpack.c.b16 %v191, %v190
  %v234 = vpack.c.b16 %v193, %v192
  %v235 = vpack.c.b16 %v195, %v194
  %v236 = vpack.c.b16 %v197, %v196
  %v237 = vpack.c.b16 %v199, %v198
  %v238 = vpack.c.b16 %v201, %v200
  %v239 = vpack.c.b16 %v203, %v202
  %v240 = vpack.c.b16 %v205, %v204
  %v241 = vpack.c.b16 %v207, %v206
  %v242 = vpack.c.b16 %v209, %v208
  %v243 = vpack.c.b16 %v211, %v210
  %v246 = vunpack.c.l.b16 %v82
  %v247 = vunpack.c.l.b16 %v83
  %v248 = vpack.c.b16 %v247, %v246
  %vm250 = vcmask 130048
  %v252 = vsel %vm250, %v212, 0
  %v255 = vsel %vm250, %v213, 0
  %v258 = vsel %vm250, %v214, 0
  %v261 = vsel %vm250, %v215, 0
  %v264 = vsel %vm250, %v216, 0
  %v267 = vsel %vm250, %v217, 0
  %v270 = vsel %vm250, %v218, 0
  %v273 = vsel %vm250, %v219, 0
  %v276 = vsel %vm250, %v220, 0
  %v279 = vsel %vm250, %v221, 0
  %v282 = vsel %vm250, %v222, 0
  %v285 = vsel %vm250, %v223, 0
  %v288 = vsel %vm250, %v224, 0
  %v291 = vsel %vm250, %v225, 0
  %v294 = vsel %vm250, %v226, 0
  %v297 = vsel %vm250, %v227, 0
  %v300 = vsel %vm250, %v228, 0
  %v303 = vsel %vm250, %v229, 0
  %v306 = vsel %vm250, %v230, 0
  %v309 = vsel %vm250, %v231, 0
  %v312 = vsel %vm250, %v232, 0
  %v315 = vsel %vm250, %v233, 0
  %v318 = vsel %vm250, %v234, 0
  %v321 = vsel %vm250, %v235, 0
  %v324 = vsel %vm250, %v236, 0
  %v327 = vsel %vm250, %v237, 0
  %v330 = vsel %vm250, %v238, 0
  %v333 = vsel %vm250, %v239, 0
  %v336 = vsel %vm250, %v240, 0
  %v339 = vsel %vm250, %v241, 0
  %v342 = vsel %vm250, %v242, 0
  %v345 = vsel %vm250, %v243, 0
  %347 = vmatpush.bf16.msra.mxu0 0
  %348 = vmatpush.bf16.msra.mxu0 0
  %349 = vmatpush.bf16.msra.mxu0 0
  %350 = vmatpush.bf16.msra.mxu0 0
  %351 = vmatpush.bf16.msra.mxu0 0
  %352 = vmatpush.bf16.msra.mxu0 0
  %353 = vmatpush.bf16.msra.mxu0 0
  %354 = vmatpush.bf16.msra.mxu0 %v248
  %355 = vmatmul.bf16.gmra.mxu0 %v252
  %v356 = vpop.f32.mrf.mxu0
  %v357 = vadd.f32 0.0, %v356
  %v358 = vpop.f32.mrf.mxu0
  %v359 = vadd.f32 0.0, %v358
  %360 = vmatmul.bf16.gmra.mxu0 %v255
  %v361 = vpop.f32.mrf.mxu0
  %v362 = vadd.f32 0.0, %v361
  %v363 = vpop.f32.mrf.mxu0
  %v364 = vadd.f32 0.0, %v363
  %365 = vmatmul.bf16.gmra.mxu0 %v258
  %v366 = vpop.f32.mrf.mxu0
  %v367 = vadd.f32 0.0, %v366
  %v368 = vpop.f32.mrf.mxu0
  %v369 = vadd.f32 0.0, %v368
  %370 = vmatmul.bf16.gmra.mxu0 %v261
  %v371 = vpop.f32.mrf.mxu0
  %v372 = vadd.f32 0.0, %v371
  %v373 = vpop.f32.mrf.mxu0
  %v374 = vadd.f32 0.0, %v373
  %375 = vmatmul.bf16.gmra.mxu0 %v264
  %v376 = vpop.f32.mrf.mxu0
  %v377 = vadd.f32 0.0, %v376
  %v378 = vpop.f32.mrf.mxu0
  %v379 = vadd.f32 0.0, %v378
  %380 = vmatmul.bf16.gmra.mxu0 %v267
  %v381 = vpop.f32.mrf.mxu0
  %v382 = vadd.f32 0.0, %v381
  %v383 = vpop.f32.mrf.mxu0
  %v384 = vadd.f32 0.0, %v383
  %385 = vmatmul.bf16.gmra.mxu0 %v270
  %v386 = vpop.f32.mrf.mxu0
  %v387 = vadd.f32 0.0, %v386
  %v388 = vpop.f32.mrf.mxu0
  %v389 = vadd.f32 0.0, %v388
  %390 = vmatmul.bf16.gmra.mxu0 %v273
  %v391 = vpop.f32.mrf.mxu0
  %v392 = vadd.f32 0.0, %v391
  %v393 = vpop.f32.mrf.mxu0
  %v394 = vadd.f32 0.0, %v393
  %395 = vmatmul.bf16.gmra.mxu0 %v276
  %v396 = vpop.f32.mrf.mxu0
  %v397 = vadd.f32 0.0, %v396
  %v398 = vpop.f32.mrf.mxu0
  %v399 = vadd.f32 0.0, %v398
  %400 = vmatmul.bf16.gmra.mxu0 %v279
  %v401 = vpop.f32.mrf.mxu0
  %v402 = vadd.f32 0.0, %v401
  %v403 = vpop.f32.mrf.mxu0
  %v404 = vadd.f32 0.0, %v403
  %405 = vmatmul.bf16.gmra.mxu0 %v282
  %v406 = vpop.f32.mrf.mxu0
  %v407 = vadd.f32 0.0, %v406
  %v408 = vpop.f32.mrf.mxu0
  %v409 = vadd.f32 0.0, %v408
  %410 = vmatmul.bf16.gmra.mxu0 %v285
  %v411 = vpop.f32.mrf.mxu0
  %v412 = vadd.f32 0.0, %v411
  %v413 = vpop.f32.mrf.mxu0
  %v414 = vadd.f32 0.0, %v413
  %415 = vmatmul.bf16.gmra.mxu0 %v288
  %v416 = vpop.f32.mrf.mxu0
  %v417 = vadd.f32 0.0, %v416
  %v418 = vpop.f32.mrf.mxu0
  %v419 = vadd.f32 0.0, %v418
  %420 = vmatmul.bf16.gmra.mxu0 %v291
  %v421 = vpop.f32.mrf.mxu0
  %v422 = vadd.f32 0.0, %v421
  %v423 = vpop.f32.mrf.mxu0
  %v424 = vadd.f32 0.0, %v423
  %425 = vmatmul.bf16.gmra.mxu0 %v294
  %v426 = vpop.f32.mrf.mxu0
  %v427 = vadd.f32 0.0, %v426
  %v428 = vpop.f32.mrf.mxu0
  %v429 = vadd.f32 0.0, %v428
  %430 = vmatmul.bf16.gmra.mxu0 %v297
  %v431 = vpop.f32.mrf.mxu0
  %v432 = vadd.f32 0.0, %v431
  %v433 = vpop.f32.mrf.mxu0
  %v434 = vadd.f32 0.0, %v433
  %435 = vmatmul.bf16.gmra.mxu0 %v300
  %v436 = vpop.f32.mrf.mxu0
  %v437 = vadd.f32 0.0, %v436
  %v438 = vpop.f32.mrf.mxu0
  %v439 = vadd.f32 0.0, %v438
  %440 = vmatmul.bf16.gmra.mxu0 %v303
  %v441 = vpop.f32.mrf.mxu0
  %v442 = vadd.f32 0.0, %v441
  %v443 = vpop.f32.mrf.mxu0
  %v444 = vadd.f32 0.0, %v443
  %445 = vmatmul.bf16.gmra.mxu0 %v306
  %v446 = vpop.f32.mrf.mxu0
  %v447 = vadd.f32 0.0, %v446
  %v448 = vpop.f32.mrf.mxu0
  %v449 = vadd.f32 0.0, %v448
  %450 = vmatmul.bf16.gmra.mxu0 %v309
  %v451 = vpop.f32.mrf.mxu0
  %v452 = vadd.f32 0.0, %v451
  %v453 = vpop.f32.mrf.mxu0
  %v454 = vadd.f32 0.0, %v453
  %455 = vmatmul.bf16.gmra.mxu0 %v312
  %v456 = vpop.f32.mrf.mxu0
  %v457 = vadd.f32 0.0, %v456
  %v458 = vpop.f32.mrf.mxu0
  %v459 = vadd.f32 0.0, %v458
  %460 = vmatmul.bf16.gmra.mxu0 %v315
  %v461 = vpop.f32.mrf.mxu0
  %v462 = vadd.f32 0.0, %v461
  %v463 = vpop.f32.mrf.mxu0
  %v464 = vadd.f32 0.0, %v463
  %465 = vmatmul.bf16.gmra.mxu0 %v318
  %v466 = vpop.f32.mrf.mxu0
  %v467 = vadd.f32 0.0, %v466
  %v468 = vpop.f32.mrf.mxu0
  %v469 = vadd.f32 0.0, %v468
  %470 = vmatmul.bf16.gmra.mxu0 %v321
  %v471 = vpop.f32.mrf.mxu0
  %v472 = vadd.f32 0.0, %v471
  %v473 = vpop.f32.mrf.mxu0
  %v474 = vadd.f32 0.0, %v473
  %475 = vmatmul.bf16.gmra.mxu0 %v324
  %v476 = vpop.f32.mrf.mxu0
  %v477 = vadd.f32 0.0, %v476
  %v478 = vpop.f32.mrf.mxu0
  %v479 = vadd.f32 0.0, %v478
  %480 = vmatmul.bf16.gmra.mxu0 %v327
  %v481 = vpop.f32.mrf.mxu0
  %v482 = vadd.f32 0.0, %v481
  %v483 = vpop.f32.mrf.mxu0
  %v484 = vadd.f32 0.0, %v483
  %485 = vmatmul.bf16.gmra.mxu0 %v330
  %v486 = vpop.f32.mrf.mxu0
  %v487 = vadd.f32 0.0, %v486
  %v488 = vpop.f32.mrf.mxu0
  %v489 = vadd.f32 0.0, %v488
  %490 = vmatmul.bf16.gmra.mxu0 %v333
  %v491 = vpop.f32.mrf.mxu0
  %v492 = vadd.f32 0.0, %v491
  %v493 = vpop.f32.mrf.mxu0
  %v494 = vadd.f32 0.0, %v493
  %495 = vmatmul.bf16.gmra.mxu0 %v336
  %v496 = vpop.f32.mrf.mxu0
  %v497 = vadd.f32 0.0, %v496
  %v498 = vpop.f32.mrf.mxu0
  %v499 = vadd.f32 0.0, %v498
  %500 = vmatmul.bf16.gmra.mxu0 %v339
  %v501 = vpop.f32.mrf.mxu0
  %v502 = vadd.f32 0.0, %v501
  %v503 = vpop.f32.mrf.mxu0
  %v504 = vadd.f32 0.0, %v503
  %505 = vmatmul.bf16.gmra.mxu0 %v342
  %v506 = vpop.f32.mrf.mxu0
  %v507 = vadd.f32 0.0, %v506
  %v508 = vpop.f32.mrf.mxu0
  %v509 = vadd.f32 0.0, %v508
  %510 = vmatmul.bf16.gmra.mxu0 %v345
  %v511 = vpop.f32.mrf.mxu0
  %v512 = vadd.f32 0.0, %v511
  %v513 = vpop.f32.mrf.mxu0
  %v514 = vadd.f32 0.0, %v513
  %515 = vdwg.mxu0
  %v516 = vld [vmem:[%s2] sm:$0x1]
  %v518 = vperm.slane %v516, 0
  %v520 = vmul.f32 %v357, %v518
  %v521 = vmul.f32 %v359, %v518
  %v522 = vmul.f32 %v362, %v518
  %v523 = vmul.f32 %v364, %v518
  %v524 = vmul.f32 %v367, %v518
  %v525 = vmul.f32 %v369, %v518
  %v526 = vmul.f32 %v372, %v518
  %v527 = vmul.f32 %v374, %v518
  %v528 = vmul.f32 %v377, %v518
  %v529 = vmul.f32 %v379, %v518
  %v530 = vmul.f32 %v382, %v518
  %v531 = vmul.f32 %v384, %v518
  %v532 = vmul.f32 %v387, %v518
  %v533 = vmul.f32 %v389, %v518
  %v534 = vmul.f32 %v392, %v518
  %v535 = vmul.f32 %v394, %v518
  %v536 = vmul.f32 %v397, %v518
  %v537 = vmul.f32 %v399, %v518
  %v538 = vmul.f32 %v402, %v518
  %v539 = vmul.f32 %v404, %v518
  %v540 = vmul.f32 %v407, %v518
  %v541 = vmul.f32 %v409, %v518
  %v542 = vmul.f32 %v412, %v518
  %v543 = vmul.f32 %v414, %v518
  %v544 = vmul.f32 %v417, %v518
  %v545 = vmul.f32 %v419, %v518
  %v546 = vmul.f32 %v422, %v518
  %v547 = vmul.f32 %v424, %v518
  %v548 = vmul.f32 %v427, %v518
  %v549 = vmul.f32 %v429, %v518
  %v550 = vmul.f32 %v432, %v518
  %v551 = vmul.f32 %v434, %v518
  %v552 = vmul.f32 %v437, %v518
  %v553 = vmul.f32 %v439, %v518
  %v554 = vmul.f32 %v442, %v518
  %v555 = vmul.f32 %v444, %v518
  %v556 = vmul.f32 %v447, %v518
  %v557 = vmul.f32 %v449, %v518
  %v558 = vmul.f32 %v452, %v518
  %v559 = vmul.f32 %v454, %v518
  %v560 = vmul.f32 %v457, %v518
  %v561 = vmul.f32 %v459, %v518
  %v562 = vmul.f32 %v462, %v518
  %v563 = vmul.f32 %v464, %v518
  %v564 = vmul.f32 %v467, %v518
  %v565 = vmul.f32 %v469, %v518
  %v566 = vmul.f32 %v472, %v518
  %v567 = vmul.f32 %v474, %v518
  %v568 = vmul.f32 %v477, %v518
  %v569 = vmul.f32 %v479, %v518
  %v570 = vmul.f32 %v482, %v518
  %v571 = vmul.f32 %v484, %v518
  %v572 = vmul.f32 %v487, %v518
  %v573 = vmul.f32 %v489, %v518
  %v574 = vmul.f32 %v492, %v518
  %v575 = vmul.f32 %v494, %v518
  %v576 = vmul.f32 %v497, %v518
  %v577 = vmul.f32 %v499, %v518
  %v578 = vmul.f32 %v502, %v518
  %v579 = vmul.f32 %v504, %v518
  %v580 = vmul.f32 %v507, %v518
  %v581 = vmul.f32 %v509, %v518
  %v582 = vmul.f32 %v512, %v518
  %v583 = vmul.f32 %v514, %v518
  %v584 = vld [vmem:[%s3] sm:$0x1]
  %v586 = vperm.slane %v584, 0
  %v588 = vadd.f32 %v520, %v586
  %v589 = vadd.f32 %v521, %v586
  %v590 = vadd.f32 %v522, %v586
  %v591 = vadd.f32 %v523, %v586
  %v592 = vadd.f32 %v524, %v586
  %v593 = vadd.f32 %v525, %v586
  %v594 = vadd.f32 %v526, %v586
  %v595 = vadd.f32 %v527, %v586
  %v596 = vadd.f32 %v528, %v586
  %v597 = vadd.f32 %v529, %v586
  %v598 = vadd.f32 %v530, %v586
  %v599 = vadd.f32 %v531, %v586
  %v600 = vadd.f32 %v532, %v586
  %v601 = vadd.f32 %v533, %v586
  %v602 = vadd.f32 %v534, %v586
  %v603 = vadd.f32 %v535, %v586
  %v604 = vadd.f32 %v536, %v586
  %v605 = vadd.f32 %v537, %v586
  %v606 = vadd.f32 %v538, %v586
  %v607 = vadd.f32 %v539, %v586
  %v608 = vadd.f32 %v540, %v586
  %v609 = vadd.f32 %v541, %v586
  %v610 = vadd.f32 %v542, %v586
  %v611 = vadd.f32 %v543, %v586
  %v612 = vadd.f32 %v544, %v586
  %v613 = vadd.f32 %v545, %v586
  %v614 = vadd.f32 %v546, %v586
  %v615 = vadd.f32 %v547, %v586
  %v616 = vadd.f32 %v548, %v586
  %v617 = vadd.f32 %v549, %v586
  %v618 = vadd.f32 %v550, %v586
  %v619 = vadd.f32 %v551, %v586
  %v620 = vadd.f32 %v552, %v586
  %v621 = vadd.f32 %v553, %v586
  %v622 = vadd.f32 %v554, %v586
  %v623 = vadd.f32 %v555, %v586
  %v624 = vadd.f32 %v556, %v586
  %v625 = vadd.f32 %v557, %v586
  %v626 = vadd.f32 %v558, %v586
  %v627 = vadd.f32 %v559, %v586
  %v628 = vadd.f32 %v560, %v586
  %v629 = vadd.f32 %v561, %v586
  %v630 = vadd.f32 %v562, %v586
  %v631 = vadd.f32 %v563, %v586
  %v632 = vadd.f32 %v564, %v586
  %v633 = vadd.f32 %v565, %v586
  %v634 = vadd.f32 %v566, %v586
  %v635 = vadd.f32 %v567, %v586
  %v636 = vadd.f32 %v568, %v586
  %v637 = vadd.f32 %v569, %v586
  %v638 = vadd.f32 %v570, %v586
  %v639 = vadd.f32 %v571, %v586
  %v640 = vadd.f32 %v572, %v586
  %v641 = vadd.f32 %v573, %v586
  %v642 = vadd.f32 %v574, %v586
  %v643 = vadd.f32 %v575, %v586
  %v644 = vadd.f32 %v576, %v586
  %v645 = vadd.f32 %v577, %v586
  %v646 = vadd.f32 %v578, %v586
  %v647 = vadd.f32 %v579, %v586
  %v648 = vadd.f32 %v580, %v586
  %v649 = vadd.f32 %v581, %v586
  %v650 = vadd.f32 %v582, %v586
  %v651 = vadd.f32 %v583, %v586
  %v652 = vsub.f32 0.0, %v588
  %v653 = vsub.f32 0.0, %v589
  %v654 = vsub.f32 0.0, %v590
  %v655 = vsub.f32 0.0, %v591
  %v656 = vsub.f32 0.0, %v592
  %v657 = vsub.f32 0.0, %v593
  %v658 = vsub.f32 0.0, %v594
  %v659 = vsub.f32 0.0, %v595
  %v660 = vsub.f32 0.0, %v596
  %v661 = vsub.f32 0.0, %v597
  %v662 = vsub.f32 0.0, %v598
  %v663 = vsub.f32 0.0, %v599
  %v664 = vsub.f32 0.0, %v600
  %v665 = vsub.f32 0.0, %v601
  %v666 = vsub.f32 0.0, %v602
  %v667 = vsub.f32 0.0, %v603
  %v668 = vsub.f32 0.0, %v604
  %v669 = vsub.f32 0.0, %v605
  %v670 = vsub.f32 0.0, %v606
  %v671 = vsub.f32 0.0, %v607
  %v672 = vsub.f32 0.0, %v608
  %v673 = vsub.f32 0.0, %v609
  %v674 = vsub.f32 0.0, %v610
  %v675 = vsub.f32 0.0, %v611
  %v676 = vsub.f32 0.0, %v612
  %v677 = vsub.f32 0.0, %v613
  %v678 = vsub.f32 0.0, %v614
  %v679 = vsub.f32 0.0, %v615
  %v680 = vsub.f32 0.0, %v616
  %v681 = vsub.f32 0.0, %v617
  %v682 = vsub.f32 0.0, %v618
  %v683 = vsub.f32 0.0, %v619
  %v684 = vsub.f32 0.0, %v620
  %v685 = vsub.f32 0.0, %v621
  %v686 = vsub.f32 0.0, %v622
  %v687 = vsub.f32 0.0, %v623
  %v688 = vsub.f32 0.0, %v624
  %v689 = vsub.f32 0.0, %v625
  %v690 = vsub.f32 0.0, %v626
  %v691 = vsub.f32 0.0, %v627
  %v692 = vsub.f32 0.0, %v628
  %v693 = vsub.f32 0.0, %v629
  %v694 = vsub.f32 0.0, %v630
  %v695 = vsub.f32 0.0, %v631
  %v696 = vsub.f32 0.0, %v632
  %v697 = vsub.f32 0.0, %v633
  %v698 = vsub.f32 0.0, %v634
  %v699 = vsub.f32 0.0, %v635
  %v700 = vsub.f32 0.0, %v636
  %v701 = vsub.f32 0.0, %v637
  %v702 = vsub.f32 0.0, %v638
  %v703 = vsub.f32 0.0, %v639
  %v704 = vsub.f32 0.0, %v640
  %v705 = vsub.f32 0.0, %v641
  %v706 = vsub.f32 0.0, %v642
  %v707 = vsub.f32 0.0, %v643
  %v708 = vsub.f32 0.0, %v644
  %v709 = vsub.f32 0.0, %v645
  %v710 = vsub.f32 0.0, %v646
  %v711 = vsub.f32 0.0, %v647
  %v712 = vsub.f32 0.0, %v648
  %v713 = vsub.f32 0.0, %v649
  %v714 = vsub.f32 0.0, %v650
  %v715 = vsub.f32 0.0, %v651
  %v716 = vmul.f32 %v652, 1.442695
  %v717 = vpow.pop %v716
  %v718 = vmul.f32 %v653, 1.442695
  %v719 = vpow.pop %v718
  %v720 = vmul.f32 %v654, 1.442695
  %v721 = vpow.pop %v720
  %v722 = vmul.f32 %v655, 1.442695
  %v723 = vpow.pop %v722
  %v724 = vmul.f32 %v656, 1.442695
  %v725 = vpow.pop %v724
  %v726 = vmul.f32 %v657, 1.442695
  %v727 = vpow.pop %v726
  %v728 = vmul.f32 %v658, 1.442695
  %v729 = vpow.pop %v728
  %v730 = vmul.f32 %v659, 1.442695
  %v731 = vpow.pop %v730
  %v732 = vmul.f32 %v660, 1.442695
  %v733 = vpow.pop %v732
  %v734 = vmul.f32 %v661, 1.442695
  %v735 = vpow.pop %v734
  %v736 = vmul.f32 %v662, 1.442695
  %v737 = vpow.pop %v736
  %v738 = vmul.f32 %v663, 1.442695
  %v739 = vpow.pop %v738
  %v740 = vmul.f32 %v664, 1.442695
  %v741 = vpow.pop %v740
  %v742 = vmul.f32 %v665, 1.442695
  %v743 = vpow.pop %v742
  %v744 = vmul.f32 %v666, 1.442695
  %v745 = vpow.pop %v744
  %v746 = vmul.f32 %v667, 1.442695
  %v747 = vpow.pop %v746
  %v748 = vmul.f32 %v668, 1.442695
  %v749 = vpow.pop %v748
  %v750 = vmul.f32 %v669, 1.442695
  %v751 = vpow.pop %v750
  %v752 = vmul.f32 %v670, 1.442695
  %v753 = vpow.pop %v752
  %v754 = vmul.f32 %v671, 1.442695
  %v755 = vpow.pop %v754
  %v756 = vmul.f32 %v672, 1.442695
  %v757 = vpow.pop %v756
  %v758 = vmul.f32 %v673, 1.442695
  %v759 = vpow.pop %v758
  %v760 = vmul.f32 %v674, 1.442695
  %v761 = vpow.pop %v760
  %v762 = vmul.f32 %v675, 1.442695
  %v763 = vpow.pop %v762
  %v764 = vmul.f32 %v676, 1.442695
  %v765 = vpow.pop %v764
  %v766 = vmul.f32 %v677, 1.442695
  %v767 = vpow.pop %v766
  %v768 = vmul.f32 %v678, 1.442695
  %v769 = vpow.pop %v768
  %v770 = vmul.f32 %v679, 1.442695
  %v771 = vpow.pop %v770
  %v772 = vmul.f32 %v680, 1.442695
  %v773 = vpow.pop %v772
  %v774 = vmul.f32 %v681, 1.442695
  %v775 = vpow.pop %v774
  %v776 = vmul.f32 %v682, 1.442695
  %v777 = vpow.pop %v776
  %v778 = vmul.f32 %v683, 1.442695
  %v779 = vpow.pop %v778
  %v780 = vmul.f32 %v684, 1.442695
  %v781 = vpow.pop %v780
  %v782 = vmul.f32 %v685, 1.442695
  %v783 = vpow.pop %v782
  %v784 = vmul.f32 %v686, 1.442695
  %v785 = vpow.pop %v784
  %v786 = vmul.f32 %v687, 1.442695
  %v787 = vpow.pop %v786
  %v788 = vmul.f32 %v688, 1.442695
  %v789 = vpow.pop %v788
  %v790 = vmul.f32 %v689, 1.442695
  %v791 = vpow.pop %v790
  %v792 = vmul.f32 %v690, 1.442695
  %v793 = vpow.pop %v792
  %v794 = vmul.f32 %v691, 1.442695
  %v795 = vpow.pop %v794
  %v796 = vmul.f32 %v692, 1.442695
  %v797 = vpow.pop %v796
  %v798 = vmul.f32 %v693, 1.442695
  %v799 = vpow.pop %v798
  %v800 = vmul.f32 %v694, 1.442695
  %v801 = vpow.pop %v800
  %v802 = vmul.f32 %v695, 1.442695
  %v803 = vpow.pop %v802
  %v804 = vmul.f32 %v696, 1.442695
  %v805 = vpow.pop %v804
  %v806 = vmul.f32 %v697, 1.442695
  %v807 = vpow.pop %v806
  %v808 = vmul.f32 %v698, 1.442695
  %v809 = vpow.pop %v808
  %v810 = vmul.f32 %v699, 1.442695
  %v811 = vpow.pop %v810
  %v812 = vmul.f32 %v700, 1.442695
  %v813 = vpow.pop %v812
  %v814 = vmul.f32 %v701, 1.442695
  %v815 = vpow.pop %v814
  %v816 = vmul.f32 %v702, 1.442695
  %v817 = vpow.pop %v816
  %v818 = vmul.f32 %v703, 1.442695
  %v819 = vpow.pop %v818
  %v820 = vmul.f32 %v704, 1.442695
  %v821 = vpow.pop %v820
  %v822 = vmul.f32 %v705, 1.442695
  %v823 = vpow.pop %v822
  %v824 = vmul.f32 %v706, 1.442695
  %v825 = vpow.pop %v824
  %v826 = vmul.f32 %v707, 1.442695
  %v827 = vpow.pop %v826
  %v828 = vmul.f32 %v708, 1.442695
  %v829 = vpow.pop %v828
  %v830 = vmul.f32 %v709, 1.442695
  %v831 = vpow.pop %v830
  %v832 = vmul.f32 %v710, 1.442695
  %v833 = vpow.pop %v832
  %v834 = vmul.f32 %v711, 1.442695
  %v835 = vpow.pop %v834
  %v836 = vmul.f32 %v712, 1.442695
  %v837 = vpow.pop %v836
  %v838 = vmul.f32 %v713, 1.442695
  %v839 = vpow.pop %v838
  %v840 = vmul.f32 %v714, 1.442695
  %v841 = vpow.pop %v840
  %v842 = vmul.f32 %v715, 1.442695
  %v843 = vpow.pop %v842
  %v844 = vadd.f32 %v717, 1.0
  %v845 = vadd.f32 %v719, 1.0
  %v846 = vadd.f32 %v721, 1.0
  %v847 = vadd.f32 %v723, 1.0
  %v848 = vadd.f32 %v725, 1.0
  %v849 = vadd.f32 %v727, 1.0
  %v850 = vadd.f32 %v729, 1.0
  %v851 = vadd.f32 %v731, 1.0
  %v852 = vadd.f32 %v733, 1.0
  %v853 = vadd.f32 %v735, 1.0
  %v854 = vadd.f32 %v737, 1.0
  %v855 = vadd.f32 %v739, 1.0
  %v856 = vadd.f32 %v741, 1.0
  %v857 = vadd.f32 %v743, 1.0
  %v858 = vadd.f32 %v745, 1.0
  %v859 = vadd.f32 %v747, 1.0
  %v860 = vadd.f32 %v749, 1.0
  %v861 = vadd.f32 %v751, 1.0
  %v862 = vadd.f32 %v753, 1.0
  %v863 = vadd.f32 %v755, 1.0
  %v864 = vadd.f32 %v757, 1.0
  %v865 = vadd.f32 %v759, 1.0
  %v866 = vadd.f32 %v761, 1.0
  %v867 = vadd.f32 %v763, 1.0
  %v868 = vadd.f32 %v765, 1.0
  %v869 = vadd.f32 %v767, 1.0
  %v870 = vadd.f32 %v769, 1.0
  %v871 = vadd.f32 %v771, 1.0
  %v872 = vadd.f32 %v773, 1.0
  %v873 = vadd.f32 %v775, 1.0
  %v874 = vadd.f32 %v777, 1.0
  %v875 = vadd.f32 %v779, 1.0
  %v876 = vadd.f32 %v781, 1.0
  %v877 = vadd.f32 %v783, 1.0
  %v878 = vadd.f32 %v785, 1.0
  %v879 = vadd.f32 %v787, 1.0
  %v880 = vadd.f32 %v789, 1.0
  %v881 = vadd.f32 %v791, 1.0
  %v882 = vadd.f32 %v793, 1.0
  %v883 = vadd.f32 %v795, 1.0
  %v884 = vadd.f32 %v797, 1.0
  %v885 = vadd.f32 %v799, 1.0
  %v886 = vadd.f32 %v801, 1.0
  %v887 = vadd.f32 %v803, 1.0
  %v888 = vadd.f32 %v805, 1.0
  %v889 = vadd.f32 %v807, 1.0
  %v890 = vadd.f32 %v809, 1.0
  %v891 = vadd.f32 %v811, 1.0
  %v892 = vadd.f32 %v813, 1.0
  %v893 = vadd.f32 %v815, 1.0
  %v894 = vadd.f32 %v817, 1.0
  %v895 = vadd.f32 %v819, 1.0
  %v896 = vadd.f32 %v821, 1.0
  %v897 = vadd.f32 %v823, 1.0
  %v898 = vadd.f32 %v825, 1.0
  %v899 = vadd.f32 %v827, 1.0
  %v900 = vadd.f32 %v829, 1.0
  %v901 = vadd.f32 %v831, 1.0
  %v902 = vadd.f32 %v833, 1.0
  %v903 = vadd.f32 %v835, 1.0
  %v904 = vadd.f32 %v837, 1.0
  %v905 = vadd.f32 %v839, 1.0
  %v906 = vadd.f32 %v841, 1.0
  %v907 = vadd.f32 %v843, 1.0
  %v908 = vrcp.pop %v844
  %v909 = vrcp.pop %v845
  %v910 = vrcp.pop %v846
  %v911 = vrcp.pop %v847
  %v912 = vrcp.pop %v848
  %v913 = vrcp.pop %v849
  %v914 = vrcp.pop %v850
  %v915 = vrcp.pop %v851
  %v916 = vrcp.pop %v852
  %v917 = vrcp.pop %v853
  %v918 = vrcp.pop %v854
  %v919 = vrcp.pop %v855
  %v920 = vrcp.pop %v856
  %v921 = vrcp.pop %v857
  %v922 = vrcp.pop %v858
  %v923 = vrcp.pop %v859
  %v924 = vrcp.pop %v860
  %v925 = vrcp.pop %v861
  %v926 = vrcp.pop %v862
  %v927 = vrcp.pop %v863
  %v928 = vrcp.pop %v864
  %v929 = vrcp.pop %v865
  %v930 = vrcp.pop %v866
  %v931 = vrcp.pop %v867
  %v932 = vrcp.pop %v868
  %v933 = vrcp.pop %v869
  %v934 = vrcp.pop %v870
  %v935 = vrcp.pop %v871
  %v936 = vrcp.pop %v872
  %v937 = vrcp.pop %v873
  %v938 = vrcp.pop %v874
  %v939 = vrcp.pop %v875
  %v940 = vrcp.pop %v876
  %v941 = vrcp.pop %v877
  %v942 = vrcp.pop %v878
  %v943 = vrcp.pop %v879
  %v944 = vrcp.pop %v880
  %v945 = vrcp.pop %v881
  %v946 = vrcp.pop %v882
  %v947 = vrcp.pop %v883
  %v948 = vrcp.pop %v884
  %v949 = vrcp.pop %v885
  %v950 = vrcp.pop %v886
  %v951 = vrcp.pop %v887
  %v952 = vrcp.pop %v888
  %v953 = vrcp.pop %v889
  %v954 = vrcp.pop %v890
  %v955 = vrcp.pop %v891
  %v956 = vrcp.pop %v892
  %v957 = vrcp.pop %v893
  %v958 = vrcp.pop %v894
  %v959 = vrcp.pop %v895
  %v960 = vrcp.pop %v896
  %v961 = vrcp.pop %v897
  %v962 = vrcp.pop %v898
  %v963 = vrcp.pop %v899
  %v964 = vrcp.pop %v900
  %v965 = vrcp.pop %v901
  %v966 = vrcp.pop %v902
  %v967 = vrcp.pop %v903
  %v968 = vrcp.pop %v904
  %v969 = vrcp.pop %v905
  %v970 = vrcp.pop %v906
  %v971 = vrcp.pop %v907
  %v972 = vmul.f32 %v588, %v908
  %v973 = vmul.f32 %v589, %v909
  %v974 = vmul.f32 %v590, %v910
  %v975 = vmul.f32 %v591, %v911
  %v976 = vmul.f32 %v592, %v912
  %v977 = vmul.f32 %v593, %v913
  %v978 = vmul.f32 %v594, %v914
  %v979 = vmul.f32 %v595, %v915
  %v980 = vmul.f32 %v596, %v916
  %v981 = vmul.f32 %v597, %v917
  %v982 = vmul.f32 %v598, %v918
  %v983 = vmul.f32 %v599, %v919
  %v984 = vmul.f32 %v600, %v920
  %v985 = vmul.f32 %v601, %v921
  %v986 = vmul.f32 %v602, %v922
  %v987 = vmul.f32 %v603, %v923
  %v988 = vmul.f32 %v604, %v924
  %v989 = vmul.f32 %v605, %v925
  %v990 = vmul.f32 %v606, %v926
  %v991 = vmul.f32 %v607, %v927
  %v992 = vmul.f32 %v608, %v928
  %v993 = vmul.f32 %v609, %v929
  %v994 = vmul.f32 %v610, %v930
  %v995 = vmul.f32 %v611, %v931
  %v996 = vmul.f32 %v612, %v932
  %v997 = vmul.f32 %v613, %v933
  %v998 = vmul.f32 %v614, %v934
  %v999 = vmul.f32 %v615, %v935
  %v1000 = vmul.f32 %v616, %v936
  %v1001 = vmul.f32 %v617, %v937
  %v1002 = vmul.f32 %v618, %v938
  %v1003 = vmul.f32 %v619, %v939
  %v1004 = vmul.f32 %v620, %v940
  %v1005 = vmul.f32 %v621, %v941
  %v1006 = vmul.f32 %v622, %v942
  %v1007 = vmul.f32 %v623, %v943
  %v1008 = vmul.f32 %v624, %v944
  %v1009 = vmul.f32 %v625, %v945
  %v1010 = vmul.f32 %v626, %v946
  %v1011 = vmul.f32 %v627, %v947
  %v1012 = vmul.f32 %v628, %v948
  %v1013 = vmul.f32 %v629, %v949
  %v1014 = vmul.f32 %v630, %v950
  %v1015 = vmul.f32 %v631, %v951
  %v1016 = vmul.f32 %v632, %v952
  %v1017 = vmul.f32 %v633, %v953
  %v1018 = vmul.f32 %v634, %v954
  %v1019 = vmul.f32 %v635, %v955
  %v1020 = vmul.f32 %v636, %v956
  %v1021 = vmul.f32 %v637, %v957
  %v1022 = vmul.f32 %v638, %v958
  %v1023 = vmul.f32 %v639, %v959
  %v1024 = vmul.f32 %v640, %v960
  %v1025 = vmul.f32 %v641, %v961
  %v1026 = vmul.f32 %v642, %v962
  %v1027 = vmul.f32 %v643, %v963
  %v1028 = vmul.f32 %v644, %v964
  %v1029 = vmul.f32 %v645, %v965
  %v1030 = vmul.f32 %v646, %v966
  %v1031 = vmul.f32 %v647, %v967
  %v1032 = vmul.f32 %v648, %v968
  %v1033 = vmul.f32 %v649, %v969
  %v1034 = vmul.f32 %v650, %v970
  %v1035 = vmul.f32 %v651, %v971
  %vm1036 = vcmask 64512
  %1037 = vst.msk [vmem:[%s4] sm:$0xff] %vm1036, %v972
  %1038 = vst.msk [vmem:[%s4 + $0x8] sm:$0xff] %vm1036, %v973
  %1039 = vst.msk [vmem:[%s4 + $0x10] sm:$0xff] %vm1036, %v974
  %1040 = vst.msk [vmem:[%s4 + $0x18] sm:$0xff] %vm1036, %v975
  %1041 = vst.msk [vmem:[%s4 + $0x20] sm:$0xff] %vm1036, %v976
  %1042 = vst.msk [vmem:[%s4 + $0x28] sm:$0xff] %vm1036, %v977
  %1043 = vst.msk [vmem:[%s4 + $0x30] sm:$0xff] %vm1036, %v978
  %1044 = vst.msk [vmem:[%s4 + $0x38] sm:$0xff] %vm1036, %v979
  %1045 = vst.msk [vmem:[%s4 + $0x40] sm:$0xff] %vm1036, %v980
  %1046 = vst.msk [vmem:[%s4 + $0x48] sm:$0xff] %vm1036, %v981
  %1047 = vst.msk [vmem:[%s4 + $0x50] sm:$0xff] %vm1036, %v982
  %1048 = vst.msk [vmem:[%s4 + $0x58] sm:$0xff] %vm1036, %v983
  %1049 = vst.msk [vmem:[%s4 + $0x60] sm:$0xff] %vm1036, %v984
  %1050 = vst.msk [vmem:[%s4 + $0x68] sm:$0xff] %vm1036, %v985
  %1051 = vst.msk [vmem:[%s4 + $0x70] sm:$0xff] %vm1036, %v986
  %1052 = vst.msk [vmem:[%s4 + $0x78] sm:$0xff] %vm1036, %v987
  %1053 = vst.msk [vmem:[%s4 + $0x80] sm:$0xff] %vm1036, %v988
  %1054 = vst.msk [vmem:[%s4 + $0x88] sm:$0xff] %vm1036, %v989
  %1055 = vst.msk [vmem:[%s4 + $0x90] sm:$0xff] %vm1036, %v990
  %1056 = vst.msk [vmem:[%s4 + $0x98] sm:$0xff] %vm1036, %v991
  %1057 = vst.msk [vmem:[%s4 + $0xa0] sm:$0xff] %vm1036, %v992
  %1058 = vst.msk [vmem:[%s4 + $0xa8] sm:$0xff] %vm1036, %v993
  %1059 = vst.msk [vmem:[%s4 + $0xb0] sm:$0xff] %vm1036, %v994
  %1060 = vst.msk [vmem:[%s4 + $0xb8] sm:$0xff] %vm1036, %v995
  %1061 = vst.msk [vmem:[%s4 + $0xc0] sm:$0xff] %vm1036, %v996
  %1062 = vst.msk [vmem:[%s4 + $0xc8] sm:$0xff] %vm1036, %v997
  %1063 = vst.msk [vmem:[%s4 + $0xd0] sm:$0xff] %vm1036, %v998
  %1064 = vst.msk [vmem:[%s4 + $0xd8] sm:$0xff] %vm1036, %v999
  %1065 = vst.msk [vmem:[%s4 + $0xe0] sm:$0xff] %vm1036, %v1000
  %1066 = vst.msk [vmem:[%s4 + $0xe8] sm:$0xff] %vm1036, %v1001
  %1067 = vst.msk [vmem:[%s4 + $0xf0] sm:$0xff] %vm1036, %v1002
  %1068 = vst.msk [vmem:[%s4 + $0xf8] sm:$0xff] %vm1036, %v1003
  %1069 = vst.msk [vmem:[%s4 + $0x100] sm:$0xff] %vm1036, %v1004
  %1070 = vst.msk [vmem:[%s4 + $0x108] sm:$0xff] %vm1036, %v1005
  %1071 = vst.msk [vmem:[%s4 + $0x110] sm:$0xff] %vm1036, %v1006
  %1072 = vst.msk [vmem:[%s4 + $0x118] sm:$0xff] %vm1036, %v1007
  %1073 = vst.msk [vmem:[%s4 + $0x120] sm:$0xff] %vm1036, %v1008
  %1074 = vst.msk [vmem:[%s4 + $0x128] sm:$0xff] %vm1036, %v1009
  %1075 = vst.msk [vmem:[%s4 + $0x130] sm:$0xff] %vm1036, %v1010
  %1076 = vst.msk [vmem:[%s4 + $0x138] sm:$0xff] %vm1036, %v1011
  %1077 = vst.msk [vmem:[%s4 + $0x140] sm:$0xff] %vm1036, %v1012
  %1078 = vst.msk [vmem:[%s4 + $0x148] sm:$0xff] %vm1036, %v1013
  %1079 = vst.msk [vmem:[%s4 + $0x150] sm:$0xff] %vm1036, %v1014
  %1080 = vst.msk [vmem:[%s4 + $0x158] sm:$0xff] %vm1036, %v1015
  %1081 = vst.msk [vmem:[%s4 + $0x160] sm:$0xff] %vm1036, %v1016
  %1082 = vst.msk [vmem:[%s4 + $0x168] sm:$0xff] %vm1036, %v1017
  %1083 = vst.msk [vmem:[%s4 + $0x170] sm:$0xff] %vm1036, %v1018
  %1084 = vst.msk [vmem:[%s4 + $0x178] sm:$0xff] %vm1036, %v1019
  %1085 = vst.msk [vmem:[%s4 + $0x180] sm:$0xff] %vm1036, %v1020
  %1086 = vst.msk [vmem:[%s4 + $0x188] sm:$0xff] %vm1036, %v1021
  %1087 = vst.msk [vmem:[%s4 + $0x190] sm:$0xff] %vm1036, %v1022
  %1088 = vst.msk [vmem:[%s4 + $0x198] sm:$0xff] %vm1036, %v1023
  %1089 = vst.msk [vmem:[%s4 + $0x1a0] sm:$0xff] %vm1036, %v1024
  %1090 = vst.msk [vmem:[%s4 + $0x1a8] sm:$0xff] %vm1036, %v1025
  %1091 = vst.msk [vmem:[%s4 + $0x1b0] sm:$0xff] %vm1036, %v1026
  %1092 = vst.msk [vmem:[%s4 + $0x1b8] sm:$0xff] %vm1036, %v1027
  %1093 = vst.msk [vmem:[%s4 + $0x1c0] sm:$0xff] %vm1036, %v1028
  %1094 = vst.msk [vmem:[%s4 + $0x1c8] sm:$0xff] %vm1036, %v1029
  %1095 = vst.msk [vmem:[%s4 + $0x1d0] sm:$0xff] %vm1036, %v1030
  %1096 = vst.msk [vmem:[%s4 + $0x1d8] sm:$0xff] %vm1036, %v1031
  %1097 = vst.msk [vmem:[%s4 + $0x1e0] sm:$0xff] %vm1036, %v1032
  %1098 = vst.msk [vmem:[%s4 + $0x1e8] sm:$0xff] %vm1036, %v1033
  %1099 = vst.msk [vmem:[%s4 + $0x1f0] sm:$0xff] %vm1036, %v1034
  %1100 = vst.msk [vmem:[%s4 + $0x1f8] sm:$0xff] %vm1036, %v1035
  // Predicated region
  $region18: #{_lambda_.11} parent=0 // pred_check
    _
  $region19: #{_lambda_.11} parent=0 // pred_check_branch
    %1102 = sbr.rel (0) target = $region21
  $region20: #{_lambda_.11} parent=0 // pred_region
    _
  $region21: #{_lambda_.11} parent=0 // pred_fallthru
    _
  // Predicated region
  $region22: #{_lambda_.11} parent=0 // pred_check
    _
  $region23: #{_lambda_.11} parent=0 // pred_check_branch
    %1104 = sbr.rel (0) target = $region25
  $region24: #{_lambda_.11} parent=0 // pred_region
    _
  $region25: #{_lambda_.11} parent=0 // pred_fallthru
    _

// kernel: _lambda_.12
$region0: #{_lambda_.12}
  #allocation0 [shape = 'u32[]', space=smem, size = 0x4, offset = 0x4, fixed_abs, tag = 'smem constant byte address 0x4 - core index']
  #allocation1 [shape = 'u32[72,128]{1,0:T(1,128)}', space=vmem, size = 0x9000, scoped, tag = 'internal scratch']
  %s0 = inlined_call_operand.vmem [shape: f32[2,16,16,8], index: 0, kind: input, shape index: {}]
  %s1 = inlined_call_operand.vmem [shape: f32[2,16,1,8], index: 1, kind: output, shape index: {0}]
  %s2 = inlined_call_operand.vmem [shape: f32[2,1,16,8], index: 2, kind: output, shape index: {1}]
  %3 = xla_tuple %s1, %s2
  %s4 = sld [smem:[#allocation0]]
  $region45: #{_lambda_.12} parent=0
    _
  %s6 = ssub.s32 1, %s4
  %s7 = scalar_select 0, %s6, %s4
  loop: start=0, step=1, limit=4
  $region2: #{_lambda_.12} parent=0 // loop_pre_header
    _
  $region3: #{_lambda_.12} parent=0 // loop_header
    %s9 = sphi 0, %s13
    %p10 = scmp.ge.s32.totalorder %s9, 4
    %s19 = sphi 0, %s21
    %s22 = sphi 0, %s19
    %s23 = sphi 0, %s22
    %s39 = sphi 0, %s23
    %s45 = sphi 0, %s47
    %s48 = sphi 0, %s45
    %s49 = sphi 0, %s48
    %s65 = sphi 0, %s49
    %s71 = sphi 0, %s73
    %s74 = sphi 0, %s71
    %s75 = sphi 0, %s74
    %s91 = sphi 0, %s75
  $region4: #{_lambda_.12} parent=0 // loop_header_branch
    %12 = sbr.rel (%p10) target = $region8
  $region5: #{_lambda_.12} parent=0 // loop_body
    %s14 = ssub.s32 %s9, 1
    %s15 = ssub.s32 %s9, 2
    %s16 = sadd.s32 %s9, 1
    %s17 = ssub.s32 %s9, %s16
    %p18 = scmp.eq.s32.totalorder %s17, 0
    %s20 = sadd.s32 %s19, 1
    %s21 = scalar_select %p18, %s19, %s20
    %p24 = pneg %p18
    %p25 = scmp.eq.s32.totalorder %s9, 1
    %p26 = por %p24, %p25
    %p27 = scmp.ne.s32.totalorder %s19, %s22
    %p28 = scmp.eq.s32.totalorder %s9, 0
    %p29 = por %p27, %p28
    %p30 = scmp.ne.s32.totalorder %s19, %s22
    %p31 = scmp.eq.s32.totalorder %s14, 1
    %p32 = por %p30, %p31
    %p33 = scmp.ne.s32.totalorder %s22, %s23
    %p34 = scmp.eq.s32.totalorder %s14, 0
    %p35 = por %p33, %p34
    %p36 = scmp.ne.s32.totalorder %s22, %s23
    %p37 = scmp.eq.s32.totalorder %s15, 1
    %p38 = por %p36, %p37
    %p40 = scmp.ne.s32.totalorder %s23, %s39
    %p41 = scmp.eq.s32.totalorder %s15, 0
    %p42 = por %p40, %p41
    %s43 = ssub.s32 %s9, %s16
    %p44 = scmp.eq.s32.totalorder %s43, 0
    %s46 = sadd.s32 %s45, 1
    %s47 = scalar_select %p44, %s45, %s46
    %p50 = pneg %p44
    %p51 = scmp.eq.s32.totalorder %s9, 1
    %p52 = por %p50, %p51
    %p53 = scmp.ne.s32.totalorder %s45, %s48
    %p54 = scmp.eq.s32.totalorder %s9, 0
    %p55 = por %p53, %p54
    %p56 = scmp.ne.s32.totalorder %s45, %s48
    %p57 = scmp.eq.s32.totalorder %s14, 1
    %p58 = por %p56, %p57
    %p59 = scmp.ne.s32.totalorder %s48, %s49
    %p60 = scmp.eq.s32.totalorder %s14, 0
    %p61 = por %p59, %p60
    %p62 = scmp.ne.s32.totalorder %s48, %s49
    %p63 = scmp.eq.s32.totalorder %s15, 1
    %p64 = por %p62, %p63
    %p66 = scmp.ne.s32.totalorder %s49, %s65
    %p67 = scmp.eq.s32.totalorder %s15, 0
    %p68 = por %p66, %p67
    %s69 = ssub.s32 %s9, %s16
    %p70 = scmp.eq.s32.totalorder %s69, 0
    %s72 = sadd.s32 %s71, 1
    %s73 = scalar_select %p70, %s71, %s72
    %p76 = pneg %p70
    %p77 = scmp.eq.s32.totalorder %s9, 1
    %p78 = por %p76, %p77
    %p79 = scmp.ne.s32.totalorder %s71, %s74
    %p80 = scmp.eq.s32.totalorder %s9, 0
    %p81 = por %p79, %p80
    %p82 = scmp.ne.s32.totalorder %s71, %s74
    %p83 = scmp.eq.s32.totalorder %s14, 1
    %p84 = por %p82, %p83
    %p85 = scmp.ne.s32.totalorder %s74, %s75
    %p86 = scmp.eq.s32.totalorder %s14, 0
    %p87 = por %p85, %p86
    %p88 = scmp.ne.s32.totalorder %s74, %s75
    %p89 = scmp.eq.s32.totalorder %s15, 1
    %p90 = por %p88, %p89
    %p92 = scmp.ne.s32.totalorder %s75, %s91
    %p93 = scmp.eq.s32.totalorder %s15, 0
    %p94 = por %p92, %p93
    %p95 = scmp.le.s32.totalorder 1, %s9
    %p96 = scmp.lt.s32.totalorder %s9, 3
    %p97 = pnand %p95, %p96
    %p98 = pneg %p97
    // Predicated region
    $region9: #{_lambda_.12} parent=5 // pred_check
      _
    $region10: #{_lambda_.12} parent=5 // pred_check_branch
      %100 = sbr.rel (%p97) target = $region12
    $region11: #{_lambda_.12} parent=5 // pred_region
      %s101 = ssub.s32 %s9, 1
    $region12: #{_lambda_.12} parent=5 // pred_fallthru
      _
    %p102 = scmp.lt.s32.totalorder %s9, 2
    // Predicated region
    $region13: #{_lambda_.12} parent=5 // pred_check
      %p103 = pneg %p102
    $region14: #{_lambda_.12} parent=5 // pred_check_branch
      %105 = sbr.rel (%p103) target = $region16
    $region15: #{_lambda_.12} parent=5 // pred_region
      // Predicated region
      $region17: #{_lambda_.12} parent=15 // pred_check
        %p106 = pneg %p29
      $region18: #{_lambda_.12} parent=15 // pred_check_branch
        %108 = sbr.rel (%p106) target = $region20
      $region19: #{_lambda_.12} parent=15 // pred_region
        %p109 = scmp.lt.s32.totalorder %s9, 1
        %s110 = scalar_select %p109, %s9, 1
        %s111 = smul.addr %s110, 32
        %s112 = smul.addr %s111, 8
        %s113 = scalar_lea.vmem %s0, %s112
      $region20: #{_lambda_.12} parent=15 // pred_fallthru
        _
    $region16: #{_lambda_.12} parent=5 // pred_fallthru
      _
    %p114 = scmp.le.s32.totalorder 1, %s9
    %p115 = scmp.lt.s32.totalorder %s9, 3
    %p116 = pnand %p114, %p115
    %p117 = pneg %p116
    // Predicated region
    $region21: #{_lambda_.12} parent=5 // pred_check
      _
    $region22: #{_lambda_.12} parent=5 // pred_check_branch
      %119 = sbr.rel (%p116) target = $region24
    $region23: #{_lambda_.12} parent=5 // pred_region
      %s120 = ssub.s32 %s9, 1
      %p121 = scmp.lt.s32.totalorder %s14, 1
      %s122 = scalar_select %p121, %s14, 1
      %s123 = smul.addr %s122, 32
      %s124 = smul.addr %s123, 8
      %s125 = scalar_lea.vmem %s0, %s124
      %p126 = pneg %p35
      %p127 = pneg %p32
      %p128 = pneg %p61
      %p129 = pneg %p58
      %p130 = scmp.lt.s32.totalorder %s14, 1
      %s131 = scalar_select %p130, %s14, 1
      %s132 = smul.addr %s131, 16
      %s133 = scalar_lea.vmem %s1, %s132
      %p134 = pneg %p87
      %p135 = pneg %p84
      %p136 = scmp.lt.s32.totalorder %s14, 1
      %s137 = scalar_select %p136, %s14, 1
      %s138 = smul.addr %s137, 2
      %s139 = smul.addr %s138, 8
      %s140 = scalar_lea.vmem %s2, %s139
      %p141 = scmp.lt.s32.totalorder %s14, 1
      %s142 = scalar_select %p141, %s14, 1
      %s143 = smul.addr %s142, 32
      %s144 = smul.addr %s143, 8
      %s145 = scalar_lea.vmem %s0, %s144
      %p146 = scmp.lt.s32.totalorder %s14, 1
      %s147 = scalar_select %p146, %s14, 1
      %s148 = smul.addr %s147, 16
      %s149 = scalar_lea.vmem %s1, %s148
      %p150 = scmp.lt.s32.totalorder %s14, 1
      %s151 = scalar_select %p150, %s14, 1
      %s152 = smul.addr %s151, 2
      %s153 = smul.addr %s152, 8
      %s154 = scalar_lea.vmem %s2, %s153
      %v155 = vld [vmem:[%s145] sm:$0xff]
      %v156 = vld [vmem:[%s145 + $0x8] sm:$0xff]
      %v157 = vld [vmem:[%s145 + $0x10] sm:$0xff]
      %v158 = vld [vmem:[%s145 + $0x18] sm:$0xff]
      %v159 = vld [vmem:[%s145 + $0x20] sm:$0xff]
      %v160 = vld [vmem:[%s145 + $0x28] sm:$0xff]
      %v161 = vld [vmem:[%s145 + $0x30] sm:$0xff]
      %v162 = vld [vmem:[%s145 + $0x38] sm:$0xff]
      %v163 = vld [vmem:[%s145 + $0x40] sm:$0xff]
      %v164 = vld [vmem:[%s145 + $0x48] sm:$0xff]
      %v165 = vld [vmem:[%s145 + $0x50] sm:$0xff]
      %v166 = vld [vmem:[%s145 + $0x58] sm:$0xff]
      %v167 = vld [vmem:[%s145 + $0x60] sm:$0xff]
      %v168 = vld [vmem:[%s145 + $0x68] sm:$0xff]
      %v169 = vld [vmem:[%s145 + $0x70] sm:$0xff]
      %v170 = vld [vmem:[%s145 + $0x78] sm:$0xff]
      %v171 = vld [vmem:[%s145 + $0x80] sm:$0xff]
      %v172 = vld [vmem:[%s145 + $0x88] sm:$0xff]
      %v173 = vld [vmem:[%s145 + $0x90] sm:$0xff]
      %v174 = vld [vmem:[%s145 + $0x98] sm:$0xff]
      %v175 = vld [vmem:[%s145 + $0xa0] sm:$0xff]
      %v176 = vld [vmem:[%s145 + $0xa8] sm:$0xff]
      %v177 = vld [vmem:[%s145 + $0xb0] sm:$0xff]
      %v178 = vld [vmem:[%s145 + $0xb8] sm:$0xff]
      %v179 = vld [vmem:[%s145 + $0xc0] sm:$0xff]
      %v180 = vld [vmem:[%s145 + $0xc8] sm:$0xff]
      %v181 = vld [vmem:[%s145 + $0xd0] sm:$0xff]
      %v182 = vld [vmem:[%s145 + $0xd8] sm:$0xff]
      %v183 = vld [vmem:[%s145 + $0xe0] sm:$0xff]
      %v184 = vld [vmem:[%s145 + $0xe8] sm:$0xff]
      %v185 = vld [vmem:[%s145 + $0xf0] sm:$0xff]
      %v186 = vld [vmem:[%s145 + $0xf8] sm:$0xff]
      %vm187 = vcmask 64512
      %v188 = vsel %vm187, %v155, 0.0
      %v189 = vsel %vm187, %v156, 0.0
      %v190 = vadd.f32 %v188, %v189
      %v191 = vrot.slane %v190, 4
      %v192 = vadd.f32 %v190, %v191
      %v193 = vrot.slane %v192, 2
      %v194 = vadd.f32 %v192, %v193
      %v195 = vrot.slane %v194, 1
      %v196 = vadd.f32 %v194, %v195
      %v197 = vsel %vm187, %v157, 0.0
      %v198 = vsel %vm187, %v158, 0.0
      %v199 = vadd.f32 %v197, %v198
      %v200 = vrot.slane %v199, 4
      %v201 = vadd.f32 %v199, %v200
      %v202 = vrot.slane %v201, 2
      %v203 = vadd.f32 %v201, %v202
      %v204 = vrot.slane %v203, 1
      %v205 = vadd.f32 %v203, %v204
      %v206 = vsel %vm187, %v159, 0.0
      %v207 = vsel %vm187, %v160, 0.0
      %v208 = vadd.f32 %v206, %v207
      %v209 = vrot.slane %v208, 4
      %v210 = vadd.f32 %v208, %v209
      %v211 = vrot.slane %v210, 2
      %v212 = vadd.f32 %v210, %v211
      %v213 = vrot.slane %v212, 1
      %v214 = vadd.f32 %v212, %v213
      %v215 = vsel %vm187, %v161, 0.0
      %v216 = vsel %vm187, %v162, 0.0
      %v217 = vadd.f32 %v215, %v216
      %v218 = vrot.slane %v217, 4
      %v219 = vadd.f32 %v217, %v218
      %v220 = vrot.slane %v219, 2
      %v221 = vadd.f32 %v219, %v220
      %v222 = vrot.slane %v221, 1
      %v223 = vadd.f32 %v221, %v222
      %v224 = vsel %vm187, %v163, 0.0
      %v225 = vsel %vm187, %v164, 0.0
      %v226 = vadd.f32 %v224, %v225
      %v227 = vrot.slane %v226, 4
      %v228 = vadd.f32 %v226, %v227
      %v229 = vrot.slane %v228, 2
      %v230 = vadd.f32 %v228, %v229
      %v231 = vrot.slane %v230, 1
      %v232 = vadd.f32 %v230, %v231
      %v233 = vsel %vm187, %v165, 0.0
      %v234 = vsel %vm187, %v166, 0.0
      %v235 = vadd.f32 %v233, %v234
      %v236 = vrot.slane %v235, 4
      %v237 = vadd.f32 %v235, %v236
      %v238 = vrot.slane %v237, 2
      %v239 = vadd.f32 %v237, %v238
      %v240 = vrot.slane %v239, 1
      %v241 = vadd.f32 %v239, %v240
      %v242 = vsel %vm187, %v167, 0.0
      %v243 = vsel %vm187, %v168, 0.0
      %v244 = vadd.f32 %v242, %v243
      %v245 = vrot.slane %v244, 4
      %v246 = vadd.f32 %v244, %v245
      %v247 = vrot.slane %v246, 2
      %v248 = vadd.f32 %v246, %v247
      %v249 = vrot.slane %v248, 1
      %v250 = vadd.f32 %v248, %v249
      %v251 = vsel %vm187, %v169, 0.0
      %v252 = vsel %vm187, %v170, 0.0
      %v253 = vadd.f32 %v251, %v252
      %v254 = vrot.slane %v253, 4
      %v255 = vadd.f32 %v253, %v254
      %v256 = vrot.slane %v255, 2
      %v257 = vadd.f32 %v255, %v256
      %v258 = vrot.slane %v257, 1
      %v259 = vadd.f32 %v257, %v258
      %v260 = vsel %vm187, %v171, 0.0
      %v261 = vsel %vm187, %v172, 0.0
      %v262 = vadd.f32 %v260, %v261
      %v263 = vrot.slane %v262, 4
      %v264 = vadd.f32 %v262, %v263
      %v265 = vrot.slane %v264, 2
      %v266 = vadd.f32 %v264, %v265
      %v267 = vrot.slane %v266, 1
      %v268 = vadd.f32 %v266, %v267
      %v269 = vsel %vm187, %v173, 0.0
      %v270 = vsel %vm187, %v174, 0.0
      %v271 = vadd.f32 %v269, %v270
      %v272 = vrot.slane %v271, 4
      %v273 = vadd.f32 %v271, %v272
      %v274 = vrot.slane %v273, 2
      %v275 = vadd.f32 %v273, %v274
      %v276 = vrot.slane %v275, 1
      %v277 = vadd.f32 %v275, %v276
      %v278 = vsel %vm187, %v175, 0.0
      %v279 = vsel %vm187, %v176, 0.0
      %v280 = vadd.f32 %v278, %v279
      %v281 = vrot.slane %v280, 4
      %v282 = vadd.f32 %v280, %v281
      %v283 = vrot.slane %v282, 2
      %v284 = vadd.f32 %v282, %v283
      %v285 = vrot.slane %v284, 1
      %v286 = vadd.f32 %v284, %v285
      %v287 = vsel %vm187, %v177, 0.0
      %v288 = vsel %vm187, %v178, 0.0
      %v289 = vadd.f32 %v287, %v288
      %v290 = vrot.slane %v289, 4
      %v291 = vadd.f32 %v289, %v290
      %v292 = vrot.slane %v291, 2
      %v293 = vadd.f32 %v291, %v292
      %v294 = vrot.slane %v293, 1
      %v295 = vadd.f32 %v293, %v294
      %v296 = vsel %vm187, %v179, 0.0
      %v297 = vsel %vm187, %v180, 0.0
      %v298 = vadd.f32 %v296, %v297
      %v299 = vrot.slane %v298, 4
      %v300 = vadd.f32 %v298, %v299
      %v301 = vrot.slane %v300, 2
      %v302 = vadd.f32 %v300, %v301
      %v303 = vrot.slane %v302, 1
      %v304 = vadd.f32 %v302, %v303
      %v305 = vsel %vm187, %v181, 0.0
      %v306 = vsel %vm187, %v182, 0.0
      %v307 = vadd.f32 %v305, %v306
      %v308 = vrot.slane %v307, 4
      %v309 = vadd.f32 %v307, %v308
      %v310 = vrot.slane %v309, 2
      %v311 = vadd.f32 %v309, %v310
      %v312 = vrot.slane %v311, 1
      %v313 = vadd.f32 %v311, %v312
      %v314 = vsel %vm187, %v183, 0.0
      %v315 = vsel %vm187, %v184, 0.0
      %v316 = vadd.f32 %v314, %v315
      %v317 = vrot.slane %v316, 4
      %v318 = vadd.f32 %v316, %v317
      %v319 = vrot.slane %v318, 2
      %v320 = vadd.f32 %v318, %v319
      %v321 = vrot.slane %v320, 1
      %v322 = vadd.f32 %v320, %v321
      %v323 = vsel %vm187, %v185, 0.0
      %v324 = vsel %vm187, %v186, 0.0
      %v325 = vadd.f32 %v323, %v324
      %v326 = vrot.slane %v325, 4
      %v327 = vadd.f32 %v325, %v326
      %v328 = vrot.slane %v327, 2
      %v329 = vadd.f32 %v327, %v328
      %v330 = vrot.slane %v329, 1
      %v331 = vadd.f32 %v329, %v330
      %v332 = vrcp.pop 16.0
      %v333 = vmul.f32 16.0, %v332
      %v334 = vsub.f32 1.0, %v333
      %v335 = vmul.f32 %v332, %v334
      %v336 = vadd.f32 %v332, %v335
      %vm337 = vweird.f32 %v332
      %v338 = vsel %vm337, %v332, %v336
      %v339 = vmul.f32 %v196, %v338
      %v340 = vmul.f32 %v205, %v338
      %v341 = vmul.f32 %v214, %v338
      %v342 = vmul.f32 %v223, %v338
      %v343 = vmul.f32 %v232, %v338
      %v344 = vmul.f32 %v241, %v338
      %v345 = vmul.f32 %v250, %v338
      %v346 = vmul.f32 %v259, %v338
      %v347 = vmul.f32 %v268, %v338
      %v348 = vmul.f32 %v277, %v338
      %v349 = vmul.f32 %v286, %v338
      %v350 = vmul.f32 %v295, %v338
      %v351 = vmul.f32 %v304, %v338
      %v352 = vmul.f32 %v313, %v338
      %v353 = vmul.f32 %v322, %v338
      %v354 = vmul.f32 %v331, %v338
      %vm355 = vcmask 57344
      %356 = vst.msk [vmem:[%s149] sm:$0x1] %vm355, %v339
      %357 = vst.msk [vmem:[%s149 + $0x1] sm:$0x1] %vm355, %v340
      %358 = vst.msk [vmem:[%s149 + $0x2] sm:$0x1] %vm355, %v341
      %359 = vst.msk [vmem:[%s149 + $0x3] sm:$0x1] %vm355, %v342
      %360 = vst.msk [vmem:[%s149 + $0x4] sm:$0x1] %vm355, %v343
      %361 = vst.msk [vmem:[%s149 + $0x5] sm:$0x1] %vm355, %v344
      %362 = vst.msk [vmem:[%s149 + $0x6] sm:$0x1] %vm355, %v345
      %363 = vst.msk [vmem:[%s149 + $0x7] sm:$0x1] %vm355, %v346
      %364 = vst.msk [vmem:[%s149 + $0x8] sm:$0x1] %vm355, %v347
      %365 = vst.msk [vmem:[%s149 + $0x9] sm:$0x1] %vm355, %v348
      %366 = vst.msk [vmem:[%s149 + $0xa] sm:$0x1] %vm355, %v349
      %367 = vst.msk [vmem:[%s149 + $0xb] sm:$0x1] %vm355, %v350
      %368 = vst.msk [vmem:[%s149 + $0xc] sm:$0x1] %vm355, %v351
      %369 = vst.msk [vmem:[%s149 + $0xd] sm:$0x1] %vm355, %v352
      %370 = vst.msk [vmem:[%s149 + $0xe] sm:$0x1] %vm355, %v353
      %371 = vst.msk [vmem:[%s149 + $0xf] sm:$0x1] %vm355, %v354
      %v372 = vadd.f32 %v188, %v197
      %v373 = vadd.f32 %v372, %v206
      %v374 = vadd.f32 %v373, %v215
      %v375 = vadd.f32 %v374, %v224
      %v376 = vadd.f32 %v375, %v233
      %v377 = vadd.f32 %v376, %v242
      %v378 = vadd.f32 %v377, %v251
      %v379 = vadd.f32 %v378, %v260
      %v380 = vadd.f32 %v379, %v269
      %v381 = vadd.f32 %v380, %v278
      %v382 = vadd.f32 %v381, %v287
      %v383 = vadd.f32 %v382, %v296
      %v384 = vadd.f32 %v383, %v305
      %v385 = vadd.f32 %v384, %v314
      %v386 = vadd.f32 %v385, %v323
      %v387 = vadd.f32 %v189, %v198
      %v388 = vadd.f32 %v387, %v207
      %v389 = vadd.f32 %v388, %v216
      %v390 = vadd.f32 %v389, %v225
      %v391 = vadd.f32 %v390, %v234
      %v392 = vadd.f32 %v391, %v243
      %v393 = vadd.f32 %v392, %v252
      %v394 = vadd.f32 %v393, %v261
      %v395 = vadd.f32 %v394, %v270
      %v396 = vadd.f32 %v395, %v279
      %v397 = vadd.f32 %v396, %v288
      %v398 = vadd.f32 %v397, %v297
      %v399 = vadd.f32 %v398, %v306
      %v400 = vadd.f32 %v399, %v315
      %v401 = vadd.f32 %v400, %v324
      %v402 = vmul.f32 %v386, %v338
      %v403 = vmul.f32 %v401, %v338
      %404 = vst.msk [vmem:[%s154] sm:$0xff] %vm187, %v402
      %405 = vst.msk [vmem:[%s154 + $0x8] sm:$0xff] %vm187, %v403
      %p406 = scmp.lt.s32.totalorder %s14, 1
      %s407 = scalar_select %p406, %s14, 1
      %s408 = smul.addr %s407, 16
      %s409 = scalar_lea.vmem %s1, %s408
      %p410 = scmp.lt.s32.totalorder %s14, 1
      %s411 = scalar_select %p410, %s14, 1
      %s412 = smul.addr %s411, 2
      %s413 = smul.addr %s412, 8
      %s414 = scalar_lea.vmem %s2, %s413
      // Predicated region
      $region25: #{_lambda_.12} parent=23 // pred_check
        %p415 = pneg %p58
      $region26: #{_lambda_.12} parent=23 // pred_check_branch
        %417 = sbr.rel (%p415) target = $region28
      $region27: #{_lambda_.12} parent=23 // pred_region
        _
      $region28: #{_lambda_.12} parent=23 // pred_fallthru
        _
      // Predicated region
      $region29: #{_lambda_.12} parent=23 // pred_check
        %p418 = pneg %p84
      $region30: #{_lambda_.12} parent=23 // pred_check_branch
        %420 = sbr.rel (%p418) target = $region32
      $region31: #{_lambda_.12} parent=23 // pred_region
        _
      $region32: #{_lambda_.12} parent=23 // pred_fallthru
        _
    $region24: #{_lambda_.12} parent=5 // pred_fallthru
      _
    %p421 = scmp.le.s32.totalorder 2, %s9
    // Predicated region
    $region33: #{_lambda_.12} parent=5 // pred_check
      %p422 = pneg %p421
    $region34: #{_lambda_.12} parent=5 // pred_check_branch
      %424 = sbr.rel (%p422) target = $region36
    $region35: #{_lambda_.12} parent=5 // pred_region
      %s425 = ssub.s32 %s9, 2
      // Predicated region
      $region37: #{_lambda_.12} parent=35 // pred_check
        %p426 = pneg %p64
      $region38: #{_lambda_.12} parent=35 // pred_check_branch
        %428 = sbr.rel (%p426) target = $region40
      $region39: #{_lambda_.12} parent=35 // pred_region
        %p429 = scmp.lt.s32.totalorder %s15, 1
        %s430 = scalar_select %p429, %s15, 1
        %s431 = smul.addr %s430, 16
        %s432 = scalar_lea.vmem %s1, %s431
      $region40: #{_lambda_.12} parent=35 // pred_fallthru
        _
      // Predicated region
      $region41: #{_lambda_.12} parent=35 // pred_check
        %p433 = pneg %p90
      $region42: #{_lambda_.12} parent=35 // pred_check_branch
        %435 = sbr.rel (%p433) target = $region44
      $region43: #{_lambda_.12} parent=35 // pred_region
        %p436 = scmp.lt.s32.totalorder %s15, 1
        %s437 = scalar_select %p436, %s15, 1
        %s438 = smul.addr %s437, 2
        %s439 = smul.addr %s438, 8
        %s440 = scalar_lea.vmem %s2, %s439
      $region44: #{_lambda_.12} parent=35 // pred_fallthru
        _
    $region36: #{_lambda_.12} parent=5 // pred_fallthru
      _
  $region6: #{_lambda_.12} parent=0 // loop_footer
    %s13 = sadd.s32 1, %s9
  $region7: #{_lambda_.12} parent=0 // loop_footer_branch
    %8 = sbr.rel target = $region3
  $region8: #{_lambda_.12} parent=0 // loop_exit
    _

// kernel: _lambda_.13
$region0: #{_lambda_.13}
  #allocation0 [shape = 'u32[]', space=smem, size = 0x4, offset = 0x4, fixed_abs, tag = 'smem constant byte address 0x4 - core index']
  #allocation1 [shape = 'u32[72,128]{1,0:T(1,128)}', space=vmem, size = 0x9000, scoped, tag = 'internal scratch']
  %s0 = inlined_call_operand.vmem [shape: bf16[64,8], index: 0, kind: input, shape index: {}]
  %s1 = inlined_call_operand.vmem [shape: bf16[8,8], index: 1, kind: input, shape index: {}]
  %s2 = inlined_call_operand.vmem [shape: f32[1,8], index: 2, kind: input, shape index: {}]
  %s3 = inlined_call_operand.vmem [shape: f32[1,8], index: 3, kind: input, shape index: {}]
  %s4 = inlined_call_operand.vmem [shape: f32[64,8], index: 4, kind: output, shape index: {}]
  %s5 = sld [smem:[#allocation0]]
  $region26: #{_lambda_.13} parent=0
    _
  %s7 = ssub.s32 1, %s5
  %s8 = scalar_select 0, %s7, %s5
  // Predicated region
  $region2: #{_lambda_.13} parent=0 // pred_check
    _
  $region3: #{_lambda_.13} parent=0 // pred_check_branch
    %10 = sbr.rel (0) target = $region5
  $region4: #{_lambda_.13} parent=0 // pred_region
    _
  $region5: #{_lambda_.13} parent=0 // pred_fallthru
    _
  // Predicated region
  $region6: #{_lambda_.13} parent=0 // pred_check
    _
  $region7: #{_lambda_.13} parent=0 // pred_check_branch
    %12 = sbr.rel (0) target = $region9
  $region8: #{_lambda_.13} parent=0 // pred_region
    _
  $region9: #{_lambda_.13} parent=0 // pred_fallthru
    _
  // Predicated region
  $region10: #{_lambda_.13} parent=0 // pred_check
    _
  $region11: #{_lambda_.13} parent=0 // pred_check_branch
    %14 = sbr.rel (0) target = $region13
  $region12: #{_lambda_.13} parent=0 // pred_region
    _
  $region13: #{_lambda_.13} parent=0 // pred_fallthru
    _
  // Predicated region
  $region14: #{_lambda_.13} parent=0 // pred_check
    _
  $region15: #{_lambda_.13} parent=0 // pred_check_branch
    %16 = sbr.rel (0) target = $region17
  $region16: #{_lambda_.13} parent=0 // pred_region
    _
  $region17: #{_lambda_.13} parent=0 // pred_fallthru
    _
  %v18 = vld [vmem:[%s0] sm:$0xf]
  %v19 = vld [vmem:[%s0 + $0x4] sm:$0xf]
  %v20 = vld [vmem:[%s0 + $0x8] sm:$0xf]
  %v21 = vld [vmem:[%s0 + $0xc] sm:$0xf]
  %v22 = vld [vmem:[%s0 + $0x10] sm:$0xf]
  %v23 = vld [vmem:[%s0 + $0x14] sm:$0xf]
  %v24 = vld [vmem:[%s0 + $0x18] sm:$0xf]
  %v25 = vld [vmem:[%s0 + $0x1c] sm:$0xf]
  %v26 = vld [vmem:[%s1] sm:$0xf]
  %v35 = vunpack.c.l.b16 %v18
  %v36 = vunpack.c.l.b16 %v19
  %v37 = vunpack.c.l.b16 %v20
  %v38 = vunpack.c.l.b16 %v21
  %v39 = vunpack.c.l.b16 %v22
  %v40 = vunpack.c.l.b16 %v23
  %v41 = vunpack.c.l.b16 %v24
  %v42 = vunpack.c.l.b16 %v25
  %v43 = vpack.c.b16 %v36, %v35
  %v44 = vpack.c.b16 %v38, %v37
  %v45 = vpack.c.b16 %v40, %v39
  %v46 = vpack.c.b16 %v42, %v41
  %vm47 = vcmask 64512
  %v49 = vsel %vm47, %v43, 0
  %v52 = vsel %vm47, %v44, 0
  %v55 = vsel %vm47, %v45, 0
  %v58 = vsel %vm47, %v46, 0
  %vm60 = vcmask 1043456
  %v62 = vsel %vm60, %v26, 0
  %64 = vmatpush.bf16.msra.mxu0 0
  %65 = vmatpush.bf16.msra.mxu0 0
  %66 = vmatpush.bf16.msra.mxu0 0
  %67 = vmatpush.bf16.msra.mxu0 0
  %68 = vmatpush.bf16.msra.mxu0 0
  %69 = vmatpush.bf16.msra.mxu0 0
  %70 = vmatpush.bf16.msra.mxu0 0
  %71 = vmatpush.bf16.msra.mxu0 %v62
  %72 = vmatmul.bf16.gmra.mxu0 %v49
  %v73 = vpop.f32.mrf.mxu0
  %v74 = vadd.f32 0.0, %v73
  %v75 = vpop.f32.mrf.mxu0
  %v76 = vadd.f32 0.0, %v75
  %77 = vmatmul.bf16.gmra.mxu0 %v52
  %v78 = vpop.f32.mrf.mxu0
  %v79 = vadd.f32 0.0, %v78
  %v80 = vpop.f32.mrf.mxu0
  %v81 = vadd.f32 0.0, %v80
  %82 = vmatmul.bf16.gmra.mxu0 %v55
  %v83 = vpop.f32.mrf.mxu0
  %v84 = vadd.f32 0.0, %v83
  %v85 = vpop.f32.mrf.mxu0
  %v86 = vadd.f32 0.0, %v85
  %87 = vmatmul.bf16.gmra.mxu0 %v58
  %v88 = vpop.f32.mrf.mxu0
  %v89 = vadd.f32 0.0, %v88
  %v90 = vpop.f32.mrf.mxu0
  %v91 = vadd.f32 0.0, %v90
  %92 = vdwg.mxu0
  %v93 = vld [vmem:[%s2] sm:$0x1]
  %v95 = vperm.slane %v93, 0
  %v97 = vmul.f32 %v74, %v95
  %v98 = vmul.f32 %v76, %v95
  %v99 = vmul.f32 %v79, %v95
  %v100 = vmul.f32 %v81, %v95
  %v101 = vmul.f32 %v84, %v95
  %v102 = vmul.f32 %v86, %v95
  %v103 = vmul.f32 %v89, %v95
  %v104 = vmul.f32 %v91, %v95
  %v105 = vld [vmem:[%s3] sm:$0x1]
  %v107 = vperm.slane %v105, 0
  %v109 = vadd.f32 %v97, %v107
  %v110 = vadd.f32 %v98, %v107
  %v111 = vadd.f32 %v99, %v107
  %v112 = vadd.f32 %v100, %v107
  %v113 = vadd.f32 %v101, %v107
  %v114 = vadd.f32 %v102, %v107
  %v115 = vadd.f32 %v103, %v107
  %v116 = vadd.f32 %v104, %v107
  %v117 = vadd.f32 %v109, 3.0
  %v118 = vadd.f32 %v110, 3.0
  %v119 = vadd.f32 %v111, 3.0
  %v120 = vadd.f32 %v112, 3.0
  %v121 = vadd.f32 %v113, 3.0
  %v122 = vadd.f32 %v114, 3.0
  %v123 = vadd.f32 %v115, 3.0
  %v124 = vadd.f32 %v116, 3.0
  %v125 = vmax.f32 %v117, 0.0
  %v126 = vmax.f32 %v118, 0.0
  %v127 = vmax.f32 %v119, 0.0
  %v128 = vmax.f32 %v120, 0.0
  %v129 = vmax.f32 %v121, 0.0
  %v130 = vmax.f32 %v122, 0.0
  %v131 = vmax.f32 %v123, 0.0
  %v132 = vmax.f32 %v124, 0.0
  %v133 = vmin.f32 %v125, 6.0
  %v134 = vmin.f32 %v126, 6.0
  %v135 = vmin.f32 %v127, 6.0
  %v136 = vmin.f32 %v128, 6.0
  %v137 = vmin.f32 %v129, 6.0
  %v138 = vmin.f32 %v130, 6.0
  %v139 = vmin.f32 %v131, 6.0
  %v140 = vmin.f32 %v132, 6.0
  %v141 = vmul.f32 %v109, %v133
  %v142 = vmul.f32 %v110, %v134
  %v143 = vmul.f32 %v111, %v135
  %v144 = vmul.f32 %v112, %v136
  %v145 = vmul.f32 %v113, %v137
  %v146 = vmul.f32 %v114, %v138
  %v147 = vmul.f32 %v115, %v139
  %v148 = vmul.f32 %v116, %v140
  %v149 = vmul.f32 %v141, 0.16666667
  %v150 = vmul.f32 %v142, 0.16666667
  %v151 = vmul.f32 %v143, 0.16666667
  %v152 = vmul.f32 %v144, 0.16666667
  %v153 = vmul.f32 %v145, 0.16666667
  %v154 = vmul.f32 %v146, 0.16666667
  %v155 = vmul.f32 %v147, 0.16666667
  %v156 = vmul.f32 %v148, 0.16666667
  %157 = vst.msk [vmem:[%s4] sm:$0xff] %vm47, %v149
  %158 = vst.msk [vmem:[%s4 + $0x8] sm:$0xff] %vm47, %v150
  %159 = vst.msk [vmem:[%s4 + $0x10] sm:$0xff] %vm47, %v151
  %160 = vst.msk [vmem:[%s4 + $0x18] sm:$0xff] %vm47, %v152
  %161 = vst.msk [vmem:[%s4 + $0x20] sm:$0xff] %vm47, %v153
  %162 = vst.msk [vmem:[%s4 + $0x28] sm:$0xff] %vm47, %v154
  %163 = vst.msk [vmem:[%s4 + $0x30] sm:$0xff] %vm47, %v155
  %164 = vst.msk [vmem:[%s4 + $0x38] sm:$0xff] %vm47, %v156
  // Predicated region
  $region18: #{_lambda_.13} parent=0 // pred_check
    _
  $region19: #{_lambda_.13} parent=0 // pred_check_branch
    %166 = sbr.rel (0) target = $region21
  $region20: #{_lambda_.13} parent=0 // pred_region
    _
  $region21: #{_lambda_.13} parent=0 // pred_fallthru
    _
  // Predicated region
  $region22: #{_lambda_.13} parent=0 // pred_check
    _
  $region23: #{_lambda_.13} parent=0 // pred_check_branch
    %168 = sbr.rel (0) target = $region25
  $region24: #{_lambda_.13} parent=0 // pred_region
    _
  $region25: #{_lambda_.13} parent=0 // pred_fallthru
    _

// kernel: _lambda_.14
$region0: #{_lambda_.14}
  #allocation0 [shape = 'u32[]', space=smem, size = 0x4, offset = 0x4, fixed_abs, tag = 'smem constant byte address 0x4 - core index']
  #allocation1 [shape = 'u32[72,128]{1,0:T(1,128)}', space=vmem, size = 0x9000, scoped, tag = 'internal scratch']
  %s0 = inlined_call_operand.vmem [shape: bf16[64,8], index: 0, kind: input, shape index: {}]
  %s1 = inlined_call_operand.vmem [shape: bf16[8,16], index: 1, kind: input, shape index: {}]
  %s2 = inlined_call_operand.vmem [shape: f32[1,16], index: 2, kind: input, shape index: {}]
  %s3 = inlined_call_operand.vmem [shape: f32[1,16], index: 3, kind: input, shape index: {}]
  %s4 = inlined_call_operand.vmem [shape: f32[64,16], index: 4, kind: output, shape index: {}]
  %s5 = sld [smem:[#allocation0]]
  $region26: #{_lambda_.14} parent=0
    _
  %s7 = ssub.s32 1, %s5
  %s8 = scalar_select 0, %s7, %s5
  // Predicated region
  $region2: #{_lambda_.14} parent=0 // pred_check
    _
  $region3: #{_lambda_.14} parent=0 // pred_check_branch
    %10 = sbr.rel (0) target = $region5
  $region4: #{_lambda_.14} parent=0 // pred_region
    _
  $region5: #{_lambda_.14} parent=0 // pred_fallthru
    _
  // Predicated region
  $region6: #{_lambda_.14} parent=0 // pred_check
    _
  $region7: #{_lambda_.14} parent=0 // pred_check_branch
    %12 = sbr.rel (0) target = $region9
  $region8: #{_lambda_.14} parent=0 // pred_region
    _
  $region9: #{_lambda_.14} parent=0 // pred_fallthru
    _
  // Predicated region
  $region10: #{_lambda_.14} parent=0 // pred_check
    _
  $region11: #{_lambda_.14} parent=0 // pred_check_branch
    %14 = sbr.rel (0) target = $region13
  $region12: #{_lambda_.14} parent=0 // pred_region
    _
  $region13: #{_lambda_.14} parent=0 // pred_fallthru
    _
  // Predicated region
  $region14: #{_lambda_.14} parent=0 // pred_check
    _
  $region15: #{_lambda_.14} parent=0 // pred_check_branch
    %16 = sbr.rel (0) target = $region17
  $region16: #{_lambda_.14} parent=0 // pred_region
    _
  $region17: #{_lambda_.14} parent=0 // pred_fallthru
    _
  %v18 = vld [vmem:[%s0] sm:$0xf]
  %v19 = vld [vmem:[%s0 + $0x4] sm:$0xf]
  %v20 = vld [vmem:[%s0 + $0x8] sm:$0xf]
  %v21 = vld [vmem:[%s0 + $0xc] sm:$0xf]
  %v22 = vld [vmem:[%s0 + $0x10] sm:$0xf]
  %v23 = vld [vmem:[%s0 + $0x14] sm:$0xf]
  %v24 = vld [vmem:[%s0 + $0x18] sm:$0xf]
  %v25 = vld [vmem:[%s0 + $0x1c] sm:$0xf]
  %v26 = vld [vmem:[%s1] sm:$0xf]
  %v35 = vunpack.c.l.b16 %v18
  %v36 = vunpack.c.l.b16 %v19
  %v37 = vunpack.c.l.b16 %v20
  %v38 = vunpack.c.l.b16 %v21
  %v39 = vunpack.c.l.b16 %v22
  %v40 = vunpack.c.l.b16 %v23
  %v41 = vunpack.c.l.b16 %v24
  %v42 = vunpack.c.l.b16 %v25
  %v43 = vpack.c.b16 %v36, %v35
  %v44 = vpack.c.b16 %v38, %v37
  %v45 = vpack.c.b16 %v40, %v39
  %v46 = vpack.c.b16 %v42, %v41
  %vm47 = vcmask 64512
  %v49 = vsel %vm47, %v43, 0
  %v52 = vsel %vm47, %v44, 0
  %v55 = vsel %vm47, %v45, 0
  %v58 = vsel %vm47, %v46, 0
  %vm60 = vcmask 1043456
  %v62 = vsel %vm60, %v26, 0
  %64 = vmatpush.bf16.msra.mxu0 0
  %65 = vmatpush.bf16.msra.mxu0 0
  %66 = vmatpush.bf16.msra.mxu0 0
  %67 = vmatpush.bf16.msra.mxu0 0
  %68 = vmatpush.bf16.msra.mxu0 0
  %69 = vmatpush.bf16.msra.mxu0 0
  %70 = vmatpush.bf16.msra.mxu0 0
  %71 = vmatpush.bf16.msra.mxu0 %v62
  %72 = vmatmul.bf16.gmra.mxu0 %v49
  %v73 = vpop.f32.mrf.mxu0
  %v74 = vadd.f32 0.0, %v73
  %v75 = vpop.f32.mrf.mxu0
  %v76 = vadd.f32 0.0, %v75
  %77 = vmatmul.bf16.gmra.mxu0 %v52
  %v78 = vpop.f32.mrf.mxu0
  %v79 = vadd.f32 0.0, %v78
  %v80 = vpop.f32.mrf.mxu0
  %v81 = vadd.f32 0.0, %v80
  %82 = vmatmul.bf16.gmra.mxu0 %v55
  %v83 = vpop.f32.mrf.mxu0
  %v84 = vadd.f32 0.0, %v83
  %v85 = vpop.f32.mrf.mxu0
  %v86 = vadd.f32 0.0, %v85
  %87 = vmatmul.bf16.gmra.mxu0 %v58
  %v88 = vpop.f32.mrf.mxu0
  %v89 = vadd.f32 0.0, %v88
  %v90 = vpop.f32.mrf.mxu0
  %v91 = vadd.f32 0.0, %v90
  %92 = vdwg.mxu0
  %v93 = vld [vmem:[%s2] sm:$0x1]
  %v95 = vperm.slane %v93, 0
  %v97 = vmul.f32 %v74, %v95
  %v98 = vmul.f32 %v76, %v95
  %v99 = vmul.f32 %v79, %v95
  %v100 = vmul.f32 %v81, %v95
  %v101 = vmul.f32 %v84, %v95
  %v102 = vmul.f32 %v86, %v95
  %v103 = vmul.f32 %v89, %v95
  %v104 = vmul.f32 %v91, %v95
  %v105 = vld [vmem:[%s3] sm:$0x1]
  %v107 = vperm.slane %v105, 0
  %v109 = vadd.f32 %v97, %v107
  %v110 = vadd.f32 %v98, %v107
  %v111 = vadd.f32 %v99, %v107
  %v112 = vadd.f32 %v100, %v107
  %v113 = vadd.f32 %v101, %v107
  %v114 = vadd.f32 %v102, %v107
  %v115 = vadd.f32 %v103, %v107
  %v116 = vadd.f32 %v104, %v107
  %v117 = vsub.f32 0.0, %v109
  %v118 = vsub.f32 0.0, %v110
  %v119 = vsub.f32 0.0, %v111
  %v120 = vsub.f32 0.0, %v112
  %v121 = vsub.f32 0.0, %v113
  %v122 = vsub.f32 0.0, %v114
  %v123 = vsub.f32 0.0, %v115
  %v124 = vsub.f32 0.0, %v116
  %v125 = vmul.f32 %v117, 1.442695
  %v126 = vpow.pop %v125
  %v127 = vmul.f32 %v118, 1.442695
  %v128 = vpow.pop %v127
  %v129 = vmul.f32 %v119, 1.442695
  %v130 = vpow.pop %v129
  %v131 = vmul.f32 %v120, 1.442695
  %v132 = vpow.pop %v131
  %v133 = vmul.f32 %v121, 1.442695
  %v134 = vpow.pop %v133
  %v135 = vmul.f32 %v122, 1.442695
  %v136 = vpow.pop %v135
  %v137 = vmul.f32 %v123, 1.442695
  %v138 = vpow.pop %v137
  %v139 = vmul.f32 %v124, 1.442695
  %v140 = vpow.pop %v139
  %v141 = vadd.f32 %v126, 1.0
  %v142 = vadd.f32 %v128, 1.0
  %v143 = vadd.f32 %v130, 1.0
  %v144 = vadd.f32 %v132, 1.0
  %v145 = vadd.f32 %v134, 1.0
  %v146 = vadd.f32 %v136, 1.0
  %v147 = vadd.f32 %v138, 1.0
  %v148 = vadd.f32 %v140, 1.0
  %v149 = vrcp.pop %v141
  %v150 = vrcp.pop %v142
  %v151 = vrcp.pop %v143
  %v152 = vrcp.pop %v144
  %v153 = vrcp.pop %v145
  %v154 = vrcp.pop %v146
  %v155 = vrcp.pop %v147
  %v156 = vrcp.pop %v148
  %vm157 = vcmask 130048
  %158 = vst.msk [vmem:[%s4] sm:$0xff] %vm157, %v149
  %159 = vst.msk [vmem:[%s4 + $0x8] sm:$0xff] %vm157, %v150
  %160 = vst.msk [vmem:[%s4 + $0x10] sm:$0xff] %vm157, %v151
  %161 = vst.msk [vmem:[%s4 + $0x18] sm:$0xff] %vm157, %v152
  %162 = vst.msk [vmem:[%s4 + $0x20] sm:$0xff] %vm157, %v153
  %163 = vst.msk [vmem:[%s4 + $0x28] sm:$0xff] %vm157, %v154
  %164 = vst.msk [vmem:[%s4 + $0x30] sm:$0xff] %vm157, %v155
  %165 = vst.msk [vmem:[%s4 + $0x38] sm:$0xff] %vm157, %v156
  // Predicated region
  $region18: #{_lambda_.14} parent=0 // pred_check
    _
  $region19: #{_lambda_.14} parent=0 // pred_check_branch
    %167 = sbr.rel (0) target = $region21
  $region20: #{_lambda_.14} parent=0 // pred_region
    _
  $region21: #{_lambda_.14} parent=0 // pred_fallthru
    _
  // Predicated region
  $region22: #{_lambda_.14} parent=0 // pred_check
    _
  $region23: #{_lambda_.14} parent=0 // pred_check_branch
    %169 = sbr.rel (0) target = $region25
  $region24: #{_lambda_.14} parent=0 // pred_region
    _
  $region25: #{_lambda_.14} parent=0 // pred_fallthru
    _

// kernel: _lambda_.15
$region0: #{_lambda_.15}
  #allocation0 [shape = 'u32[]', space=smem, size = 0x4, offset = 0x4, fixed_abs, tag = 'smem constant byte address 0x4 - core index']
  #allocation1 [shape = 'u32[72,128]{1,0:T(1,128)}', space=vmem, size = 0x9000, scoped, tag = 'internal scratch']
  %s0 = inlined_call_operand.vmem [shape: f32[2,16,16,8], index: 0, kind: input, shape index: {}]
  %s1 = inlined_call_operand.vmem [shape: f32[2,16,1,8], index: 1, kind: input, shape index: {}]
  %s2 = inlined_call_operand.vmem [shape: f32[2,1,16,8], index: 2, kind: input, shape index: {}]
  %s3 = inlined_call_operand.vmem [shape: bf16[8,16], index: 3, kind: input, shape index: {}]
  %s4 = inlined_call_operand.vmem [shape: f32[1,16], index: 4, kind: input, shape index: {}]
  %s5 = inlined_call_operand.vmem [shape: f32[1,16], index: 5, kind: input, shape index: {}]
  %s6 = inlined_call_operand.vmem [shape: f32[2,16,16,16], index: 6, kind: output, shape index: {}]
  %s7 = sld [smem:[#allocation0]]
  $region57: #{_lambda_.15} parent=0
    _
  %s9 = ssub.s32 1, %s7
  %s10 = scalar_select 0, %s9, %s7
  loop: start=0, step=1, limit=4
  $region2: #{_lambda_.15} parent=0 // loop_pre_header
    _
  $region3: #{_lambda_.15} parent=0 // loop_header
    %s12 = sphi 0, %s16
    %p13 = scmp.ge.s32.totalorder %s12, 4
    %s22 = sphi 0, %s24
    %s25 = sphi 0, %s22
    %s26 = sphi 0, %s25
    %s42 = sphi 0, %s26
    %s48 = sphi 0, %s50
    %s51 = sphi 0, %s48
    %s52 = sphi 0, %s51
    %s68 = sphi 0, %s52
    %s74 = sphi 0, %s76
    %s77 = sphi 0, %s74
    %s78 = sphi 0, %s77
    %s94 = sphi 0, %s78
    %s98 = sphi 0, %s98
    %s100 = sphi 0, %s98
    %s101 = sphi 0, %s100
    %s115 = sphi 0, %s101
    %s119 = sphi 0, %s119
    %s121 = sphi 0, %s119
    %s122 = sphi 0, %s121
    %s136 = sphi 0, %s122
    %s140 = sphi 0, %s140
    %s142 = sphi 0, %s140
    %s143 = sphi 0, %s142
    %s157 = sphi 0, %s143
    %s163 = sphi 0, %s165
    %s166 = sphi 0, %s163
    %s167 = sphi 0, %s166
    %s183 = sphi 0, %s167
  $region4: #{_lambda_.15} parent=0 // loop_header_branch
    %15 = sbr.rel (%p13) target = $region8
  $region5: #{_lambda_.15} parent=0 // loop_body
    %s17 = ssub.s32 %s12, 1
    %s18 = ssub.s32 %s12, 2
    %s19 = sadd.s32 %s12, 1
    %s20 = ssub.s32 %s12, %s19
    %p21 = scmp.eq.s32.totalorder %s20, 0
    %s23 = sadd.s32 %s22, 1
    %s24 = scalar_select %p21, %s22, %s23
    %p27 = pneg %p21
    %p28 = scmp.eq.s32.totalorder %s12, 1
    %p29 = por %p27, %p28
    %p30 = scmp.ne.s32.totalorder %s22, %s25
    %p31 = scmp.eq.s32.totalorder %s12, 0
    %p32 = por %p30, %p31
    %p33 = scmp.ne.s32.totalorder %s22, %s25
    %p34 = scmp.eq.s32.totalorder %s17, 1
    %p35 = por %p33, %p34
    %p36 = scmp.ne.s32.totalorder %s25, %s26
    %p37 = scmp.eq.s32.totalorder %s17, 0
    %p38 = por %p36, %p37
    %p39 = scmp.ne.s32.totalorder %s25, %s26
    %p40 = scmp.eq.s32.totalorder %s18, 1
    %p41 = por %p39, %p40
    %p43 = scmp.ne.s32.totalorder %s26, %s42
    %p44 = scmp.eq.s32.totalorder %s18, 0
    %p45 = por %p43, %p44
    %s46 = ssub.s32 %s12, %s19
    %p47 = scmp.eq.s32.totalorder %s46, 0
    %s49 = sadd.s32 %s48, 1
    %s50 = scalar_select %p47, %s48, %s49
    %p53 = pneg %p47
    %p54 = scmp.eq.s32.totalorder %s12, 1
    %p55 = por %p53, %p54
    %p56 = scmp.ne.s32.totalorder %s48, %s51
    %p57 = scmp.eq.s32.totalorder %s12, 0
    %p58 = por %p56, %p57
    %p59 = scmp.ne.s32.totalorder %s48, %s51
    %p60 = scmp.eq.s32.totalorder %s17, 1
    %p61 = por %p59, %p60
    %p62 = scmp.ne.s32.totalorder %s51, %s52
    %p63 = scmp.eq.s32.totalorder %s17, 0
    %p64 = por %p62, %p63
    %p65 = scmp.ne.s32.totalorder %s51, %s52
    %p66 = scmp.eq.s32.totalorder %s18, 1
    %p67 = por %p65, %p66
    %p69 = scmp.ne.s32.totalorder %s52, %s68
    %p70 = scmp.eq.s32.totalorder %s18, 0
    %p71 = por %p69, %p70
    %s72 = ssub.s32 %s12, %s19
    %p73 = scmp.eq.s32.totalorder %s72, 0
    %s75 = sadd.s32 %s74, 1
    %s76 = scalar_select %p73, %s74, %s75
    %p79 = pneg %p73
    %p80 = scmp.eq.s32.totalorder %s12, 1
    %p81 = por %p79, %p80
    %p82 = scmp.ne.s32.totalorder %s74, %s77
    %p83 = scmp.eq.s32.totalorder %s12, 0
    %p84 = por %p82, %p83
    %p85 = scmp.ne.s32.totalorder %s74, %s77
    %p86 = scmp.eq.s32.totalorder %s17, 1
    %p87 = por %p85, %p86
    %p88 = scmp.ne.s32.totalorder %s77, %s78
    %p89 = scmp.eq.s32.totalorder %s17, 0
    %p90 = por %p88, %p89
    %p91 = scmp.ne.s32.totalorder %s77, %s78
    %p92 = scmp.eq.s32.totalorder %s18, 1
    %p93 = por %p91, %p92
    %p95 = scmp.ne.s32.totalorder %s78, %s94
    %p96 = scmp.eq.s32.totalorder %s18, 0
    %p97 = por %p95, %p96
    %s99 = sadd.s32 %s98, 1
    %p102 = scmp.eq.s32.totalorder %s12, 1
    %p103 = scmp.ne.s32.totalorder %s98, %s100
    %p104 = scmp.eq.s32.totalorder %s12, 0
    %p105 = por %p103, %p104
    %p106 = scmp.ne.s32.totalorder %s98, %s100
    %p107 = scmp.eq.s32.totalorder %s17, 1
    %p108 = por %p106, %p107
    %p109 = scmp.ne.s32.totalorder %s100, %s101
    %p110 = scmp.eq.s32.totalorder %s17, 0
    %p111 = por %p109, %p110
    %p112 = scmp.ne.s32.totalorder %s100, %s101
    %p113 = scmp.eq.s32.totalorder %s18, 1
    %p114 = por %p112, %p113
    %p116 = scmp.ne.s32.totalorder %s101, %s115
    %p117 = scmp.eq.s32.totalorder %s18, 0
    %p118 = por %p116, %p117
    %s120 = sadd.s32 %s119, 1
    %p123 = scmp.eq.s32.totalorder %s12, 1
    %p124 = scmp.ne.s32.totalorder %s119, %s121
    %p125 = scmp.eq.s32.totalorder %s12, 0
    %p126 = por %p124, %p125
    %p127 = scmp.ne.s32.totalorder %s119, %s121
    %p128 = scmp.eq.s32.totalorder %s17, 1
    %p129 = por %p127, %p128
    %p130 = scmp.ne.s32.totalorder %s121, %s122
    %p131 = scmp.eq.s32.totalorder %s17, 0
    %p132 = por %p130, %p131
    %p133 = scmp.ne.s32.totalorder %s121, %s122
    %p134 = scmp.eq.s32.totalorder %s18, 1
    %p135 = por %p133, %p134
    %p137 = scmp.ne.s32.totalorder %s122, %s136
    %p138 = scmp.eq.s32.totalorder %s18, 0
    %p139 = por %p137, %p138
    %s141 = sadd.s32 %s140, 1
    %p144 = scmp.eq.s32.totalorder %s12, 1
    %p145 = scmp.ne.s32.totalorder %s140, %s142
    %p146 = scmp.eq.s32.totalorder %s12, 0
    %p147 = por %p145, %p146
    %p148 = scmp.ne.s32.totalorder %s140, %s142
    %p149 = scmp.eq.s32.totalorder %s17, 1
    %p150 = por %p148, %p149
    %p151 = scmp.ne.s32.totalorder %s142, %s143
    %p152 = scmp.eq.s32.totalorder %s17, 0
    %p153 = por %p151, %p152
    %p154 = scmp.ne.s32.totalorder %s142, %s143
    %p155 = scmp.eq.s32.totalorder %s18, 1
    %p156 = por %p154, %p155
    %p158 = scmp.ne.s32.totalorder %s143, %s157
    %p159 = scmp.eq.s32.totalorder %s18, 0
    %p160 = por %p158, %p159
    %s161 = ssub.s32 %s12, %s19
    %p162 = scmp.eq.s32.totalorder %s161, 0
    %s164 = sadd.s32 %s163, 1
    %s165 = scalar_select %p162, %s163, %s164
    %p168 = pneg %p162
    %p169 = scmp.eq.s32.totalorder %s12, 1
    %p170 = por %p168, %p169
    %p171 = scmp.ne.s32.totalorder %s163, %s166
    %p172 = scmp.eq.s32.totalorder %s12, 0
    %p173 = por %p171, %p172
    %p174 = scmp.ne.s32.totalorder %s163, %s166
    %p175 = scmp.eq.s32.totalorder %s17, 1
    %p176 = por %p174, %p175
    %p177 = scmp.ne.s32.totalorder %s166, %s167
    %p178 = scmp.eq.s32.totalorder %s17, 0
    %p179 = por %p177, %p178
    %p180 = scmp.ne.s32.totalorder %s166, %s167
    %p181 = scmp.eq.s32.totalorder %s18, 1
    %p182 = por %p180, %p181
    %p184 = scmp.ne.s32.totalorder %s167, %s183
    %p185 = scmp.eq.s32.totalorder %s18, 0
    %p186 = por %p184, %p185
    %p187 = scmp.le.s32.totalorder 1, %s12
    %p188 = scmp.lt.s32.totalorder %s12, 3
    %p189 = pnand %p187, %p188
    %p190 = pneg %p189
    // Predicated region
    $region9: #{_lambda_.15} parent=5 // pred_check
      _
    $region10: #{_lambda_.15} parent=5 // pred_check_branch
      %192 = sbr.rel (%p189) target = $region12
    $region11: #{_lambda_.15} parent=5 // pred_region
      %s193 = ssub.s32 %s12, 1
      // Predicated region
      $region13: #{_lambda_.15} parent=11 // pred_check
        %p194 = pneg %p111
      $region14: #{_lambda_.15} parent=11 // pred_check_branch
        %196 = sbr.rel (%p194) target = $region16
      $region15: #{_lambda_.15} parent=11 // pred_region
        _
      $region16: #{_lambda_.15} parent=11 // pred_fallthru
        _
      // Predicated region
      $region17: #{_lambda_.15} parent=11 // pred_check
        %p197 = pneg %p132
      $region18: #{_lambda_.15} parent=11 // pred_check_branch
        %199 = sbr.rel (%p197) target = $region20
      $region19: #{_lambda_.15} parent=11 // pred_region
        _
      $region20: #{_lambda_.15} parent=11 // pred_fallthru
        _
      // Predicated region
      $region21: #{_lambda_.15} parent=11 // pred_check
        %p200 = pneg %p153
      $region22: #{_lambda_.15} parent=11 // pred_check_branch
        %202 = sbr.rel (%p200) target = $region24
      $region23: #{_lambda_.15} parent=11 // pred_region
        _
      $region24: #{_lambda_.15} parent=11 // pred_fallthru
        _
    $region12: #{_lambda_.15} parent=5 // pred_fallthru
      _
    %p203 = scmp.lt.s32.totalorder %s12, 2
    // Predicated region
    $region25: #{_lambda_.15} parent=5 // pred_check
      %p204 = pneg %p203
    $region26: #{_lambda_.15} parent=5 // pred_check_branch
      %206 = sbr.rel (%p204) target = $region28
    $region27: #{_lambda_.15} parent=5 // pred_region
      // Predicated region
      $region29: #{_lambda_.15} parent=27 // pred_check
        %p207 = pneg %p32
      $region30: #{_lambda_.15} parent=27 // pred_check_branch
        %209 = sbr.rel (%p207) target = $region32
      $region31: #{_lambda_.15} parent=27 // pred_region
        %p210 = scmp.lt.s32.totalorder %s12, 1
        %s211 = scalar_select %p210, %s12, 1
        %s212 = smul.addr %s211, 32
        %s213 = smul.addr %s212, 8
        %s214 = scalar_lea.vmem %s0, %s213
      $region32: #{_lambda_.15} parent=27 // pred_fallthru
        _
      // Predicated region
      $region33: #{_lambda_.15} parent=27 // pred_check
        %p215 = pneg %p58
      $region34: #{_lambda_.15} parent=27 // pred_check_branch
        %217 = sbr.rel (%p215) target = $region36
      $region35: #{_lambda_.15} parent=27 // pred_region
        %p218 = scmp.lt.s32.totalorder %s12, 1
        %s219 = scalar_select %p218, %s12, 1
        %s220 = smul.addr %s219, 16
        %s221 = scalar_lea.vmem %s1, %s220
      $region36: #{_lambda_.15} parent=27 // pred_fallthru
        _
      // Predicated region
      $region37: #{_lambda_.15} parent=27 // pred_check
        %p222 = pneg %p84
      $region38: #{_lambda_.15} parent=27 // pred_check_branch
        %224 = sbr.rel (%p222) target = $region40
      $region39: #{_lambda_.15} parent=27 // pred_region
        %p225 = scmp.lt.s32.totalorder %s12, 1
        %s226 = scalar_select %p225, %s12, 1
        %s227 = smul.addr %s226, 2
        %s228 = smul.addr %s227, 8
        %s229 = scalar_lea.vmem %s2, %s228
      $region40: #{_lambda_.15} parent=27 // pred_fallthru
        _
    $region28: #{_lambda_.15} parent=5 // pred_fallthru
      _
    %p230 = scmp.le.s32.totalorder 1, %s12
    %p231 = scmp.lt.s32.totalorder %s12, 3
    %p232 = pnand %p230, %p231
    %p233 = pneg %p232
    // Predicated region
    $region41: #{_lambda_.15} parent=5 // pred_check
      _
    $region42: #{_lambda_.15} parent=5 // pred_check_branch
      %235 = sbr.rel (%p232) target = $region44
    $region43: #{_lambda_.15} parent=5 // pred_region
      %s236 = ssub.s32 %s12, 1
      %p237 = scmp.lt.s32.totalorder %s17, 1
      %s238 = scalar_select %p237, %s17, 1
      %s239 = smul.addr %s238, 32
      %s240 = smul.addr %s239, 8
      %s241 = scalar_lea.vmem %s0, %s240
      %p242 = pneg %p38
      %p243 = pneg %p35
      %p244 = scmp.lt.s32.totalorder %s17, 1
      %s245 = scalar_select %p244, %s17, 1
      %s246 = smul.addr %s245, 16
      %s247 = scalar_lea.vmem %s1, %s246
      %p248 = pneg %p64
      %p249 = pneg %p61
      %p250 = scmp.lt.s32.totalorder %s17, 1
      %s251 = scalar_select %p250, %s17, 1
      %s252 = smul.addr %s251, 2
      %s253 = smul.addr %s252, 8
      %s254 = scalar_lea.vmem %s2, %s253
      %p255 = pneg %p90
      %p256 = pneg %p87
      %p257 = pneg %p111
      %p258 = pneg %p108
      %p259 = pneg %p132
      %p260 = pneg %p129
      %p261 = pneg %p153
      %p262 = pneg %p150
      %p263 = pneg %p179
      %p264 = pneg %p176
      %p265 = scmp.lt.s32.totalorder %s17, 1
      %s266 = scalar_select %p265, %s17, 1
      %s267 = smul.addr %s266, 32
      %s268 = smul.addr %s267, 8
      %s269 = scalar_lea.vmem %s6, %s268
      %p270 = scmp.lt.s32.totalorder %s17, 1
      %s271 = scalar_select %p270, %s17, 1
      %s272 = smul.addr %s271, 32
      %s273 = smul.addr %s272, 8
      %s274 = scalar_lea.vmem %s0, %s273
      %p275 = scmp.lt.s32.totalorder %s17, 1
      %s276 = scalar_select %p275, %s17, 1
      %s277 = smul.addr %s276, 16
      %s278 = scalar_lea.vmem %s1, %s277
      %p279 = scmp.lt.s32.totalorder %s17, 1
      %s280 = scalar_select %p279, %s17, 1
      %s281 = smul.addr %s280, 2
      %s282 = smul.addr %s281, 8
      %s283 = scalar_lea.vmem %s2, %s282
      %p284 = scmp.lt.s32.totalorder %s17, 1
      %s285 = scalar_select %p284, %s17, 1
      %s286 = smul.addr %s285, 32
      %s287 = smul.addr %s286, 8
      %s288 = scalar_lea.vmem %s6, %s287
      %v290 = vld [vmem:[%s274] sm:$0xff]
      %v291 = vld [vmem:[%s274 + $0x8] sm:$0xff]
      %v292 = vld [vmem:[%s274 + $0x10] sm:$0xff]
      %v293 = vld [vmem:[%s274 + $0x18] sm:$0xff]
      %v294 = vld [vmem:[%s274 + $0x20] sm:$0xff]
      %v295 = vld [vmem:[%s274 + $0x28] sm:$0xff]
      %v296 = vld [vmem:[%s274 + $0x30] sm:$0xff]
      %v297 = vld [vmem:[%s274 + $0x38] sm:$0xff]
      %v298 = vld [vmem:[%s274 + $0x40] sm:$0xff]
      %v299 = vld [vmem:[%s274 + $0x48] sm:$0xff]
      %v300 = vld [vmem:[%s274 + $0x50] sm:$0xff]
      %v301 = vld [vmem:[%s274 + $0x58] sm:$0xff]
      %v302 = vld [vmem:[%s274 + $0x60] sm:$0xff]
      %v303 = vld [vmem:[%s274 + $0x68] sm:$0xff]
      %v304 = vld [vmem:[%s274 + $0x70] sm:$0xff]
      %v305 = vld [vmem:[%s274 + $0x78] sm:$0xff]
      %v306 = vld [vmem:[%s274 + $0x80] sm:$0xff]
      %v307 = vld [vmem:[%s274 + $0x88] sm:$0xff]
      %v308 = vld [vmem:[%s274 + $0x90] sm:$0xff]
      %v309 = vld [vmem:[%s274 + $0x98] sm:$0xff]
      %v310 = vld [vmem:[%s274 + $0xa0] sm:$0xff]
      %v311 = vld [vmem:[%s274 + $0xa8] sm:$0xff]
      %v312 = vld [vmem:[%s274 + $0xb0] sm:$0xff]
      %v313 = vld [vmem:[%s274 + $0xb8] sm:$0xff]
      %v314 = vld [vmem:[%s274 + $0xc0] sm:$0xff]
      %v315 = vld [vmem:[%s274 + $0xc8] sm:$0xff]
      %v316 = vld [vmem:[%s274 + $0xd0] sm:$0xff]
      %v317 = vld [vmem:[%s274 + $0xd8] sm:$0xff]
      %v318 = vld [vmem:[%s274 + $0xe0] sm:$0xff]
      %v319 = vld [vmem:[%s274 + $0xe8] sm:$0xff]
      %v320 = vld [vmem:[%s274 + $0xf0] sm:$0xff]
      %v321 = vld [vmem:[%s274 + $0xf8] sm:$0xff]
      %v322 = vld [vmem:[%s283] sm:$0xff]
      %v323 = vld [vmem:[%s283 + $0x8] sm:$0xff]
      %v324 = vmul.f32 %v290, %v322
      %v325 = vmul.f32 %v291, %v323
      %v326 = vmul.f32 %v292, %v322
      %v327 = vmul.f32 %v293, %v323
      %v328 = vmul.f32 %v294, %v322
      %v329 = vmul.f32 %v295, %v323
      %v330 = vmul.f32 %v296, %v322
      %v331 = vmul.f32 %v297, %v323
      %v332 = vmul.f32 %v298, %v322
      %v333 = vmul.f32 %v299, %v323
      %v334 = vmul.f32 %v300, %v322
      %v335 = vmul.f32 %v301, %v323
      %v336 = vmul.f32 %v302, %v322
      %v337 = vmul.f32 %v303, %v323
      %v338 = vmul.f32 %v304, %v322
      %v339 = vmul.f32 %v305, %v323
      %v340 = vmul.f32 %v306, %v322
      %v341 = vmul.f32 %v307, %v323
      %v342 = vmul.f32 %v308, %v322
      %v343 = vmul.f32 %v309, %v323
      %v344 = vmul.f32 %v310, %v322
      %v345 = vmul.f32 %v311, %v323
      %v346 = vmul.f32 %v312, %v322
      %v347 = vmul.f32 %v313, %v323
      %v348 = vmul.f32 %v314, %v322
      %v349 = vmul.f32 %v315, %v323
      %v350 = vmul.f32 %v316, %v322
      %v351 = vmul.f32 %v317, %v323
      %v352 = vmul.f32 %v318, %v322
      %v353 = vmul.f32 %v319, %v323
      %v354 = vmul.f32 %v320, %v322
      %v355 = vmul.f32 %v321, %v323
      %v356 = vld [vmem:[%s278] sm:$0x1]
      %v357 = vld [vmem:[%s278 + $0x1] sm:$0x1]
      %v358 = vld [vmem:[%s278 + $0x2] sm:$0x1]
      %v359 = vld [vmem:[%s278 + $0x3] sm:$0x1]
      %v360 = vld [vmem:[%s278 + $0x4] sm:$0x1]
      %v361 = vld [vmem:[%s278 + $0x5] sm:$0x1]
      %v362 = vld [vmem:[%s278 + $0x6] sm:$0x1]
      %v363 = vld [vmem:[%s278 + $0x7] sm:$0x1]
      %v364 = vld [vmem:[%s278 + $0x8] sm:$0x1]
      %v365 = vld [vmem:[%s278 + $0x9] sm:$0x1]
      %v366 = vld [vmem:[%s278 + $0xa] sm:$0x1]
      %v367 = vld [vmem:[%s278 + $0xb] sm:$0x1]
      %v368 = vld [vmem:[%s278 + $0xc] sm:$0x1]
      %v369 = vld [vmem:[%s278 + $0xd] sm:$0x1]
      %v370 = vld [vmem:[%s278 + $0xe] sm:$0x1]
      %v371 = vld [vmem:[%s278 + $0xf] sm:$0x1]
      %v388 = vperm.slane %v356, 0
      %v389 = vperm.slane %v357, 0
      %v390 = vperm.slane %v358, 0
      %v391 = vperm.slane %v359, 0
      %v392 = vperm.slane %v360, 0
      %v393 = vperm.slane %v361, 0
      %v394 = vperm.slane %v362, 0
      %v395 = vperm.slane %v363, 0
      %v396 = vperm.slane %v364, 0
      %v397 = vperm.slane %v365, 0
      %v398 = vperm.slane %v366, 0
      %v399 = vperm.slane %v367, 0
      %v400 = vperm.slane %v368, 0
      %v401 = vperm.slane %v369, 0
      %v402 = vperm.slane %v370, 0
      %v403 = vperm.slane %v371, 0
      %v420 = vmul.f32 %v324, %v388
      %v421 = vmul.f32 %v325, %v388
      %v422 = vmul.f32 %v326, %v389
      %v423 = vmul.f32 %v327, %v389
      %v424 = vmul.f32 %v328, %v390
      %v425 = vmul.f32 %v329, %v390
      %v426 = vmul.f32 %v330, %v391
      %v427 = vmul.f32 %v331, %v391
      %v428 = vmul.f32 %v332, %v392
      %v429 = vmul.f32 %v333, %v392
      %v430 = vmul.f32 %v334, %v393
      %v431 = vmul.f32 %v335, %v393
      %v432 = vmul.f32 %v336, %v394
      %v433 = vmul.f32 %v337, %v394
      %v434 = vmul.f32 %v338, %v395
      %v435 = vmul.f32 %v339, %v395
      %v436 = vmul.f32 %v340, %v396
      %v437 = vmul.f32 %v341, %v396
      %v438 = vmul.f32 %v342, %v397
      %v439 = vmul.f32 %v343, %v397
      %v440 = vmul.f32 %v344, %v398
      %v441 = vmul.f32 %v345, %v398
      %v442 = vmul.f32 %v346, %v399
      %v443 = vmul.f32 %v347, %v399
      %v444 = vmul.f32 %v348, %v400
      %v445 = vmul.f32 %v349, %v400
      %v446 = vmul.f32 %v350, %v401
      %v447 = vmul.f32 %v351, %v401
      %v448 = vmul.f32 %v352, %v402
      %v449 = vmul.f32 %v353, %v402
      %v450 = vmul.f32 %v354, %v403
      %v451 = vmul.f32 %v355, %v403
      %v452 = vpack.c.bf16 %v421, %v420
      %v453 = vpack.c.bf16 %v423, %v422
      %v454 = vpack.c.bf16 %v425, %v424
      %v455 = vpack.c.bf16 %v427, %v426
      %v456 = vpack.c.bf16 %v429, %v428
      %v457 = vpack.c.bf16 %v431, %v430
      %v458 = vpack.c.bf16 %v433, %v432
      %v459 = vpack.c.bf16 %v435, %v434
      %v460 = vpack.c.bf16 %v437, %v436
      %v461 = vpack.c.bf16 %v439, %v438
      %v462 = vpack.c.bf16 %v441, %v440
      %v463 = vpack.c.bf16 %v443, %v442
      %v464 = vpack.c.bf16 %v445, %v444
      %v465 = vpack.c.bf16 %v447, %v446
      %v466 = vpack.c.bf16 %v449, %v448
      %v467 = vpack.c.bf16 %v451, %v450
      %v468 = vld [vmem:[%s3] sm:$0xf]
      %vm469 = vcmask 64512
      %v471 = vsel %vm469, %v452, 0
      %v474 = vsel %vm469, %v453, 0
      %v477 = vsel %vm469, %v454, 0
      %v480 = vsel %vm469, %v455, 0
      %v483 = vsel %vm469, %v456, 0
      %v486 = vsel %vm469, %v457, 0
      %v489 = vsel %vm469, %v458, 0
      %v492 = vsel %vm469, %v459, 0
      %v495 = vsel %vm469, %v460, 0
      %v498 = vsel %vm469, %v461, 0
      %v501 = vsel %vm469, %v462, 0
      %v504 = vsel %vm469, %v463, 0
      %v507 = vsel %vm469, %v464, 0
      %v510 = vsel %vm469, %v465, 0
      %v513 = vsel %vm469, %v466, 0
      %v516 = vsel %vm469, %v467, 0
      %vm518 = vcmask 1043456
      %v520 = vsel %vm518, %v468, 0
      %522 = vmatpush.bf16.msra.mxu0 0
      %523 = vmatpush.bf16.msra.mxu0 0
      %524 = vmatpush.bf16.msra.mxu0 0
      %525 = vmatpush.bf16.msra.mxu0 0
      %526 = vmatpush.bf16.msra.mxu0 0
      %527 = vmatpush.bf16.msra.mxu0 0
      %528 = vmatpush.bf16.msra.mxu0 0
      %529 = vmatpush.bf16.msra.mxu0 %v520
      %530 = vmatmul.bf16.gmra.mxu0 %v471
      %v531 = vpop.f32.mrf.mxu0
      %v532 = vadd.f32 0.0, %v531
      %v533 = vpop.f32.mrf.mxu0
      %v534 = vadd.f32 0.0, %v533
      %535 = vmatmul.bf16.gmra.mxu0 %v474
      %v536 = vpop.f32.mrf.mxu0
      %v537 = vadd.f32 0.0, %v536
      %v538 = vpop.f32.mrf.mxu0
      %v539 = vadd.f32 0.0, %v538
      %540 = vmatmul.bf16.gmra.mxu0 %v477
      %v541 = vpop.f32.mrf.mxu0
      %v542 = vadd.f32 0.0, %v541
      %v543 = vpop.f32.mrf.mxu0
      %v544 = vadd.f32 0.0, %v543
      %545 = vmatmul.bf16.gmra.mxu0 %v480
      %v546 = vpop.f32.mrf.mxu0
      %v547 = vadd.f32 0.0, %v546
      %v548 = vpop.f32.mrf.mxu0
      %v549 = vadd.f32 0.0, %v548
      %550 = vmatmul.bf16.gmra.mxu0 %v483
      %v551 = vpop.f32.mrf.mxu0
      %v552 = vadd.f32 0.0, %v551
      %v553 = vpop.f32.mrf.mxu0
      %v554 = vadd.f32 0.0, %v553
      %555 = vmatmul.bf16.gmra.mxu0 %v486
      %v556 = vpop.f32.mrf.mxu0
      %v557 = vadd.f32 0.0, %v556
      %v558 = vpop.f32.mrf.mxu0
      %v559 = vadd.f32 0.0, %v558
      %560 = vmatmul.bf16.gmra.mxu0 %v489
      %v561 = vpop.f32.mrf.mxu0
      %v562 = vadd.f32 0.0, %v561
      %v563 = vpop.f32.mrf.mxu0
      %v564 = vadd.f32 0.0, %v563
      %565 = vmatmul.bf16.gmra.mxu0 %v492
      %v566 = vpop.f32.mrf.mxu0
      %v567 = vadd.f32 0.0, %v566
      %v568 = vpop.f32.mrf.mxu0
      %v569 = vadd.f32 0.0, %v568
      %570 = vmatmul.bf16.gmra.mxu0 %v495
      %v571 = vpop.f32.mrf.mxu0
      %v572 = vadd.f32 0.0, %v571
      %v573 = vpop.f32.mrf.mxu0
      %v574 = vadd.f32 0.0, %v573
      %575 = vmatmul.bf16.gmra.mxu0 %v498
      %v576 = vpop.f32.mrf.mxu0
      %v577 = vadd.f32 0.0, %v576
      %v578 = vpop.f32.mrf.mxu0
      %v579 = vadd.f32 0.0, %v578
      %580 = vmatmul.bf16.gmra.mxu0 %v501
      %v581 = vpop.f32.mrf.mxu0
      %v582 = vadd.f32 0.0, %v581
      %v583 = vpop.f32.mrf.mxu0
      %v584 = vadd.f32 0.0, %v583
      %585 = vmatmul.bf16.gmra.mxu0 %v504
      %v586 = vpop.f32.mrf.mxu0
      %v587 = vadd.f32 0.0, %v586
      %v588 = vpop.f32.mrf.mxu0
      %v589 = vadd.f32 0.0, %v588
      %590 = vmatmul.bf16.gmra.mxu0 %v507
      %v591 = vpop.f32.mrf.mxu0
      %v592 = vadd.f32 0.0, %v591
      %v593 = vpop.f32.mrf.mxu0
      %v594 = vadd.f32 0.0, %v593
      %595 = vmatmul.bf16.gmra.mxu0 %v510
      %v596 = vpop.f32.mrf.mxu0
      %v597 = vadd.f32 0.0, %v596
      %v598 = vpop.f32.mrf.mxu0
      %v599 = vadd.f32 0.0, %v598
      %600 = vmatmul.bf16.gmra.mxu0 %v513
      %v601 = vpop.f32.mrf.mxu0
      %v602 = vadd.f32 0.0, %v601
      %v603 = vpop.f32.mrf.mxu0
      %v604 = vadd.f32 0.0, %v603
      %605 = vmatmul.bf16.gmra.mxu0 %v516
      %v606 = vpop.f32.mrf.mxu0
      %v607 = vadd.f32 0.0, %v606
      %v608 = vpop.f32.mrf.mxu0
      %v609 = vadd.f32 0.0, %v608
      %610 = vdwg.mxu0
      %v611 = vld [vmem:[%s4] sm:$0x1]
      %v613 = vperm.slane %v611, 0
      %v615 = vmul.f32 %v532, %v613
      %v616 = vmul.f32 %v534, %v613
      %v617 = vmul.f32 %v537, %v613
      %v618 = vmul.f32 %v539, %v613
      %v619 = vmul.f32 %v542, %v613
      %v620 = vmul.f32 %v544, %v613
      %v621 = vmul.f32 %v547, %v613
      %v622 = vmul.f32 %v549, %v613
      %v623 = vmul.f32 %v552, %v613
      %v624 = vmul.f32 %v554, %v613
      %v625 = vmul.f32 %v557, %v613
      %v626 = vmul.f32 %v559, %v613
      %v627 = vmul.f32 %v562, %v613
      %v628 = vmul.f32 %v564, %v613
      %v629 = vmul.f32 %v567, %v613
      %v630 = vmul.f32 %v569, %v613
      %v631 = vmul.f32 %v572, %v613
      %v632 = vmul.f32 %v574, %v613
      %v633 = vmul.f32 %v577, %v613
      %v634 = vmul.f32 %v579, %v613
      %v635 = vmul.f32 %v582, %v613
      %v636 = vmul.f32 %v584, %v613
      %v637 = vmul.f32 %v587, %v613
      %v638 = vmul.f32 %v589, %v613
      %v639 = vmul.f32 %v592, %v613
      %v640 = vmul.f32 %v594, %v613
      %v641 = vmul.f32 %v597, %v613
      %v642 = vmul.f32 %v599, %v613
      %v643 = vmul.f32 %v602, %v613
      %v644 = vmul.f32 %v604, %v613
      %v645 = vmul.f32 %v607, %v613
      %v646 = vmul.f32 %v609, %v613
      %v647 = vld [vmem:[%s5] sm:$0x1]
      %v649 = vperm.slane %v647, 0
      %v651 = vadd.f32 %v615, %v649
      %v652 = vadd.f32 %v616, %v649
      %v653 = vadd.f32 %v617, %v649
      %v654 = vadd.f32 %v618, %v649
      %v655 = vadd.f32 %v619, %v649
      %v656 = vadd.f32 %v620, %v649
      %v657 = vadd.f32 %v621, %v649
      %v658 = vadd.f32 %v622, %v649
      %v659 = vadd.f32 %v623, %v649
      %v660 = vadd.f32 %v624, %v649
      %v661 = vadd.f32 %v625, %v649
      %v662 = vadd.f32 %v626, %v649
      %v663 = vadd.f32 %v627, %v649
      %v664 = vadd.f32 %v628, %v649
      %v665 = vadd.f32 %v629, %v649
      %v666 = vadd.f32 %v630, %v649
      %v667 = vadd.f32 %v631, %v649
      %v668 = vadd.f32 %v632, %v649
      %v669 = vadd.f32 %v633, %v649
      %v670 = vadd.f32 %v634, %v649
      %v671 = vadd.f32 %v635, %v649
      %v672 = vadd.f32 %v636, %v649
      %v673 = vadd.f32 %v637, %v649
      %v674 = vadd.f32 %v638, %v649
      %v675 = vadd.f32 %v639, %v649
      %v676 = vadd.f32 %v640, %v649
      %v677 = vadd.f32 %v641, %v649
      %v678 = vadd.f32 %v642, %v649
      %v679 = vadd.f32 %v643, %v649
      %v680 = vadd.f32 %v644, %v649
      %v681 = vadd.f32 %v645, %v649
      %v682 = vadd.f32 %v646, %v649
      %v683 = vsub.f32 0.0, %v651
      %v684 = vsub.f32 0.0, %v652
      %v685 = vsub.f32 0.0, %v653
      %v686 = vsub.f32 0.0, %v654
      %v687 = vsub.f32 0.0, %v655
      %v688 = vsub.f32 0.0, %v656
      %v689 = vsub.f32 0.0, %v657
      %v690 = vsub.f32 0.0, %v658
      %v691 = vsub.f32 0.0, %v659
      %v692 = vsub.f32 0.0, %v660
      %v693 = vsub.f32 0.0, %v661
      %v694 = vsub.f32 0.0, %v662
      %v695 = vsub.f32 0.0, %v663
      %v696 = vsub.f32 0.0, %v664
      %v697 = vsub.f32 0.0, %v665
      %v698 = vsub.f32 0.0, %v666
      %v699 = vsub.f32 0.0, %v667
      %v700 = vsub.f32 0.0, %v668
      %v701 = vsub.f32 0.0, %v669
      %v702 = vsub.f32 0.0, %v670
      %v703 = vsub.f32 0.0, %v671
      %v704 = vsub.f32 0.0, %v672
      %v705 = vsub.f32 0.0, %v673
      %v706 = vsub.f32 0.0, %v674
      %v707 = vsub.f32 0.0, %v675
      %v708 = vsub.f32 0.0, %v676
      %v709 = vsub.f32 0.0, %v677
      %v710 = vsub.f32 0.0, %v678
      %v711 = vsub.f32 0.0, %v679
      %v712 = vsub.f32 0.0, %v680
      %v713 = vsub.f32 0.0, %v681
      %v714 = vsub.f32 0.0, %v682
      %v715 = vmul.f32 %v683, 1.442695
      %v716 = vpow.pop %v715
      %v717 = vmul.f32 %v684, 1.442695
      %v718 = vpow.pop %v717
      %v719 = vmul.f32 %v685, 1.442695
      %v720 = vpow.pop %v719
      %v721 = vmul.f32 %v686, 1.442695
      %v722 = vpow.pop %v721
      %v723 = vmul.f32 %v687, 1.442695
      %v724 = vpow.pop %v723
      %v725 = vmul.f32 %v688, 1.442695
      %v726 = vpow.pop %v725
      %v727 = vmul.f32 %v689, 1.442695
      %v728 = vpow.pop %v727
      %v729 = vmul.f32 %v690, 1.442695
      %v730 = vpow.pop %v729
      %v731 = vmul.f32 %v691, 1.442695
      %v732 = vpow.pop %v731
      %v733 = vmul.f32 %v692, 1.442695
      %v734 = vpow.pop %v733
      %v735 = vmul.f32 %v693, 1.442695
      %v736 = vpow.pop %v735
      %v737 = vmul.f32 %v694, 1.442695
      %v738 = vpow.pop %v737
      %v739 = vmul.f32 %v695, 1.442695
      %v740 = vpow.pop %v739
      %v741 = vmul.f32 %v696, 1.442695
      %v742 = vpow.pop %v741
      %v743 = vmul.f32 %v697, 1.442695
      %v744 = vpow.pop %v743
      %v745 = vmul.f32 %v698, 1.442695
      %v746 = vpow.pop %v745
      %v747 = vmul.f32 %v699, 1.442695
      %v748 = vpow.pop %v747
      %v749 = vmul.f32 %v700, 1.442695
      %v750 = vpow.pop %v749
      %v751 = vmul.f32 %v701, 1.442695
      %v752 = vpow.pop %v751
      %v753 = vmul.f32 %v702, 1.442695
      %v754 = vpow.pop %v753
      %v755 = vmul.f32 %v703, 1.442695
      %v756 = vpow.pop %v755
      %v757 = vmul.f32 %v704, 1.442695
      %v758 = vpow.pop %v757
      %v759 = vmul.f32 %v705, 1.442695
      %v760 = vpow.pop %v759
      %v761 = vmul.f32 %v706, 1.442695
      %v762 = vpow.pop %v761
      %v763 = vmul.f32 %v707, 1.442695
      %v764 = vpow.pop %v763
      %v765 = vmul.f32 %v708, 1.442695
      %v766 = vpow.pop %v765
      %v767 = vmul.f32 %v709, 1.442695
      %v768 = vpow.pop %v767
      %v769 = vmul.f32 %v710, 1.442695
      %v770 = vpow.pop %v769
      %v771 = vmul.f32 %v711, 1.442695
      %v772 = vpow.pop %v771
      %v773 = vmul.f32 %v712, 1.442695
      %v774 = vpow.pop %v773
      %v775 = vmul.f32 %v713, 1.442695
      %v776 = vpow.pop %v775
      %v777 = vmul.f32 %v714, 1.442695
      %v778 = vpow.pop %v777
      %v779 = vadd.f32 %v716, 1.0
      %v780 = vadd.f32 %v718, 1.0
      %v781 = vadd.f32 %v720, 1.0
      %v782 = vadd.f32 %v722, 1.0
      %v783 = vadd.f32 %v724, 1.0
      %v784 = vadd.f32 %v726, 1.0
      %v785 = vadd.f32 %v728, 1.0
      %v786 = vadd.f32 %v730, 1.0
      %v787 = vadd.f32 %v732, 1.0
      %v788 = vadd.f32 %v734, 1.0
      %v789 = vadd.f32 %v736, 1.0
      %v790 = vadd.f32 %v738, 1.0
      %v791 = vadd.f32 %v740, 1.0
      %v792 = vadd.f32 %v742, 1.0
      %v793 = vadd.f32 %v744, 1.0
      %v794 = vadd.f32 %v746, 1.0
      %v795 = vadd.f32 %v748, 1.0
      %v796 = vadd.f32 %v750, 1.0
      %v797 = vadd.f32 %v752, 1.0
      %v798 = vadd.f32 %v754, 1.0
      %v799 = vadd.f32 %v756, 1.0
      %v800 = vadd.f32 %v758, 1.0
      %v801 = vadd.f32 %v760, 1.0
      %v802 = vadd.f32 %v762, 1.0
      %v803 = vadd.f32 %v764, 1.0
      %v804 = vadd.f32 %v766, 1.0
      %v805 = vadd.f32 %v768, 1.0
      %v806 = vadd.f32 %v770, 1.0
      %v807 = vadd.f32 %v772, 1.0
      %v808 = vadd.f32 %v774, 1.0
      %v809 = vadd.f32 %v776, 1.0
      %v810 = vadd.f32 %v778, 1.0
      %v811 = vrcp.pop %v779
      %v812 = vrcp.pop %v780
      %v813 = vrcp.pop %v781
      %v814 = vrcp.pop %v782
      %v815 = vrcp.pop %v783
      %v816 = vrcp.pop %v784
      %v817 = vrcp.pop %v785
      %v818 = vrcp.pop %v786
      %v819 = vrcp.pop %v787
      %v820 = vrcp.pop %v788
      %v821 = vrcp.pop %v789
      %v822 = vrcp.pop %v790
      %v823 = vrcp.pop %v791
      %v824 = vrcp.pop %v792
      %v825 = vrcp.pop %v793
      %v826 = vrcp.pop %v794
      %v827 = vrcp.pop %v795
      %v828 = vrcp.pop %v796
      %v829 = vrcp.pop %v797
      %v830 = vrcp.pop %v798
      %v831 = vrcp.pop %v799
      %v832 = vrcp.pop %v800
      %v833 = vrcp.pop %v801
      %v834 = vrcp.pop %v802
      %v835 = vrcp.pop %v803
      %v836 = vrcp.pop %v804
      %v837 = vrcp.pop %v805
      %v838 = vrcp.pop %v806
      %v839 = vrcp.pop %v807
      %v840 = vrcp.pop %v808
      %v841 = vrcp.pop %v809
      %v842 = vrcp.pop %v810
      %v843 = vmul.f32 %v651, %v811
      %v844 = vmul.f32 %v652, %v812
      %v845 = vmul.f32 %v653, %v813
      %v846 = vmul.f32 %v654, %v814
      %v847 = vmul.f32 %v655, %v815
      %v848 = vmul.f32 %v656, %v816
      %v849 = vmul.f32 %v657, %v817
      %v850 = vmul.f32 %v658, %v818
      %v851 = vmul.f32 %v659, %v819
      %v852 = vmul.f32 %v660, %v820
      %v853 = vmul.f32 %v661, %v821
      %v854 = vmul.f32 %v662, %v822
      %v855 = vmul.f32 %v663, %v823
      %v856 = vmul.f32 %v664, %v824
      %v857 = vmul.f32 %v665, %v825
      %v858 = vmul.f32 %v666, %v826
      %v859 = vmul.f32 %v667, %v827
      %v860 = vmul.f32 %v668, %v828
      %v861 = vmul.f32 %v669, %v829
      %v862 = vmul.f32 %v670, %v830
      %v863 = vmul.f32 %v671, %v831
      %v864 = vmul.f32 %v672, %v832
      %v865 = vmul.f32 %v673, %v833
      %v866 = vmul.f32 %v674, %v834
      %v867 = vmul.f32 %v675, %v835
      %v868 = vmul.f32 %v676, %v836
      %v869 = vmul.f32 %v677, %v837
      %v870 = vmul.f32 %v678, %v838
      %v871 = vmul.f32 %v679, %v839
      %v872 = vmul.f32 %v680, %v840
      %v873 = vmul.f32 %v681, %v841
      %v874 = vmul.f32 %v682, %v842
      %vm875 = vcmask 130048
      %876 = vst.msk [vmem:[%s288] sm:$0xff] %vm875, %v843
      %877 = vst.msk [vmem:[%s288 + $0x8] sm:$0xff] %vm875, %v844
      %878 = vst.msk [vmem:[%s288 + $0x10] sm:$0xff] %vm875, %v845
      %879 = vst.msk [vmem:[%s288 + $0x18] sm:$0xff] %vm875, %v846
      %880 = vst.msk [vmem:[%s288 + $0x20] sm:$0xff] %vm875, %v847
      %881 = vst.msk [vmem:[%s288 + $0x28] sm:$0xff] %vm875, %v848
      %882 = vst.msk [vmem:[%s288 + $0x30] sm:$0xff] %vm875, %v849
      %883 = vst.msk [vmem:[%s288 + $0x38] sm:$0xff] %vm875, %v850
      %884 = vst.msk [vmem:[%s288 + $0x40] sm:$0xff] %vm875, %v851
      %885 = vst.msk [vmem:[%s288 + $0x48] sm:$0xff] %vm875, %v852
      %886 = vst.msk [vmem:[%s288 + $0x50] sm:$0xff] %vm875, %v853
      %887 = vst.msk [vmem:[%s288 + $0x58] sm:$0xff] %vm875, %v854
      %888 = vst.msk [vmem:[%s288 + $0x60] sm:$0xff] %vm875, %v855
      %889 = vst.msk [vmem:[%s288 + $0x68] sm:$0xff] %vm875, %v856
      %890 = vst.msk [vmem:[%s288 + $0x70] sm:$0xff] %vm875, %v857
      %891 = vst.msk [vmem:[%s288 + $0x78] sm:$0xff] %vm875, %v858
      %892 = vst.msk [vmem:[%s288 + $0x80] sm:$0xff] %vm875, %v859
      %893 = vst.msk [vmem:[%s288 + $0x88] sm:$0xff] %vm875, %v860
      %894 = vst.msk [vmem:[%s288 + $0x90] sm:$0xff] %vm875, %v861
      %895 = vst.msk [vmem:[%s288 + $0x98] sm:$0xff] %vm875, %v862
      %896 = vst.msk [vmem:[%s288 + $0xa0] sm:$0xff] %vm875, %v863
      %897 = vst.msk [vmem:[%s288 + $0xa8] sm:$0xff] %vm875, %v864
      %898 = vst.msk [vmem:[%s288 + $0xb0] sm:$0xff] %vm875, %v865
      %899 = vst.msk [vmem:[%s288 + $0xb8] sm:$0xff] %vm875, %v866
      %900 = vst.msk [vmem:[%s288 + $0xc0] sm:$0xff] %vm875, %v867
      %901 = vst.msk [vmem:[%s288 + $0xc8] sm:$0xff] %vm875, %v868
      %902 = vst.msk [vmem:[%s288 + $0xd0] sm:$0xff] %vm875, %v869
      %903 = vst.msk [vmem:[%s288 + $0xd8] sm:$0xff] %vm875, %v870
      %904 = vst.msk [vmem:[%s288 + $0xe0] sm:$0xff] %vm875, %v871
      %905 = vst.msk [vmem:[%s288 + $0xe8] sm:$0xff] %vm875, %v872
      %906 = vst.msk [vmem:[%s288 + $0xf0] sm:$0xff] %vm875, %v873
      %907 = vst.msk [vmem:[%s288 + $0xf8] sm:$0xff] %vm875, %v874
      %p908 = scmp.lt.s32.totalorder %s17, 1
      %s909 = scalar_select %p908, %s17, 1
      %s910 = smul.addr %s909, 32
      %s911 = smul.addr %s910, 8
      %s912 = scalar_lea.vmem %s6, %s911
      // Predicated region
      $region45: #{_lambda_.15} parent=43 // pred_check
        %p913 = pneg %p176
      $region46: #{_lambda_.15} parent=43 // pred_check_branch
        %915 = sbr.rel (%p913) target = $region48
      $region47: #{_lambda_.15} parent=43 // pred_region
        _
      $region48: #{_lambda_.15} parent=43 // pred_fallthru
        _
    $region44: #{_lambda_.15} parent=5 // pred_fallthru
      _
    %p916 = scmp.le.s32.totalorder 2, %s12
    // Predicated region
    $region49: #{_lambda_.15} parent=5 // pred_check
      %p917 = pneg %p916
    $region50: #{_lambda_.15} parent=5 // pred_check_branch
      %919 = sbr.rel (%p917) target = $region52
    $region51: #{_lambda_.15} parent=5 // pred_region
      %s920 = ssub.s32 %s12, 2
      // Predicated region
      $region53: #{_lambda_.15} parent=51 // pred_check
        %p921 = pneg %p182
      $region54: #{_lambda_.15} parent=51 // pred_check_branch
        %923 = sbr.rel (%p921) target = $region56
      $region55: #{_lambda_.15} parent=51 // pred_region
        %p924 = scmp.lt.s32.totalorder %s18, 1
        %s925 = scalar_select %p924, %s18, 1
        %s926 = smul.addr %s925, 32
        %s927 = smul.addr %s926, 8
        %s928 = scalar_lea.vmem %s6, %s927
      $region56: #{_lambda_.15} parent=51 // pred_fallthru
        _
    $region52: #{_lambda_.15} parent=5 // pred_fallthru
      _
  $region6: #{_lambda_.15} parent=0 // loop_footer
    %s16 = sadd.s32 1, %s12
  $region7: #{_lambda_.15} parent=0 // loop_footer_branch
    %11 = sbr.rel target = $region3
  $region8: #{_lambda_.15} parent=0 // loop_exit
    _

// kernel: _lambda_.16
$region0: #{_lambda_.16}
  #allocation0 [shape = 'u32[]', space=smem, size = 0x4, offset = 0x4, fixed_abs, tag = 'smem constant byte address 0x4 - core index']
  #allocation1 [shape = 'u32[72,128]{1,0:T(1,128)}', space=vmem, size = 0x9000, scoped, tag = 'internal scratch']
  %s0 = inlined_call_operand.vmem [shape: bf16[512,144], index: 0, kind: input, shape index: {}]
  %s1 = inlined_call_operand.vmem [shape: bf16[144,18], index: 1, kind: input, shape index: {}]
  %s2 = inlined_call_operand.vmem [shape: f32[1,18], index: 2, kind: input, shape index: {}]
  %s3 = inlined_call_operand.vmem [shape: f32[1,18], index: 3, kind: input, shape index: {}]
  %s4 = inlined_call_operand.vmem [shape: f32[512,18], index: 4, kind: output, shape index: {}]
  %s5 = sld [smem:[#allocation0]]
  $region26: #{_lambda_.16} parent=0
    _
  %s7 = ssub.s32 1, %s5
  %s8 = scalar_select 0, %s7, %s5
  // Predicated region
  $region2: #{_lambda_.16} parent=0 // pred_check
    _
  $region3: #{_lambda_.16} parent=0 // pred_check_branch
    %10 = sbr.rel (0) target = $region5
  $region4: #{_lambda_.16} parent=0 // pred_region
    _
  $region5: #{_lambda_.16} parent=0 // pred_fallthru
    _
  // Predicated region
  $region6: #{_lambda_.16} parent=0 // pred_check
    _
  $region7: #{_lambda_.16} parent=0 // pred_check_branch
    %12 = sbr.rel (0) target = $region9
  $region8: #{_lambda_.16} parent=0 // pred_region
    _
  $region9: #{_lambda_.16} parent=0 // pred_fallthru
    _
  // Predicated region
  $region10: #{_lambda_.16} parent=0 // pred_check
    _
  $region11: #{_lambda_.16} parent=0 // pred_check_branch
    %14 = sbr.rel (0) target = $region13
  $region12: #{_lambda_.16} parent=0 // pred_region
    _
  $region13: #{_lambda_.16} parent=0 // pred_fallthru
    _
  // Predicated region
  $region14: #{_lambda_.16} parent=0 // pred_check
    _
  $region15: #{_lambda_.16} parent=0 // pred_check_branch
    %16 = sbr.rel (0) target = $region17
  $region16: #{_lambda_.16} parent=0 // pred_region
    _
  $region17: #{_lambda_.16} parent=0 // pred_fallthru
    _
  %v18 = vld [vmem:[%s0] sm:$0xff]
  %v19 = vld [vmem:[%s0 + $0x8] sm:$0xff]
  %v20 = vld [vmem:[%s0 + $0x10] sm:$0xff]
  %v21 = vld [vmem:[%s0 + $0x18] sm:$0xff]
  %v22 = vld [vmem:[%s0 + $0x20] sm:$0xff]
  %v23 = vld [vmem:[%s0 + $0x28] sm:$0xff]
  %v24 = vld [vmem:[%s0 + $0x30] sm:$0xff]
  %v25 = vld [vmem:[%s0 + $0x38] sm:$0xff]
  %v26 = vld [vmem:[%s0 + $0x40] sm:$0xff]
  %v27 = vld [vmem:[%s0 + $0x48] sm:$0xff]
  %v28 = vld [vmem:[%s0 + $0x50] sm:$0xff]
  %v29 = vld [vmem:[%s0 + $0x58] sm:$0xff]
  %v30 = vld [vmem:[%s0 + $0x60] sm:$0xff]
  %v31 = vld [vmem:[%s0 + $0x68] sm:$0xff]
  %v32 = vld [vmem:[%s0 + $0x70] sm:$0xff]
  %v33 = vld [vmem:[%s0 + $0x78] sm:$0xff]
  %v34 = vld [vmem:[%s0 + $0x80] sm:$0xff]
  %v35 = vld [vmem:[%s0 + $0x88] sm:$0xff]
  %v36 = vld [vmem:[%s0 + $0x90] sm:$0xff]
  %v37 = vld [vmem:[%s0 + $0x98] sm:$0xff]
  %v38 = vld [vmem:[%s0 + $0xa0] sm:$0xff]
  %v39 = vld [vmem:[%s0 + $0xa8] sm:$0xff]
  %v40 = vld [vmem:[%s0 + $0xb0] sm:$0xff]
  %v41 = vld [vmem:[%s0 + $0xb8] sm:$0xff]
  %v42 = vld [vmem:[%s0 + $0xc0] sm:$0xff]
  %v43 = vld [vmem:[%s0 + $0xc8] sm:$0xff]
  %v44 = vld [vmem:[%s0 + $0xd0] sm:$0xff]
  %v45 = vld [vmem:[%s0 + $0xd8] sm:$0xff]
  %v46 = vld [vmem:[%s0 + $0xe0] sm:$0xff]
  %v47 = vld [vmem:[%s0 + $0xe8] sm:$0xff]
  %v48 = vld [vmem:[%s0 + $0xf0] sm:$0xff]
  %v49 = vld [vmem:[%s0 + $0xf8] sm:$0xff]
  %v50 = vld [vmem:[%s0 + $0x100] sm:$0xff]
  %v51 = vld [vmem:[%s0 + $0x108] sm:$0xff]
  %v52 = vld [vmem:[%s0 + $0x110] sm:$0xff]
  %v53 = vld [vmem:[%s0 + $0x118] sm:$0xff]
  %v54 = vld [vmem:[%s0 + $0x120] sm:$0xff]
  %v55 = vld [vmem:[%s0 + $0x128] sm:$0xff]
  %v56 = vld [vmem:[%s0 + $0x130] sm:$0xff]
  %v57 = vld [vmem:[%s0 + $0x138] sm:$0xff]
  %v58 = vld [vmem:[%s0 + $0x140] sm:$0xff]
  %v59 = vld [vmem:[%s0 + $0x148] sm:$0xff]
  %v60 = vld [vmem:[%s0 + $0x150] sm:$0xff]
  %v61 = vld [vmem:[%s0 + $0x158] sm:$0xff]
  %v62 = vld [vmem:[%s0 + $0x160] sm:$0xff]
  %v63 = vld [vmem:[%s0 + $0x168] sm:$0xff]
  %v64 = vld [vmem:[%s0 + $0x170] sm:$0xff]
  %v65 = vld [vmem:[%s0 + $0x178] sm:$0xff]
  %v66 = vld [vmem:[%s0 + $0x180] sm:$0xff]
  %v67 = vld [vmem:[%s0 + $0x188] sm:$0xff]
  %v68 = vld [vmem:[%s0 + $0x190] sm:$0xff]
  %v69 = vld [vmem:[%s0 + $0x198] sm:$0xff]
  %v70 = vld [vmem:[%s0 + $0x1a0] sm:$0xff]
  %v71 = vld [vmem:[%s0 + $0x1a8] sm:$0xff]
  %v72 = vld [vmem:[%s0 + $0x1b0] sm:$0xff]
  %v73 = vld [vmem:[%s0 + $0x1b8] sm:$0xff]
  %v74 = vld [vmem:[%s0 + $0x1c0] sm:$0xff]
  %v75 = vld [vmem:[%s0 + $0x1c8] sm:$0xff]
  %v76 = vld [vmem:[%s0 + $0x1d0] sm:$0xff]
  %v77 = vld [vmem:[%s0 + $0x1d8] sm:$0xff]
  %v78 = vld [vmem:[%s0 + $0x1e0] sm:$0xff]
  %v79 = vld [vmem:[%s0 + $0x1e8] sm:$0xff]
  %v80 = vld [vmem:[%s0 + $0x1f0] sm:$0xff]
  %v81 = vld [vmem:[%s0 + $0x1f8] sm:$0xff]
  %v82 = vld [vmem:[%s1] sm:$0xf]
  %v83 = vld [vmem:[%s1 + $0x4] sm:$0xf]
  %v84 = vld [vmem:[%s1 + $0x8] sm:$0xf]
  %v85 = vld [vmem:[%s1 + $0xc] sm:$0xf]
  %v86 = vld [vmem:[%s1 + $0x10] sm:$0xf]
  %v87 = vld [vmem:[%s1 + $0x14] sm:$0xf]
  %v88 = vld [vmem:[%s1 + $0x18] sm:$0xf]
  %v89 = vld [vmem:[%s1 + $0x1c] sm:$0xf]
  %v90 = vld [vmem:[%s1 + $0x20] sm:$0xf]
  %v91 = vld [vmem:[%s1 + $0x24] sm:$0xf]
  %v92 = vld [vmem:[%s1 + $0x28] sm:$0xf]
  %v93 = vld [vmem:[%s1 + $0x2c] sm:$0xf]
  %v94 = vld [vmem:[%s1 + $0x30] sm:$0xf]
  %v95 = vld [vmem:[%s1 + $0x34] sm:$0xf]
  %v96 = vld [vmem:[%s1 + $0x38] sm:$0xf]
  %v97 = vld [vmem:[%s1 + $0x3c] sm:$0xf]
  %v98 = vld [vmem:[%s1 + $0x40] sm:$0xf]
  %v99 = vld [vmem:[%s1 + $0x44] sm:$0xf]
  %v164 = vunpack.c.l.b16 %v18
  %v165 = vunpack.c.h.b16 %v18
  %v166 = vunpack.c.l.b16 %v19
  %v167 = vunpack.c.h.b16 %v19
  %v168 = vunpack.c.l.b16 %v20
  %v169 = vunpack.c.h.b16 %v20
  %v170 = vunpack.c.l.b16 %v21
  %v171 = vunpack.c.h.b16 %v21
  %v172 = vunpack.c.l.b16 %v22
  %v173 = vunpack.c.h.b16 %v22
  %v174 = vunpack.c.l.b16 %v23
  %v175 = vunpack.c.h.b16 %v23
  %v176 = vunpack.c.l.b16 %v24
  %v177 = vunpack.c.h.b16 %v24
  %v178 = vunpack.c.l.b16 %v25
  %v179 = vunpack.c.h.b16 %v25
  %v180 = vunpack.c.l.b16 %v26
  %v181 = vunpack.c.h.b16 %v26
  %v182 = vunpack.c.l.b16 %v27
  %v183 = vunpack.c.h.b16 %v27
  %v184 = vunpack.c.l.b16 %v28
  %v185 = vunpack.c.h.b16 %v28
  %v186 = vunpack.c.l.b16 %v29
  %v187 = vunpack.c.h.b16 %v29
  %v188 = vunpack.c.l.b16 %v30
  %v189 = vunpack.c.h.b16 %v30
  %v190 = vunpack.c.l.b16 %v31
  %v191 = vunpack.c.h.b16 %v31
  %v192 = vunpack.c.l.b16 %v32
  %v193 = vunpack.c.h.b16 %v32
  %v194 = vunpack.c.l.b16 %v33
  %v195 = vunpack.c.h.b16 %v33
  %v196 = vunpack.c.l.b16 %v34
  %v197 = vunpack.c.h.b16 %v34
  %v198 = vunpack.c.l.b16 %v35
  %v199 = vunpack.c.h.b16 %v35
  %v200 = vunpack.c.l.b16 %v36
  %v201 = vunpack.c.h.b16 %v36
  %v202 = vunpack.c.l.b16 %v37
  %v203 = vunpack.c.h.b16 %v37
  %v204 = vunpack.c.l.b16 %v38
  %v205 = vunpack.c.h.b16 %v38
  %v206 = vunpack.c.l.b16 %v39
  %v207 = vunpack.c.h.b16 %v39
  %v208 = vunpack.c.l.b16 %v40
  %v209 = vunpack.c.h.b16 %v40
  %v210 = vunpack.c.l.b16 %v41
  %v211 = vunpack.c.h.b16 %v41
  %v212 = vunpack.c.l.b16 %v42
  %v213 = vunpack.c.h.b16 %v42
  %v214 = vunpack.c.l.b16 %v43
  %v215 = vunpack.c.h.b16 %v43
  %v216 = vunpack.c.l.b16 %v44
  %v217 = vunpack.c.h.b16 %v44
  %v218 = vunpack.c.l.b16 %v45
  %v219 = vunpack.c.h.b16 %v45
  %v220 = vunpack.c.l.b16 %v46
  %v221 = vunpack.c.h.b16 %v46
  %v222 = vunpack.c.l.b16 %v47
  %v223 = vunpack.c.h.b16 %v47
  %v224 = vunpack.c.l.b16 %v48
  %v225 = vunpack.c.h.b16 %v48
  %v226 = vunpack.c.l.b16 %v49
  %v227 = vunpack.c.h.b16 %v49
  %v228 = vunpack.c.l.b16 %v50
  %v229 = vunpack.c.h.b16 %v50
  %v230 = vunpack.c.l.b16 %v51
  %v231 = vunpack.c.h.b16 %v51
  %v232 = vunpack.c.l.b16 %v52
  %v233 = vunpack.c.h.b16 %v52
  %v234 = vunpack.c.l.b16 %v53
  %v235 = vunpack.c.h.b16 %v53
  %v236 = vunpack.c.l.b16 %v54
  %v237 = vunpack.c.h.b16 %v54
  %v238 = vunpack.c.l.b16 %v55
  %v239 = vunpack.c.h.b16 %v55
  %v240 = vunpack.c.l.b16 %v56
  %v241 = vunpack.c.h.b16 %v56
  %v242 = vunpack.c.l.b16 %v57
  %v243 = vunpack.c.h.b16 %v57
  %v244 = vunpack.c.l.b16 %v58
  %v245 = vunpack.c.h.b16 %v58
  %v246 = vunpack.c.l.b16 %v59
  %v247 = vunpack.c.h.b16 %v59
  %v248 = vunpack.c.l.b16 %v60
  %v249 = vunpack.c.h.b16 %v60
  %v250 = vunpack.c.l.b16 %v61
  %v251 = vunpack.c.h.b16 %v61
  %v252 = vunpack.c.l.b16 %v62
  %v253 = vunpack.c.h.b16 %v62
  %v254 = vunpack.c.l.b16 %v63
  %v255 = vunpack.c.h.b16 %v63
  %v256 = vunpack.c.l.b16 %v64
  %v257 = vunpack.c.h.b16 %v64
  %v258 = vunpack.c.l.b16 %v65
  %v259 = vunpack.c.h.b16 %v65
  %v260 = vunpack.c.l.b16 %v66
  %v261 = vunpack.c.h.b16 %v66
  %v262 = vunpack.c.l.b16 %v67
  %v263 = vunpack.c.h.b16 %v67
  %v264 = vunpack.c.l.b16 %v68
  %v265 = vunpack.c.h.b16 %v68
  %v266 = vunpack.c.l.b16 %v69
  %v267 = vunpack.c.h.b16 %v69
  %v268 = vunpack.c.l.b16 %v70
  %v269 = vunpack.c.h.b16 %v70
  %v270 = vunpack.c.l.b16 %v71
  %v271 = vunpack.c.h.b16 %v71
  %v272 = vunpack.c.l.b16 %v72
  %v273 = vunpack.c.h.b16 %v72
  %v274 = vunpack.c.l.b16 %v73
  %v275 = vunpack.c.h.b16 %v73
  %v276 = vunpack.c.l.b16 %v74
  %v277 = vunpack.c.h.b16 %v74
  %v278 = vunpack.c.l.b16 %v75
  %v279 = vunpack.c.h.b16 %v75
  %v280 = vunpack.c.l.b16 %v76
  %v281 = vunpack.c.h.b16 %v76
  %v282 = vunpack.c.l.b16 %v77
  %v283 = vunpack.c.h.b16 %v77
  %v284 = vunpack.c.l.b16 %v78
  %v285 = vunpack.c.h.b16 %v78
  %v286 = vunpack.c.l.b16 %v79
  %v287 = vunpack.c.h.b16 %v79
  %v288 = vunpack.c.l.b16 %v80
  %v289 = vunpack.c.h.b16 %v80
  %v290 = vunpack.c.l.b16 %v81
  %v291 = vunpack.c.h.b16 %v81
  %v292 = vpack.c.b16 %v166, %v164
  %v293 = vpack.c.b16 %v167, %v165
  %v294 = vpack.c.b16 %v170, %v168
  %v295 = vpack.c.b16 %v171, %v169
  %v296 = vpack.c.b16 %v174, %v172
  %v297 = vpack.c.b16 %v175, %v173
  %v298 = vpack.c.b16 %v178, %v176
  %v299 = vpack.c.b16 %v179, %v177
  %v300 = vpack.c.b16 %v182, %v180
  %v301 = vpack.c.b16 %v183, %v181
  %v302 = vpack.c.b16 %v186, %v184
  %v303 = vpack.c.b16 %v187, %v185
  %v304 = vpack.c.b16 %v190, %v188
  %v305 = vpack.c.b16 %v191, %v189
  %v306 = vpack.c.b16 %v194, %v192
  %v307 = vpack.c.b16 %v195, %v193
  %v308 = vpack.c.b16 %v198, %v196
  %v309 = vpack.c.b16 %v199, %v197
  %v310 = vpack.c.b16 %v202, %v200
  %v311 = vpack.c.b16 %v203, %v201
  %v312 = vpack.c.b16 %v206, %v204
  %v313 = vpack.c.b16 %v207, %v205
  %v314 = vpack.c.b16 %v210, %v208
  %v315 = vpack.c.b16 %v211, %v209
  %v316 = vpack.c.b16 %v214, %v212
  %v317 = vpack.c.b16 %v215, %v213
  %v318 = vpack.c.b16 %v218, %v216
  %v319 = vpack.c.b16 %v219, %v217
  %v320 = vpack.c.b16 %v222, %v220
  %v321 = vpack.c.b16 %v223, %v221
  %v322 = vpack.c.b16 %v226, %v224
  %v323 = vpack.c.b16 %v227, %v225
  %v324 = vpack.c.b16 %v230, %v228
  %v325 = vpack.c.b16 %v231, %v229
  %v326 = vpack.c.b16 %v234, %v232
  %v327 = vpack.c.b16 %v235, %v233
  %v328 = vpack.c.b16 %v238, %v236
  %v329 = vpack.c.b16 %v239, %v237
  %v330 = vpack.c.b16 %v242, %v240
  %v331 = vpack.c.b16 %v243, %v241
  %v332 = vpack.c.b16 %v246, %v244
  %v333 = vpack.c.b16 %v247, %v245
  %v334 = vpack.c.b16 %v250, %v248
  %v335 = vpack.c.b16 %v251, %v249
  %v336 = vpack.c.b16 %v254, %v252
  %v337 = vpack.c.b16 %v255, %v253
  %v338 = vpack.c.b16 %v258, %v256
  %v339 = vpack.c.b16 %v259, %v257
  %v340 = vpack.c.b16 %v262, %v260
  %v341 = vpack.c.b16 %v263, %v261
  %v342 = vpack.c.b16 %v266, %v264
  %v343 = vpack.c.b16 %v267, %v265
  %v344 = vpack.c.b16 %v270, %v268
  %v345 = vpack.c.b16 %v271, %v269
  %v346 = vpack.c.b16 %v274, %v272
  %v347 = vpack.c.b16 %v275, %v273
  %v348 = vpack.c.b16 %v278, %v276
  %v349 = vpack.c.b16 %v279, %v277
  %v350 = vpack.c.b16 %v282, %v280
  %v351 = vpack.c.b16 %v283, %v281
  %v352 = vpack.c.b16 %v286, %v284
  %v353 = vpack.c.b16 %v287, %v285
  %v354 = vpack.c.b16 %v290, %v288
  %v355 = vpack.c.b16 %v291, %v289
  %v406 = vunpack.c.l.b16 %v82
  %v407 = vunpack.c.l.b16 %v83
  %v408 = vunpack.c.l.b16 %v84
  %v409 = vunpack.c.l.b16 %v85
  %v410 = vunpack.c.l.b16 %v86
  %v411 = vunpack.c.l.b16 %v87
  %v412 = vunpack.c.l.b16 %v88
  %v413 = vunpack.c.l.b16 %v89
  %v414 = vunpack.c.l.b16 %v90
  %v415 = vunpack.c.l.b16 %v91
  %v416 = vunpack.c.l.b16 %v92
  %v417 = vunpack.c.l.b16 %v93
  %v418 = vunpack.c.l.b16 %v94
  %v419 = vunpack.c.l.b16 %v95
  %v420 = vunpack.c.l.b16 %v96
  %v421 = vunpack.c.l.b16 %v97
  %v422 = vunpack.c.l.b16 %v98
  %v423 = vunpack.c.l.b16 %v99
  %v424 = vpack.c.b16 %v407, %v406
  %v425 = vpack.c.b16 %v409, %v408
  %v426 = vpack.c.b16 %v411, %v410
  %v427 = vpack.c.b16 %v413, %v412
  %v428 = vpack.c.b16 %v415, %v414
  %v429 = vpack.c.b16 %v417, %v416
  %v430 = vpack.c.b16 %v419, %v418
  %v431 = vpack.c.b16 %v421, %v420
  %v432 = vpack.c.b16 %v423, %v422
  %vm442 = vcmask 130048
  %v444 = vsel %vm442, %v293, 0
  %v447 = vsel %vm442, %v295, 0
  %v450 = vsel %vm442, %v297, 0
  %v453 = vsel %vm442, %v299, 0
  %v456 = vsel %vm442, %v301, 0
  %v459 = vsel %vm442, %v303, 0
  %v462 = vsel %vm442, %v305, 0
  %v465 = vsel %vm442, %v307, 0
  %v468 = vsel %vm442, %v309, 0
  %v471 = vsel %vm442, %v311, 0
  %v474 = vsel %vm442, %v313, 0
  %v477 = vsel %vm442, %v315, 0
  %v480 = vsel %vm442, %v317, 0
  %v483 = vsel %vm442, %v319, 0
  %v486 = vsel %vm442, %v321, 0
  %v489 = vsel %vm442, %v323, 0
  %v492 = vsel %vm442, %v325, 0
  %v495 = vsel %vm442, %v327, 0
  %v498 = vsel %vm442, %v329, 0
  %v501 = vsel %vm442, %v331, 0
  %v504 = vsel %vm442, %v333, 0
  %v507 = vsel %vm442, %v335, 0
  %v510 = vsel %vm442, %v337, 0
  %v513 = vsel %vm442, %v339, 0
  %v516 = vsel %vm442, %v341, 0
  %v519 = vsel %vm442, %v343, 0
  %v522 = vsel %vm442, %v345, 0
  %v525 = vsel %vm442, %v347, 0
  %v528 = vsel %vm442, %v349, 0
  %v531 = vsel %vm442, %v351, 0
  %v534 = vsel %vm442, %v353, 0
  %v537 = vsel %vm442, %v355, 0
  %539 = vmatpush.bf16.msra.mxu0 %v431
  %540 = vmatpush.bf16.msra.mxu0 %v430
  %541 = vmatpush.bf16.msra.mxu0 %v429
  %542 = vmatpush.bf16.msra.mxu0 %v428
  %543 = vmatpush.bf16.msra.mxu0 %v427
  %544 = vmatpush.bf16.msra.mxu0 %v426
  %545 = vmatpush.bf16.msra.mxu0 %v425
  %546 = vmatpush.bf16.msra.mxu0 %v424
  %547 = vmatmul.bf16.gmra.mxu0 %v292
  %v548 = vpop.f32.mrf.mxu0
  %v549 = vadd.f32 0.0, %v548
  %v550 = vpop.f32.mrf.mxu0
  %v551 = vadd.f32 0.0, %v550
  %552 = vmatmul.bf16.gmra.mxu0 %v294
  %v553 = vpop.f32.mrf.mxu0
  %v554 = vadd.f32 0.0, %v553
  %v555 = vpop.f32.mrf.mxu0
  %v556 = vadd.f32 0.0, %v555
  %557 = vmatmul.bf16.gmra.mxu0 %v296
  %v558 = vpop.f32.mrf.mxu0
  %v559 = vadd.f32 0.0, %v558
  %v560 = vpop.f32.mrf.mxu0
  %v561 = vadd.f32 0.0, %v560
  %562 = vmatmul.bf16.gmra.mxu0 %v298
  %v563 = vpop.f32.mrf.mxu0
  %v564 = vadd.f32 0.0, %v563
  %v565 = vpop.f32.mrf.mxu0
  %v566 = vadd.f32 0.0, %v565
  %567 = vmatmul.bf16.gmra.mxu0 %v300
  %v568 = vpop.f32.mrf.mxu0
  %v569 = vadd.f32 0.0, %v568
  %v570 = vpop.f32.mrf.mxu0
  %v571 = vadd.f32 0.0, %v570
  %572 = vmatmul.bf16.gmra.mxu0 %v302
  %v573 = vpop.f32.mrf.mxu0
  %v574 = vadd.f32 0.0, %v573
  %v575 = vpop.f32.mrf.mxu0
  %v576 = vadd.f32 0.0, %v575
  %577 = vmatmul.bf16.gmra.mxu0 %v304
  %v578 = vpop.f32.mrf.mxu0
  %v579 = vadd.f32 0.0, %v578
  %v580 = vpop.f32.mrf.mxu0
  %v581 = vadd.f32 0.0, %v580
  %582 = vmatmul.bf16.gmra.mxu0 %v306
  %v583 = vpop.f32.mrf.mxu0
  %v584 = vadd.f32 0.0, %v583
  %v585 = vpop.f32.mrf.mxu0
  %v586 = vadd.f32 0.0, %v585
  %587 = vmatmul.bf16.gmra.mxu0 %v308
  %v588 = vpop.f32.mrf.mxu0
  %v589 = vadd.f32 0.0, %v588
  %v590 = vpop.f32.mrf.mxu0
  %v591 = vadd.f32 0.0, %v590
  %592 = vmatmul.bf16.gmra.mxu0 %v310
  %v593 = vpop.f32.mrf.mxu0
  %v594 = vadd.f32 0.0, %v593
  %v595 = vpop.f32.mrf.mxu0
  %v596 = vadd.f32 0.0, %v595
  %597 = vmatmul.bf16.gmra.mxu0 %v312
  %v598 = vpop.f32.mrf.mxu0
  %v599 = vadd.f32 0.0, %v598
  %v600 = vpop.f32.mrf.mxu0
  %v601 = vadd.f32 0.0, %v600
  %602 = vmatmul.bf16.gmra.mxu0 %v314
  %v603 = vpop.f32.mrf.mxu0
  %v604 = vadd.f32 0.0, %v603
  %v605 = vpop.f32.mrf.mxu0
  %v606 = vadd.f32 0.0, %v605
  %607 = vmatmul.bf16.gmra.mxu0 %v316
  %v608 = vpop.f32.mrf.mxu0
  %v609 = vadd.f32 0.0, %v608
  %v610 = vpop.f32.mrf.mxu0
  %v611 = vadd.f32 0.0, %v610
  %612 = vmatmul.bf16.gmra.mxu0 %v318
  %v613 = vpop.f32.mrf.mxu0
  %v614 = vadd.f32 0.0, %v613
  %v615 = vpop.f32.mrf.mxu0
  %v616 = vadd.f32 0.0, %v615
  %617 = vmatmul.bf16.gmra.mxu0 %v320
  %v618 = vpop.f32.mrf.mxu0
  %v619 = vadd.f32 0.0, %v618
  %v620 = vpop.f32.mrf.mxu0
  %v621 = vadd.f32 0.0, %v620
  %622 = vmatmul.bf16.gmra.mxu0 %v322
  %v623 = vpop.f32.mrf.mxu0
  %v624 = vadd.f32 0.0, %v623
  %v625 = vpop.f32.mrf.mxu0
  %v626 = vadd.f32 0.0, %v625
  %627 = vmatmul.bf16.gmra.mxu0 %v324
  %v628 = vpop.f32.mrf.mxu0
  %v629 = vadd.f32 0.0, %v628
  %v630 = vpop.f32.mrf.mxu0
  %v631 = vadd.f32 0.0, %v630
  %632 = vmatmul.bf16.gmra.mxu0 %v326
  %v633 = vpop.f32.mrf.mxu0
  %v634 = vadd.f32 0.0, %v633
  %v635 = vpop.f32.mrf.mxu0
  %v636 = vadd.f32 0.0, %v635
  %637 = vmatmul.bf16.gmra.mxu0 %v328
  %v638 = vpop.f32.mrf.mxu0
  %v639 = vadd.f32 0.0, %v638
  %v640 = vpop.f32.mrf.mxu0
  %v641 = vadd.f32 0.0, %v640
  %642 = vmatmul.bf16.gmra.mxu0 %v330
  %v643 = vpop.f32.mrf.mxu0
  %v644 = vadd.f32 0.0, %v643
  %v645 = vpop.f32.mrf.mxu0
  %v646 = vadd.f32 0.0, %v645
  %647 = vmatmul.bf16.gmra.mxu0 %v332
  %v648 = vpop.f32.mrf.mxu0
  %v649 = vadd.f32 0.0, %v648
  %v650 = vpop.f32.mrf.mxu0
  %v651 = vadd.f32 0.0, %v650
  %652 = vmatmul.bf16.gmra.mxu0 %v334
  %v653 = vpop.f32.mrf.mxu0
  %v654 = vadd.f32 0.0, %v653
  %v655 = vpop.f32.mrf.mxu0
  %v656 = vadd.f32 0.0, %v655
  %657 = vmatmul.bf16.gmra.mxu0 %v336
  %v658 = vpop.f32.mrf.mxu0
  %v659 = vadd.f32 0.0, %v658
  %v660 = vpop.f32.mrf.mxu0
  %v661 = vadd.f32 0.0, %v660
  %662 = vmatmul.bf16.gmra.mxu0 %v338
  %v663 = vpop.f32.mrf.mxu0
  %v664 = vadd.f32 0.0, %v663
  %v665 = vpop.f32.mrf.mxu0
  %v666 = vadd.f32 0.0, %v665
  %667 = vmatmul.bf16.gmra.mxu0 %v340
  %v668 = vpop.f32.mrf.mxu0
  %v669 = vadd.f32 0.0, %v668
  %v670 = vpop.f32.mrf.mxu0
  %v671 = vadd.f32 0.0, %v670
  %672 = vmatmul.bf16.gmra.mxu0 %v342
  %v673 = vpop.f32.mrf.mxu0
  %v674 = vadd.f32 0.0, %v673
  %v675 = vpop.f32.mrf.mxu0
  %v676 = vadd.f32 0.0, %v675
  %677 = vmatmul.bf16.gmra.mxu0 %v344
  %v678 = vpop.f32.mrf.mxu0
  %v679 = vadd.f32 0.0, %v678
  %v680 = vpop.f32.mrf.mxu0
  %v681 = vadd.f32 0.0, %v680
  %682 = vmatmul.bf16.gmra.mxu0 %v346
  %v683 = vpop.f32.mrf.mxu0
  %v684 = vadd.f32 0.0, %v683
  %v685 = vpop.f32.mrf.mxu0
  %v686 = vadd.f32 0.0, %v685
  %687 = vmatmul.bf16.gmra.mxu0 %v348
  %v688 = vpop.f32.mrf.mxu0
  %v689 = vadd.f32 0.0, %v688
  %v690 = vpop.f32.mrf.mxu0
  %v691 = vadd.f32 0.0, %v690
  %692 = vmatmul.bf16.gmra.mxu0 %v350
  %v693 = vpop.f32.mrf.mxu0
  %v694 = vadd.f32 0.0, %v693
  %v695 = vpop.f32.mrf.mxu0
  %v696 = vadd.f32 0.0, %v695
  %697 = vmatmul.bf16.gmra.mxu0 %v352
  %v698 = vpop.f32.mrf.mxu0
  %v699 = vadd.f32 0.0, %v698
  %v700 = vpop.f32.mrf.mxu0
  %v701 = vadd.f32 0.0, %v700
  %702 = vmatmul.bf16.gmra.mxu0 %v354
  %v703 = vpop.f32.mrf.mxu0
  %v704 = vadd.f32 0.0, %v703
  %v705 = vpop.f32.mrf.mxu0
  %v706 = vadd.f32 0.0, %v705
  %707 = vdwg.mxu0
  %708 = vmatpush.bf16.msra.mxu0 0
  %709 = vmatpush.bf16.msra.mxu0 0
  %710 = vmatpush.bf16.msra.mxu0 0
  %711 = vmatpush.bf16.msra.mxu0 0
  %712 = vmatpush.bf16.msra.mxu0 0
  %713 = vmatpush.bf16.msra.mxu0 0
  %714 = vmatpush.bf16.msra.mxu0 0
  %715 = vmatpush.bf16.msra.mxu0 %v432
  %716 = vmatmul.bf16.gmra.mxu0 %v444
  %v717 = vpop.f32.mrf.mxu0
  %v718 = vadd.f32 %v549, %v717
  %v719 = vpop.f32.mrf.mxu0
  %v720 = vadd.f32 %v551, %v719
  %721 = vmatmul.bf16.gmra.mxu0 %v447
  %v722 = vpop.f32.mrf.mxu0
  %v723 = vadd.f32 %v554, %v722
  %v724 = vpop.f32.mrf.mxu0
  %v725 = vadd.f32 %v556, %v724
  %726 = vmatmul.bf16.gmra.mxu0 %v450
  %v727 = vpop.f32.mrf.mxu0
  %v728 = vadd.f32 %v559, %v727
  %v729 = vpop.f32.mrf.mxu0
  %v730 = vadd.f32 %v561, %v729
  %731 = vmatmul.bf16.gmra.mxu0 %v453
  %v732 = vpop.f32.mrf.mxu0
  %v733 = vadd.f32 %v564, %v732
  %v734 = vpop.f32.mrf.mxu0
  %v735 = vadd.f32 %v566, %v734
  %736 = vmatmul.bf16.gmra.mxu0 %v456
  %v737 = vpop.f32.mrf.mxu0
  %v738 = vadd.f32 %v569, %v737
  %v739 = vpop.f32.mrf.mxu0
  %v740 = vadd.f32 %v571, %v739
  %741 = vmatmul.bf16.gmra.mxu0 %v459
  %v742 = vpop.f32.mrf.mxu0
  %v743 = vadd.f32 %v574, %v742
  %v744 = vpop.f32.mrf.mxu0
  %v745 = vadd.f32 %v576, %v744
  %746 = vmatmul.bf16.gmra.mxu0 %v462
  %v747 = vpop.f32.mrf.mxu0
  %v748 = vadd.f32 %v579, %v747
  %v749 = vpop.f32.mrf.mxu0
  %v750 = vadd.f32 %v581, %v749
  %751 = vmatmul.bf16.gmra.mxu0 %v465
  %v752 = vpop.f32.mrf.mxu0
  %v753 = vadd.f32 %v584, %v752
  %v754 = vpop.f32.mrf.mxu0
  %v755 = vadd.f32 %v586, %v754
  %756 = vmatmul.bf16.gmra.mxu0 %v468
  %v757 = vpop.f32.mrf.mxu0
  %v758 = vadd.f32 %v589, %v757
  %v759 = vpop.f32.mrf.mxu0
  %v760 = vadd.f32 %v591, %v759
  %761 = vmatmul.bf16.gmra.mxu0 %v471
  %v762 = vpop.f32.mrf.mxu0
  %v763 = vadd.f32 %v594, %v762
  %v764 = vpop.f32.mrf.mxu0
  %v765 = vadd.f32 %v596, %v764
  %766 = vmatmul.bf16.gmra.mxu0 %v474
  %v767 = vpop.f32.mrf.mxu0
  %v768 = vadd.f32 %v599, %v767
  %v769 = vpop.f32.mrf.mxu0
  %v770 = vadd.f32 %v601, %v769
  %771 = vmatmul.bf16.gmra.mxu0 %v477
  %v772 = vpop.f32.mrf.mxu0
  %v773 = vadd.f32 %v604, %v772
  %v774 = vpop.f32.mrf.mxu0
  %v775 = vadd.f32 %v606, %v774
  %776 = vmatmul.bf16.gmra.mxu0 %v480
  %v777 = vpop.f32.mrf.mxu0
  %v778 = vadd.f32 %v609, %v777
  %v779 = vpop.f32.mrf.mxu0
  %v780 = vadd.f32 %v611, %v779
  %781 = vmatmul.bf16.gmra.mxu0 %v483
  %v782 = vpop.f32.mrf.mxu0
  %v783 = vadd.f32 %v614, %v782
  %v784 = vpop.f32.mrf.mxu0
  %v785 = vadd.f32 %v616, %v784
  %786 = vmatmul.bf16.gmra.mxu0 %v486
  %v787 = vpop.f32.mrf.mxu0
  %v788 = vadd.f32 %v619, %v787
  %v789 = vpop.f32.mrf.mxu0
  %v790 = vadd.f32 %v621, %v789
  %791 = vmatmul.bf16.gmra.mxu0 %v489
  %v792 = vpop.f32.mrf.mxu0
  %v793 = vadd.f32 %v624, %v792
  %v794 = vpop.f32.mrf.mxu0
  %v795 = vadd.f32 %v626, %v794
  %796 = vmatmul.bf16.gmra.mxu0 %v492
  %v797 = vpop.f32.mrf.mxu0
  %v798 = vadd.f32 %v629, %v797
  %v799 = vpop.f32.mrf.mxu0
  %v800 = vadd.f32 %v631, %v799
  %801 = vmatmul.bf16.gmra.mxu0 %v495
  %v802 = vpop.f32.mrf.mxu0
  %v803 = vadd.f32 %v634, %v802
  %v804 = vpop.f32.mrf.mxu0
  %v805 = vadd.f32 %v636, %v804
  %806 = vmatmul.bf16.gmra.mxu0 %v498
  %v807 = vpop.f32.mrf.mxu0
  %v808 = vadd.f32 %v639, %v807
  %v809 = vpop.f32.mrf.mxu0
  %v810 = vadd.f32 %v641, %v809
  %811 = vmatmul.bf16.gmra.mxu0 %v501
  %v812 = vpop.f32.mrf.mxu0
  %v813 = vadd.f32 %v644, %v812
  %v814 = vpop.f32.mrf.mxu0
  %v815 = vadd.f32 %v646, %v814
  %816 = vmatmul.bf16.gmra.mxu0 %v504
  %v817 = vpop.f32.mrf.mxu0
  %v818 = vadd.f32 %v649, %v817
  %v819 = vpop.f32.mrf.mxu0
  %v820 = vadd.f32 %v651, %v819
  %821 = vmatmul.bf16.gmra.mxu0 %v507
  %v822 = vpop.f32.mrf.mxu0
  %v823 = vadd.f32 %v654, %v822
  %v824 = vpop.f32.mrf.mxu0
  %v825 = vadd.f32 %v656, %v824
  %826 = vmatmul.bf16.gmra.mxu0 %v510
  %v827 = vpop.f32.mrf.mxu0
  %v828 = vadd.f32 %v659, %v827
  %v829 = vpop.f32.mrf.mxu0
  %v830 = vadd.f32 %v661, %v829
  %831 = vmatmul.bf16.gmra.mxu0 %v513
  %v832 = vpop.f32.mrf.mxu0
  %v833 = vadd.f32 %v664, %v832
  %v834 = vpop.f32.mrf.mxu0
  %v835 = vadd.f32 %v666, %v834
  %836 = vmatmul.bf16.gmra.mxu0 %v516
  %v837 = vpop.f32.mrf.mxu0
  %v838 = vadd.f32 %v669, %v837
  %v839 = vpop.f32.mrf.mxu0
  %v840 = vadd.f32 %v671, %v839
  %841 = vmatmul.bf16.gmra.mxu0 %v519
  %v842 = vpop.f32.mrf.mxu0
  %v843 = vadd.f32 %v674, %v842
  %v844 = vpop.f32.mrf.mxu0
  %v845 = vadd.f32 %v676, %v844
  %846 = vmatmul.bf16.gmra.mxu0 %v522
  %v847 = vpop.f32.mrf.mxu0
  %v848 = vadd.f32 %v679, %v847
  %v849 = vpop.f32.mrf.mxu0
  %v850 = vadd.f32 %v681, %v849
  %851 = vmatmul.bf16.gmra.mxu0 %v525
  %v852 = vpop.f32.mrf.mxu0
  %v853 = vadd.f32 %v684, %v852
  %v854 = vpop.f32.mrf.mxu0
  %v855 = vadd.f32 %v686, %v854
  %856 = vmatmul.bf16.gmra.mxu0 %v528
  %v857 = vpop.f32.mrf.mxu0
  %v858 = vadd.f32 %v689, %v857
  %v859 = vpop.f32.mrf.mxu0
  %v860 = vadd.f32 %v691, %v859
  %861 = vmatmul.bf16.gmra.mxu0 %v531
  %v862 = vpop.f32.mrf.mxu0
  %v863 = vadd.f32 %v694, %v862
  %v864 = vpop.f32.mrf.mxu0
  %v865 = vadd.f32 %v696, %v864
  %866 = vmatmul.bf16.gmra.mxu0 %v534
  %v867 = vpop.f32.mrf.mxu0
  %v868 = vadd.f32 %v699, %v867
  %v869 = vpop.f32.mrf.mxu0
  %v870 = vadd.f32 %v701, %v869
  %871 = vmatmul.bf16.gmra.mxu0 %v537
  %v872 = vpop.f32.mrf.mxu0
  %v873 = vadd.f32 %v704, %v872
  %v874 = vpop.f32.mrf.mxu0
  %v875 = vadd.f32 %v706, %v874
  %876 = vdwg.mxu0
  %v877 = vld [vmem:[%s2] sm:$0x1]
  %v879 = vperm.slane %v877, 0
  %v881 = vmul.f32 %v718, %v879
  %v882 = vmul.f32 %v720, %v879
  %v883 = vmul.f32 %v723, %v879
  %v884 = vmul.f32 %v725, %v879
  %v885 = vmul.f32 %v728, %v879
  %v886 = vmul.f32 %v730, %v879
  %v887 = vmul.f32 %v733, %v879
  %v888 = vmul.f32 %v735, %v879
  %v889 = vmul.f32 %v738, %v879
  %v890 = vmul.f32 %v740, %v879
  %v891 = vmul.f32 %v743, %v879
  %v892 = vmul.f32 %v745, %v879
  %v893 = vmul.f32 %v748, %v879
  %v894 = vmul.f32 %v750, %v879
  %v895 = vmul.f32 %v753, %v879
  %v896 = vmul.f32 %v755, %v879
  %v897 = vmul.f32 %v758, %v879
  %v898 = vmul.f32 %v760, %v879
  %v899 = vmul.f32 %v763, %v879
  %v900 = vmul.f32 %v765, %v879
  %v901 = vmul.f32 %v768, %v879
  %v902 = vmul.f32 %v770, %v879
  %v903 = vmul.f32 %v773, %v879
  %v904 = vmul.f32 %v775, %v879
  %v905 = vmul.f32 %v778, %v879
  %v906 = vmul.f32 %v780, %v879
  %v907 = vmul.f32 %v783, %v879
  %v908 = vmul.f32 %v785, %v879
  %v909 = vmul.f32 %v788, %v879
  %v910 = vmul.f32 %v790, %v879
  %v911 = vmul.f32 %v793, %v879
  %v912 = vmul.f32 %v795, %v879
  %v913 = vmul.f32 %v798, %v879
  %v914 = vmul.f32 %v800, %v879
  %v915 = vmul.f32 %v803, %v879
  %v916 = vmul.f32 %v805, %v879
  %v917 = vmul.f32 %v808, %v879
  %v918 = vmul.f32 %v810, %v879
  %v919 = vmul.f32 %v813, %v879
  %v920 = vmul.f32 %v815, %v879
  %v921 = vmul.f32 %v818, %v879
  %v922 = vmul.f32 %v820, %v879
  %v923 = vmul.f32 %v823, %v879
  %v924 = vmul.f32 %v825, %v879
  %v925 = vmul.f32 %v828, %v879
  %v926 = vmul.f32 %v830, %v879
  %v927 = vmul.f32 %v833, %v879
  %v928 = vmul.f32 %v835, %v879
  %v929 = vmul.f32 %v838, %v879
  %v930 = vmul.f32 %v840, %v879
  %v931 = vmul.f32 %v843, %v879
  %v932 = vmul.f32 %v845, %v879
  %v933 = vmul.f32 %v848, %v879
  %v934 = vmul.f32 %v850, %v879
  %v935 = vmul.f32 %v853, %v879
  %v936 = vmul.f32 %v855, %v879
  %v937 = vmul.f32 %v858, %v879
  %v938 = vmul.f32 %v860, %v879
  %v939 = vmul.f32 %v863, %v879
  %v940 = vmul.f32 %v865, %v879
  %v941 = vmul.f32 %v868, %v879
  %v942 = vmul.f32 %v870, %v879
  %v943 = vmul.f32 %v873, %v879
  %v944 = vmul.f32 %v875, %v879
  %v945 = vld [vmem:[%s3] sm:$0x1]
  %v947 = vperm.slane %v945, 0
  %v949 = vadd.f32 %v881, %v947
  %v950 = vadd.f32 %v882, %v947
  %v951 = vadd.f32 %v883, %v947
  %v952 = vadd.f32 %v884, %v947
  %v953 = vadd.f32 %v885, %v947
  %v954 = vadd.f32 %v886, %v947
  %v955 = vadd.f32 %v887, %v947
  %v956 = vadd.f32 %v888, %v947
  %v957 = vadd.f32 %v889, %v947
  %v958 = vadd.f32 %v890, %v947
  %v959 = vadd.f32 %v891, %v947
  %v960 = vadd.f32 %v892, %v947
  %v961 = vadd.f32 %v893, %v947
  %v962 = vadd.f32 %v894, %v947
  %v963 = vadd.f32 %v895, %v947
  %v964 = vadd.f32 %v896, %v947
  %v965 = vadd.f32 %v897, %v947
  %v966 = vadd.f32 %v898, %v947
  %v967 = vadd.f32 %v899, %v947
  %v968 = vadd.f32 %v900, %v947
  %v969 = vadd.f32 %v901, %v947
  %v970 = vadd.f32 %v902, %v947
  %v971 = vadd.f32 %v903, %v947
  %v972 = vadd.f32 %v904, %v947
  %v973 = vadd.f32 %v905, %v947
  %v974 = vadd.f32 %v906, %v947
  %v975 = vadd.f32 %v907, %v947
  %v976 = vadd.f32 %v908, %v947
  %v977 = vadd.f32 %v909, %v947
  %v978 = vadd.f32 %v910, %v947
  %v979 = vadd.f32 %v911, %v947
  %v980 = vadd.f32 %v912, %v947
  %v981 = vadd.f32 %v913, %v947
  %v982 = vadd.f32 %v914, %v947
  %v983 = vadd.f32 %v915, %v947
  %v984 = vadd.f32 %v916, %v947
  %v985 = vadd.f32 %v917, %v947
  %v986 = vadd.f32 %v918, %v947
  %v987 = vadd.f32 %v919, %v947
  %v988 = vadd.f32 %v920, %v947
  %v989 = vadd.f32 %v921, %v947
  %v990 = vadd.f32 %v922, %v947
  %v991 = vadd.f32 %v923, %v947
  %v992 = vadd.f32 %v924, %v947
  %v993 = vadd.f32 %v925, %v947
  %v994 = vadd.f32 %v926, %v947
  %v995 = vadd.f32 %v927, %v947
  %v996 = vadd.f32 %v928, %v947
  %v997 = vadd.f32 %v929, %v947
  %v998 = vadd.f32 %v930, %v947
  %v999 = vadd.f32 %v931, %v947
  %v1000 = vadd.f32 %v932, %v947
  %v1001 = vadd.f32 %v933, %v947
  %v1002 = vadd.f32 %v934, %v947
  %v1003 = vadd.f32 %v935, %v947
  %v1004 = vadd.f32 %v936, %v947
  %v1005 = vadd.f32 %v937, %v947
  %v1006 = vadd.f32 %v938, %v947
  %v1007 = vadd.f32 %v939, %v947
  %v1008 = vadd.f32 %v940, %v947
  %v1009 = vadd.f32 %v941, %v947
  %v1010 = vadd.f32 %v942, %v947
  %v1011 = vadd.f32 %v943, %v947
  %v1012 = vadd.f32 %v944, %v947
  %vm1013 = vcmask 146432
  %1014 = vst.msk [vmem:[%s4] sm:$0xff] %vm1013, %v949
  %1015 = vst.msk [vmem:[%s4 + $0x8] sm:$0xff] %vm1013, %v950
  %1016 = vst.msk [vmem:[%s4 + $0x10] sm:$0xff] %vm1013, %v951
  %1017 = vst.msk [vmem:[%s4 + $0x18] sm:$0xff] %vm1013, %v952
  %1018 = vst.msk [vmem:[%s4 + $0x20] sm:$0xff] %vm1013, %v953
  %1019 = vst.msk [vmem:[%s4 + $0x28] sm:$0xff] %vm1013, %v954
  %1020 = vst.msk [vmem:[%s4 + $0x30] sm:$0xff] %vm1013, %v955
  %1021 = vst.msk [vmem:[%s4 + $0x38] sm:$0xff] %vm1013, %v956
  %1022 = vst.msk [vmem:[%s4 + $0x40] sm:$0xff] %vm1013, %v957
  %1023 = vst.msk [vmem:[%s4 + $0x48] sm:$0xff] %vm1013, %v958
  %1024 = vst.msk [vmem:[%s4 + $0x50] sm:$0xff] %vm1013, %v959
  %1025 = vst.msk [vmem:[%s4 + $0x58] sm:$0xff] %vm1013, %v960
  %1026 = vst.msk [vmem:[%s4 + $0x60] sm:$0xff] %vm1013, %v961
  %1027 = vst.msk [vmem:[%s4 + $0x68] sm:$0xff] %vm1013, %v962
  %1028 = vst.msk [vmem:[%s4 + $0x70] sm:$0xff] %vm1013, %v963
  %1029 = vst.msk [vmem:[%s4 + $0x78] sm:$0xff] %vm1013, %v964
  %1030 = vst.msk [vmem:[%s4 + $0x80] sm:$0xff] %vm1013, %v965
  %1031 = vst.msk [vmem:[%s4 + $0x88] sm:$0xff] %vm1013, %v966
  %1032 = vst.msk [vmem:[%s4 + $0x90] sm:$0xff] %vm1013, %v967
  %1033 = vst.msk [vmem:[%s4 + $0x98] sm:$0xff] %vm1013, %v968
  %1034 = vst.msk [vmem:[%s4 + $0xa0] sm:$0xff] %vm1013, %v969
  %1035 = vst.msk [vmem:[%s4 + $0xa8] sm:$0xff] %vm1013, %v970
  %1036 = vst.msk [vmem:[%s4 + $0xb0] sm:$0xff] %vm1013, %v971
  %1037 = vst.msk [vmem:[%s4 + $0xb8] sm:$0xff] %vm1013, %v972
  %1038 = vst.msk [vmem:[%s4 + $0xc0] sm:$0xff] %vm1013, %v973
  %1039 = vst.msk [vmem:[%s4 + $0xc8] sm:$0xff] %vm1013, %v974
  %1040 = vst.msk [vmem:[%s4 + $0xd0] sm:$0xff] %vm1013, %v975
  %1041 = vst.msk [vmem:[%s4 + $0xd8] sm:$0xff] %vm1013, %v976
  %1042 = vst.msk [vmem:[%s4 + $0xe0] sm:$0xff] %vm1013, %v977
  %1043 = vst.msk [vmem:[%s4 + $0xe8] sm:$0xff] %vm1013, %v978
  %1044 = vst.msk [vmem:[%s4 + $0xf0] sm:$0xff] %vm1013, %v979
  %1045 = vst.msk [vmem:[%s4 + $0xf8] sm:$0xff] %vm1013, %v980
  %1046 = vst.msk [vmem:[%s4 + $0x100] sm:$0xff] %vm1013, %v981
  %1047 = vst.msk [vmem:[%s4 + $0x108] sm:$0xff] %vm1013, %v982
  %1048 = vst.msk [vmem:[%s4 + $0x110] sm:$0xff] %vm1013, %v983
  %1049 = vst.msk [vmem:[%s4 + $0x118] sm:$0xff] %vm1013, %v984
  %1050 = vst.msk [vmem:[%s4 + $0x120] sm:$0xff] %vm1013, %v985
  %1051 = vst.msk [vmem:[%s4 + $0x128] sm:$0xff] %vm1013, %v986
  %1052 = vst.msk [vmem:[%s4 + $0x130] sm:$0xff] %vm1013, %v987
  %1053 = vst.msk [vmem:[%s4 + $0x138] sm:$0xff] %vm1013, %v988
  %1054 = vst.msk [vmem:[%s4 + $0x140] sm:$0xff] %vm1013, %v989
  %1055 = vst.msk [vmem:[%s4 + $0x148] sm:$0xff] %vm1013, %v990
  %1056 = vst.msk [vmem:[%s4 + $0x150] sm:$0xff] %vm1013, %v991
  %1057 = vst.msk [vmem:[%s4 + $0x158] sm:$0xff] %vm1013, %v992
  %1058 = vst.msk [vmem:[%s4 + $0x160] sm:$0xff] %vm1013, %v993
  %1059 = vst.msk [vmem:[%s4 + $0x168] sm:$0xff] %vm1013, %v994
  %1060 = vst.msk [vmem:[%s4 + $0x170] sm:$0xff] %vm1013, %v995
  %1061 = vst.msk [vmem:[%s4 + $0x178] sm:$0xff] %vm1013, %v996
  %1062 = vst.msk [vmem:[%s4 + $0x180] sm:$0xff] %vm1013, %v997
  %1063 = vst.msk [vmem:[%s4 + $0x188] sm:$0xff] %vm1013, %v998
  %1064 = vst.msk [vmem:[%s4 + $0x190] sm:$0xff] %vm1013, %v999
  %1065 = vst.msk [vmem:[%s4 + $0x198] sm:$0xff] %vm1013, %v1000
  %1066 = vst.msk [vmem:[%s4 + $0x1a0] sm:$0xff] %vm1013, %v1001
  %1067 = vst.msk [vmem:[%s4 + $0x1a8] sm:$0xff] %vm1013, %v1002
  %1068 = vst.msk [vmem:[%s4 + $0x1b0] sm:$0xff] %vm1013, %v1003
  %1069 = vst.msk [vmem:[%s4 + $0x1b8] sm:$0xff] %vm1013, %v1004
  %1070 = vst.msk [vmem:[%s4 + $0x1c0] sm:$0xff] %vm1013, %v1005
  %1071 = vst.msk [vmem:[%s4 + $0x1c8] sm:$0xff] %vm1013, %v1006
  %1072 = vst.msk [vmem:[%s4 + $0x1d0] sm:$0xff] %vm1013, %v1007
  %1073 = vst.msk [vmem:[%s4 + $0x1d8] sm:$0xff] %vm1013, %v1008
  %1074 = vst.msk [vmem:[%s4 + $0x1e0] sm:$0xff] %vm1013, %v1009
  %1075 = vst.msk [vmem:[%s4 + $0x1e8] sm:$0xff] %vm1013, %v1010
  %1076 = vst.msk [vmem:[%s4 + $0x1f0] sm:$0xff] %vm1013, %v1011
  %1077 = vst.msk [vmem:[%s4 + $0x1f8] sm:$0xff] %vm1013, %v1012
  // Predicated region
  $region18: #{_lambda_.16} parent=0 // pred_check
    _
  $region19: #{_lambda_.16} parent=0 // pred_check_branch
    %1079 = sbr.rel (0) target = $region21
  $region20: #{_lambda_.16} parent=0 // pred_region
    _
  $region21: #{_lambda_.16} parent=0 // pred_fallthru
    _
  // Predicated region
  $region22: #{_lambda_.16} parent=0 // pred_check
    _
  $region23: #{_lambda_.16} parent=0 // pred_check_branch
    %1081 = sbr.rel (0) target = $region25
  $region24: #{_lambda_.16} parent=0 // pred_region
    _
  $region25: #{_lambda_.16} parent=0 // pred_fallthru
    _

// kernel: _lambda_.17
$region0: #{_lambda_.17}
  #allocation0 [shape = 'u32[]', space=smem, size = 0x4, offset = 0x4, fixed_abs, tag = 'smem constant byte address 0x4 - core index']
  #allocation1 [shape = 'u32[72,128]{1,0:T(1,128)}', space=vmem, size = 0x9000, scoped, tag = 'internal scratch']
  %s0 = inlined_call_operand.vmem [shape: bf16[512,144], index: 0, kind: input, shape index: {}]
  %s1 = inlined_call_operand.vmem [shape: bf16[144,16], index: 1, kind: input, shape index: {}]
  %s2 = inlined_call_operand.vmem [shape: f32[1,16], index: 2, kind: input, shape index: {}]
  %s3 = inlined_call_operand.vmem [shape: f32[1,16], index: 3, kind: input, shape index: {}]
  %s4 = inlined_call_operand.vmem [shape: f32[512,16], index: 4, kind: input, shape index: {}]
  %s5 = inlined_call_operand.vmem [shape: f32[512,16], index: 5, kind: output, shape index: {}]
  %s6 = sld [smem:[#allocation0]]
  $region30: #{_lambda_.17} parent=0
    _
  %s8 = ssub.s32 1, %s6
  %s9 = scalar_select 0, %s8, %s6
  // Predicated region
  $region2: #{_lambda_.17} parent=0 // pred_check
    _
  $region3: #{_lambda_.17} parent=0 // pred_check_branch
    %11 = sbr.rel (0) target = $region5
  $region4: #{_lambda_.17} parent=0 // pred_region
    _
  $region5: #{_lambda_.17} parent=0 // pred_fallthru
    _
  // Predicated region
  $region6: #{_lambda_.17} parent=0 // pred_check
    _
  $region7: #{_lambda_.17} parent=0 // pred_check_branch
    %13 = sbr.rel (0) target = $region9
  $region8: #{_lambda_.17} parent=0 // pred_region
    _
  $region9: #{_lambda_.17} parent=0 // pred_fallthru
    _
  // Predicated region
  $region10: #{_lambda_.17} parent=0 // pred_check
    _
  $region11: #{_lambda_.17} parent=0 // pred_check_branch
    %15 = sbr.rel (0) target = $region13
  $region12: #{_lambda_.17} parent=0 // pred_region
    _
  $region13: #{_lambda_.17} parent=0 // pred_fallthru
    _
  // Predicated region
  $region14: #{_lambda_.17} parent=0 // pred_check
    _
  $region15: #{_lambda_.17} parent=0 // pred_check_branch
    %17 = sbr.rel (0) target = $region17
  $region16: #{_lambda_.17} parent=0 // pred_region
    _
  $region17: #{_lambda_.17} parent=0 // pred_fallthru
    _
  // Predicated region
  $region18: #{_lambda_.17} parent=0 // pred_check
    _
  $region19: #{_lambda_.17} parent=0 // pred_check_branch
    %19 = sbr.rel (0) target = $region21
  $region20: #{_lambda_.17} parent=0 // pred_region
    _
  $region21: #{_lambda_.17} parent=0 // pred_fallthru
    _
  %v21 = vld [vmem:[%s0] sm:$0xff]
  %v22 = vld [vmem:[%s0 + $0x8] sm:$0xff]
  %v23 = vld [vmem:[%s0 + $0x10] sm:$0xff]
  %v24 = vld [vmem:[%s0 + $0x18] sm:$0xff]
  %v25 = vld [vmem:[%s0 + $0x20] sm:$0xff]
  %v26 = vld [vmem:[%s0 + $0x28] sm:$0xff]
  %v27 = vld [vmem:[%s0 + $0x30] sm:$0xff]
  %v28 = vld [vmem:[%s0 + $0x38] sm:$0xff]
  %v29 = vld [vmem:[%s0 + $0x40] sm:$0xff]
  %v30 = vld [vmem:[%s0 + $0x48] sm:$0xff]
  %v31 = vld [vmem:[%s0 + $0x50] sm:$0xff]
  %v32 = vld [vmem:[%s0 + $0x58] sm:$0xff]
  %v33 = vld [vmem:[%s0 + $0x60] sm:$0xff]
  %v34 = vld [vmem:[%s0 + $0x68] sm:$0xff]
  %v35 = vld [vmem:[%s0 + $0x70] sm:$0xff]
  %v36 = vld [vmem:[%s0 + $0x78] sm:$0xff]
  %v37 = vld [vmem:[%s0 + $0x80] sm:$0xff]
  %v38 = vld [vmem:[%s0 + $0x88] sm:$0xff]
  %v39 = vld [vmem:[%s0 + $0x90] sm:$0xff]
  %v40 = vld [vmem:[%s0 + $0x98] sm:$0xff]
  %v41 = vld [vmem:[%s0 + $0xa0] sm:$0xff]
  %v42 = vld [vmem:[%s0 + $0xa8] sm:$0xff]
  %v43 = vld [vmem:[%s0 + $0xb0] sm:$0xff]
  %v44 = vld [vmem:[%s0 + $0xb8] sm:$0xff]
  %v45 = vld [vmem:[%s0 + $0xc0] sm:$0xff]
  %v46 = vld [vmem:[%s0 + $0xc8] sm:$0xff]
  %v47 = vld [vmem:[%s0 + $0xd0] sm:$0xff]
  %v48 = vld [vmem:[%s0 + $0xd8] sm:$0xff]
  %v49 = vld [vmem:[%s0 + $0xe0] sm:$0xff]
  %v50 = vld [vmem:[%s0 + $0xe8] sm:$0xff]
  %v51 = vld [vmem:[%s0 + $0xf0] sm:$0xff]
  %v52 = vld [vmem:[%s0 + $0xf8] sm:$0xff]
  %v53 = vld [vmem:[%s0 + $0x100] sm:$0xff]
  %v54 = vld [vmem:[%s0 + $0x108] sm:$0xff]
  %v55 = vld [vmem:[%s0 + $0x110] sm:$0xff]
  %v56 = vld [vmem:[%s0 + $0x118] sm:$0xff]
  %v57 = vld [vmem:[%s0 + $0x120] sm:$0xff]
  %v58 = vld [vmem:[%s0 + $0x128] sm:$0xff]
  %v59 = vld [vmem:[%s0 + $0x130] sm:$0xff]
  %v60 = vld [vmem:[%s0 + $0x138] sm:$0xff]
  %v61 = vld [vmem:[%s0 + $0x140] sm:$0xff]
  %v62 = vld [vmem:[%s0 + $0x148] sm:$0xff]
  %v63 = vld [vmem:[%s0 + $0x150] sm:$0xff]
  %v64 = vld [vmem:[%s0 + $0x158] sm:$0xff]
  %v65 = vld [vmem:[%s0 + $0x160] sm:$0xff]
  %v66 = vld [vmem:[%s0 + $0x168] sm:$0xff]
  %v67 = vld [vmem:[%s0 + $0x170] sm:$0xff]
  %v68 = vld [vmem:[%s0 + $0x178] sm:$0xff]
  %v69 = vld [vmem:[%s0 + $0x180] sm:$0xff]
  %v70 = vld [vmem:[%s0 + $0x188] sm:$0xff]
  %v71 = vld [vmem:[%s0 + $0x190] sm:$0xff]
  %v72 = vld [vmem:[%s0 + $0x198] sm:$0xff]
  %v73 = vld [vmem:[%s0 + $0x1a0] sm:$0xff]
  %v74 = vld [vmem:[%s0 + $0x1a8] sm:$0xff]
  %v75 = vld [vmem:[%s0 + $0x1b0] sm:$0xff]
  %v76 = vld [vmem:[%s0 + $0x1b8] sm:$0xff]
  %v77 = vld [vmem:[%s0 + $0x1c0] sm:$0xff]
  %v78 = vld [vmem:[%s0 + $0x1c8] sm:$0xff]
  %v79 = vld [vmem:[%s0 + $0x1d0] sm:$0xff]
  %v80 = vld [vmem:[%s0 + $0x1d8] sm:$0xff]
  %v81 = vld [vmem:[%s0 + $0x1e0] sm:$0xff]
  %v82 = vld [vmem:[%s0 + $0x1e8] sm:$0xff]
  %v83 = vld [vmem:[%s0 + $0x1f0] sm:$0xff]
  %v84 = vld [vmem:[%s0 + $0x1f8] sm:$0xff]
  %v85 = vld [vmem:[%s1] sm:$0xf]
  %v86 = vld [vmem:[%s1 + $0x4] sm:$0xf]
  %v87 = vld [vmem:[%s1 + $0x8] sm:$0xf]
  %v88 = vld [vmem:[%s1 + $0xc] sm:$0xf]
  %v89 = vld [vmem:[%s1 + $0x10] sm:$0xf]
  %v90 = vld [vmem:[%s1 + $0x14] sm:$0xf]
  %v91 = vld [vmem:[%s1 + $0x18] sm:$0xf]
  %v92 = vld [vmem:[%s1 + $0x1c] sm:$0xf]
  %v93 = vld [vmem:[%s1 + $0x20] sm:$0xf]
  %v94 = vld [vmem:[%s1 + $0x24] sm:$0xf]
  %v95 = vld [vmem:[%s1 + $0x28] sm:$0xf]
  %v96 = vld [vmem:[%s1 + $0x2c] sm:$0xf]
  %v97 = vld [vmem:[%s1 + $0x30] sm:$0xf]
  %v98 = vld [vmem:[%s1 + $0x34] sm:$0xf]
  %v99 = vld [vmem:[%s1 + $0x38] sm:$0xf]
  %v100 = vld [vmem:[%s1 + $0x3c] sm:$0xf]
  %v101 = vld [vmem:[%s1 + $0x40] sm:$0xf]
  %v102 = vld [vmem:[%s1 + $0x44] sm:$0xf]
  %v167 = vunpack.c.l.b16 %v21
  %v168 = vunpack.c.h.b16 %v21
  %v169 = vunpack.c.l.b16 %v22
  %v170 = vunpack.c.h.b16 %v22
  %v171 = vunpack.c.l.b16 %v23
  %v172 = vunpack.c.h.b16 %v23
  %v173 = vunpack.c.l.b16 %v24
  %v174 = vunpack.c.h.b16 %v24
  %v175 = vunpack.c.l.b16 %v25
  %v176 = vunpack.c.h.b16 %v25
  %v177 = vunpack.c.l.b16 %v26
  %v178 = vunpack.c.h.b16 %v26
  %v179 = vunpack.c.l.b16 %v27
  %v180 = vunpack.c.h.b16 %v27
  %v181 = vunpack.c.l.b16 %v28
  %v182 = vunpack.c.h.b16 %v28
  %v183 = vunpack.c.l.b16 %v29
  %v184 = vunpack.c.h.b16 %v29
  %v185 = vunpack.c.l.b16 %v30
  %v186 = vunpack.c.h.b16 %v30
  %v187 = vunpack.c.l.b16 %v31
  %v188 = vunpack.c.h.b16 %v31
  %v189 = vunpack.c.l.b16 %v32
  %v190 = vunpack.c.h.b16 %v32
  %v191 = vunpack.c.l.b16 %v33
  %v192 = vunpack.c.h.b16 %v33
  %v193 = vunpack.c.l.b16 %v34
  %v194 = vunpack.c.h.b16 %v34
  %v195 = vunpack.c.l.b16 %v35
  %v196 = vunpack.c.h.b16 %v35
  %v197 = vunpack.c.l.b16 %v36
  %v198 = vunpack.c.h.b16 %v36
  %v199 = vunpack.c.l.b16 %v37
  %v200 = vunpack.c.h.b16 %v37
  %v201 = vunpack.c.l.b16 %v38
  %v202 = vunpack.c.h.b16 %v38
  %v203 = vunpack.c.l.b16 %v39
  %v204 = vunpack.c.h.b16 %v39
  %v205 = vunpack.c.l.b16 %v40
  %v206 = vunpack.c.h.b16 %v40
  %v207 = vunpack.c.l.b16 %v41
  %v208 = vunpack.c.h.b16 %v41
  %v209 = vunpack.c.l.b16 %v42
  %v210 = vunpack.c.h.b16 %v42
  %v211 = vunpack.c.l.b16 %v43
  %v212 = vunpack.c.h.b16 %v43
  %v213 = vunpack.c.l.b16 %v44
  %v214 = vunpack.c.h.b16 %v44
  %v215 = vunpack.c.l.b16 %v45
  %v216 = vunpack.c.h.b16 %v45
  %v217 = vunpack.c.l.b16 %v46
  %v218 = vunpack.c.h.b16 %v46
  %v219 = vunpack.c.l.b16 %v47
  %v220 = vunpack.c.h.b16 %v47
  %v221 = vunpack.c.l.b16 %v48
  %v222 = vunpack.c.h.b16 %v48
  %v223 = vunpack.c.l.b16 %v49
  %v224 = vunpack.c.h.b16 %v49
  %v225 = vunpack.c.l.b16 %v50
  %v226 = vunpack.c.h.b16 %v50
  %v227 = vunpack.c.l.b16 %v51
  %v228 = vunpack.c.h.b16 %v51
  %v229 = vunpack.c.l.b16 %v52
  %v230 = vunpack.c.h.b16 %v52
  %v231 = vunpack.c.l.b16 %v53
  %v232 = vunpack.c.h.b16 %v53
  %v233 = vunpack.c.l.b16 %v54
  %v234 = vunpack.c.h.b16 %v54
  %v235 = vunpack.c.l.b16 %v55
  %v236 = vunpack.c.h.b16 %v55
  %v237 = vunpack.c.l.b16 %v56
  %v238 = vunpack.c.h.b16 %v56
  %v239 = vunpack.c.l.b16 %v57
  %v240 = vunpack.c.h.b16 %v57
  %v241 = vunpack.c.l.b16 %v58
  %v242 = vunpack.c.h.b16 %v58
  %v243 = vunpack.c.l.b16 %v59
  %v244 = vunpack.c.h.b16 %v59
  %v245 = vunpack.c.l.b16 %v60
  %v246 = vunpack.c.h.b16 %v60
  %v247 = vunpack.c.l.b16 %v61
  %v248 = vunpack.c.h.b16 %v61
  %v249 = vunpack.c.l.b16 %v62
  %v250 = vunpack.c.h.b16 %v62
  %v251 = vunpack.c.l.b16 %v63
  %v252 = vunpack.c.h.b16 %v63
  %v253 = vunpack.c.l.b16 %v64
  %v254 = vunpack.c.h.b16 %v64
  %v255 = vunpack.c.l.b16 %v65
  %v256 = vunpack.c.h.b16 %v65
  %v257 = vunpack.c.l.b16 %v66
  %v258 = vunpack.c.h.b16 %v66
  %v259 = vunpack.c.l.b16 %v67
  %v260 = vunpack.c.h.b16 %v67
  %v261 = vunpack.c.l.b16 %v68
  %v262 = vunpack.c.h.b16 %v68
  %v263 = vunpack.c.l.b16 %v69
  %v264 = vunpack.c.h.b16 %v69
  %v265 = vunpack.c.l.b16 %v70
  %v266 = vunpack.c.h.b16 %v70
  %v267 = vunpack.c.l.b16 %v71
  %v268 = vunpack.c.h.b16 %v71
  %v269 = vunpack.c.l.b16 %v72
  %v270 = vunpack.c.h.b16 %v72
  %v271 = vunpack.c.l.b16 %v73
  %v272 = vunpack.c.h.b16 %v73
  %v273 = vunpack.c.l.b16 %v74
  %v274 = vunpack.c.h.b16 %v74
  %v275 = vunpack.c.l.b16 %v75
  %v276 = vunpack.c.h.b16 %v75
  %v277 = vunpack.c.l.b16 %v76
  %v278 = vunpack.c.h.b16 %v76
  %v279 = vunpack.c.l.b16 %v77
  %v280 = vunpack.c.h.b16 %v77
  %v281 = vunpack.c.l.b16 %v78
  %v282 = vunpack.c.h.b16 %v78
  %v283 = vunpack.c.l.b16 %v79
  %v284 = vunpack.c.h.b16 %v79
  %v285 = vunpack.c.l.b16 %v80
  %v286 = vunpack.c.h.b16 %v80
  %v287 = vunpack.c.l.b16 %v81
  %v288 = vunpack.c.h.b16 %v81
  %v289 = vunpack.c.l.b16 %v82
  %v290 = vunpack.c.h.b16 %v82
  %v291 = vunpack.c.l.b16 %v83
  %v292 = vunpack.c.h.b16 %v83
  %v293 = vunpack.c.l.b16 %v84
  %v294 = vunpack.c.h.b16 %v84
  %v295 = vpack.c.b16 %v169, %v167
  %v296 = vpack.c.b16 %v170, %v168
  %v297 = vpack.c.b16 %v173, %v171
  %v298 = vpack.c.b16 %v174, %v172
  %v299 = vpack.c.b16 %v177, %v175
  %v300 = vpack.c.b16 %v178, %v176
  %v301 = vpack.c.b16 %v181, %v179
  %v302 = vpack.c.b16 %v182, %v180
  %v303 = vpack.c.b16 %v185, %v183
  %v304 = vpack.c.b16 %v186, %v184
  %v305 = vpack.c.b16 %v189, %v187
  %v306 = vpack.c.b16 %v190, %v188
  %v307 = vpack.c.b16 %v193, %v191
  %v308 = vpack.c.b16 %v194, %v192
  %v309 = vpack.c.b16 %v197, %v195
  %v310 = vpack.c.b16 %v198, %v196
  %v311 = vpack.c.b16 %v201, %v199
  %v312 = vpack.c.b16 %v202, %v200
  %v313 = vpack.c.b16 %v205, %v203
  %v314 = vpack.c.b16 %v206, %v204
  %v315 = vpack.c.b16 %v209, %v207
  %v316 = vpack.c.b16 %v210, %v208
  %v317 = vpack.c.b16 %v213, %v211
  %v318 = vpack.c.b16 %v214, %v212
  %v319 = vpack.c.b16 %v217, %v215
  %v320 = vpack.c.b16 %v218, %v216
  %v321 = vpack.c.b16 %v221, %v219
  %v322 = vpack.c.b16 %v222, %v220
  %v323 = vpack.c.b16 %v225, %v223
  %v324 = vpack.c.b16 %v226, %v224
  %v325 = vpack.c.b16 %v229, %v227
  %v326 = vpack.c.b16 %v230, %v228
  %v327 = vpack.c.b16 %v233, %v231
  %v328 = vpack.c.b16 %v234, %v232
  %v329 = vpack.c.b16 %v237, %v235
  %v330 = vpack.c.b16 %v238, %v236
  %v331 = vpack.c.b16 %v241, %v239
  %v332 = vpack.c.b16 %v242, %v240
  %v333 = vpack.c.b16 %v245, %v243
  %v334 = vpack.c.b16 %v246, %v244
  %v335 = vpack.c.b16 %v249, %v247
  %v336 = vpack.c.b16 %v250, %v248
  %v337 = vpack.c.b16 %v253, %v251
  %v338 = vpack.c.b16 %v254, %v252
  %v339 = vpack.c.b16 %v257, %v255
  %v340 = vpack.c.b16 %v258, %v256
  %v341 = vpack.c.b16 %v261, %v259
  %v342 = vpack.c.b16 %v262, %v260
  %v343 = vpack.c.b16 %v265, %v263
  %v344 = vpack.c.b16 %v266, %v264
  %v345 = vpack.c.b16 %v269, %v267
  %v346 = vpack.c.b16 %v270, %v268
  %v347 = vpack.c.b16 %v273, %v271
  %v348 = vpack.c.b16 %v274, %v272
  %v349 = vpack.c.b16 %v277, %v275
  %v350 = vpack.c.b16 %v278, %v276
  %v351 = vpack.c.b16 %v281, %v279
  %v352 = vpack.c.b16 %v282, %v280
  %v353 = vpack.c.b16 %v285, %v283
  %v354 = vpack.c.b16 %v286, %v284
  %v355 = vpack.c.b16 %v289, %v287
  %v356 = vpack.c.b16 %v290, %v288
  %v357 = vpack.c.b16 %v293, %v291
  %v358 = vpack.c.b16 %v294, %v292
  %v409 = vunpack.c.l.b16 %v85
  %v410 = vunpack.c.l.b16 %v86
  %v411 = vunpack.c.l.b16 %v87
  %v412 = vunpack.c.l.b16 %v88
  %v413 = vunpack.c.l.b16 %v89
  %v414 = vunpack.c.l.b16 %v90
  %v415 = vunpack.c.l.b16 %v91
  %v416 = vunpack.c.l.b16 %v92
  %v417 = vunpack.c.l.b16 %v93
  %v418 = vunpack.c.l.b16 %v94
  %v419 = vunpack.c.l.b16 %v95
  %v420 = vunpack.c.l.b16 %v96
  %v421 = vunpack.c.l.b16 %v97
  %v422 = vunpack.c.l.b16 %v98
  %v423 = vunpack.c.l.b16 %v99
  %v424 = vunpack.c.l.b16 %v100
  %v425 = vunpack.c.l.b16 %v101
  %v426 = vunpack.c.l.b16 %v102
  %v427 = vpack.c.b16 %v410, %v409
  %v428 = vpack.c.b16 %v412, %v411
  %v429 = vpack.c.b16 %v414, %v413
  %v430 = vpack.c.b16 %v416, %v415
  %v431 = vpack.c.b16 %v418, %v417
  %v432 = vpack.c.b16 %v420, %v419
  %v433 = vpack.c.b16 %v422, %v421
  %v434 = vpack.c.b16 %v424, %v423
  %v435 = vpack.c.b16 %v426, %v425
  %vm445 = vcmask 130048
  %v447 = vsel %vm445, %v296, 0
  %v450 = vsel %vm445, %v298, 0
  %v453 = vsel %vm445, %v300, 0
  %v456 = vsel %vm445, %v302, 0
  %v459 = vsel %vm445, %v304, 0
  %v462 = vsel %vm445, %v306, 0
  %v465 = vsel %vm445, %v308, 0
  %v468 = vsel %vm445, %v310, 0
  %v471 = vsel %vm445, %v312, 0
  %v474 = vsel %vm445, %v314, 0
  %v477 = vsel %vm445, %v316, 0
  %v480 = vsel %vm445, %v318, 0
  %v483 = vsel %vm445, %v320, 0
  %v486 = vsel %vm445, %v322, 0
  %v489 = vsel %vm445, %v324, 0
  %v492 = vsel %vm445, %v326, 0
  %v495 = vsel %vm445, %v328, 0
  %v498 = vsel %vm445, %v330, 0
  %v501 = vsel %vm445, %v332, 0
  %v504 = vsel %vm445, %v334, 0
  %v507 = vsel %vm445, %v336, 0
  %v510 = vsel %vm445, %v338, 0
  %v513 = vsel %vm445, %v340, 0
  %v516 = vsel %vm445, %v342, 0
  %v519 = vsel %vm445, %v344, 0
  %v522 = vsel %vm445, %v346, 0
  %v525 = vsel %vm445, %v348, 0
  %v528 = vsel %vm445, %v350, 0
  %v531 = vsel %vm445, %v352, 0
  %v534 = vsel %vm445, %v354, 0
  %v537 = vsel %vm445, %v356, 0
  %v540 = vsel %vm445, %v358, 0
  %542 = vmatpush.bf16.msra.mxu0 %v434
  %543 = vmatpush.bf16.msra.mxu0 %v433
  %544 = vmatpush.bf16.msra.mxu0 %v432
  %545 = vmatpush.bf16.msra.mxu0 %v431
  %546 = vmatpush.bf16.msra.mxu0 %v430
  %547 = vmatpush.bf16.msra.mxu0 %v429
  %548 = vmatpush.bf16.msra.mxu0 %v428
  %549 = vmatpush.bf16.msra.mxu0 %v427
  %550 = vmatmul.bf16.gmra.mxu0 %v295
  %v551 = vpop.f32.mrf.mxu0
  %v552 = vadd.f32 0.0, %v551
  %v553 = vpop.f32.mrf.mxu0
  %v554 = vadd.f32 0.0, %v553
  %555 = vmatmul.bf16.gmra.mxu0 %v297
  %v556 = vpop.f32.mrf.mxu0
  %v557 = vadd.f32 0.0, %v556
  %v558 = vpop.f32.mrf.mxu0
  %v559 = vadd.f32 0.0, %v558
  %560 = vmatmul.bf16.gmra.mxu0 %v299
  %v561 = vpop.f32.mrf.mxu0
  %v562 = vadd.f32 0.0, %v561
  %v563 = vpop.f32.mrf.mxu0
  %v564 = vadd.f32 0.0, %v563
  %565 = vmatmul.bf16.gmra.mxu0 %v301
  %v566 = vpop.f32.mrf.mxu0
  %v567 = vadd.f32 0.0, %v566
  %v568 = vpop.f32.mrf.mxu0
  %v569 = vadd.f32 0.0, %v568
  %570 = vmatmul.bf16.gmra.mxu0 %v303
  %v571 = vpop.f32.mrf.mxu0
  %v572 = vadd.f32 0.0, %v571
  %v573 = vpop.f32.mrf.mxu0
  %v574 = vadd.f32 0.0, %v573
  %575 = vmatmul.bf16.gmra.mxu0 %v305
  %v576 = vpop.f32.mrf.mxu0
  %v577 = vadd.f32 0.0, %v576
  %v578 = vpop.f32.mrf.mxu0
  %v579 = vadd.f32 0.0, %v578
  %580 = vmatmul.bf16.gmra.mxu0 %v307
  %v581 = vpop.f32.mrf.mxu0
  %v582 = vadd.f32 0.0, %v581
  %v583 = vpop.f32.mrf.mxu0
  %v584 = vadd.f32 0.0, %v583
  %585 = vmatmul.bf16.gmra.mxu0 %v309
  %v586 = vpop.f32.mrf.mxu0
  %v587 = vadd.f32 0.0, %v586
  %v588 = vpop.f32.mrf.mxu0
  %v589 = vadd.f32 0.0, %v588
  %590 = vmatmul.bf16.gmra.mxu0 %v311
  %v591 = vpop.f32.mrf.mxu0
  %v592 = vadd.f32 0.0, %v591
  %v593 = vpop.f32.mrf.mxu0
  %v594 = vadd.f32 0.0, %v593
  %595 = vmatmul.bf16.gmra.mxu0 %v313
  %v596 = vpop.f32.mrf.mxu0
  %v597 = vadd.f32 0.0, %v596
  %v598 = vpop.f32.mrf.mxu0
  %v599 = vadd.f32 0.0, %v598
  %600 = vmatmul.bf16.gmra.mxu0 %v315
  %v601 = vpop.f32.mrf.mxu0
  %v602 = vadd.f32 0.0, %v601
  %v603 = vpop.f32.mrf.mxu0
  %v604 = vadd.f32 0.0, %v603
  %605 = vmatmul.bf16.gmra.mxu0 %v317
  %v606 = vpop.f32.mrf.mxu0
  %v607 = vadd.f32 0.0, %v606
  %v608 = vpop.f32.mrf.mxu0
  %v609 = vadd.f32 0.0, %v608
  %610 = vmatmul.bf16.gmra.mxu0 %v319
  %v611 = vpop.f32.mrf.mxu0
  %v612 = vadd.f32 0.0, %v611
  %v613 = vpop.f32.mrf.mxu0
  %v614 = vadd.f32 0.0, %v613
  %615 = vmatmul.bf16.gmra.mxu0 %v321
  %v616 = vpop.f32.mrf.mxu0
  %v617 = vadd.f32 0.0, %v616
  %v618 = vpop.f32.mrf.mxu0
  %v619 = vadd.f32 0.0, %v618
  %620 = vmatmul.bf16.gmra.mxu0 %v323
  %v621 = vpop.f32.mrf.mxu0
  %v622 = vadd.f32 0.0, %v621
  %v623 = vpop.f32.mrf.mxu0
  %v624 = vadd.f32 0.0, %v623
  %625 = vmatmul.bf16.gmra.mxu0 %v325
  %v626 = vpop.f32.mrf.mxu0
  %v627 = vadd.f32 0.0, %v626
  %v628 = vpop.f32.mrf.mxu0
  %v629 = vadd.f32 0.0, %v628
  %630 = vmatmul.bf16.gmra.mxu0 %v327
  %v631 = vpop.f32.mrf.mxu0
  %v632 = vadd.f32 0.0, %v631
  %v633 = vpop.f32.mrf.mxu0
  %v634 = vadd.f32 0.0, %v633
  %635 = vmatmul.bf16.gmra.mxu0 %v329
  %v636 = vpop.f32.mrf.mxu0
  %v637 = vadd.f32 0.0, %v636
  %v638 = vpop.f32.mrf.mxu0
  %v639 = vadd.f32 0.0, %v638
  %640 = vmatmul.bf16.gmra.mxu0 %v331
  %v641 = vpop.f32.mrf.mxu0
  %v642 = vadd.f32 0.0, %v641
  %v643 = vpop.f32.mrf.mxu0
  %v644 = vadd.f32 0.0, %v643
  %645 = vmatmul.bf16.gmra.mxu0 %v333
  %v646 = vpop.f32.mrf.mxu0
  %v647 = vadd.f32 0.0, %v646
  %v648 = vpop.f32.mrf.mxu0
  %v649 = vadd.f32 0.0, %v648
  %650 = vmatmul.bf16.gmra.mxu0 %v335
  %v651 = vpop.f32.mrf.mxu0
  %v652 = vadd.f32 0.0, %v651
  %v653 = vpop.f32.mrf.mxu0
  %v654 = vadd.f32 0.0, %v653
  %655 = vmatmul.bf16.gmra.mxu0 %v337
  %v656 = vpop.f32.mrf.mxu0
  %v657 = vadd.f32 0.0, %v656
  %v658 = vpop.f32.mrf.mxu0
  %v659 = vadd.f32 0.0, %v658
  %660 = vmatmul.bf16.gmra.mxu0 %v339
  %v661 = vpop.f32.mrf.mxu0
  %v662 = vadd.f32 0.0, %v661
  %v663 = vpop.f32.mrf.mxu0
  %v664 = vadd.f32 0.0, %v663
  %665 = vmatmul.bf16.gmra.mxu0 %v341
  %v666 = vpop.f32.mrf.mxu0
  %v667 = vadd.f32 0.0, %v666
  %v668 = vpop.f32.mrf.mxu0
  %v669 = vadd.f32 0.0, %v668
  %670 = vmatmul.bf16.gmra.mxu0 %v343
  %v671 = vpop.f32.mrf.mxu0
  %v672 = vadd.f32 0.0, %v671
  %v673 = vpop.f32.mrf.mxu0
  %v674 = vadd.f32 0.0, %v673
  %675 = vmatmul.bf16.gmra.mxu0 %v345
  %v676 = vpop.f32.mrf.mxu0
  %v677 = vadd.f32 0.0, %v676
  %v678 = vpop.f32.mrf.mxu0
  %v679 = vadd.f32 0.0, %v678
  %680 = vmatmul.bf16.gmra.mxu0 %v347
  %v681 = vpop.f32.mrf.mxu0
  %v682 = vadd.f32 0.0, %v681
  %v683 = vpop.f32.mrf.mxu0
  %v684 = vadd.f32 0.0, %v683
  %685 = vmatmul.bf16.gmra.mxu0 %v349
  %v686 = vpop.f32.mrf.mxu0
  %v687 = vadd.f32 0.0, %v686
  %v688 = vpop.f32.mrf.mxu0
  %v689 = vadd.f32 0.0, %v688
  %690 = vmatmul.bf16.gmra.mxu0 %v351
  %v691 = vpop.f32.mrf.mxu0
  %v692 = vadd.f32 0.0, %v691
  %v693 = vpop.f32.mrf.mxu0
  %v694 = vadd.f32 0.0, %v693
  %695 = vmatmul.bf16.gmra.mxu0 %v353
  %v696 = vpop.f32.mrf.mxu0
  %v697 = vadd.f32 0.0, %v696
  %v698 = vpop.f32.mrf.mxu0
  %v699 = vadd.f32 0.0, %v698
  %700 = vmatmul.bf16.gmra.mxu0 %v355
  %v701 = vpop.f32.mrf.mxu0
  %v702 = vadd.f32 0.0, %v701
  %v703 = vpop.f32.mrf.mxu0
  %v704 = vadd.f32 0.0, %v703
  %705 = vmatmul.bf16.gmra.mxu0 %v357
  %v706 = vpop.f32.mrf.mxu0
  %v707 = vadd.f32 0.0, %v706
  %v708 = vpop.f32.mrf.mxu0
  %v709 = vadd.f32 0.0, %v708
  %710 = vdwg.mxu0
  %711 = vmatpush.bf16.msra.mxu0 0
  %712 = vmatpush.bf16.msra.mxu0 0
  %713 = vmatpush.bf16.msra.mxu0 0
  %714 = vmatpush.bf16.msra.mxu0 0
  %715 = vmatpush.bf16.msra.mxu0 0
  %716 = vmatpush.bf16.msra.mxu0 0
  %717 = vmatpush.bf16.msra.mxu0 0
  %718 = vmatpush.bf16.msra.mxu0 %v435
  %719 = vmatmul.bf16.gmra.mxu0 %v447
  %v720 = vpop.f32.mrf.mxu0
  %v721 = vadd.f32 %v552, %v720
  %v722 = vpop.f32.mrf.mxu0
  %v723 = vadd.f32 %v554, %v722
  %724 = vmatmul.bf16.gmra.mxu0 %v450
  %v725 = vpop.f32.mrf.mxu0
  %v726 = vadd.f32 %v557, %v725
  %v727 = vpop.f32.mrf.mxu0
  %v728 = vadd.f32 %v559, %v727
  %729 = vmatmul.bf16.gmra.mxu0 %v453
  %v730 = vpop.f32.mrf.mxu0
  %v731 = vadd.f32 %v562, %v730
  %v732 = vpop.f32.mrf.mxu0
  %v733 = vadd.f32 %v564, %v732
  %734 = vmatmul.bf16.gmra.mxu0 %v456
  %v735 = vpop.f32.mrf.mxu0
  %v736 = vadd.f32 %v567, %v735
  %v737 = vpop.f32.mrf.mxu0
  %v738 = vadd.f32 %v569, %v737
  %739 = vmatmul.bf16.gmra.mxu0 %v459
  %v740 = vpop.f32.mrf.mxu0
  %v741 = vadd.f32 %v572, %v740
  %v742 = vpop.f32.mrf.mxu0
  %v743 = vadd.f32 %v574, %v742
  %744 = vmatmul.bf16.gmra.mxu0 %v462
  %v745 = vpop.f32.mrf.mxu0
  %v746 = vadd.f32 %v577, %v745
  %v747 = vpop.f32.mrf.mxu0
  %v748 = vadd.f32 %v579, %v747
  %749 = vmatmul.bf16.gmra.mxu0 %v465
  %v750 = vpop.f32.mrf.mxu0
  %v751 = vadd.f32 %v582, %v750
  %v752 = vpop.f32.mrf.mxu0
  %v753 = vadd.f32 %v584, %v752
  %754 = vmatmul.bf16.gmra.mxu0 %v468
  %v755 = vpop.f32.mrf.mxu0
  %v756 = vadd.f32 %v587, %v755
  %v757 = vpop.f32.mrf.mxu0
  %v758 = vadd.f32 %v589, %v757
  %759 = vmatmul.bf16.gmra.mxu0 %v471
  %v760 = vpop.f32.mrf.mxu0
  %v761 = vadd.f32 %v592, %v760
  %v762 = vpop.f32.mrf.mxu0
  %v763 = vadd.f32 %v594, %v762
  %764 = vmatmul.bf16.gmra.mxu0 %v474
  %v765 = vpop.f32.mrf.mxu0
  %v766 = vadd.f32 %v597, %v765
  %v767 = vpop.f32.mrf.mxu0
  %v768 = vadd.f32 %v599, %v767
  %769 = vmatmul.bf16.gmra.mxu0 %v477
  %v770 = vpop.f32.mrf.mxu0
  %v771 = vadd.f32 %v602, %v770
  %v772 = vpop.f32.mrf.mxu0
  %v773 = vadd.f32 %v604, %v772
  %774 = vmatmul.bf16.gmra.mxu0 %v480
  %v775 = vpop.f32.mrf.mxu0
  %v776 = vadd.f32 %v607, %v775
  %v777 = vpop.f32.mrf.mxu0
  %v778 = vadd.f32 %v609, %v777
  %779 = vmatmul.bf16.gmra.mxu0 %v483
  %v780 = vpop.f32.mrf.mxu0
  %v781 = vadd.f32 %v612, %v780
  %v782 = vpop.f32.mrf.mxu0
  %v783 = vadd.f32 %v614, %v782
  %784 = vmatmul.bf16.gmra.mxu0 %v486
  %v785 = vpop.f32.mrf.mxu0
  %v786 = vadd.f32 %v617, %v785
  %v787 = vpop.f32.mrf.mxu0
  %v788 = vadd.f32 %v619, %v787
  %789 = vmatmul.bf16.gmra.mxu0 %v489
  %v790 = vpop.f32.mrf.mxu0
  %v791 = vadd.f32 %v622, %v790
  %v792 = vpop.f32.mrf.mxu0
  %v793 = vadd.f32 %v624, %v792
  %794 = vmatmul.bf16.gmra.mxu0 %v492
  %v795 = vpop.f32.mrf.mxu0
  %v796 = vadd.f32 %v627, %v795
  %v797 = vpop.f32.mrf.mxu0
  %v798 = vadd.f32 %v629, %v797
  %799 = vmatmul.bf16.gmra.mxu0 %v495
  %v800 = vpop.f32.mrf.mxu0
  %v801 = vadd.f32 %v632, %v800
  %v802 = vpop.f32.mrf.mxu0
  %v803 = vadd.f32 %v634, %v802
  %804 = vmatmul.bf16.gmra.mxu0 %v498
  %v805 = vpop.f32.mrf.mxu0
  %v806 = vadd.f32 %v637, %v805
  %v807 = vpop.f32.mrf.mxu0
  %v808 = vadd.f32 %v639, %v807
  %809 = vmatmul.bf16.gmra.mxu0 %v501
  %v810 = vpop.f32.mrf.mxu0
  %v811 = vadd.f32 %v642, %v810
  %v812 = vpop.f32.mrf.mxu0
  %v813 = vadd.f32 %v644, %v812
  %814 = vmatmul.bf16.gmra.mxu0 %v504
  %v815 = vpop.f32.mrf.mxu0
  %v816 = vadd.f32 %v647, %v815
  %v817 = vpop.f32.mrf.mxu0
  %v818 = vadd.f32 %v649, %v817
  %819 = vmatmul.bf16.gmra.mxu0 %v507
  %v820 = vpop.f32.mrf.mxu0
  %v821 = vadd.f32 %v652, %v820
  %v822 = vpop.f32.mrf.mxu0
  %v823 = vadd.f32 %v654, %v822
  %824 = vmatmul.bf16.gmra.mxu0 %v510
  %v825 = vpop.f32.mrf.mxu0
  %v826 = vadd.f32 %v657, %v825
  %v827 = vpop.f32.mrf.mxu0
  %v828 = vadd.f32 %v659, %v827
  %829 = vmatmul.bf16.gmra.mxu0 %v513
  %v830 = vpop.f32.mrf.mxu0
  %v831 = vadd.f32 %v662, %v830
  %v832 = vpop.f32.mrf.mxu0
  %v833 = vadd.f32 %v664, %v832
  %834 = vmatmul.bf16.gmra.mxu0 %v516
  %v835 = vpop.f32.mrf.mxu0
  %v836 = vadd.f32 %v667, %v835
  %v837 = vpop.f32.mrf.mxu0
  %v838 = vadd.f32 %v669, %v837
  %839 = vmatmul.bf16.gmra.mxu0 %v519
  %v840 = vpop.f32.mrf.mxu0
  %v841 = vadd.f32 %v672, %v840
  %v842 = vpop.f32.mrf.mxu0
  %v843 = vadd.f32 %v674, %v842
  %844 = vmatmul.bf16.gmra.mxu0 %v522
  %v845 = vpop.f32.mrf.mxu0
  %v846 = vadd.f32 %v677, %v845
  %v847 = vpop.f32.mrf.mxu0
  %v848 = vadd.f32 %v679, %v847
  %849 = vmatmul.bf16.gmra.mxu0 %v525
  %v850 = vpop.f32.mrf.mxu0
  %v851 = vadd.f32 %v682, %v850
  %v852 = vpop.f32.mrf.mxu0
  %v853 = vadd.f32 %v684, %v852
  %854 = vmatmul.bf16.gmra.mxu0 %v528
  %v855 = vpop.f32.mrf.mxu0
  %v856 = vadd.f32 %v687, %v855
  %v857 = vpop.f32.mrf.mxu0
  %v858 = vadd.f32 %v689, %v857
  %859 = vmatmul.bf16.gmra.mxu0 %v531
  %v860 = vpop.f32.mrf.mxu0
  %v861 = vadd.f32 %v692, %v860
  %v862 = vpop.f32.mrf.mxu0
  %v863 = vadd.f32 %v694, %v862
  %864 = vmatmul.bf16.gmra.mxu0 %v534
  %v865 = vpop.f32.mrf.mxu0
  %v866 = vadd.f32 %v697, %v865
  %v867 = vpop.f32.mrf.mxu0
  %v868 = vadd.f32 %v699, %v867
  %869 = vmatmul.bf16.gmra.mxu0 %v537
  %v870 = vpop.f32.mrf.mxu0
  %v871 = vadd.f32 %v702, %v870
  %v872 = vpop.f32.mrf.mxu0
  %v873 = vadd.f32 %v704, %v872
  %874 = vmatmul.bf16.gmra.mxu0 %v540
  %v875 = vpop.f32.mrf.mxu0
  %v876 = vadd.f32 %v707, %v875
  %v877 = vpop.f32.mrf.mxu0
  %v878 = vadd.f32 %v709, %v877
  %879 = vdwg.mxu0
  %v880 = vld [vmem:[%s2] sm:$0x1]
  %v882 = vperm.slane %v880, 0
  %v884 = vmul.f32 %v721, %v882
  %v885 = vmul.f32 %v723, %v882
  %v886 = vmul.f32 %v726, %v882
  %v887 = vmul.f32 %v728, %v882
  %v888 = vmul.f32 %v731, %v882
  %v889 = vmul.f32 %v733, %v882
  %v890 = vmul.f32 %v736, %v882
  %v891 = vmul.f32 %v738, %v882
  %v892 = vmul.f32 %v741, %v882
  %v893 = vmul.f32 %v743, %v882
  %v894 = vmul.f32 %v746, %v882
  %v895 = vmul.f32 %v748, %v882
  %v896 = vmul.f32 %v751, %v882
  %v897 = vmul.f32 %v753, %v882
  %v898 = vmul.f32 %v756, %v882
  %v899 = vmul.f32 %v758, %v882
  %v900 = vmul.f32 %v761, %v882
  %v901 = vmul.f32 %v763, %v882
  %v902 = vmul.f32 %v766, %v882
  %v903 = vmul.f32 %v768, %v882
  %v904 = vmul.f32 %v771, %v882
  %v905 = vmul.f32 %v773, %v882
  %v906 = vmul.f32 %v776, %v882
  %v907 = vmul.f32 %v778, %v882
  %v908 = vmul.f32 %v781, %v882
  %v909 = vmul.f32 %v783, %v882
  %v910 = vmul.f32 %v786, %v882
  %v911 = vmul.f32 %v788, %v882
  %v912 = vmul.f32 %v791, %v882
  %v913 = vmul.f32 %v793, %v882
  %v914 = vmul.f32 %v796, %v882
  %v915 = vmul.f32 %v798, %v882
  %v916 = vmul.f32 %v801, %v882
  %v917 = vmul.f32 %v803, %v882
  %v918 = vmul.f32 %v806, %v882
  %v919 = vmul.f32 %v808, %v882
  %v920 = vmul.f32 %v811, %v882
  %v921 = vmul.f32 %v813, %v882
  %v922 = vmul.f32 %v816, %v882
  %v923 = vmul.f32 %v818, %v882
  %v924 = vmul.f32 %v821, %v882
  %v925 = vmul.f32 %v823, %v882
  %v926 = vmul.f32 %v826, %v882
  %v927 = vmul.f32 %v828, %v882
  %v928 = vmul.f32 %v831, %v882
  %v929 = vmul.f32 %v833, %v882
  %v930 = vmul.f32 %v836, %v882
  %v931 = vmul.f32 %v838, %v882
  %v932 = vmul.f32 %v841, %v882
  %v933 = vmul.f32 %v843, %v882
  %v934 = vmul.f32 %v846, %v882
  %v935 = vmul.f32 %v848, %v882
  %v936 = vmul.f32 %v851, %v882
  %v937 = vmul.f32 %v853, %v882
  %v938 = vmul.f32 %v856, %v882
  %v939 = vmul.f32 %v858, %v882
  %v940 = vmul.f32 %v861, %v882
  %v941 = vmul.f32 %v863, %v882
  %v942 = vmul.f32 %v866, %v882
  %v943 = vmul.f32 %v868, %v882
  %v944 = vmul.f32 %v871, %v882
  %v945 = vmul.f32 %v873, %v882
  %v946 = vmul.f32 %v876, %v882
  %v947 = vmul.f32 %v878, %v882
  %v948 = vld [vmem:[%s3] sm:$0x1]
  %v950 = vperm.slane %v948, 0
  %v952 = vadd.f32 %v884, %v950
  %v953 = vadd.f32 %v885, %v950
  %v954 = vadd.f32 %v886, %v950
  %v955 = vadd.f32 %v887, %v950
  %v956 = vadd.f32 %v888, %v950
  %v957 = vadd.f32 %v889, %v950
  %v958 = vadd.f32 %v890, %v950
  %v959 = vadd.f32 %v891, %v950
  %v960 = vadd.f32 %v892, %v950
  %v961 = vadd.f32 %v893, %v950
  %v962 = vadd.f32 %v894, %v950
  %v963 = vadd.f32 %v895, %v950
  %v964 = vadd.f32 %v896, %v950
  %v965 = vadd.f32 %v897, %v950
  %v966 = vadd.f32 %v898, %v950
  %v967 = vadd.f32 %v899, %v950
  %v968 = vadd.f32 %v900, %v950
  %v969 = vadd.f32 %v901, %v950
  %v970 = vadd.f32 %v902, %v950
  %v971 = vadd.f32 %v903, %v950
  %v972 = vadd.f32 %v904, %v950
  %v973 = vadd.f32 %v905, %v950
  %v974 = vadd.f32 %v906, %v950
  %v975 = vadd.f32 %v907, %v950
  %v976 = vadd.f32 %v908, %v950
  %v977 = vadd.f32 %v909, %v950
  %v978 = vadd.f32 %v910, %v950
  %v979 = vadd.f32 %v911, %v950
  %v980 = vadd.f32 %v912, %v950
  %v981 = vadd.f32 %v913, %v950
  %v982 = vadd.f32 %v914, %v950
  %v983 = vadd.f32 %v915, %v950
  %v984 = vadd.f32 %v916, %v950
  %v985 = vadd.f32 %v917, %v950
  %v986 = vadd.f32 %v918, %v950
  %v987 = vadd.f32 %v919, %v950
  %v988 = vadd.f32 %v920, %v950
  %v989 = vadd.f32 %v921, %v950
  %v990 = vadd.f32 %v922, %v950
  %v991 = vadd.f32 %v923, %v950
  %v992 = vadd.f32 %v924, %v950
  %v993 = vadd.f32 %v925, %v950
  %v994 = vadd.f32 %v926, %v950
  %v995 = vadd.f32 %v927, %v950
  %v996 = vadd.f32 %v928, %v950
  %v997 = vadd.f32 %v929, %v950
  %v998 = vadd.f32 %v930, %v950
  %v999 = vadd.f32 %v931, %v950
  %v1000 = vadd.f32 %v932, %v950
  %v1001 = vadd.f32 %v933, %v950
  %v1002 = vadd.f32 %v934, %v950
  %v1003 = vadd.f32 %v935, %v950
  %v1004 = vadd.f32 %v936, %v950
  %v1005 = vadd.f32 %v937, %v950
  %v1006 = vadd.f32 %v938, %v950
  %v1007 = vadd.f32 %v939, %v950
  %v1008 = vadd.f32 %v940, %v950
  %v1009 = vadd.f32 %v941, %v950
  %v1010 = vadd.f32 %v942, %v950
  %v1011 = vadd.f32 %v943, %v950
  %v1012 = vadd.f32 %v944, %v950
  %v1013 = vadd.f32 %v945, %v950
  %v1014 = vadd.f32 %v946, %v950
  %v1015 = vadd.f32 %v947, %v950
  %v1016 = vsub.f32 0.0, %v952
  %v1017 = vsub.f32 0.0, %v953
  %v1018 = vsub.f32 0.0, %v954
  %v1019 = vsub.f32 0.0, %v955
  %v1020 = vsub.f32 0.0, %v956
  %v1021 = vsub.f32 0.0, %v957
  %v1022 = vsub.f32 0.0, %v958
  %v1023 = vsub.f32 0.0, %v959
  %v1024 = vsub.f32 0.0, %v960
  %v1025 = vsub.f32 0.0, %v961
  %v1026 = vsub.f32 0.0, %v962
  %v1027 = vsub.f32 0.0, %v963
  %v1028 = vsub.f32 0.0, %v964
  %v1029 = vsub.f32 0.0, %v965
  %v1030 = vsub.f32 0.0, %v966
  %v1031 = vsub.f32 0.0, %v967
  %v1032 = vsub.f32 0.0, %v968
  %v1033 = vsub.f32 0.0, %v969
  %v1034 = vsub.f32 0.0, %v970
  %v1035 = vsub.f32 0.0, %v971
  %v1036 = vsub.f32 0.0, %v972
  %v1037 = vsub.f32 0.0, %v973
  %v1038 = vsub.f32 0.0, %v974
  %v1039 = vsub.f32 0.0, %v975
  %v1040 = vsub.f32 0.0, %v976
  %v1041 = vsub.f32 0.0, %v977
  %v1042 = vsub.f32 0.0, %v978
  %v1043 = vsub.f32 0.0, %v979
  %v1044 = vsub.f32 0.0, %v980
  %v1045 = vsub.f32 0.0, %v981
  %v1046 = vsub.f32 0.0, %v982
  %v1047 = vsub.f32 0.0, %v983
  %v1048 = vsub.f32 0.0, %v984
  %v1049 = vsub.f32 0.0, %v985
  %v1050 = vsub.f32 0.0, %v986
  %v1051 = vsub.f32 0.0, %v987
  %v1052 = vsub.f32 0.0, %v988
  %v1053 = vsub.f32 0.0, %v989
  %v1054 = vsub.f32 0.0, %v990
  %v1055 = vsub.f32 0.0, %v991
  %v1056 = vsub.f32 0.0, %v992
  %v1057 = vsub.f32 0.0, %v993
  %v1058 = vsub.f32 0.0, %v994
  %v1059 = vsub.f32 0.0, %v995
  %v1060 = vsub.f32 0.0, %v996
  %v1061 = vsub.f32 0.0, %v997
  %v1062 = vsub.f32 0.0, %v998
  %v1063 = vsub.f32 0.0, %v999
  %v1064 = vsub.f32 0.0, %v1000
  %v1065 = vsub.f32 0.0, %v1001
  %v1066 = vsub.f32 0.0, %v1002
  %v1067 = vsub.f32 0.0, %v1003
  %v1068 = vsub.f32 0.0, %v1004
  %v1069 = vsub.f32 0.0, %v1005
  %v1070 = vsub.f32 0.0, %v1006
  %v1071 = vsub.f32 0.0, %v1007
  %v1072 = vsub.f32 0.0, %v1008
  %v1073 = vsub.f32 0.0, %v1009
  %v1074 = vsub.f32 0.0, %v1010
  %v1075 = vsub.f32 0.0, %v1011
  %v1076 = vsub.f32 0.0, %v1012
  %v1077 = vsub.f32 0.0, %v1013
  %v1078 = vsub.f32 0.0, %v1014
  %v1079 = vsub.f32 0.0, %v1015
  %v1080 = vmul.f32 %v1016, 1.442695
  %v1081 = vpow.pop %v1080
  %v1082 = vmul.f32 %v1017, 1.442695
  %v1083 = vpow.pop %v1082
  %v1084 = vmul.f32 %v1018, 1.442695
  %v1085 = vpow.pop %v1084
  %v1086 = vmul.f32 %v1019, 1.442695
  %v1087 = vpow.pop %v1086
  %v1088 = vmul.f32 %v1020, 1.442695
  %v1089 = vpow.pop %v1088
  %v1090 = vmul.f32 %v1021, 1.442695
  %v1091 = vpow.pop %v1090
  %v1092 = vmul.f32 %v1022, 1.442695
  %v1093 = vpow.pop %v1092
  %v1094 = vmul.f32 %v1023, 1.442695
  %v1095 = vpow.pop %v1094
  %v1096 = vmul.f32 %v1024, 1.442695
  %v1097 = vpow.pop %v1096
  %v1098 = vmul.f32 %v1025, 1.442695
  %v1099 = vpow.pop %v1098
  %v1100 = vmul.f32 %v1026, 1.442695
  %v1101 = vpow.pop %v1100
  %v1102 = vmul.f32 %v1027, 1.442695
  %v1103 = vpow.pop %v1102
  %v1104 = vmul.f32 %v1028, 1.442695
  %v1105 = vpow.pop %v1104
  %v1106 = vmul.f32 %v1029, 1.442695
  %v1107 = vpow.pop %v1106
  %v1108 = vmul.f32 %v1030, 1.442695
  %v1109 = vpow.pop %v1108
  %v1110 = vmul.f32 %v1031, 1.442695
  %v1111 = vpow.pop %v1110
  %v1112 = vmul.f32 %v1032, 1.442695
  %v1113 = vpow.pop %v1112
  %v1114 = vmul.f32 %v1033, 1.442695
  %v1115 = vpow.pop %v1114
  %v1116 = vmul.f32 %v1034, 1.442695
  %v1117 = vpow.pop %v1116
  %v1118 = vmul.f32 %v1035, 1.442695
  %v1119 = vpow.pop %v1118
  %v1120 = vmul.f32 %v1036, 1.442695
  %v1121 = vpow.pop %v1120
  %v1122 = vmul.f32 %v1037, 1.442695
  %v1123 = vpow.pop %v1122
  %v1124 = vmul.f32 %v1038, 1.442695
  %v1125 = vpow.pop %v1124
  %v1126 = vmul.f32 %v1039, 1.442695
  %v1127 = vpow.pop %v1126
  %v1128 = vmul.f32 %v1040, 1.442695
  %v1129 = vpow.pop %v1128
  %v1130 = vmul.f32 %v1041, 1.442695
  %v1131 = vpow.pop %v1130
  %v1132 = vmul.f32 %v1042, 1.442695
  %v1133 = vpow.pop %v1132
  %v1134 = vmul.f32 %v1043, 1.442695
  %v1135 = vpow.pop %v1134
  %v1136 = vmul.f32 %v1044, 1.442695
  %v1137 = vpow.pop %v1136
  %v1138 = vmul.f32 %v1045, 1.442695
  %v1139 = vpow.pop %v1138
  %v1140 = vmul.f32 %v1046, 1.442695
  %v1141 = vpow.pop %v1140
  %v1142 = vmul.f32 %v1047, 1.442695
  %v1143 = vpow.pop %v1142
  %v1144 = vmul.f32 %v1048, 1.442695
  %v1145 = vpow.pop %v1144
  %v1146 = vmul.f32 %v1049, 1.442695
  %v1147 = vpow.pop %v1146
  %v1148 = vmul.f32 %v1050, 1.442695
  %v1149 = vpow.pop %v1148
  %v1150 = vmul.f32 %v1051, 1.442695
  %v1151 = vpow.pop %v1150
  %v1152 = vmul.f32 %v1052, 1.442695
  %v1153 = vpow.pop %v1152
  %v1154 = vmul.f32 %v1053, 1.442695
  %v1155 = vpow.pop %v1154
  %v1156 = vmul.f32 %v1054, 1.442695
  %v1157 = vpow.pop %v1156
  %v1158 = vmul.f32 %v1055, 1.442695
  %v1159 = vpow.pop %v1158
  %v1160 = vmul.f32 %v1056, 1.442695
  %v1161 = vpow.pop %v1160
  %v1162 = vmul.f32 %v1057, 1.442695
  %v1163 = vpow.pop %v1162
  %v1164 = vmul.f32 %v1058, 1.442695
  %v1165 = vpow.pop %v1164
  %v1166 = vmul.f32 %v1059, 1.442695
  %v1167 = vpow.pop %v1166
  %v1168 = vmul.f32 %v1060, 1.442695
  %v1169 = vpow.pop %v1168
  %v1170 = vmul.f32 %v1061, 1.442695
  %v1171 = vpow.pop %v1170
  %v1172 = vmul.f32 %v1062, 1.442695
  %v1173 = vpow.pop %v1172
  %v1174 = vmul.f32 %v1063, 1.442695
  %v1175 = vpow.pop %v1174
  %v1176 = vmul.f32 %v1064, 1.442695
  %v1177 = vpow.pop %v1176
  %v1178 = vmul.f32 %v1065, 1.442695
  %v1179 = vpow.pop %v1178
  %v1180 = vmul.f32 %v1066, 1.442695
  %v1181 = vpow.pop %v1180
  %v1182 = vmul.f32 %v1067, 1.442695
  %v1183 = vpow.pop %v1182
  %v1184 = vmul.f32 %v1068, 1.442695
  %v1185 = vpow.pop %v1184
  %v1186 = vmul.f32 %v1069, 1.442695
  %v1187 = vpow.pop %v1186
  %v1188 = vmul.f32 %v1070, 1.442695
  %v1189 = vpow.pop %v1188
  %v1190 = vmul.f32 %v1071, 1.442695
  %v1191 = vpow.pop %v1190
  %v1192 = vmul.f32 %v1072, 1.442695
  %v1193 = vpow.pop %v1192
  %v1194 = vmul.f32 %v1073, 1.442695
  %v1195 = vpow.pop %v1194
  %v1196 = vmul.f32 %v1074, 1.442695
  %v1197 = vpow.pop %v1196
  %v1198 = vmul.f32 %v1075, 1.442695
  %v1199 = vpow.pop %v1198
  %v1200 = vmul.f32 %v1076, 1.442695
  %v1201 = vpow.pop %v1200
  %v1202 = vmul.f32 %v1077, 1.442695
  %v1203 = vpow.pop %v1202
  %v1204 = vmul.f32 %v1078, 1.442695
  %v1205 = vpow.pop %v1204
  %v1206 = vmul.f32 %v1079, 1.442695
  %v1207 = vpow.pop %v1206
  %v1208 = vadd.f32 %v1081, 1.0
  %v1209 = vadd.f32 %v1083, 1.0
  %v1210 = vadd.f32 %v1085, 1.0
  %v1211 = vadd.f32 %v1087, 1.0
  %v1212 = vadd.f32 %v1089, 1.0
  %v1213 = vadd.f32 %v1091, 1.0
  %v1214 = vadd.f32 %v1093, 1.0
  %v1215 = vadd.f32 %v1095, 1.0
  %v1216 = vadd.f32 %v1097, 1.0
  %v1217 = vadd.f32 %v1099, 1.0
  %v1218 = vadd.f32 %v1101, 1.0
  %v1219 = vadd.f32 %v1103, 1.0
  %v1220 = vadd.f32 %v1105, 1.0
  %v1221 = vadd.f32 %v1107, 1.0
  %v1222 = vadd.f32 %v1109, 1.0
  %v1223 = vadd.f32 %v1111, 1.0
  %v1224 = vadd.f32 %v1113, 1.0
  %v1225 = vadd.f32 %v1115, 1.0
  %v1226 = vadd.f32 %v1117, 1.0
  %v1227 = vadd.f32 %v1119, 1.0
  %v1228 = vadd.f32 %v1121, 1.0
  %v1229 = vadd.f32 %v1123, 1.0
  %v1230 = vadd.f32 %v1125, 1.0
  %v1231 = vadd.f32 %v1127, 1.0
  %v1232 = vadd.f32 %v1129, 1.0
  %v1233 = vadd.f32 %v1131, 1.0
  %v1234 = vadd.f32 %v1133, 1.0
  %v1235 = vadd.f32 %v1135, 1.0
  %v1236 = vadd.f32 %v1137, 1.0
  %v1237 = vadd.f32 %v1139, 1.0
  %v1238 = vadd.f32 %v1141, 1.0
  %v1239 = vadd.f32 %v1143, 1.0
  %v1240 = vadd.f32 %v1145, 1.0
  %v1241 = vadd.f32 %v1147, 1.0
  %v1242 = vadd.f32 %v1149, 1.0
  %v1243 = vadd.f32 %v1151, 1.0
  %v1244 = vadd.f32 %v1153, 1.0
  %v1245 = vadd.f32 %v1155, 1.0
  %v1246 = vadd.f32 %v1157, 1.0
  %v1247 = vadd.f32 %v1159, 1.0
  %v1248 = vadd.f32 %v1161, 1.0
  %v1249 = vadd.f32 %v1163, 1.0
  %v1250 = vadd.f32 %v1165, 1.0
  %v1251 = vadd.f32 %v1167, 1.0
  %v1252 = vadd.f32 %v1169, 1.0
  %v1253 = vadd.f32 %v1171, 1.0
  %v1254 = vadd.f32 %v1173, 1.0
  %v1255 = vadd.f32 %v1175, 1.0
  %v1256 = vadd.f32 %v1177, 1.0
  %v1257 = vadd.f32 %v1179, 1.0
  %v1258 = vadd.f32 %v1181, 1.0
  %v1259 = vadd.f32 %v1183, 1.0
  %v1260 = vadd.f32 %v1185, 1.0
  %v1261 = vadd.f32 %v1187, 1.0
  %v1262 = vadd.f32 %v1189, 1.0
  %v1263 = vadd.f32 %v1191, 1.0
  %v1264 = vadd.f32 %v1193, 1.0
  %v1265 = vadd.f32 %v1195, 1.0
  %v1266 = vadd.f32 %v1197, 1.0
  %v1267 = vadd.f32 %v1199, 1.0
  %v1268 = vadd.f32 %v1201, 1.0
  %v1269 = vadd.f32 %v1203, 1.0
  %v1270 = vadd.f32 %v1205, 1.0
  %v1271 = vadd.f32 %v1207, 1.0
  %v1272 = vrcp.pop %v1208
  %v1273 = vrcp.pop %v1209
  %v1274 = vrcp.pop %v1210
  %v1275 = vrcp.pop %v1211
  %v1276 = vrcp.pop %v1212
  %v1277 = vrcp.pop %v1213
  %v1278 = vrcp.pop %v1214
  %v1279 = vrcp.pop %v1215
  %v1280 = vrcp.pop %v1216
  %v1281 = vrcp.pop %v1217
  %v1282 = vrcp.pop %v1218
  %v1283 = vrcp.pop %v1219
  %v1284 = vrcp.pop %v1220
  %v1285 = vrcp.pop %v1221
  %v1286 = vrcp.pop %v1222
  %v1287 = vrcp.pop %v1223
  %v1288 = vrcp.pop %v1224
  %v1289 = vrcp.pop %v1225
  %v1290 = vrcp.pop %v1226
  %v1291 = vrcp.pop %v1227
  %v1292 = vrcp.pop %v1228
  %v1293 = vrcp.pop %v1229
  %v1294 = vrcp.pop %v1230
  %v1295 = vrcp.pop %v1231
  %v1296 = vrcp.pop %v1232
  %v1297 = vrcp.pop %v1233
  %v1298 = vrcp.pop %v1234
  %v1299 = vrcp.pop %v1235
  %v1300 = vrcp.pop %v1236
  %v1301 = vrcp.pop %v1237
  %v1302 = vrcp.pop %v1238
  %v1303 = vrcp.pop %v1239
  %v1304 = vrcp.pop %v1240
  %v1305 = vrcp.pop %v1241
  %v1306 = vrcp.pop %v1242
  %v1307 = vrcp.pop %v1243
  %v1308 = vrcp.pop %v1244
  %v1309 = vrcp.pop %v1245
  %v1310 = vrcp.pop %v1246
  %v1311 = vrcp.pop %v1247
  %v1312 = vrcp.pop %v1248
  %v1313 = vrcp.pop %v1249
  %v1314 = vrcp.pop %v1250
  %v1315 = vrcp.pop %v1251
  %v1316 = vrcp.pop %v1252
  %v1317 = vrcp.pop %v1253
  %v1318 = vrcp.pop %v1254
  %v1319 = vrcp.pop %v1255
  %v1320 = vrcp.pop %v1256
  %v1321 = vrcp.pop %v1257
  %v1322 = vrcp.pop %v1258
  %v1323 = vrcp.pop %v1259
  %v1324 = vrcp.pop %v1260
  %v1325 = vrcp.pop %v1261
  %v1326 = vrcp.pop %v1262
  %v1327 = vrcp.pop %v1263
  %v1328 = vrcp.pop %v1264
  %v1329 = vrcp.pop %v1265
  %v1330 = vrcp.pop %v1266
  %v1331 = vrcp.pop %v1267
  %v1332 = vrcp.pop %v1268
  %v1333 = vrcp.pop %v1269
  %v1334 = vrcp.pop %v1270
  %v1335 = vrcp.pop %v1271
  %v1336 = vmul.f32 %v952, %v1272
  %v1337 = vmul.f32 %v953, %v1273
  %v1338 = vmul.f32 %v954, %v1274
  %v1339 = vmul.f32 %v955, %v1275
  %v1340 = vmul.f32 %v956, %v1276
  %v1341 = vmul.f32 %v957, %v1277
  %v1342 = vmul.f32 %v958, %v1278
  %v1343 = vmul.f32 %v959, %v1279
  %v1344 = vmul.f32 %v960, %v1280
  %v1345 = vmul.f32 %v961, %v1281
  %v1346 = vmul.f32 %v962, %v1282
  %v1347 = vmul.f32 %v963, %v1283
  %v1348 = vmul.f32 %v964, %v1284
  %v1349 = vmul.f32 %v965, %v1285
  %v1350 = vmul.f32 %v966, %v1286
  %v1351 = vmul.f32 %v967, %v1287
  %v1352 = vmul.f32 %v968, %v1288
  %v1353 = vmul.f32 %v969, %v1289
  %v1354 = vmul.f32 %v970, %v1290
  %v1355 = vmul.f32 %v971, %v1291
  %v1356 = vmul.f32 %v972, %v1292
  %v1357 = vmul.f32 %v973, %v1293
  %v1358 = vmul.f32 %v974, %v1294
  %v1359 = vmul.f32 %v975, %v1295
  %v1360 = vmul.f32 %v976, %v1296
  %v1361 = vmul.f32 %v977, %v1297
  %v1362 = vmul.f32 %v978, %v1298
  %v1363 = vmul.f32 %v979, %v1299
  %v1364 = vmul.f32 %v980, %v1300
  %v1365 = vmul.f32 %v981, %v1301
  %v1366 = vmul.f32 %v982, %v1302
  %v1367 = vmul.f32 %v983, %v1303
  %v1368 = vmul.f32 %v984, %v1304
  %v1369 = vmul.f32 %v985, %v1305
  %v1370 = vmul.f32 %v986, %v1306
  %v1371 = vmul.f32 %v987, %v1307
  %v1372 = vmul.f32 %v988, %v1308
  %v1373 = vmul.f32 %v989, %v1309
  %v1374 = vmul.f32 %v990, %v1310
  %v1375 = vmul.f32 %v991, %v1311
  %v1376 = vmul.f32 %v992, %v1312
  %v1377 = vmul.f32 %v993, %v1313
  %v1378 = vmul.f32 %v994, %v1314
  %v1379 = vmul.f32 %v995, %v1315
  %v1380 = vmul.f32 %v996, %v1316
  %v1381 = vmul.f32 %v997, %v1317
  %v1382 = vmul.f32 %v998, %v1318
  %v1383 = vmul.f32 %v999, %v1319
  %v1384 = vmul.f32 %v1000, %v1320
  %v1385 = vmul.f32 %v1001, %v1321
  %v1386 = vmul.f32 %v1002, %v1322
  %v1387 = vmul.f32 %v1003, %v1323
  %v1388 = vmul.f32 %v1004, %v1324
  %v1389 = vmul.f32 %v1005, %v1325
  %v1390 = vmul.f32 %v1006, %v1326
  %v1391 = vmul.f32 %v1007, %v1327
  %v1392 = vmul.f32 %v1008, %v1328
  %v1393 = vmul.f32 %v1009, %v1329
  %v1394 = vmul.f32 %v1010, %v1330
  %v1395 = vmul.f32 %v1011, %v1331
  %v1396 = vmul.f32 %v1012, %v1332
  %v1397 = vmul.f32 %v1013, %v1333
  %v1398 = vmul.f32 %v1014, %v1334
  %v1399 = vmul.f32 %v1015, %v1335
  %v1400 = vld [vmem:[%s4] sm:$0xff]
  %v1401 = vld [vmem:[%s4 + $0x8] sm:$0xff]
  %v1402 = vld [vmem:[%s4 + $0x10] sm:$0xff]
  %v1403 = vld [vmem:[%s4 + $0x18] sm:$0xff]
  %v1404 = vld [vmem:[%s4 + $0x20] sm:$0xff]
  %v1405 = vld [vmem:[%s4 + $0x28] sm:$0xff]
  %v1406 = vld [vmem:[%s4 + $0x30] sm:$0xff]
  %v1407 = vld [vmem:[%s4 + $0x38] sm:$0xff]
  %v1408 = vld [vmem:[%s4 + $0x40] sm:$0xff]
  %v1409 = vld [vmem:[%s4 + $0x48] sm:$0xff]
  %v1410 = vld [vmem:[%s4 + $0x50] sm:$0xff]
  %v1411 = vld [vmem:[%s4 + $0x58] sm:$0xff]
  %v1412 = vld [vmem:[%s4 + $0x60] sm:$0xff]
  %v1413 = vld [vmem:[%s4 + $0x68] sm:$0xff]
  %v1414 = vld [vmem:[%s4 + $0x70] sm:$0xff]
  %v1415 = vld [vmem:[%s4 + $0x78] sm:$0xff]
  %v1416 = vld [vmem:[%s4 + $0x80] sm:$0xff]
  %v1417 = vld [vmem:[%s4 + $0x88] sm:$0xff]
  %v1418 = vld [vmem:[%s4 + $0x90] sm:$0xff]
  %v1419 = vld [vmem:[%s4 + $0x98] sm:$0xff]
  %v1420 = vld [vmem:[%s4 + $0xa0] sm:$0xff]
  %v1421 = vld [vmem:[%s4 + $0xa8] sm:$0xff]
  %v1422 = vld [vmem:[%s4 + $0xb0] sm:$0xff]
  %v1423 = vld [vmem:[%s4 + $0xb8] sm:$0xff]
  %v1424 = vld [vmem:[%s4 + $0xc0] sm:$0xff]
  %v1425 = vld [vmem:[%s4 + $0xc8] sm:$0xff]
  %v1426 = vld [vmem:[%s4 + $0xd0] sm:$0xff]
  %v1427 = vld [vmem:[%s4 + $0xd8] sm:$0xff]
  %v1428 = vld [vmem:[%s4 + $0xe0] sm:$0xff]
  %v1429 = vld [vmem:[%s4 + $0xe8] sm:$0xff]
  %v1430 = vld [vmem:[%s4 + $0xf0] sm:$0xff]
  %v1431 = vld [vmem:[%s4 + $0xf8] sm:$0xff]
  %v1432 = vld [vmem:[%s4 + $0x100] sm:$0xff]
  %v1433 = vld [vmem:[%s4 + $0x108] sm:$0xff]
  %v1434 = vld [vmem:[%s4 + $0x110] sm:$0xff]
  %v1435 = vld [vmem:[%s4 + $0x118] sm:$0xff]
  %v1436 = vld [vmem:[%s4 + $0x120] sm:$0xff]
  %v1437 = vld [vmem:[%s4 + $0x128] sm:$0xff]
  %v1438 = vld [vmem:[%s4 + $0x130] sm:$0xff]
  %v1439 = vld [vmem:[%s4 + $0x138] sm:$0xff]
  %v1440 = vld [vmem:[%s4 + $0x140] sm:$0xff]
  %v1441 = vld [vmem:[%s4 + $0x148] sm:$0xff]
  %v1442 = vld [vmem:[%s4 + $0x150] sm:$0xff]
  %v1443 = vld [vmem:[%s4 + $0x158] sm:$0xff]
  %v1444 = vld [vmem:[%s4 + $0x160] sm:$0xff]
  %v1445 = vld [vmem:[%s4 + $0x168] sm:$0xff]
  %v1446 = vld [vmem:[%s4 + $0x170] sm:$0xff]
  %v1447 = vld [vmem:[%s4 + $0x178] sm:$0xff]
  %v1448 = vld [vmem:[%s4 + $0x180] sm:$0xff]
  %v1449 = vld [vmem:[%s4 + $0x188] sm:$0xff]
  %v1450 = vld [vmem:[%s4 + $0x190] sm:$0xff]
  %v1451 = vld [vmem:[%s4 + $0x198] sm:$0xff]
  %v1452 = vld [vmem:[%s4 + $0x1a0] sm:$0xff]
  %v1453 = vld [vmem:[%s4 + $0x1a8] sm:$0xff]
  %v1454 = vld [vmem:[%s4 + $0x1b0] sm:$0xff]
  %v1455 = vld [vmem:[%s4 + $0x1b8] sm:$0xff]
  %v1456 = vld [vmem:[%s4 + $0x1c0] sm:$0xff]
  %v1457 = vld [vmem:[%s4 + $0x1c8] sm:$0xff]
  %v1458 = vld [vmem:[%s4 + $0x1d0] sm:$0xff]
  %v1459 = vld [vmem:[%s4 + $0x1d8] sm:$0xff]
  %v1460 = vld [vmem:[%s4 + $0x1e0] sm:$0xff]
  %v1461 = vld [vmem:[%s4 + $0x1e8] sm:$0xff]
  %v1462 = vld [vmem:[%s4 + $0x1f0] sm:$0xff]
  %v1463 = vld [vmem:[%s4 + $0x1f8] sm:$0xff]
  %v1464 = vadd.f32 %v1336, %v1400
  %v1465 = vadd.f32 %v1337, %v1401
  %v1466 = vadd.f32 %v1338, %v1402
  %v1467 = vadd.f32 %v1339, %v1403
  %v1468 = vadd.f32 %v1340, %v1404
  %v1469 = vadd.f32 %v1341, %v1405
  %v1470 = vadd.f32 %v1342, %v1406
  %v1471 = vadd.f32 %v1343, %v1407
  %v1472 = vadd.f32 %v1344, %v1408
  %v1473 = vadd.f32 %v1345, %v1409
  %v1474 = vadd.f32 %v1346, %v1410
  %v1475 = vadd.f32 %v1347, %v1411
  %v1476 = vadd.f32 %v1348, %v1412
  %v1477 = vadd.f32 %v1349, %v1413
  %v1478 = vadd.f32 %v1350, %v1414
  %v1479 = vadd.f32 %v1351, %v1415
  %v1480 = vadd.f32 %v1352, %v1416
  %v1481 = vadd.f32 %v1353, %v1417
  %v1482 = vadd.f32 %v1354, %v1418
  %v1483 = vadd.f32 %v1355, %v1419
  %v1484 = vadd.f32 %v1356, %v1420
  %v1485 = vadd.f32 %v1357, %v1421
  %v1486 = vadd.f32 %v1358, %v1422
  %v1487 = vadd.f32 %v1359, %v1423
  %v1488 = vadd.f32 %v1360, %v1424
  %v1489 = vadd.f32 %v1361, %v1425
  %v1490 = vadd.f32 %v1362, %v1426
  %v1491 = vadd.f32 %v1363, %v1427
  %v1492 = vadd.f32 %v1364, %v1428
  %v1493 = vadd.f32 %v1365, %v1429
  %v1494 = vadd.f32 %v1366, %v1430
  %v1495 = vadd.f32 %v1367, %v1431
  %v1496 = vadd.f32 %v1368, %v1432
  %v1497 = vadd.f32 %v1369, %v1433
  %v1498 = vadd.f32 %v1370, %v1434
  %v1499 = vadd.f32 %v1371, %v1435
  %v1500 = vadd.f32 %v1372, %v1436
  %v1501 = vadd.f32 %v1373, %v1437
  %v1502 = vadd.f32 %v1374, %v1438
  %v1503 = vadd.f32 %v1375, %v1439
  %v1504 = vadd.f32 %v1376, %v1440
  %v1505 = vadd.f32 %v1377, %v1441
  %v1506 = vadd.f32 %v1378, %v1442
  %v1507 = vadd.f32 %v1379, %v1443
  %v1508 = vadd.f32 %v1380, %v1444
  %v1509 = vadd.f32 %v1381, %v1445
  %v1510 = vadd.f32 %v1382, %v1446
  %v1511 = vadd.f32 %v1383, %v1447
  %v1512 = vadd.f32 %v1384, %v1448
  %v1513 = vadd.f32 %v1385, %v1449
  %v1514 = vadd.f32 %v1386, %v1450
  %v1515 = vadd.f32 %v1387, %v1451
  %v1516 = vadd.f32 %v1388, %v1452
  %v1517 = vadd.f32 %v1389, %v1453
  %v1518 = vadd.f32 %v1390, %v1454
  %v1519 = vadd.f32 %v1391, %v1455
  %v1520 = vadd.f32 %v1392, %v1456
  %v1521 = vadd.f32 %v1393, %v1457
  %v1522 = vadd.f32 %v1394, %v1458
  %v1523 = vadd.f32 %v1395, %v1459
  %v1524 = vadd.f32 %v1396, %v1460
  %v1525 = vadd.f32 %v1397, %v1461
  %v1526 = vadd.f32 %v1398, %v1462
  %v1527 = vadd.f32 %v1399, %v1463
  %1528 = vst.msk [vmem:[%s5] sm:$0xff] %vm445, %v1464
  %1529 = vst.msk [vmem:[%s5 + $0x8] sm:$0xff] %vm445, %v1465
  %1530 = vst.msk [vmem:[%s5 + $0x10] sm:$0xff] %vm445, %v1466
  %1531 = vst.msk [vmem:[%s5 + $0x18] sm:$0xff] %vm445, %v1467
  %1532 = vst.msk [vmem:[%s5 + $0x20] sm:$0xff] %vm445, %v1468
  %1533 = vst.msk [vmem:[%s5 + $0x28] sm:$0xff] %vm445, %v1469
  %1534 = vst.msk [vmem:[%s5 + $0x30] sm:$0xff] %vm445, %v1470
  %1535 = vst.msk [vmem:[%s5 + $0x38] sm:$0xff] %vm445, %v1471
  %1536 = vst.msk [vmem:[%s5 + $0x40] sm:$0xff] %vm445, %v1472
  %1537 = vst.msk [vmem:[%s5 + $0x48] sm:$0xff] %vm445, %v1473
  %1538 = vst.msk [vmem:[%s5 + $0x50] sm:$0xff] %vm445, %v1474
  %1539 = vst.msk [vmem:[%s5 + $0x58] sm:$0xff] %vm445, %v1475
  %1540 = vst.msk [vmem:[%s5 + $0x60] sm:$0xff] %vm445, %v1476
  %1541 = vst.msk [vmem:[%s5 + $0x68] sm:$0xff] %vm445, %v1477
  %1542 = vst.msk [vmem:[%s5 + $0x70] sm:$0xff] %vm445, %v1478
  %1543 = vst.msk [vmem:[%s5 + $0x78] sm:$0xff] %vm445, %v1479
  %1544 = vst.msk [vmem:[%s5 + $0x80] sm:$0xff] %vm445, %v1480
  %1545 = vst.msk [vmem:[%s5 + $0x88] sm:$0xff] %vm445, %v1481
  %1546 = vst.msk [vmem:[%s5 + $0x90] sm:$0xff] %vm445, %v1482
  %1547 = vst.msk [vmem:[%s5 + $0x98] sm:$0xff] %vm445, %v1483
  %1548 = vst.msk [vmem:[%s5 + $0xa0] sm:$0xff] %vm445, %v1484
  %1549 = vst.msk [vmem:[%s5 + $0xa8] sm:$0xff] %vm445, %v1485
  %1550 = vst.msk [vmem:[%s5 + $0xb0] sm:$0xff] %vm445, %v1486
  %1551 = vst.msk [vmem:[%s5 + $0xb8] sm:$0xff] %vm445, %v1487
  %1552 = vst.msk [vmem:[%s5 + $0xc0] sm:$0xff] %vm445, %v1488
  %1553 = vst.msk [vmem:[%s5 + $0xc8] sm:$0xff] %vm445, %v1489
  %1554 = vst.msk [vmem:[%s5 + $0xd0] sm:$0xff] %vm445, %v1490
  %1555 = vst.msk [vmem:[%s5 + $0xd8] sm:$0xff] %vm445, %v1491
  %1556 = vst.msk [vmem:[%s5 + $0xe0] sm:$0xff] %vm445, %v1492
  %1557 = vst.msk [vmem:[%s5 + $0xe8] sm:$0xff] %vm445, %v1493
  %1558 = vst.msk [vmem:[%s5 + $0xf0] sm:$0xff] %vm445, %v1494
  %1559 = vst.msk [vmem:[%s5 + $0xf8] sm:$0xff] %vm445, %v1495
  %1560 = vst.msk [vmem:[%s5 + $0x100] sm:$0xff] %vm445, %v1496
  %1561 = vst.msk [vmem:[%s5 + $0x108] sm:$0xff] %vm445, %v1497
  %1562 = vst.msk [vmem:[%s5 + $0x110] sm:$0xff] %vm445, %v1498
  %1563 = vst.msk [vmem:[%s5 + $0x118] sm:$0xff] %vm445, %v1499
  %1564 = vst.msk [vmem:[%s5 + $0x120] sm:$0xff] %vm445, %v1500
  %1565 = vst.msk [vmem:[%s5 + $0x128] sm:$0xff] %vm445, %v1501
  %1566 = vst.msk [vmem:[%s5 + $0x130] sm:$0xff] %vm445, %v1502
  %1567 = vst.msk [vmem:[%s5 + $0x138] sm:$0xff] %vm445, %v1503
  %1568 = vst.msk [vmem:[%s5 + $0x140] sm:$0xff] %vm445, %v1504
  %1569 = vst.msk [vmem:[%s5 + $0x148] sm:$0xff] %vm445, %v1505
  %1570 = vst.msk [vmem:[%s5 + $0x150] sm:$0xff] %vm445, %v1506
  %1571 = vst.msk [vmem:[%s5 + $0x158] sm:$0xff] %vm445, %v1507
  %1572 = vst.msk [vmem:[%s5 + $0x160] sm:$0xff] %vm445, %v1508
  %1573 = vst.msk [vmem:[%s5 + $0x168] sm:$0xff] %vm445, %v1509
  %1574 = vst.msk [vmem:[%s5 + $0x170] sm:$0xff] %vm445, %v1510
  %1575 = vst.msk [vmem:[%s5 + $0x178] sm:$0xff] %vm445, %v1511
  %1576 = vst.msk [vmem:[%s5 + $0x180] sm:$0xff] %vm445, %v1512
  %1577 = vst.msk [vmem:[%s5 + $0x188] sm:$0xff] %vm445, %v1513
  %1578 = vst.msk [vmem:[%s5 + $0x190] sm:$0xff] %vm445, %v1514
  %1579 = vst.msk [vmem:[%s5 + $0x198] sm:$0xff] %vm445, %v1515
  %1580 = vst.msk [vmem:[%s5 + $0x1a0] sm:$0xff] %vm445, %v1516
  %1581 = vst.msk [vmem:[%s5 + $0x1a8] sm:$0xff] %vm445, %v1517
  %1582 = vst.msk [vmem:[%s5 + $0x1b0] sm:$0xff] %vm445, %v1518
  %1583 = vst.msk [vmem:[%s5 + $0x1b8] sm:$0xff] %vm445, %v1519
  %1584 = vst.msk [vmem:[%s5 + $0x1c0] sm:$0xff] %vm445, %v1520
  %1585 = vst.msk [vmem:[%s5 + $0x1c8] sm:$0xff] %vm445, %v1521
  %1586 = vst.msk [vmem:[%s5 + $0x1d0] sm:$0xff] %vm445, %v1522
  %1587 = vst.msk [vmem:[%s5 + $0x1d8] sm:$0xff] %vm445, %v1523
  %1588 = vst.msk [vmem:[%s5 + $0x1e0] sm:$0xff] %vm445, %v1524
  %1589 = vst.msk [vmem:[%s5 + $0x1e8] sm:$0xff] %vm445, %v1525
  %1590 = vst.msk [vmem:[%s5 + $0x1f0] sm:$0xff] %vm445, %v1526
  %1591 = vst.msk [vmem:[%s5 + $0x1f8] sm:$0xff] %vm445, %v1527
  // Predicated region
  $region22: #{_lambda_.17} parent=0 // pred_check
    _
  $region23: #{_lambda_.17} parent=0 // pred_check_branch
    %1593 = sbr.rel (0) target = $region25
  $region24: #{_lambda_.17} parent=0 // pred_region
    _
  $region25: #{_lambda_.17} parent=0 // pred_fallthru
    _
  // Predicated region
  $region26: #{_lambda_.17} parent=0 // pred_check
    _
  $region27: #{_lambda_.17} parent=0 // pred_check_branch
    %1595 = sbr.rel (0) target = $region29
  $region28: #{_lambda_.17} parent=0 // pred_region
    _
  $region29: #{_lambda_.17} parent=0 // pred_fallthru
    _

</llo_original>
